<compile_context>
chip_gen: v5e
topology: v5e:2x2
jax: 0.10.0
libtpu: 0.0.40
codegen_flags: <defaults>
</compile_context>

<pallas_src>
import numpy as np
import jax
import jax.numpy as jnp
from jax.experimental import pallas as pl
from jax.experimental.pallas import tpu as pltpu


def _round_up(x, m):
    return (x + m - 1) // m * m


# ----------------------------- Pallas kernels ---------------------------------
def _gemm_bias_lrelu_kernel(cols_ref, w_ref, shift_ref, o_ref):
    # (tm, r*K) @ (r*K, r*Cout) on the MXU, f32 accumulation; fused bias + LeakyReLU.
    y = jnp.dot(cols_ref[...], w_ref[...], preferred_element_type=jnp.float32)
    y = y + shift_ref[...]                    # folded BN shift
    y = jnp.maximum(y, 0.2 * y)               # LeakyReLU(0.2)
    o_ref[...] = y.astype(o_ref.dtype)


def _tail_kernel(cols4_ref, w4_ref, b4_ref, g5_ref, w5_ref, b5_ref,
                 g6_ref, w6_ref, b6_ref, o_ref):
    """Fused layers 4-6: activations stay in VMEM/registers, never touch HBM."""
    f32 = jnp.float32

    # ---- layer 4 (downBlock 4x4 s2): plain GEMM on pre-extracted patches ----
    h4 = jnp.dot(cols4_ref[...], w4_ref[...], preferred_element_type=f32)
    h4 = h4 + b4_ref[...]
    h4 = jnp.maximum(h4, 0.2 * h4).astype(jnp.bfloat16)        # (M4, C4)

    # ---- layer 5 (downBlock 4x4 s2): conv as sum over taps of
    #      (0/1 gather matrix @ activations) @ per-tap weight  -- exact gather on MXU ----
    acc5 = jnp.zeros((g5_ref.shape[1], w5_ref.shape[2]), f32)
    for t in range(g5_ref.shape[0]):
        gathered = jnp.dot(g5_ref[t], h4, preferred_element_type=f32)
        acc5 = acc5 + jnp.dot(gathered.astype(jnp.bfloat16), w5_ref[t],
                              preferred_element_type=f32)
    h5 = acc5 + b5_ref[...]
    h5 = jnp.maximum(h5, 0.2 * h5).astype(jnp.bfloat16)        # (M5, C5)

    # ---- layer 6 (Block3x3_leakRelu 3x3 s1): same gather-matmul trick ----
    acc6 = jnp.zeros((g6_ref.shape[1], w6_ref.shape[2]), f32)
    for t in range(g6_ref.shape[0]):
        gathered = jnp.dot(g6_ref[t], h5, preferred_element_type=f32)
        acc6 = acc6 + jnp.dot(gathered.astype(jnp.bfloat16), w6_ref[t],
                              preferred_element_type=f32)
    y = acc6 + b6_ref[...]
    o_ref[...] = jnp.maximum(y, 0.2 * y)                       # (M6, C6) f32


# ------------------------------ JAX glue --------------------------------------
def _im2col(x_nhwc, kh, kw, stride, pad):
    N, H, W, C = x_nhwc.shape
    xp = jnp.pad(x_nhwc, ((0, 0), (pad, pad), (pad, pad), (0, 0)))
    OH = (H + 2 * pad - kh) // stride + 1
    OW = (W + 2 * pad - kw) // stride + 1
    patches = []
    for i in range(kh):
        for j in range(kw):
            patches.append(
                xp[:, i:i + (OH - 1) * stride + 1:stride,
                      j:j + (OW - 1) * stride + 1:stride, :])
    cols = jnp.concatenate(patches, axis=-1)            # (N, OH, OW, kh*kw*C)
    return cols.reshape(N * OH * OW, kh * kw * C), OH, OW


def _w_mat(w_oihw, scale):
    """(Cout, Cin, kh, kw) -> (kh*kw*Cin, Cout) with BN scale folded per out-channel."""
    Cout = w_oihw.shape[0]
    return (jnp.transpose(w_oihw, (2, 3, 1, 0)).reshape(-1, Cout)
            * scale.reshape(1, Cout))


def _w_taps(w_oihw, scale):
    """(Cout, Cin, kh, kw) -> (kh*kw, Cin, Cout) per-tap matrices, BN scale folded."""
    Cout, Cin, kh, kw = w_oihw.shape
    w = jnp.transpose(w_oihw, (2, 3, 1, 0)) * scale.reshape(1, 1, 1, Cout)
    return w.reshape(kh * kw, Cin, Cout).astype(jnp.bfloat16)


def _fused_conv_gemm(cols, w_scaled, shift):
    """LeakyReLU(cols @ w_scaled + shift) with lane-dense packed output.
    cols: (M, K) bf16, w_scaled: (K, Cout) f32, shift: (1, Cout) f32 -> (M, Cout) bf16."""
    M, K = cols.shape
    Cout = w_scaled.shape[1]

    # Lane-dense packing: r consecutive output rows share one 128-lane output row.
    r = max(1, 128 // Cout)
    md_min = -(-M // r)
    # Big tiles; aim for a grid of exactly 2 so v7x can shard across both TensorCores.
    tmd = min(1024, max(8, _round_up(-(-md_min // 2), 8)))
    grid_m = -(-md_min // tmd)
    md = grid_m * tmd
    mp = md * r
    if mp != M:
        cols = jnp.pad(cols, ((0, mp - M), (0, 0)))
    cols_d = cols.reshape(md, r * K)

    # Block-diagonal weight: (M/r, r*K) @ kron(I_r, W)  ==  row-packed (M, K) @ W.
    w_bd = jnp.kron(jnp.eye(r, dtype=w_scaled.dtype), w_scaled).astype(jnp.bfloat16)
    shift_d = jnp.tile(shift.astype(jnp.float32), (1, r))

    out_d = pl.pallas_call(
        _gemm_bias_lrelu_kernel,
        out_shape=jax.ShapeDtypeStruct((md, r * Cout), jnp.bfloat16),
        grid_spec=pltpu.PrefetchScalarGridSpec(
            num_scalar_prefetch=0,
            grid=(grid_m,),
            in_specs=[
                pl.BlockSpec((tmd, r * K), lambda m: (m, 0)),      # packed patch rows
                pl.BlockSpec((r * K, r * Cout), lambda m: (0, 0)), # block-diag weight
                pl.BlockSpec((1, r * Cout), lambda m: (0, 0)),     # folded BN shift
            ],
            out_specs=pl.BlockSpec((tmd, r * Cout), lambda m: (m, 0)),
        ),
        compiler_params=pltpu.CompilerParams(
            dimension_semantics=("parallel",)),
    )(cols_d, w_bd, shift_d)

    out = out_d.reshape(mp, Cout)       # row-major identical to the unpacked layout
    return out if mp == M else out[:M]


def _conv_bn_lrelu(x_nhwc, w_oihw, scale, shift, stride, pad):
    Cout, _, kh, kw = w_oihw.shape
    cols, OH, OW = _im2col(x_nhwc, kh, kw, stride, pad)
    out = _fused_conv_gemm(cols.astype(jnp.bfloat16),
                           _w_mat(w_oihw, scale),
                           shift.reshape(1, Cout))
    N = x_nhwc.shape[0]
    return out.reshape(N, OH, OW, Cout)


def _gather_mats(N, H, W, kh, kw, stride, pad):
    """0/1 matrices G[t]: (G[t] @ x_flat) is the stride-s shifted spatial slice for conv
    tap t; zero padding is folded in (out-of-bounds rows are all-zero).  Block-diagonal
    over the batch.  Shape: (kh*kw, N*OH*OW, N*H*W)."""
    OH = (H + 2 * pad - kh) // stride + 1
    OW = (W + 2 * pad - kw) // stride + 1
    pin, pout = H * W, OH * OW
    g = np.zeros((kh * kw, N * pout, N * pin), np.float32)
    for i in range(kh):
        for j in range(kw):
            t = i * kw + j
            for oh in range(OH):
                ih = oh * stride + i - pad
                if ih < 0 or ih >= H:
                    continue
                for ow in range(OW):
                    iw = ow * stride + j - pad
                    if iw < 0 or iw >= W:
                        continue
                    for n in range(N):
                        g[t, n * pout + oh * OW + ow, n * pin + ih * W + iw] = 1.0
    return jnp.asarray(g, jnp.bfloat16), OH, OW


def _tail_fused(h3_nhwc, p4, p5, p6):
    """Layers 4-6 (conv 4ndf->8ndf, downBlock 8ndf->16ndf, Block3x3 16ndf->8ndf) fused
    into a single pallas_call; intermediates stay in VMEM."""
    N = h3_nhwc.shape[0]
    w4, s4, b4, st4, pd4 = p4
    w5, s5, b5, st5, pd5 = p5
    w6, s6, b6, st6, pd6 = p6
    C4, C5, C6 = w4.shape[0], w5.shape[0], w6.shape[0]

    # Layer-4 patches come from HBM anyway -> im2col outside, GEMM inside.
    cols4, OH4, OW4 = _im2col(h3_nhwc, w4.shape[2], w4.shape[3], st4, pd4)
    w4m = _w_mat(w4, s4).astype(jnp.bfloat16)

    g5, OH5, OW5 = _gather_mats(N, OH4, OW4, w5.shape[2], w5.shape[3], st5, pd5)
    w5t = _w_taps(w5, s5)
    g6, OH6, OW6 = _gather_mats(N, OH5, OW5, w6.shape[2], w6.shape[3], st6, pd6)
    w6t = _w_taps(w6, s6)

    M6 = N * OH6 * OW6
    full = lambda shp: pl.BlockSpec(shp, lambda *_: (0,) * len(shp))
    out = pl.pallas_call(
        _tail_kernel,
        out_shape=jax.ShapeDtypeStruct((M6, C6), jnp.float32),
        grid_spec=pltpu.PrefetchScalarGridSpec(
            num_scalar_prefetch=0,
            grid=(1,),
            in_specs=[
                full(cols4.shape), full(w4m.shape), full((1, C4)),
                full(g5.shape), full(w5t.shape), full((1, C5)),
                full(g6.shape), full(w6t.shape), full((1, C6)),
            ],
            out_specs=full((M6, C6)),
        ),
        compiler_params=pltpu.CompilerParams(
            dimension_semantics=("arbitrary",)),
    )(cols4.astype(jnp.bfloat16), w4m, b4.reshape(1, C4).astype(jnp.float32),
      g5, w5t, b5.reshape(1, C5).astype(jnp.float32),
      g6, w6t, b6.reshape(1, C6).astype(jnp.float32))
    return out.reshape(N, OH6, OW6, C6)


# ------------------------- parameter initialization ---------------------------
def init_d_net128_params(key, ndf=8):
    # (cin, cout, kernel, stride, pad, has_bn) — mirrors the PyTorch module __init__.
    specs = [
        (3,        ndf,      4, 2, 1, False),  # encode_image_by_16times conv1 (no BN)
        (ndf,      ndf * 2,  4, 2, 1, True),   # conv2 + BN
        (ndf * 2,  ndf * 4,  4, 2, 1, True),   # conv3 + BN
        (ndf * 4,  ndf * 8,  4, 2, 1, True),   # conv4 + BN
        (ndf * 8,  ndf * 16, 4, 2, 1, True),   # img_code_s32 (downBlock)
        (ndf * 16, ndf * 8,  3, 1, 1, True),   # img_code_s32_1 (Block3x3_leakRelu)
    ]
    eps = 1e-5
    keys = jax.random.split(key, len(specs) * 3)
    params = []
    for idx, (cin, cout, k, s, p, has_bn) in enumerate(specs):
        kw_, kg, kb = keys[3 * idx], keys[3 * idx + 1], keys[3 * idx + 2]
        w = 0.05 * jax.random.normal(kw_, (cout, cin, k, k), jnp.float32)
        if has_bn:
            # eval-mode BatchNorm (running_mean=0, running_var=1 PyTorch defaults);
            # general affine-fold formula so real checkpoints drop in unchanged.
            gamma = 1.0 + 0.1 * jax.random.normal(kg, (cout,), jnp.float32)
            beta = 0.1 * jax.random.normal(kb, (cout,), jnp.float32)
            run_mean = jnp.zeros((cout,), jnp.float32)
            run_var = jnp.ones((cout,), jnp.float32)
            scale = gamma / jnp.sqrt(run_var + eps)
            shift = beta - run_mean * scale
        else:
            scale = jnp.ones((cout,), jnp.float32)
            shift = jnp.zeros((cout,), jnp.float32)
        params.append((w, scale, shift, s, p))
    return params


# ------------------------------ forward pass -----------------------------------
def d_net128_forward(img_nchw, params):
    """Returns (x_code4, seg_code) exactly like D_NET128.forward(img)."""
    x = jnp.transpose(img_nchw, (0, 2, 3, 1)).astype(jnp.bfloat16)   # NCHW -> NHWC
    for (w, scale, shift, stride, pad) in params[:3]:                # layers 1-3
        x = _conv_bn_lrelu(x, w, scale, shift, stride, pad)
    x = _tail_fused(x, params[3], params[4], params[5])              # layers 4-6 fused
    x_code4 = jnp.transpose(x, (0, 3, 1, 2)).astype(jnp.float32)     # back to NCHW
    # TODO(synk): SEG branch (self.SEG_NET / SEG_DNET) disabled because no SegNet module
    # is provided (cfg.SEGD_FLAG False path) — forward returns seg_code=None.
    seg_code = None
    return x_code4, seg_code


if __name__ == "__main__":
    key = jax.random.PRNGKey(0)
    k_img, k_params = jax.random.split(key)

    ndf = 8                                   # small DF_DIM for a quick run
    batch = 2
    img = jax.random.normal(k_img, (batch, 3, 128, 128), jnp.float32)  # NCHW like PyTorch

    params = init_d_net128_params(k_params, ndf=ndf)

    fwd = jax.jit(lambda im: d_net128_forward(im, params))
    x_code4, seg_code = fwd(img)
    x_code4 = jax.block_until_ready(x_code4)

    assert x_code4.shape == (batch, ndf * 8, 4, 4), x_code4.shape
    assert seg_code is None
    print("KERNEL_OK")
</pallas_src>

<mosaic_0001>
module attributes {stable_mosaic.version = 11 : i64} {
  func.func @_gemm_bias_lrelu_kernel(%arg0: i32, %arg1: memref<256x768xbf16, #tpu.memory_space<vmem>>, %arg2: memref<768x128xbf16, #tpu.memory_space<vmem>>, %arg3: memref<1x128xf32, #tpu.memory_space<vmem>>, %arg4: memref<256x128xbf16, #tpu.memory_space<vmem>>) attributes {dimension_semantics = [#tpu.dimension_semantics<parallel>], iteration_bounds = array<i64: 2>, scalar_prefetch = 0 : i64, scratch_operands = 0 : i64, tpu.core_type = #tpu.core_type<tc>, window_params = [{transform_indices = @transform_0, window_bounds = array<i64: 256, 768>}, {pipeline_mode = #tpu.pipeline_mode<synchronous>, transform_indices = @transform_1, window_bounds = array<i64: 768, 128>}, {pipeline_mode = #tpu.pipeline_mode<synchronous>, transform_indices = @transform_2, window_bounds = array<i64: 1, 128>}, {transform_indices = @transform_3, window_bounds = array<i64: 256, 128>}]} {
    %c0 = arith.constant 0 : index
    %c0_0 = arith.constant 0 : index
    %0 = vector.load %arg1[%c0, %c0_0] : memref<256x768xbf16, #tpu.memory_space<vmem>>, vector<256x768xbf16>
    %c0_1 = arith.constant 0 : index
    %c0_2 = arith.constant 0 : index
    %1 = vector.load %arg2[%c0_1, %c0_2] : memref<768x128xbf16, #tpu.memory_space<vmem>>, vector<768x128xbf16>
    %cst = arith.constant dense<0.000000e+00> : vector<256x128xf32>
    %2 = tpu.matmul %0, %1, %cst {dimension_numbers = #tpu.dot_dimension_numbers<[1], [0], [0], [1], [0, 0, 1, 1], [], []>} : vector<256x768xbf16>, vector<768x128xbf16>, vector<256x128xf32> -> vector<256x128xf32>
    %c0_3 = arith.constant 0 : index
    %c0_4 = arith.constant 0 : index
    %3 = vector.load %arg3[%c0_3, %c0_4] : memref<1x128xf32, #tpu.memory_space<vmem>>, vector<1x128xf32>
    %4 = vector.broadcast %3 : vector<1x128xf32> to vector<256x128xf32>
    %5 = arith.addf %2, %4 : vector<256x128xf32>
    %cst_5 = arith.constant 2.000000e-01 : f32
    %6 = vector.broadcast %cst_5 : f32 to vector<256x128xf32>
    %7 = arith.mulf %6, %5 : vector<256x128xf32>
    %8 = arith.maximumf %5, %7 : vector<256x128xf32>
    %9 = arith.truncf %8 : vector<256x128xf32> to vector<256x128xbf16>
    %c0_6 = arith.constant 0 : index
    %c0_7 = arith.constant 0 : index
    %10 = vector.load %arg4[%c0_6, %c0_7] : memref<256x128xbf16, #tpu.memory_space<vmem>>, vector<256x128xbf16>
    tpu.vector_store %arg4[%c0_6, %c0_7], %9 {strides = array<i32>} : memref<256x128xbf16, #tpu.memory_space<vmem>>, vector<256x128xbf16>,
    return
  }
  func.func @transform_0(%arg0: i32) -> (i32, i32) {
    %c0_i32 = arith.constant 0 : i32
    %c0_i32_0 = arith.constant 0 : i32
    return %arg0, %c0_i32 : i32, i32
  }
  func.func @transform_1(%arg0: i32) -> (i32, i32) {
    %c0_i32 = arith.constant 0 : i32
    %c0_i32_0 = arith.constant 0 : i32
    %c0_i32_1 = arith.constant 0 : i32
    return %c0_i32, %c0_i32_0 : i32, i32
  }
  func.func @transform_2(%arg0: i32) -> (i32, i32) {
    %c0_i32 = arith.constant 0 : i32
    %c0_i32_0 = arith.constant 0 : i32
    %c0_i32_1 = arith.constant 0 : i32
    return %c0_i32, %c0_i32_0 : i32, i32
  }
  func.func @transform_3(%arg0: i32) -> (i32, i32) {
    %c0_i32 = arith.constant 0 : i32
    %c0_i32_0 = arith.constant 0 : i32
    return %arg0, %c0_i32 : i32, i32
  }
}

module attributes {stable_mosaic.version = 11 : i64} {
  func.func @_gemm_bias_lrelu_kernel(%arg0: i32, %arg1: memref<128x1024xbf16, #tpu.memory_space<vmem>>, %arg2: memref<1024x128xbf16, #tpu.memory_space<vmem>>, %arg3: memref<1x128xf32, #tpu.memory_space<vmem>>, %arg4: memref<128x128xbf16, #tpu.memory_space<vmem>>) attributes {dimension_semantics = [#tpu.dimension_semantics<parallel>], iteration_bounds = array<i64: 2>, scalar_prefetch = 0 : i64, scratch_operands = 0 : i64, tpu.core_type = #tpu.core_type<tc>, window_params = [{transform_indices = @transform_0, window_bounds = array<i64: 128, 1024>}, {pipeline_mode = #tpu.pipeline_mode<synchronous>, transform_indices = @transform_1, window_bounds = array<i64: 1024, 128>}, {pipeline_mode = #tpu.pipeline_mode<synchronous>, transform_indices = @transform_2, window_bounds = array<i64: 1, 128>}, {transform_indices = @transform_3, window_bounds = array<i64: 128, 128>}]} {
    %c0 = arith.constant 0 : index
    %c0_0 = arith.constant 0 : index
    %0 = vector.load %arg1[%c0, %c0_0] : memref<128x1024xbf16, #tpu.memory_space<vmem>>, vector<128x1024xbf16>
    %c0_1 = arith.constant 0 : index
    %c0_2 = arith.constant 0 : index
    %1 = vector.load %arg2[%c0_1, %c0_2] : memref<1024x128xbf16, #tpu.memory_space<vmem>>, vector<1024x128xbf16>
    %cst = arith.constant dense<0.000000e+00> : vector<128x128xf32>
    %2 = tpu.matmul %0, %1, %cst {dimension_numbers = #tpu.dot_dimension_numbers<[1], [0], [0], [1], [0, 0, 1, 1], [], []>} : vector<128x1024xbf16>, vector<1024x128xbf16>, vector<128x128xf32> -> vector<128x128xf32>
    %c0_3 = arith.constant 0 : index
    %c0_4 = arith.constant 0 : index
    %3 = vector.load %arg3[%c0_3, %c0_4] : memref<1x128xf32, #tpu.memory_space<vmem>>, vector<1x128xf32>
    %4 = vector.broadcast %3 : vector<1x128xf32> to vector<128x128xf32>
    %5 = arith.addf %2, %4 : vector<128x128xf32>
    %cst_5 = arith.constant 2.000000e-01 : f32
    %6 = vector.broadcast %cst_5 : f32 to vector<128x128xf32>
    %7 = arith.mulf %6, %5 : vector<128x128xf32>
    %8 = arith.maximumf %5, %7 : vector<128x128xf32>
    %9 = arith.truncf %8 : vector<128x128xf32> to vector<128x128xbf16>
    %c0_6 = arith.constant 0 : index
    %c0_7 = arith.constant 0 : index
    %10 = vector.load %arg4[%c0_6, %c0_7] : memref<128x128xbf16, #tpu.memory_space<vmem>>, vector<128x128xbf16>
    tpu.vector_store %arg4[%c0_6, %c0_7], %9 {strides = array<i32>} : memref<128x128xbf16, #tpu.memory_space<vmem>>, vector<128x128xbf16>,
    return
  }
  func.func @transform_0(%arg0: i32) -> (i32, i32) {
    %c0_i32 = arith.constant 0 : i32
    %c0_i32_0 = arith.constant 0 : i32
    return %arg0, %c0_i32 : i32, i32
  }
  func.func @transform_1(%arg0: i32) -> (i32, i32) {
    %c0_i32 = arith.constant 0 : i32
    %c0_i32_0 = arith.constant 0 : i32
    %c0_i32_1 = arith.constant 0 : i32
    return %c0_i32, %c0_i32_0 : i32, i32
  }
  func.func @transform_2(%arg0: i32) -> (i32, i32) {
    %c0_i32 = arith.constant 0 : i32
    %c0_i32_0 = arith.constant 0 : i32
    %c0_i32_1 = arith.constant 0 : i32
    return %c0_i32, %c0_i32_0 : i32, i32
  }
  func.func @transform_3(%arg0: i32) -> (i32, i32) {
    %c0_i32 = arith.constant 0 : i32
    %c0_i32_0 = arith.constant 0 : i32
    return %arg0, %c0_i32 : i32, i32
  }
}

module attributes {stable_mosaic.version = 11 : i64} {
  func.func @_gemm_bias_lrelu_kernel(%arg0: i32, %arg1: memref<64x1024xbf16, #tpu.memory_space<vmem>>, %arg2: memref<1024x128xbf16, #tpu.memory_space<vmem>>, %arg3: memref<1x128xf32, #tpu.memory_space<vmem>>, %arg4: memref<64x128xbf16, #tpu.memory_space<vmem>>) attributes {dimension_semantics = [#tpu.dimension_semantics<parallel>], iteration_bounds = array<i64: 2>, scalar_prefetch = 0 : i64, scratch_operands = 0 : i64, tpu.core_type = #tpu.core_type<tc>, window_params = [{transform_indices = @transform_0, window_bounds = array<i64: 64, 1024>}, {pipeline_mode = #tpu.pipeline_mode<synchronous>, transform_indices = @transform_1, window_bounds = array<i64: 1024, 128>}, {pipeline_mode = #tpu.pipeline_mode<synchronous>, transform_indices = @transform_2, window_bounds = array<i64: 1, 128>}, {transform_indices = @transform_3, window_bounds = array<i64: 64, 128>}]} {
    %c0 = arith.constant 0 : index
    %c0_0 = arith.constant 0 : index
    %0 = vector.load %arg1[%c0, %c0_0] : memref<64x1024xbf16, #tpu.memory_space<vmem>>, vector<64x1024xbf16>
    %c0_1 = arith.constant 0 : index
    %c0_2 = arith.constant 0 : index
    %1 = vector.load %arg2[%c0_1, %c0_2] : memref<1024x128xbf16, #tpu.memory_space<vmem>>, vector<1024x128xbf16>
    %cst = arith.constant dense<0.000000e+00> : vector<64x128xf32>
    %2 = tpu.matmul %0, %1, %cst {dimension_numbers = #tpu.dot_dimension_numbers<[1], [0], [0], [1], [0, 0, 1, 1], [], []>} : vector<64x1024xbf16>, vector<1024x128xbf16>, vector<64x128xf32> -> vector<64x128xf32>
    %c0_3 = arith.constant 0 : index
    %c0_4 = arith.constant 0 : index
    %3 = vector.load %arg3[%c0_3, %c0_4] : memref<1x128xf32, #tpu.memory_space<vmem>>, vector<1x128xf32>
    %4 = vector.broadcast %3 : vector<1x128xf32> to vector<64x128xf32>
    %5 = arith.addf %2, %4 : vector<64x128xf32>
    %cst_5 = arith.constant 2.000000e-01 : f32
    %6 = vector.broadcast %cst_5 : f32 to vector<64x128xf32>
    %7 = arith.mulf %6, %5 : vector<64x128xf32>
    %8 = arith.maximumf %5, %7 : vector<64x128xf32>
    %9 = arith.truncf %8 : vector<64x128xf32> to vector<64x128xbf16>
    %c0_6 = arith.constant 0 : index
    %c0_7 = arith.constant 0 : index
    %10 = vector.load %arg4[%c0_6, %c0_7] : memref<64x128xbf16, #tpu.memory_space<vmem>>, vector<64x128xbf16>
    tpu.vector_store %arg4[%c0_6, %c0_7], %9 {strides = array<i32>} : memref<64x128xbf16, #tpu.memory_space<vmem>>, vector<64x128xbf16>,
    return
  }
  func.func @transform_0(%arg0: i32) -> (i32, i32) {
    %c0_i32 = arith.constant 0 : i32
    %c0_i32_0 = arith.constant 0 : i32
    return %arg0, %c0_i32 : i32, i32
  }
  func.func @transform_1(%arg0: i32) -> (i32, i32) {
    %c0_i32 = arith.constant 0 : i32
    %c0_i32_0 = arith.constant 0 : i32
    %c0_i32_1 = arith.constant 0 : i32
    return %c0_i32, %c0_i32_0 : i32, i32
  }
  func.func @transform_2(%arg0: i32) -> (i32, i32) {
    %c0_i32 = arith.constant 0 : i32
    %c0_i32_0 = arith.constant 0 : i32
    %c0_i32_1 = arith.constant 0 : i32
    return %c0_i32, %c0_i32_0 : i32, i32
  }
  func.func @transform_3(%arg0: i32) -> (i32, i32) {
    %c0_i32 = arith.constant 0 : i32
    %c0_i32_0 = arith.constant 0 : i32
    return %arg0, %c0_i32 : i32, i32
  }
}

module attributes {stable_mosaic.version = 11 : i64} {
  func.func @_tail_kernel(%arg0: i32, %arg1: memref<128x512xbf16, #tpu.memory_space<vmem>>, %arg2: memref<512x64xbf16, #tpu.memory_space<vmem>>, %arg3: memref<1x64xf32, #tpu.memory_space<vmem>>, %arg4: memref<16x32x128xbf16, #tpu.memory_space<vmem>>, %arg5: memref<16x64x128xbf16, #tpu.memory_space<vmem>>, %arg6: memref<1x128xf32, #tpu.memory_space<vmem>>, %arg7: memref<9x32x32xbf16, #tpu.memory_space<vmem>>, %arg8: memref<9x128x64xbf16, #tpu.memory_space<vmem>>, %arg9: memref<1x64xf32, #tpu.memory_space<vmem>>, %arg10: memref<32x64xf32, #tpu.memory_space<vmem>>) attributes {dimension_semantics = [#tpu.dimension_semantics<arbitrary>], iteration_bounds = array<i64: 1>, scalar_prefetch = 0 : i64, scratch_operands = 0 : i64, tpu.core_type = #tpu.core_type<tc>, window_params = [{pipeline_mode = #tpu.pipeline_mode<synchronous>, transform_indices = @transform_0, window_bounds = array<i64: 128, 512>}, {pipeline_mode = #tpu.pipeline_mode<synchronous>, transform_indices = @transform_1, window_bounds = array<i64: 512, 64>}, {pipeline_mode = #tpu.pipeline_mode<synchronous>, transform_indices = @transform_2, window_bounds = array<i64: 1, 64>}, {pipeline_mode = #tpu.pipeline_mode<synchronous>, transform_indices = @transform_3, window_bounds = array<i64: 16, 32, 128>}, {pipeline_mode = #tpu.pipeline_mode<synchronous>, transform_indices = @transform_4, window_bounds = array<i64: 16, 64, 128>}, {pipeline_mode = #tpu.pipeline_mode<synchronous>, transform_indices = @transform_5, window_bounds = array<i64: 1, 128>}, {pipeline_mode = #tpu.pipeline_mode<synchronous>, transform_indices = @transform_6, window_bounds = array<i64: 9, 32, 32>}, {pipeline_mode = #tpu.pipeline_mode<synchronous>, transform_indices = @transform_7, window_bounds = array<i64: 9, 128, 64>}, {pipeline_mode = #tpu.pipeline_mode<synchronous>, transform_indices = @transform_8, window_bounds = array<i64: 1, 64>}, {pipeline_mode = #tpu.pipeline_mode<synchronous>, transform_indices = @transform_9, window_bounds = array<i64: 32, 64>}]} {
    %c0 = arith.constant 0 : index
    %c0_0 = arith.constant 0 : index
    %0 = vector.load %arg1[%c0, %c0_0] : memref<128x512xbf16, #tpu.memory_space<vmem>>, vector<128x512xbf16>
    %c0_1 = arith.constant 0 : index
    %c0_2 = arith.constant 0 : index
    %1 = vector.load %arg2[%c0_1, %c0_2] : memref<512x64xbf16, #tpu.memory_space<vmem>>, vector<512x64xbf16>
    %cst = arith.constant dense<0.000000e+00> : vector<128x64xf32>
    %2 = tpu.matmul %0, %1, %cst {dimension_numbers = #tpu.dot_dimension_numbers<[1], [0], [0], [1], [0, 0, 1, 1], [], []>} : vector<128x512xbf16>, vector<512x64xbf16>, vector<128x64xf32> -> vector<128x64xf32>
    %c0_3 = arith.constant 0 : index
    %c0_4 = arith.constant 0 : index
    %3 = vector.load %arg3[%c0_3, %c0_4] : memref<1x64xf32, #tpu.memory_space<vmem>>, vector<1x64xf32>
    %4 = vector.broadcast %3 : vector<1x64xf32> to vector<128x64xf32>
    %5 = arith.addf %2, %4 : vector<128x64xf32>
    %cst_5 = arith.constant 2.000000e-01 : f32
    %6 = vector.broadcast %cst_5 : f32 to vector<128x64xf32>
    %7 = arith.mulf %6, %5 : vector<128x64xf32>
    %8 = arith.maximumf %5, %7 : vector<128x64xf32>
    %9 = arith.truncf %8 : vector<128x64xf32> to vector<128x64xbf16>
    %cst_6 = arith.constant 0.000000e+00 : f32
    %10 = vector.broadcast %cst_6 : f32 to vector<32x128xf32>
    %c0_7 = arith.constant 0 : index
    %c0_8 = arith.constant 0 : index
    %c0_9 = arith.constant 0 : index
    %11 = vector.load %arg4[%c0_7, %c0_8, %c0_9] : memref<16x32x128xbf16, #tpu.memory_space<vmem>>, vector<1x32x128xbf16>
    %12 = vector.shape_cast %11 : vector<1x32x128xbf16> to vector<32x128xbf16>
    %cst_10 = arith.constant dense<0.000000e+00> : vector<32x64xf32>
    %13 = tpu.matmul %12, %9, %cst_10 {dimension_numbers = #tpu.dot_dimension_numbers<[1], [0], [0], [1], [0, 0, 1, 1], [], []>} : vector<32x128xbf16>, vector<128x64xbf16>, vector<32x64xf32> -> vector<32x64xf32>
    %14 = arith.truncf %13 : vector<32x64xf32> to vector<32x64xbf16>
    %c0_11 = arith.constant 0 : index
    %c0_12 = arith.constant 0 : index
    %c0_13 = arith.constant 0 : index
    %15 = vector.load %arg5[%c0_11, %c0_12, %c0_13] : memref<16x64x128xbf16, #tpu.memory_space<vmem>>, vector<1x64x128xbf16>
    %16 = vector.shape_cast %15 : vector<1x64x128xbf16> to vector<64x128xbf16>
    %cst_14 = arith.constant dense<0.000000e+00> : vector<32x128xf32>
    %17 = tpu.matmul %14, %16, %cst_14 {dimension_numbers = #tpu.dot_dimension_numbers<[1], [0], [0], [1], [0, 0, 1, 1], [], []>} : vector<32x64xbf16>, vector<64x128xbf16>, vector<32x128xf32> -> vector<32x128xf32>
    %18 = arith.addf %10, %17 : vector<32x128xf32>
    %c1 = arith.constant 1 : index
    %c0_15 = arith.constant 0 : index
    %c0_16 = arith.constant 0 : index
    %19 = vector.load %arg4[%c1, %c0_15, %c0_16] : memref<16x32x128xbf16, #tpu.memory_space<vmem>>, vector<1x32x128xbf16>
    %20 = vector.shape_cast %19 : vector<1x32x128xbf16> to vector<32x128xbf16>
    %cst_17 = arith.constant dense<0.000000e+00> : vector<32x64xf32>
    %21 = tpu.matmul %20, %9, %cst_17 {dimension_numbers = #tpu.dot_dimension_numbers<[1], [0], [0], [1], [0, 0, 1, 1], [], []>} : vector<32x128xbf16>, vector<128x64xbf16>, vector<32x64xf32> -> vector<32x64xf32>
    %22 = arith.truncf %21 : vector<32x64xf32> to vector<32x64xbf16>
    %c1_18 = arith.constant 1 : index
    %c0_19 = arith.constant 0 : index
    %c0_20 = arith.constant 0 : index
    %23 = vector.load %arg5[%c1_18, %c0_19, %c0_20] : memref<16x64x128xbf16, #tpu.memory_space<vmem>>, vector<1x64x128xbf16>
    %24 = vector.shape_cast %23 : vector<1x64x128xbf16> to vector<64x128xbf16>
    %cst_21 = arith.constant dense<0.000000e+00> : vector<32x128xf32>
    %25 = tpu.matmul %22, %24, %cst_21 {dimension_numbers = #tpu.dot_dimension_numbers<[1], [0], [0], [1], [0, 0, 1, 1], [], []>} : vector<32x64xbf16>, vector<64x128xbf16>, vector<32x128xf32> -> vector<32x128xf32>
    %26 = arith.addf %18, %25 : vector<32x128xf32>
    %c2 = arith.constant 2 : index
    %c0_22 = arith.constant 0 : index
    %c0_23 = arith.constant 0 : index
    %27 = vector.load %arg4[%c2, %c0_22, %c0_23] : memref<16x32x128xbf16, #tpu.memory_space<vmem>>, vector<1x32x128xbf16>
    %28 = vector.shape_cast %27 : vector<1x32x128xbf16> to vector<32x128xbf16>
    %cst_24 = arith.constant dense<0.000000e+00> : vector<32x64xf32>
    %29 = tpu.matmul %28, %9, %cst_24 {dimension_numbers = #tpu.dot_dimension_numbers<[1], [0], [0], [1], [0, 0, 1, 1], [], []>} : vector<32x128xbf16>, vector<128x64xbf16>, vector<32x64xf32> -> vector<32x64xf32>
    %30 = arith.truncf %29 : vector<32x64xf32> to vector<32x64xbf16>
    %c2_25 = arith.constant 2 : index
    %c0_26 = arith.constant 0 : index
    %c0_27 = arith.constant 0 : index
    %31 = vector.load %arg5[%c2_25, %c0_26, %c0_27] : memref<16x64x128xbf16, #tpu.memory_space<vmem>>, vector<1x64x128xbf16>
    %32 = vector.shape_cast %31 : vector<1x64x128xbf16> to vector<64x128xbf16>
    %cst_28 = arith.constant dense<0.000000e+00> : vector<32x128xf32>
    %33 = tpu.matmul %30, %32, %cst_28 {dimension_numbers = #tpu.dot_dimension_numbers<[1], [0], [0], [1], [0, 0, 1, 1], [], []>} : vector<32x64xbf16>, vector<64x128xbf16>, vector<32x128xf32> -> vector<32x128xf32>
    %34 = arith.addf %26, %33 : vector<32x128xf32>
    %c3 = arith.constant 3 : index
    %c0_29 = arith.constant 0 : index
    %c0_30 = arith.constant 0 : index
    %35 = vector.load %arg4[%c3, %c0_29, %c0_30] : memref<16x32x128xbf16, #tpu.memory_space<vmem>>, vector<1x32x128xbf16>
    %36 = vector.shape_cast %35 : vector<1x32x128xbf16> to vector<32x128xbf16>
    %cst_31 = arith.constant dense<0.000000e+00> : vector<32x64xf32>
    %37 = tpu.matmul %36, %9, %cst_31 {dimension_numbers = #tpu.dot_dimension_numbers<[1], [0], [0], [1], [0, 0, 1, 1], [], []>} : vector<32x128xbf16>, vector<128x64xbf16>, vector<32x64xf32> -> vector<32x64xf32>
    %38 = arith.truncf %37 : vector<32x64xf32> to vector<32x64xbf16>
    %c3_32 = arith.constant 3 : index
    %c0_33 = arith.constant 0 : index
    %c0_34 = arith.constant 0 : index
    %39 = vector.load %arg5[%c3_32, %c0_33, %c0_34] : memref<16x64x128xbf16, #tpu.memory_space<vmem>>, vector<1x64x128xbf16>
    %40 = vector.shape_cast %39 : vector<1x64x128xbf16> to vector<64x128xbf16>
    %cst_35 = arith.constant dense<0.000000e+00> : vector<32x128xf32>
    %41 = tpu.matmul %38, %40, %cst_35 {dimension_numbers = #tpu.dot_dimension_numbers<[1], [0], [0], [1], [0, 0, 1, 1], [], []>} : vector<32x64xbf16>, vector<64x128xbf16>, vector<32x128xf32> -> vector<32x128xf32>
    %42 = arith.addf %34, %41 : vector<32x128xf32>
    %c4 = arith.constant 4 : index
    %c0_36 = arith.constant 0 : index
    %c0_37 = arith.constant 0 : index
    %43 = vector.load %arg4[%c4, %c0_36, %c0_37] : memref<16x32x128xbf16, #tpu.memory_space<vmem>>, vector<1x32x128xbf16>
    %44 = vector.shape_cast %43 : vector<1x32x128xbf16> to vector<32x128xbf16>
    %cst_38 = arith.constant dense<0.000000e+00> : vector<32x64xf32>
    %45 = tpu.matmul %44, %9, %cst_38 {dimension_numbers = #tpu.dot_dimension_numbers<[1], [0], [0], [1], [0, 0, 1, 1], [], []>} : vector<32x128xbf16>, vector<128x64xbf16>, vector<32x64xf32> -> vector<32x64xf32>
    %46 = arith.truncf %45 : vector<32x64xf32> to vector<32x64xbf16>
    %c4_39 = arith.constant 4 : index
    %c0_40 = arith.constant 0 : index
    %c0_41 = arith.constant 0 : index
    %47 = vector.load %arg5[%c4_39, %c0_40, %c0_41] : memref<16x64x128xbf16, #tpu.memory_space<vmem>>, vector<1x64x128xbf16>
    %48 = vector.shape_cast %47 : vector<1x64x128xbf16> to vector<64x128xbf16>
    %cst_42 = arith.constant dense<0.000000e+00> : vector<32x128xf32>
    %49 = tpu.matmul %46, %48, %cst_42 {dimension_numbers = #tpu.dot_dimension_numbers<[1], [0], [0], [1], [0, 0, 1, 1], [], []>} : vector<32x64xbf16>, vector<64x128xbf16>, vector<32x128xf32> -> vector<32x128xf32>
    %50 = arith.addf %42, %49 : vector<32x128xf32>
    %c5 = arith.constant 5 : index
    %c0_43 = arith.constant 0 : index
    %c0_44 = arith.constant 0 : index
    %51 = vector.load %arg4[%c5, %c0_43, %c0_44] : memref<16x32x128xbf16, #tpu.memory_space<vmem>>, vector<1x32x128xbf16>
    %52 = vector.shape_cast %51 : vector<1x32x128xbf16> to vector<32x128xbf16>
    %cst_45 = arith.constant dense<0.000000e+00> : vector<32x64xf32>
    %53 = tpu.matmul %52, %9, %cst_45 {dimension_numbers = #tpu.dot_dimension_numbers<[1], [0], [0], [1], [0, 0, 1, 1], [], []>} : vector<32x128xbf16>, vector<128x64xbf16>, vector<32x64xf32> -> vector<32x64xf32>
    %54 = arith.truncf %53 : vector<32x64xf32> to vector<32x64xbf16>
    %c5_46 = arith.constant 5 : index
    %c0_47 = arith.constant 0 : index
    %c0_48 = arith.constant 0 : index
    %55 = vector.load %arg5[%c5_46, %c0_47, %c0_48] : memref<16x64x128xbf16, #tpu.memory_space<vmem>>, vector<1x64x128xbf16>
    %56 = vector.shape_cast %55 : vector<1x64x128xbf16> to vector<64x128xbf16>
    %cst_49 = arith.constant dense<0.000000e+00> : vector<32x128xf32>
    %57 = tpu.matmul %54, %56, %cst_49 {dimension_numbers = #tpu.dot_dimension_numbers<[1], [0], [0], [1], [0, 0, 1, 1], [], []>} : vector<32x64xbf16>, vector<64x128xbf16>, vector<32x128xf32> -> vector<32x128xf32>
    %58 = arith.addf %50, %57 : vector<32x128xf32>
    %c6 = arith.constant 6 : index
    %c0_50 = arith.constant 0 : index
    %c0_51 = arith.constant 0 : index
    %59 = vector.load %arg4[%c6, %c0_50, %c0_51] : memref<16x32x128xbf16, #tpu.memory_space<vmem>>, vector<1x32x128xbf16>
    %60 = vector.shape_cast %59 : vector<1x32x128xbf16> to vector<32x128xbf16>
    %cst_52 = arith.constant dense<0.000000e+00> : vector<32x64xf32>
    %61 = tpu.matmul %60, %9, %cst_52 {dimension_numbers = #tpu.dot_dimension_numbers<[1], [0], [0], [1], [0, 0, 1, 1], [], []>} : vector<32x128xbf16>, vector<128x64xbf16>, vector<32x64xf32> -> vector<32x64xf32>
    %62 = arith.truncf %61 : vector<32x64xf32> to vector<32x64xbf16>
    %c6_53 = arith.constant 6 : index
    %c0_54 = arith.constant 0 : index
    %c0_55 = arith.constant 0 : index
    %63 = vector.load %arg5[%c6_53, %c0_54, %c0_55] : memref<16x64x128xbf16, #tpu.memory_space<vmem>>, vector<1x64x128xbf16>
    %64 = vector.shape_cast %63 : vector<1x64x128xbf16> to vector<64x128xbf16>
    %cst_56 = arith.constant dense<0.000000e+00> : vector<32x128xf32>
    %65 = tpu.matmul %62, %64, %cst_56 {dimension_numbers = #tpu.dot_dimension_numbers<[1], [0], [0], [1], [0, 0, 1, 1], [], []>} : vector<32x64xbf16>, vector<64x128xbf16>, vector<32x128xf32> -> vector<32x128xf32>
    %66 = arith.addf %58, %65 : vector<32x128xf32>
    %c7 = arith.constant 7 : index
    %c0_57 = arith.constant 0 : index
    %c0_58 = arith.constant 0 : index
    %67 = vector.load %arg4[%c7, %c0_57, %c0_58] : memref<16x32x128xbf16, #tpu.memory_space<vmem>>, vector<1x32x128xbf16>
    %68 = vector.shape_cast %67 : vector<1x32x128xbf16> to vector<32x128xbf16>
    %cst_59 = arith.constant dense<0.000000e+00> : vector<32x64xf32>
    %69 = tpu.matmul %68, %9, %cst_59 {dimension_numbers = #tpu.dot_dimension_numbers<[1], [0], [0], [1], [0, 0, 1, 1], [], []>} : vector<32x128xbf16>, vector<128x64xbf16>, vector<32x64xf32> -> vector<32x64xf32>
    %70 = arith.truncf %69 : vector<32x64xf32> to vector<32x64xbf16>
    %c7_60 = arith.constant 7 : index
    %c0_61 = arith.constant 0 : index
    %c0_62 = arith.constant 0 : index
    %71 = vector.load %arg5[%c7_60, %c0_61, %c0_62] : memref<16x64x128xbf16, #tpu.memory_space<vmem>>, vector<1x64x128xbf16>
    %72 = vector.shape_cast %71 : vector<1x64x128xbf16> to vector<64x128xbf16>
    %cst_63 = arith.constant dense<0.000000e+00> : vector<32x128xf32>
    %73 = tpu.matmul %70, %72, %cst_63 {dimension_numbers = #tpu.dot_dimension_numbers<[1], [0], [0], [1], [0, 0, 1, 1], [], []>} : vector<32x64xbf16>, vector<64x128xbf16>, vector<32x128xf32> -> vector<32x128xf32>
    %74 = arith.addf %66, %73 : vector<32x128xf32>
    %c8 = arith.constant 8 : index
    %c0_64 = arith.constant 0 : index
    %c0_65 = arith.constant 0 : index
    %75 = vector.load %arg4[%c8, %c0_64, %c0_65] : memref<16x32x128xbf16, #tpu.memory_space<vmem>>, vector<1x32x128xbf16>
    %76 = vector.shape_cast %75 : vector<1x32x128xbf16> to vector<32x128xbf16>
    %cst_66 = arith.constant dense<0.000000e+00> : vector<32x64xf32>
    %77 = tpu.matmul %76, %9, %cst_66 {dimension_numbers = #tpu.dot_dimension_numbers<[1], [0], [0], [1], [0, 0, 1, 1], [], []>} : vector<32x128xbf16>, vector<128x64xbf16>, vector<32x64xf32> -> vector<32x64xf32>
    %78 = arith.truncf %77 : vector<32x64xf32> to vector<32x64xbf16>
    %c8_67 = arith.constant 8 : index
    %c0_68 = arith.constant 0 : index
    %c0_69 = arith.constant 0 : index
    %79 = vector.load %arg5[%c8_67, %c0_68, %c0_69] : memref<16x64x128xbf16, #tpu.memory_space<vmem>>, vector<1x64x128xbf16>
    %80 = vector.shape_cast %79 : vector<1x64x128xbf16> to vector<64x128xbf16>
    %cst_70 = arith.constant dense<0.000000e+00> : vector<32x128xf32>
    %81 = tpu.matmul %78, %80, %cst_70 {dimension_numbers = #tpu.dot_dimension_numbers<[1], [0], [0], [1], [0, 0, 1, 1], [], []>} : vector<32x64xbf16>, vector<64x128xbf16>, vector<32x128xf32> -> vector<32x128xf32>
    %82 = arith.addf %74, %81 : vector<32x128xf32>
    %c9 = arith.constant 9 : index
    %c0_71 = arith.constant 0 : index
    %c0_72 = arith.constant 0 : index
    %83 = vector.load %arg4[%c9, %c0_71, %c0_72] : memref<16x32x128xbf16, #tpu.memory_space<vmem>>, vector<1x32x128xbf16>
    %84 = vector.shape_cast %83 : vector<1x32x128xbf16> to vector<32x128xbf16>
    %cst_73 = arith.constant dense<0.000000e+00> : vector<32x64xf32>
    %85 = tpu.matmul %84, %9, %cst_73 {dimension_numbers = #tpu.dot_dimension_numbers<[1], [0], [0], [1], [0, 0, 1, 1], [], []>} : vector<32x128xbf16>, vector<128x64xbf16>, vector<32x64xf32> -> vector<32x64xf32>
    %86 = arith.truncf %85 : vector<32x64xf32> to vector<32x64xbf16>
    %c9_74 = arith.constant 9 : index
    %c0_75 = arith.constant 0 : index
    %c0_76 = arith.constant 0 : index
    %87 = vector.load %arg5[%c9_74, %c0_75, %c0_76] : memref<16x64x128xbf16, #tpu.memory_space<vmem>>, vector<1x64x128xbf16>
    %88 = vector.shape_cast %87 : vector<1x64x128xbf16> to vector<64x128xbf16>
    %cst_77 = arith.constant dense<0.000000e+00> : vector<32x128xf32>
    %89 = tpu.matmul %86, %88, %cst_77 {dimension_numbers = #tpu.dot_dimension_numbers<[1], [0], [0], [1], [0, 0, 1, 1], [], []>} : vector<32x64xbf16>, vector<64x128xbf16>, vector<32x128xf32> -> vector<32x128xf32>
    %90 = arith.addf %82, %89 : vector<32x128xf32>
    %c10 = arith.constant 10 : index
    %c0_78 = arith.constant 0 : index
    %c0_79 = arith.constant 0 : index
    %91 = vector.load %arg4[%c10, %c0_78, %c0_79] : memref<16x32x128xbf16, #tpu.memory_space<vmem>>, vector<1x32x128xbf16>
    %92 = vector.shape_cast %91 : vector<1x32x128xbf16> to vector<32x128xbf16>
    %cst_80 = arith.constant dense<0.000000e+00> : vector<32x64xf32>
    %93 = tpu.matmul %92, %9, %cst_80 {dimension_numbers = #tpu.dot_dimension_numbers<[1], [0], [0], [1], [0, 0, 1, 1], [], []>} : vector<32x128xbf16>, vector<128x64xbf16>, vector<32x64xf32> -> vector<32x64xf32>
    %94 = arith.truncf %93 : vector<32x64xf32> to vector<32x64xbf16>
    %c10_81 = arith.constant 10 : index
    %c0_82 = arith.constant 0 : index
    %c0_83 = arith.constant 0 : index
    %95 = vector.load %arg5[%c10_81, %c0_82, %c0_83] : memref<16x64x128xbf16, #tpu.memory_space<vmem>>, vector<1x64x128xbf16>
    %96 = vector.shape_cast %95 : vector<1x64x128xbf16> to vector<64x128xbf16>
    %cst_84 = arith.constant dense<0.000000e+00> : vector<32x128xf32>
    %97 = tpu.matmul %94, %96, %cst_84 {dimension_numbers = #tpu.dot_dimension_numbers<[1], [0], [0], [1], [0, 0, 1, 1], [], []>} : vector<32x64xbf16>, vector<64x128xbf16>, vector<32x128xf32> -> vector<32x128xf32>
    %98 = arith.addf %90, %97 : vector<32x128xf32>
    %c11 = arith.constant 11 : index
    %c0_85 = arith.constant 0 : index
    %c0_86 = arith.constant 0 : index
    %99 = vector.load %arg4[%c11, %c0_85, %c0_86] : memref<16x32x128xbf16, #tpu.memory_space<vmem>>, vector<1x32x128xbf16>
    %100 = vector.shape_cast %99 : vector<1x32x128xbf16> to vector<32x128xbf16>
    %cst_87 = arith.constant dense<0.000000e+00> : vector<32x64xf32>
    %101 = tpu.matmul %100, %9, %cst_87 {dimension_numbers = #tpu.dot_dimension_numbers<[1], [0], [0], [1], [0, 0, 1, 1], [], []>} : vector<32x128xbf16>, vector<128x64xbf16>, vector<32x64xf32> -> vector<32x64xf32>
    %102 = arith.truncf %101 : vector<32x64xf32> to vector<32x64xbf16>
    %c11_88 = arith.constant 11 : index
    %c0_89 = arith.constant 0 : index
    %c0_90 = arith.constant 0 : index
    %103 = vector.load %arg5[%c11_88, %c0_89, %c0_90] : memref<16x64x128xbf16, #tpu.memory_space<vmem>>, vector<1x64x128xbf16>
    %104 = vector.shape_cast %103 : vector<1x64x128xbf16> to vector<64x128xbf16>
    %cst_91 = arith.constant dense<0.000000e+00> : vector<32x128xf32>
    %105 = tpu.matmul %102, %104, %cst_91 {dimension_numbers = #tpu.dot_dimension_numbers<[1], [0], [0], [1], [0, 0, 1, 1], [], []>} : vector<32x64xbf16>, vector<64x128xbf16>, vector<32x128xf32> -> vector<32x128xf32>
    %106 = arith.addf %98, %105 : vector<32x128xf32>
    %c12 = arith.constant 12 : index
    %c0_92 = arith.constant 0 : index
    %c0_93 = arith.constant 0 : index
    %107 = vector.load %arg4[%c12, %c0_92, %c0_93] : memref<16x32x128xbf16, #tpu.memory_space<vmem>>, vector<1x32x128xbf16>
    %108 = vector.shape_cast %107 : vector<1x32x128xbf16> to vector<32x128xbf16>
    %cst_94 = arith.constant dense<0.000000e+00> : vector<32x64xf32>
    %109 = tpu.matmul %108, %9, %cst_94 {dimension_numbers = #tpu.dot_dimension_numbers<[1], [0], [0], [1], [0, 0, 1, 1], [], []>} : vector<32x128xbf16>, vector<128x64xbf16>, vector<32x64xf32> -> vector<32x64xf32>
    %110 = arith.truncf %109 : vector<32x64xf32> to vector<32x64xbf16>
    %c12_95 = arith.constant 12 : index
    %c0_96 = arith.constant 0 : index
    %c0_97 = arith.constant 0 : index
    %111 = vector.load %arg5[%c12_95, %c0_96, %c0_97] : memref<16x64x128xbf16, #tpu.memory_space<vmem>>, vector<1x64x128xbf16>
    %112 = vector.shape_cast %111 : vector<1x64x128xbf16> to vector<64x128xbf16>
    %cst_98 = arith.constant dense<0.000000e+00> : vector<32x128xf32>
    %113 = tpu.matmul %110, %112, %cst_98 {dimension_numbers = #tpu.dot_dimension_numbers<[1], [0], [0], [1], [0, 0, 1, 1], [], []>} : vector<32x64xbf16>, vector<64x128xbf16>, vector<32x128xf32> -> vector<32x128xf32>
    %114 = arith.addf %106, %113 : vector<32x128xf32>
    %c13 = arith.constant 13 : index
    %c0_99 = arith.constant 0 : index
    %c0_100 = arith.constant 0 : index
    %115 = vector.load %arg4[%c13, %c0_99, %c0_100] : memref<16x32x128xbf16, #tpu.memory_space<vmem>>, vector<1x32x128xbf16>
    %116 = vector.shape_cast %115 : vector<1x32x128xbf16> to vector<32x128xbf16>
    %cst_101 = arith.constant dense<0.000000e+00> : vector<32x64xf32>
    %117 = tpu.matmul %116, %9, %cst_101 {dimension_numbers = #tpu.dot_dimension_numbers<[1], [0], [0], [1], [0, 0, 1, 1], [], []>} : vector<32x128xbf16>, vector<128x64xbf16>, vector<32x64xf32> -> vector<32x64xf32>
    %118 = arith.truncf %117 : vector<32x64xf32> to vector<32x64xbf16>
    %c13_102 = arith.constant 13 : index
    %c0_103 = arith.constant 0 : index
    %c0_104 = arith.constant 0 : index
    %119 = vector.load %arg5[%c13_102, %c0_103, %c0_104] : memref<16x64x128xbf16, #tpu.memory_space<vmem>>, vector<1x64x128xbf16>
    %120 = vector.shape_cast %119 : vector<1x64x128xbf16> to vector<64x128xbf16>
    %cst_105 = arith.constant dense<0.000000e+00> : vector<32x128xf32>
    %121 = tpu.matmul %118, %120, %cst_105 {dimension_numbers = #tpu.dot_dimension_numbers<[1], [0], [0], [1], [0, 0, 1, 1], [], []>} : vector<32x64xbf16>, vector<64x128xbf16>, vector<32x128xf32> -> vector<32x128xf32>
    %122 = arith.addf %114, %121 : vector<32x128xf32>
    %c14 = arith.constant 14 : index
    %c0_106 = arith.constant 0 : index
    %c0_107 = arith.constant 0 : index
    %123 = vector.load %arg4[%c14, %c0_106, %c0_107] : memref<16x32x128xbf16, #tpu.memory_space<vmem>>, vector<1x32x128xbf16>
    %124 = vector.shape_cast %123 : vector<1x32x128xbf16> to vector<32x128xbf16>
    %cst_108 = arith.constant dense<0.000000e+00> : vector<32x64xf32>
    %125 = tpu.matmul %124, %9, %cst_108 {dimension_numbers = #tpu.dot_dimension_numbers<[1], [0], [0], [1], [0, 0, 1, 1], [], []>} : vector<32x128xbf16>, vector<128x64xbf16>, vector<32x64xf32> -> vector<32x64xf32>
    %126 = arith.truncf %125 : vector<32x64xf32> to vector<32x64xbf16>
    %c14_109 = arith.constant 14 : index
    %c0_110 = arith.constant 0 : index
    %c0_111 = arith.constant 0 : index
    %127 = vector.load %arg5[%c14_109, %c0_110, %c0_111] : memref<16x64x128xbf16, #tpu.memory_space<vmem>>, vector<1x64x128xbf16>
    %128 = vector.shape_cast %127 : vector<1x64x128xbf16> to vector<64x128xbf16>
    %cst_112 = arith.constant dense<0.000000e+00> : vector<32x128xf32>
    %129 = tpu.matmul %126, %128, %cst_112 {dimension_numbers = #tpu.dot_dimension_numbers<[1], [0], [0], [1], [0, 0, 1, 1], [], []>} : vector<32x64xbf16>, vector<64x128xbf16>, vector<32x128xf32> -> vector<32x128xf32>
    %130 = arith.addf %122, %129 : vector<32x128xf32>
    %c15 = arith.constant 15 : index
    %c0_113 = arith.constant 0 : index
    %c0_114 = arith.constant 0 : index
    %131 = vector.load %arg4[%c15, %c0_113, %c0_114] : memref<16x32x128xbf16, #tpu.memory_space<vmem>>, vector<1x32x128xbf16>
    %132 = vector.shape_cast %131 : vector<1x32x128xbf16> to vector<32x128xbf16>
    %cst_115 = arith.constant dense<0.000000e+00> : vector<32x64xf32>
    %133 = tpu.matmul %132, %9, %cst_115 {dimension_numbers = #tpu.dot_dimension_numbers<[1], [0], [0], [1], [0, 0, 1, 1], [], []>} : vector<32x128xbf16>, vector<128x64xbf16>, vector<32x64xf32> -> vector<32x64xf32>
    %134 = arith.truncf %133 : vector<32x64xf32> to vector<32x64xbf16>
    %c15_116 = arith.constant 15 : index
    %c0_117 = arith.constant 0 : index
    %c0_118 = arith.constant 0 : index
    %135 = vector.load %arg5[%c15_116, %c0_117, %c0_118] : memref<16x64x128xbf16, #tpu.memory_space<vmem>>, vector<1x64x128xbf16>
    %136 = vector.shape_cast %135 : vector<1x64x128xbf16> to vector<64x128xbf16>
    %cst_119 = arith.constant dense<0.000000e+00> : vector<32x128xf32>
    %137 = tpu.matmul %134, %136, %cst_119 {dimension_numbers = #tpu.dot_dimension_numbers<[1], [0], [0], [1], [0, 0, 1, 1], [], []>} : vector<32x64xbf16>, vector<64x128xbf16>, vector<32x128xf32> -> vector<32x128xf32>
    %138 = arith.addf %130, %137 : vector<32x128xf32>
    %c0_120 = arith.constant 0 : index
    %c0_121 = arith.constant 0 : index
    %139 = vector.load %arg6[%c0_120, %c0_121] : memref<1x128xf32, #tpu.memory_space<vmem>>, vector<1x128xf32>
    %140 = vector.broadcast %139 : vector<1x128xf32> to vector<32x128xf32>
    %141 = arith.addf %138, %140 : vector<32x128xf32>
    %cst_122 = arith.constant 2.000000e-01 : f32
    %142 = vector.broadcast %cst_122 : f32 to vector<32x128xf32>
    %143 = arith.mulf %142, %141 : vector<32x128xf32>
    %144 = arith.maximumf %141, %143 : vector<32x128xf32>
    %145 = arith.truncf %144 : vector<32x128xf32> to vector<32x128xbf16>
    %cst_123 = arith.constant 0.000000e+00 : f32
    %146 = vector.broadcast %cst_123 : f32 to vector<32x64xf32>
    %c0_124 = arith.constant 0 : index
    %c0_125 = arith.constant 0 : index
    %c0_126 = arith.constant 0 : index
    %147 = vector.load %arg7[%c0_124, %c0_125, %c0_126] : memref<9x32x32xbf16, #tpu.memory_space<vmem>>, vector<1x32x32xbf16>
    %148 = vector.shape_cast %147 : vector<1x32x32xbf16> to vector<32x32xbf16>
    %cst_127 = arith.constant dense<0.000000e+00> : vector<32x128xf32>
    %149 = tpu.matmul %148, %145, %cst_127 {dimension_numbers = #tpu.dot_dimension_numbers<[1], [0], [0], [1], [0, 0, 1, 1], [], []>} : vector<32x32xbf16>, vector<32x128xbf16>, vector<32x128xf32> -> vector<32x128xf32>
    %150 = arith.truncf %149 : vector<32x128xf32> to vector<32x128xbf16>
    %c0_128 = arith.constant 0 : index
    %c0_129 = arith.constant 0 : index
    %c0_130 = arith.constant 0 : index
    %151 = vector.load %arg8[%c0_128, %c0_129, %c0_130] : memref<9x128x64xbf16, #tpu.memory_space<vmem>>, vector<1x128x64xbf16>
    %152 = vector.shape_cast %151 : vector<1x128x64xbf16> to vector<128x64xbf16>
    %cst_131 = arith.constant dense<0.000000e+00> : vector<32x64xf32>
    %153 = tpu.matmul %150, %152, %cst_131 {dimension_numbers = #tpu.dot_dimension_numbers<[1], [0], [0], [1], [0, 0, 1, 1], [], []>} : vector<32x128xbf16>, vector<128x64xbf16>, vector<32x64xf32> -> vector<32x64xf32>
    %154 = arith.addf %146, %153 : vector<32x64xf32>
    %c1_132 = arith.constant 1 : index
    %c0_133 = arith.constant 0 : index
    %c0_134 = arith.constant 0 : index
    %155 = vector.load %arg7[%c1_132, %c0_133, %c0_134] : memref<9x32x32xbf16, #tpu.memory_space<vmem>>, vector<1x32x32xbf16>
    %156 = vector.shape_cast %155 : vector<1x32x32xbf16> to vector<32x32xbf16>
    %cst_135 = arith.constant dense<0.000000e+00> : vector<32x128xf32>
    %157 = tpu.matmul %156, %145, %cst_135 {dimension_numbers = #tpu.dot_dimension_numbers<[1], [0], [0], [1], [0, 0, 1, 1], [], []>} : vector<32x32xbf16>, vector<32x128xbf16>, vector<32x128xf32> -> vector<32x128xf32>
    %158 = arith.truncf %157 : vector<32x128xf32> to vector<32x128xbf16>
    %c1_136 = arith.constant 1 : index
    %c0_137 = arith.constant 0 : index
    %c0_138 = arith.constant 0 : index
    %159 = vector.load %arg8[%c1_136, %c0_137, %c0_138] : memref<9x128x64xbf16, #tpu.memory_space<vmem>>, vector<1x128x64xbf16>
    %160 = vector.shape_cast %159 : vector<1x128x64xbf16> to vector<128x64xbf16>
    %cst_139 = arith.constant dense<0.000000e+00> : vector<32x64xf32>
    %161 = tpu.matmul %158, %160, %cst_139 {dimension_numbers = #tpu.dot_dimension_numbers<[1], [0], [0], [1], [0, 0, 1, 1], [], []>} : vector<32x128xbf16>, vector<128x64xbf16>, vector<32x64xf32> -> vector<32x64xf32>
    %162 = arith.addf %154, %161 : vector<32x64xf32>
    %c2_140 = arith.constant 2 : index
    %c0_141 = arith.constant 0 : index
    %c0_142 = arith.constant 0 : index
    %163 = vector.load %arg7[%c2_140, %c0_141, %c0_142] : memref<9x32x32xbf16, #tpu.memory_space<vmem>>, vector<1x32x32xbf16>
    %164 = vector.shape_cast %163 : vector<1x32x32xbf16> to vector<32x32xbf16>
    %cst_143 = arith.constant dense<0.000000e+00> : vector<32x128xf32>
    %165 = tpu.matmul %164, %145, %cst_143 {dimension_numbers = #tpu.dot_dimension_numbers<[1], [0], [0], [1], [0, 0, 1, 1], [], []>} : vector<32x32xbf16>, vector<32x128xbf16>, vector<32x128xf32> -> vector<32x128xf32>
    %166 = arith.truncf %165 : vector<32x128xf32> to vector<32x128xbf16>
    %c2_144 = arith.constant 2 : index
    %c0_145 = arith.constant 0 : index
    %c0_146 = arith.constant 0 : index
    %167 = vector.load %arg8[%c2_144, %c0_145, %c0_146] : memref<9x128x64xbf16, #tpu.memory_space<vmem>>, vector<1x128x64xbf16>
    %168 = vector.shape_cast %167 : vector<1x128x64xbf16> to vector<128x64xbf16>
    %cst_147 = arith.constant dense<0.000000e+00> : vector<32x64xf32>
    %169 = tpu.matmul %166, %168, %cst_147 {dimension_numbers = #tpu.dot_dimension_numbers<[1], [0], [0], [1], [0, 0, 1, 1], [], []>} : vector<32x128xbf16>, vector<128x64xbf16>, vector<32x64xf32> -> vector<32x64xf32>
    %170 = arith.addf %162, %169 : vector<32x64xf32>
    %c3_148 = arith.constant 3 : index
    %c0_149 = arith.constant 0 : index
    %c0_150 = arith.constant 0 : index
    %171 = vector.load %arg7[%c3_148, %c0_149, %c0_150] : memref<9x32x32xbf16, #tpu.memory_space<vmem>>, vector<1x32x32xbf16>
    %172 = vector.shape_cast %171 : vector<1x32x32xbf16> to vector<32x32xbf16>
    %cst_151 = arith.constant dense<0.000000e+00> : vector<32x128xf32>
    %173 = tpu.matmul %172, %145, %cst_151 {dimension_numbers = #tpu.dot_dimension_numbers<[1], [0], [0], [1], [0, 0, 1, 1], [], []>} : vector<32x32xbf16>, vector<32x128xbf16>, vector<32x128xf32> -> vector<32x128xf32>
    %174 = arith.truncf %173 : vector<32x128xf32> to vector<32x128xbf16>
    %c3_152 = arith.constant 3 : index
    %c0_153 = arith.constant 0 : index
    %c0_154 = arith.constant 0 : index
    %175 = vector.load %arg8[%c3_152, %c0_153, %c0_154] : memref<9x128x64xbf16, #tpu.memory_space<vmem>>, vector<1x128x64xbf16>
    %176 = vector.shape_cast %175 : vector<1x128x64xbf16> to vector<128x64xbf16>
    %cst_155 = arith.constant dense<0.000000e+00> : vector<32x64xf32>
    %177 = tpu.matmul %174, %176, %cst_155 {dimension_numbers = #tpu.dot_dimension_numbers<[1], [0], [0], [1], [0, 0, 1, 1], [], []>} : vector<32x128xbf16>, vector<128x64xbf16>, vector<32x64xf32> -> vector<32x64xf32>
    %178 = arith.addf %170, %177 : vector<32x64xf32>
    %c4_156 = arith.constant 4 : index
    %c0_157 = arith.constant 0 : index
    %c0_158 = arith.constant 0 : index
    %179 = vector.load %arg7[%c4_156, %c0_157, %c0_158] : memref<9x32x32xbf16, #tpu.memory_space<vmem>>, vector<1x32x32xbf16>
    %180 = vector.shape_cast %179 : vector<1x32x32xbf16> to vector<32x32xbf16>
    %cst_159 = arith.constant dense<0.000000e+00> : vector<32x128xf32>
    %181 = tpu.matmul %180, %145, %cst_159 {dimension_numbers = #tpu.dot_dimension_numbers<[1], [0], [0], [1], [0, 0, 1, 1], [], []>} : vector<32x32xbf16>, vector<32x128xbf16>, vector<32x128xf32> -> vector<32x128xf32>
    %182 = arith.truncf %181 : vector<32x128xf32> to vector<32x128xbf16>
    %c4_160 = arith.constant 4 : index
    %c0_161 = arith.constant 0 : index
    %c0_162 = arith.constant 0 : index
    %183 = vector.load %arg8[%c4_160, %c0_161, %c0_162] : memref<9x128x64xbf16, #tpu.memory_space<vmem>>, vector<1x128x64xbf16>
    %184 = vector.shape_cast %183 : vector<1x128x64xbf16> to vector<128x64xbf16>
    %cst_163 = arith.constant dense<0.000000e+00> : vector<32x64xf32>
    %185 = tpu.matmul %182, %184, %cst_163 {dimension_numbers = #tpu.dot_dimension_numbers<[1], [0], [0], [1], [0, 0, 1, 1], [], []>} : vector<32x128xbf16>, vector<128x64xbf16>, vector<32x64xf32> -> vector<32x64xf32>
    %186 = arith.addf %178, %185 : vector<32x64xf32>
    %c5_164 = arith.constant 5 : index
    %c0_165 = arith.constant 0 : index
    %c0_166 = arith.constant 0 : index
    %187 = vector.load %arg7[%c5_164, %c0_165, %c0_166] : memref<9x32x32xbf16, #tpu.memory_space<vmem>>, vector<1x32x32xbf16>
    %188 = vector.shape_cast %187 : vector<1x32x32xbf16> to vector<32x32xbf16>
    %cst_167 = arith.constant dense<0.000000e+00> : vector<32x128xf32>
    %189 = tpu.matmul %188, %145, %cst_167 {dimension_numbers = #tpu.dot_dimension_numbers<[1], [0], [0], [1], [0, 0, 1, 1], [], []>} : vector<32x32xbf16>, vector<32x128xbf16>, vector<32x128xf32> -> vector<32x128xf32>
    %190 = arith.truncf %189 : vector<32x128xf32> to vector<32x128xbf16>
    %c5_168 = arith.constant 5 : index
    %c0_169 = arith.constant 0 : index
    %c0_170 = arith.constant 0 : index
    %191 = vector.load %arg8[%c5_168, %c0_169, %c0_170] : memref<9x128x64xbf16, #tpu.memory_space<vmem>>, vector<1x128x64xbf16>
    %192 = vector.shape_cast %191 : vector<1x128x64xbf16> to vector<128x64xbf16>
    %cst_171 = arith.constant dense<0.000000e+00> : vector<32x64xf32>
    %193 = tpu.matmul %190, %192, %cst_171 {dimension_numbers = #tpu.dot_dimension_numbers<[1], [0], [0], [1], [0, 0, 1, 1], [], []>} : vector<32x128xbf16>, vector<128x64xbf16>, vector<32x64xf32> -> vector<32x64xf32>
    %194 = arith.addf %186, %193 : vector<32x64xf32>
    %c6_172 = arith.constant 6 : index
    %c0_173 = arith.constant 0 : index
    %c0_174 = arith.constant 0 : index
    %195 = vector.load %arg7[%c6_172, %c0_173, %c0_174] : memref<9x32x32xbf16, #tpu.memory_space<vmem>>, vector<1x32x32xbf16>
    %196 = vector.shape_cast %195 : vector<1x32x32xbf16> to vector<32x32xbf16>
    %cst_175 = arith.constant dense<0.000000e+00> : vector<32x128xf32>
    %197 = tpu.matmul %196, %145, %cst_175 {dimension_numbers = #tpu.dot_dimension_numbers<[1], [0], [0], [1], [0, 0, 1, 1], [], []>} : vector<32x32xbf16>, vector<32x128xbf16>, vector<32x128xf32> -> vector<32x128xf32>
    %198 = arith.truncf %197 : vector<32x128xf32> to vector<32x128xbf16>
    %c6_176 = arith.constant 6 : index
    %c0_177 = arith.constant 0 : index
    %c0_178 = arith.constant 0 : index
    %199 = vector.load %arg8[%c6_176, %c0_177, %c0_178] : memref<9x128x64xbf16, #tpu.memory_space<vmem>>, vector<1x128x64xbf16>
    %200 = vector.shape_cast %199 : vector<1x128x64xbf16> to vector<128x64xbf16>
    %cst_179 = arith.constant dense<0.000000e+00> : vector<32x64xf32>
    %201 = tpu.matmul %198, %200, %cst_179 {dimension_numbers = #tpu.dot_dimension_numbers<[1], [0], [0], [1], [0, 0, 1, 1], [], []>} : vector<32x128xbf16>, vector<128x64xbf16>, vector<32x64xf32> -> vector<32x64xf32>
    %202 = arith.addf %194, %201 : vector<32x64xf32>
    %c7_180 = arith.constant 7 : index
    %c0_181 = arith.constant 0 : index
    %c0_182 = arith.constant 0 : index
    %203 = vector.load %arg7[%c7_180, %c0_181, %c0_182] : memref<9x32x32xbf16, #tpu.memory_space<vmem>>, vector<1x32x32xbf16>
    %204 = vector.shape_cast %203 : vector<1x32x32xbf16> to vector<32x32xbf16>
    %cst_183 = arith.constant dense<0.000000e+00> : vector<32x128xf32>
    %205 = tpu.matmul %204, %145, %cst_183 {dimension_numbers = #tpu.dot_dimension_numbers<[1], [0], [0], [1], [0, 0, 1, 1], [], []>} : vector<32x32xbf16>, vector<32x128xbf16>, vector<32x128xf32> -> vector<32x128xf32>
    %206 = arith.truncf %205 : vector<32x128xf32> to vector<32x128xbf16>
    %c7_184 = arith.constant 7 : index
    %c0_185 = arith.constant 0 : index
    %c0_186 = arith.constant 0 : index
    %207 = vector.load %arg8[%c7_184, %c0_185, %c0_186] : memref<9x128x64xbf16, #tpu.memory_space<vmem>>, vector<1x128x64xbf16>
    %208 = vector.shape_cast %207 : vector<1x128x64xbf16> to vector<128x64xbf16>
    %cst_187 = arith.constant dense<0.000000e+00> : vector<32x64xf32>
    %209 = tpu.matmul %206, %208, %cst_187 {dimension_numbers = #tpu.dot_dimension_numbers<[1], [0], [0], [1], [0, 0, 1, 1], [], []>} : vector<32x128xbf16>, vector<128x64xbf16>, vector<32x64xf32> -> vector<32x64xf32>
    %210 = arith.addf %202, %209 : vector<32x64xf32>
    %c8_188 = arith.constant 8 : index
    %c0_189 = arith.constant 0 : index
    %c0_190 = arith.constant 0 : index
    %211 = vector.load %arg7[%c8_188, %c0_189, %c0_190] : memref<9x32x32xbf16, #tpu.memory_space<vmem>>, vector<1x32x32xbf16>
    %212 = vector.shape_cast %211 : vector<1x32x32xbf16> to vector<32x32xbf16>
    %cst_191 = arith.constant dense<0.000000e+00> : vector<32x128xf32>
    %213 = tpu.matmul %212, %145, %cst_191 {dimension_numbers = #tpu.dot_dimension_numbers<[1], [0], [0], [1], [0, 0, 1, 1], [], []>} : vector<32x32xbf16>, vector<32x128xbf16>, vector<32x128xf32> -> vector<32x128xf32>
    %214 = arith.truncf %213 : vector<32x128xf32> to vector<32x128xbf16>
    %c8_192 = arith.constant 8 : index
    %c0_193 = arith.constant 0 : index
    %c0_194 = arith.constant 0 : index
    %215 = vector.load %arg8[%c8_192, %c0_193, %c0_194] : memref<9x128x64xbf16, #tpu.memory_space<vmem>>, vector<1x128x64xbf16>
    %216 = vector.shape_cast %215 : vector<1x128x64xbf16> to vector<128x64xbf16>
    %cst_195 = arith.constant dense<0.000000e+00> : vector<32x64xf32>
    %217 = tpu.matmul %214, %216, %cst_195 {dimension_numbers = #tpu.dot_dimension_numbers<[1], [0], [0], [1], [0, 0, 1, 1], [], []>} : vector<32x128xbf16>, vector<128x64xbf16>, vector<32x64xf32> -> vector<32x64xf32>
    %218 = arith.addf %210, %217 : vector<32x64xf32>
    %c0_196 = arith.constant 0 : index
    %c0_197 = arith.constant 0 : index
    %219 = vector.load %arg9[%c0_196, %c0_197] : memref<1x64xf32, #tpu.memory_space<vmem>>, vector<1x64xf32>
    %220 = vector.broadcast %219 : vector<1x64xf32> to vector<32x64xf32>
    %221 = arith.addf %218, %220 : vector<32x64xf32>
    %cst_198 = arith.constant 2.000000e-01 : f32
    %222 = vector.broadcast %cst_198 : f32 to vector<32x64xf32>
    %223 = arith.mulf %222, %221 : vector<32x64xf32>
    %224 = arith.maximumf %221, %223 : vector<32x64xf32>
    %c0_199 = arith.constant 0 : index
    %c0_200 = arith.constant 0 : index
    %225 = vector.load %arg10[%c0_199, %c0_200] : memref<32x64xf32, #tpu.memory_space<vmem>>, vector<32x64xf32>
    tpu.vector_store %arg10[%c0_199, %c0_200], %224 {strides = array<i32>} : memref<32x64xf32, #tpu.memory_space<vmem>>, vector<32x64xf32>,
    return
  }
  func.func @transform_0(%arg0: i32) -> (i32, i32) {
    %c0_i32 = arith.constant 0 : i32
    %c0_i32_0 = arith.constant 0 : i32
    %c0_i32_1 = arith.constant 0 : i32
    return %c0_i32, %c0_i32_0 : i32, i32
  }
  func.func @transform_1(%arg0: i32) -> (i32, i32) {
    %c0_i32 = arith.constant 0 : i32
    %c0_i32_0 = arith.constant 0 : i32
    %c0_i32_1 = arith.constant 0 : i32
    return %c0_i32, %c0_i32_0 : i32, i32
  }
  func.func @transform_2(%arg0: i32) -> (i32, i32) {
    %c0_i32 = arith.constant 0 : i32
    %c0_i32_0 = arith.constant 0 : i32
    %c0_i32_1 = arith.constant 0 : i32
    return %c0_i32, %c0_i32_0 : i32, i32
  }
  func.func @transform_3(%arg0: i32) -> (i32, i32, i32) {
    %c0_i32 = arith.constant 0 : i32
    %c0_i32_0 = arith.constant 0 : i32
    %c0_i32_1 = arith.constant 0 : i32
    %c0_i32_2 = arith.constant 0 : i32
    return %c0_i32, %c0_i32_0, %c0_i32_1 : i32, i32, i32
  }
  func.func @transform_4(%arg0: i32) -> (i32, i32, i32) {
    %c0_i32 = arith.constant 0 : i32
    %c0_i32_0 = arith.constant 0 : i32
    %c0_i32_1 = arith.constant 0 : i32
    %c0_i32_2 = arith.constant 0 : i32
    return %c0_i32, %c0_i32_0, %c0_i32_1 : i32, i32, i32
  }
  func.func @transform_5(%arg0: i32) -> (i32, i32) {
    %c0_i32 = arith.constant 0 : i32
    %c0_i32_0 = arith.constant 0 : i32
    %c0_i32_1 = arith.constant 0 : i32
    return %c0_i32, %c0_i32_0 : i32, i32
  }
  func.func @transform_6(%arg0: i32) -> (i32, i32, i32) {
    %c0_i32 = arith.constant 0 : i32
    %c0_i32_0 = arith.constant 0 : i32
    %c0_i32_1 = arith.constant 0 : i32
    %c0_i32_2 = arith.constant 0 : i32
    return %c0_i32, %c0_i32_0, %c0_i32_1 : i32, i32, i32
  }
  func.func @transform_7(%arg0: i32) -> (i32, i32, i32) {
    %c0_i32 = arith.constant 0 : i32
    %c0_i32_0 = arith.constant 0 : i32
    %c0_i32_1 = arith.constant 0 : i32
    %c0_i32_2 = arith.constant 0 : i32
    return %c0_i32, %c0_i32_0, %c0_i32_1 : i32, i32, i32
  }
  func.func @transform_8(%arg0: i32) -> (i32, i32) {
    %c0_i32 = arith.constant 0 : i32
    %c0_i32_0 = arith.constant 0 : i32
    %c0_i32_1 = arith.constant 0 : i32
    return %c0_i32, %c0_i32_0 : i32, i32
  }
  func.func @transform_9(%arg0: i32) -> (i32, i32) {
    %c0_i32 = arith.constant 0 : i32
    %c0_i32_0 = arith.constant 0 : i32
    %c0_i32_1 = arith.constant 0 : i32
    return %c0_i32, %c0_i32_0 : i32, i32
  }
}

</mosaic_0001>

<llo_original>
// kernel: tile.9
$region0: #{tile.9}
  #allocation0 [shape = 's32[1]{0}', space=sflag, size = 0x4, scoped, tag = 'scoped memory for tile.9']
  %s0 = inlined_call_operand.<no memory space> [shape: f32[], index: 0, kind: input, shape index: {}]
  %s1 = inlined_call_operand.vmem [shape: f32[1,128], index: 1, kind: output, shape index: {}]
  %v2 = vstv %s0
  %3 = vst [vmem:[%s1] sm:$0x1] %v2

// kernel: _lambda_.4
$region0: #{_lambda_.4}
  #allocation0 [shape = 'u32[]', space=smem, size = 0x4, offset = 0x4, fixed_abs, tag = 'smem constant byte address 0x4 - core index']
  #allocation1 [shape = 'u32[72,128]{1,0:T(1,128)}', space=vmem, size = 0x9000, scoped, tag = 'internal scratch']
  %s0 = inlined_call_operand.vmem [shape: bf16[512,768], index: 0, kind: input, shape index: {}]
  %s1 = inlined_call_operand.vmem [shape: bf16[768,128], index: 1, kind: input, shape index: {}]
  %s2 = inlined_call_operand.vmem [shape: f32[1,128], index: 2, kind: input, shape index: {}]
  %s3 = inlined_call_operand.vmem [shape: bf16[512,128], index: 3, kind: output, shape index: {}]
  %s4 = sld [smem:[#allocation0]]
  $region45: #{_lambda_.4} parent=0
    _
  %s6 = ssub.s32 1, %s4
  %s7 = scalar_select 0, %s6, %s4
  loop: start=0, step=1, limit=4
  $region2: #{_lambda_.4} parent=0 // loop_pre_header
    _
  $region3: #{_lambda_.4} parent=0 // loop_header
    %s9 = sphi 0, %s13
    %p10 = scmp.ge.s32.totalorder %s9, 4
    %s19 = sphi 0, %s21
    %s22 = sphi 0, %s19
    %s23 = sphi 0, %s22
    %s39 = sphi 0, %s23
    %s43 = sphi 0, %s43
    %s45 = sphi 0, %s43
    %s46 = sphi 0, %s45
    %s60 = sphi 0, %s46
    %s64 = sphi 0, %s64
    %s66 = sphi 0, %s64
    %s67 = sphi 0, %s66
    %s81 = sphi 0, %s67
    %s87 = sphi 0, %s89
    %s90 = sphi 0, %s87
    %s91 = sphi 0, %s90
    %s107 = sphi 0, %s91
  $region4: #{_lambda_.4} parent=0 // loop_header_branch
    %12 = sbr.rel (%p10) target = $region8
  $region5: #{_lambda_.4} parent=0 // loop_body
    %s14 = ssub.s32 %s9, 1
    %s15 = ssub.s32 %s9, 2
    %s16 = sadd.s32 %s9, 1
    %s17 = ssub.s32 %s9, %s16
    %p18 = scmp.eq.s32.totalorder %s17, 0
    %s20 = sadd.s32 %s19, 1
    %s21 = scalar_select %p18, %s19, %s20
    %p24 = pneg %p18
    %p25 = scmp.eq.s32.totalorder %s9, 1
    %p26 = por %p24, %p25
    %p27 = scmp.ne.s32.totalorder %s19, %s22
    %p28 = scmp.eq.s32.totalorder %s9, 0
    %p29 = por %p27, %p28
    %p30 = scmp.ne.s32.totalorder %s19, %s22
    %p31 = scmp.eq.s32.totalorder %s14, 1
    %p32 = por %p30, %p31
    %p33 = scmp.ne.s32.totalorder %s22, %s23
    %p34 = scmp.eq.s32.totalorder %s14, 0
    %p35 = por %p33, %p34
    %p36 = scmp.ne.s32.totalorder %s22, %s23
    %p37 = scmp.eq.s32.totalorder %s15, 1
    %p38 = por %p36, %p37
    %p40 = scmp.ne.s32.totalorder %s23, %s39
    %p41 = scmp.eq.s32.totalorder %s15, 0
    %p42 = por %p40, %p41
    %s44 = sadd.s32 %s43, 1
    %p47 = scmp.eq.s32.totalorder %s9, 1
    %p48 = scmp.ne.s32.totalorder %s43, %s45
    %p49 = scmp.eq.s32.totalorder %s9, 0
    %p50 = por %p48, %p49
    %p51 = scmp.ne.s32.totalorder %s43, %s45
    %p52 = scmp.eq.s32.totalorder %s14, 1
    %p53 = por %p51, %p52
    %p54 = scmp.ne.s32.totalorder %s45, %s46
    %p55 = scmp.eq.s32.totalorder %s14, 0
    %p56 = por %p54, %p55
    %p57 = scmp.ne.s32.totalorder %s45, %s46
    %p58 = scmp.eq.s32.totalorder %s15, 1
    %p59 = por %p57, %p58
    %p61 = scmp.ne.s32.totalorder %s46, %s60
    %p62 = scmp.eq.s32.totalorder %s15, 0
    %p63 = por %p61, %p62
    %s65 = sadd.s32 %s64, 1
    %p68 = scmp.eq.s32.totalorder %s9, 1
    %p69 = scmp.ne.s32.totalorder %s64, %s66
    %p70 = scmp.eq.s32.totalorder %s9, 0
    %p71 = por %p69, %p70
    %p72 = scmp.ne.s32.totalorder %s64, %s66
    %p73 = scmp.eq.s32.totalorder %s14, 1
    %p74 = por %p72, %p73
    %p75 = scmp.ne.s32.totalorder %s66, %s67
    %p76 = scmp.eq.s32.totalorder %s14, 0
    %p77 = por %p75, %p76
    %p78 = scmp.ne.s32.totalorder %s66, %s67
    %p79 = scmp.eq.s32.totalorder %s15, 1
    %p80 = por %p78, %p79
    %p82 = scmp.ne.s32.totalorder %s67, %s81
    %p83 = scmp.eq.s32.totalorder %s15, 0
    %p84 = por %p82, %p83
    %s85 = ssub.s32 %s9, %s16
    %p86 = scmp.eq.s32.totalorder %s85, 0
    %s88 = sadd.s32 %s87, 1
    %s89 = scalar_select %p86, %s87, %s88
    %p92 = pneg %p86
    %p93 = scmp.eq.s32.totalorder %s9, 1
    %p94 = por %p92, %p93
    %p95 = scmp.ne.s32.totalorder %s87, %s90
    %p96 = scmp.eq.s32.totalorder %s9, 0
    %p97 = por %p95, %p96
    %p98 = scmp.ne.s32.totalorder %s87, %s90
    %p99 = scmp.eq.s32.totalorder %s14, 1
    %p100 = por %p98, %p99
    %p101 = scmp.ne.s32.totalorder %s90, %s91
    %p102 = scmp.eq.s32.totalorder %s14, 0
    %p103 = por %p101, %p102
    %p104 = scmp.ne.s32.totalorder %s90, %s91
    %p105 = scmp.eq.s32.totalorder %s15, 1
    %p106 = por %p104, %p105
    %p108 = scmp.ne.s32.totalorder %s91, %s107
    %p109 = scmp.eq.s32.totalorder %s15, 0
    %p110 = por %p108, %p109
    %p111 = scmp.le.s32.totalorder 1, %s9
    %p112 = scmp.lt.s32.totalorder %s9, 3
    %p113 = pnand %p111, %p112
    %p114 = pneg %p113
    // Predicated region
    $region9: #{_lambda_.4} parent=5 // pred_check
      _
    $region10: #{_lambda_.4} parent=5 // pred_check_branch
      %116 = sbr.rel (%p113) target = $region12
    $region11: #{_lambda_.4} parent=5 // pred_region
      %s117 = ssub.s32 %s9, 1
      // Predicated region
      $region13: #{_lambda_.4} parent=11 // pred_check
        %p118 = pneg %p56
      $region14: #{_lambda_.4} parent=11 // pred_check_branch
        %120 = sbr.rel (%p118) target = $region16
      $region15: #{_lambda_.4} parent=11 // pred_region
        _
      $region16: #{_lambda_.4} parent=11 // pred_fallthru
        _
      // Predicated region
      $region17: #{_lambda_.4} parent=11 // pred_check
        %p121 = pneg %p77
      $region18: #{_lambda_.4} parent=11 // pred_check_branch
        %123 = sbr.rel (%p121) target = $region20
      $region19: #{_lambda_.4} parent=11 // pred_region
        _
      $region20: #{_lambda_.4} parent=11 // pred_fallthru
        _
    $region12: #{_lambda_.4} parent=5 // pred_fallthru
      _
    %p124 = scmp.lt.s32.totalorder %s9, 2
    // Predicated region
    $region21: #{_lambda_.4} parent=5 // pred_check
      %p125 = pneg %p124
    $region22: #{_lambda_.4} parent=5 // pred_check_branch
      %127 = sbr.rel (%p125) target = $region24
    $region23: #{_lambda_.4} parent=5 // pred_region
      // Predicated region
      $region25: #{_lambda_.4} parent=23 // pred_check
        %p128 = pneg %p29
      $region26: #{_lambda_.4} parent=23 // pred_check_branch
        %130 = sbr.rel (%p128) target = $region28
      $region27: #{_lambda_.4} parent=23 // pred_region
        %s131 = smul.u32 32, %s9
        %p132 = scmp.lt.s32.totalorder %s131, 63
        %s133 = scalar_select %p132, %s131, 63
        %s134 = smul.addr %s133, 6
        %s135 = smul.addr %s134, 4
        %s136 = scalar_lea.vmem %s0, %s135
        %s137 = smul.u32 32, %s9
      $region28: #{_lambda_.4} parent=23 // pred_fallthru
        _
    $region24: #{_lambda_.4} parent=5 // pred_fallthru
      _
    %p138 = scmp.le.s32.totalorder 1, %s9
    %p139 = scmp.lt.s32.totalorder %s9, 3
    %p140 = pnand %p138, %p139
    %p141 = pneg %p140
    // Predicated region
    $region29: #{_lambda_.4} parent=5 // pred_check
      _
    $region30: #{_lambda_.4} parent=5 // pred_check_branch
      %143 = sbr.rel (%p140) target = $region32
    $region31: #{_lambda_.4} parent=5 // pred_region
      %s144 = ssub.s32 %s9, 1
      %s145 = smul.u32 32, %s14
      %p146 = scmp.lt.s32.totalorder %s145, 63
      %s147 = scalar_select %p146, %s145, 63
      %s148 = smul.addr %s147, 6
      %s149 = smul.addr %s148, 4
      %s150 = scalar_lea.vmem %s0, %s149
      %p151 = pneg %p35
      %p152 = pneg %p32
      %p153 = pneg %p56
      %p154 = pneg %p53
      %p155 = pneg %p77
      %p156 = pneg %p74
      %p157 = pneg %p103
      %p158 = pneg %p100
      %s159 = smul.u32 32, %s14
      %p160 = scmp.lt.s32.totalorder %s159, 63
      %s161 = scalar_select %p160, %s159, 63
      %s162 = smul.addr %s161, 4
      %s163 = scalar_lea.vmem %s3, %s162
      %s164 = smul.u32 32, %s14
      %p165 = scmp.lt.s32.totalorder %s164, 63
      %s166 = scalar_select %p165, %s164, 63
      %s167 = smul.addr %s166, 6
      %s168 = smul.addr %s167, 4
      %s169 = scalar_lea.vmem %s0, %s168
      %s170 = smul.u32 32, %s14
      %s171 = smul.u32 32, %s14
      %p172 = scmp.lt.s32.totalorder %s171, 63
      %s173 = scalar_select %p172, %s171, 63
      %s174 = smul.addr %s173, 4
      %s175 = scalar_lea.vmem %s3, %s174
      %s176 = smul.u32 32, %s14
      %v177 = vld [vmem:[%s169] sm:$0xff]
      %v178 = vld [vmem:[%s169 + $0x8] sm:$0xff]
      %v179 = vld [vmem:[%s169 + $0x10] sm:$0xff]
      %v180 = vld [vmem:[%s169 + $0x18] sm:$0xff]
      %v181 = vld [vmem:[%s169 + $0x20] sm:$0xff]
      %v182 = vld [vmem:[%s169 + $0x28] sm:$0xff]
      %v183 = vld [vmem:[%s169 + $0x30] sm:$0xff]
      %v184 = vld [vmem:[%s169 + $0x38] sm:$0xff]
      %v185 = vld [vmem:[%s169 + $0x40] sm:$0xff]
      %v186 = vld [vmem:[%s169 + $0x48] sm:$0xff]
      %v187 = vld [vmem:[%s169 + $0x50] sm:$0xff]
      %v188 = vld [vmem:[%s169 + $0x58] sm:$0xff]
      %v189 = vld [vmem:[%s169 + $0x60] sm:$0xff]
      %v190 = vld [vmem:[%s169 + $0x68] sm:$0xff]
      %v191 = vld [vmem:[%s169 + $0x70] sm:$0xff]
      %v192 = vld [vmem:[%s169 + $0x78] sm:$0xff]
      %v193 = vld [vmem:[%s169 + $0x80] sm:$0xff]
      %v194 = vld [vmem:[%s169 + $0x88] sm:$0xff]
      %v195 = vld [vmem:[%s169 + $0x90] sm:$0xff]
      %v196 = vld [vmem:[%s169 + $0x98] sm:$0xff]
      %v197 = vld [vmem:[%s169 + $0xa0] sm:$0xff]
      %v198 = vld [vmem:[%s169 + $0xa8] sm:$0xff]
      %v199 = vld [vmem:[%s169 + $0xb0] sm:$0xff]
      %v200 = vld [vmem:[%s169 + $0xb8] sm:$0xff]
      %v201 = vld [vmem:[%s169 + $0xc0] sm:$0xff]
      %v202 = vld [vmem:[%s169 + $0xc8] sm:$0xff]
      %v203 = vld [vmem:[%s169 + $0xd0] sm:$0xff]
      %v204 = vld [vmem:[%s169 + $0xd8] sm:$0xff]
      %v205 = vld [vmem:[%s169 + $0xe0] sm:$0xff]
      %v206 = vld [vmem:[%s169 + $0xe8] sm:$0xff]
      %v207 = vld [vmem:[%s169 + $0xf0] sm:$0xff]
      %v208 = vld [vmem:[%s169 + $0xf8] sm:$0xff]
      %v209 = vld [vmem:[%s169 + $0x100] sm:$0xff]
      %v210 = vld [vmem:[%s169 + $0x108] sm:$0xff]
      %v211 = vld [vmem:[%s169 + $0x110] sm:$0xff]
      %v212 = vld [vmem:[%s169 + $0x118] sm:$0xff]
      %v213 = vld [vmem:[%s169 + $0x120] sm:$0xff]
      %v214 = vld [vmem:[%s169 + $0x128] sm:$0xff]
      %v215 = vld [vmem:[%s169 + $0x130] sm:$0xff]
      %v216 = vld [vmem:[%s169 + $0x138] sm:$0xff]
      %v217 = vld [vmem:[%s169 + $0x140] sm:$0xff]
      %v218 = vld [vmem:[%s169 + $0x148] sm:$0xff]
      %v219 = vld [vmem:[%s169 + $0x150] sm:$0xff]
      %v220 = vld [vmem:[%s169 + $0x158] sm:$0xff]
      %v221 = vld [vmem:[%s169 + $0x160] sm:$0xff]
      %v222 = vld [vmem:[%s169 + $0x168] sm:$0xff]
      %v223 = vld [vmem:[%s169 + $0x170] sm:$0xff]
      %v224 = vld [vmem:[%s169 + $0x178] sm:$0xff]
      %v225 = vld [vmem:[%s169 + $0x180] sm:$0xff]
      %v226 = vld [vmem:[%s169 + $0x188] sm:$0xff]
      %v227 = vld [vmem:[%s169 + $0x190] sm:$0xff]
      %v228 = vld [vmem:[%s169 + $0x198] sm:$0xff]
      %v229 = vld [vmem:[%s169 + $0x1a0] sm:$0xff]
      %v230 = vld [vmem:[%s169 + $0x1a8] sm:$0xff]
      %v231 = vld [vmem:[%s169 + $0x1b0] sm:$0xff]
      %v232 = vld [vmem:[%s169 + $0x1b8] sm:$0xff]
      %v233 = vld [vmem:[%s169 + $0x1c0] sm:$0xff]
      %v234 = vld [vmem:[%s169 + $0x1c8] sm:$0xff]
      %v235 = vld [vmem:[%s169 + $0x1d0] sm:$0xff]
      %v236 = vld [vmem:[%s169 + $0x1d8] sm:$0xff]
      %v237 = vld [vmem:[%s169 + $0x1e0] sm:$0xff]
      %v238 = vld [vmem:[%s169 + $0x1e8] sm:$0xff]
      %v239 = vld [vmem:[%s169 + $0x1f0] sm:$0xff]
      %v240 = vld [vmem:[%s169 + $0x1f8] sm:$0xff]
      %v241 = vld [vmem:[%s169 + $0x200] sm:$0xff]
      %v242 = vld [vmem:[%s169 + $0x208] sm:$0xff]
      %v243 = vld [vmem:[%s169 + $0x210] sm:$0xff]
      %v244 = vld [vmem:[%s169 + $0x218] sm:$0xff]
      %v245 = vld [vmem:[%s169 + $0x220] sm:$0xff]
      %v246 = vld [vmem:[%s169 + $0x228] sm:$0xff]
      %v247 = vld [vmem:[%s169 + $0x230] sm:$0xff]
      %v248 = vld [vmem:[%s169 + $0x238] sm:$0xff]
      %v249 = vld [vmem:[%s169 + $0x240] sm:$0xff]
      %v250 = vld [vmem:[%s169 + $0x248] sm:$0xff]
      %v251 = vld [vmem:[%s169 + $0x250] sm:$0xff]
      %v252 = vld [vmem:[%s169 + $0x258] sm:$0xff]
      %v253 = vld [vmem:[%s169 + $0x260] sm:$0xff]
      %v254 = vld [vmem:[%s169 + $0x268] sm:$0xff]
      %v255 = vld [vmem:[%s169 + $0x270] sm:$0xff]
      %v256 = vld [vmem:[%s169 + $0x278] sm:$0xff]
      %v257 = vld [vmem:[%s169 + $0x280] sm:$0xff]
      %v258 = vld [vmem:[%s169 + $0x288] sm:$0xff]
      %v259 = vld [vmem:[%s169 + $0x290] sm:$0xff]
      %v260 = vld [vmem:[%s169 + $0x298] sm:$0xff]
      %v261 = vld [vmem:[%s169 + $0x2a0] sm:$0xff]
      %v262 = vld [vmem:[%s169 + $0x2a8] sm:$0xff]
      %v263 = vld [vmem:[%s169 + $0x2b0] sm:$0xff]
      %v264 = vld [vmem:[%s169 + $0x2b8] sm:$0xff]
      %v265 = vld [vmem:[%s169 + $0x2c0] sm:$0xff]
      %v266 = vld [vmem:[%s169 + $0x2c8] sm:$0xff]
      %v267 = vld [vmem:[%s169 + $0x2d0] sm:$0xff]
      %v268 = vld [vmem:[%s169 + $0x2d8] sm:$0xff]
      %v269 = vld [vmem:[%s169 + $0x2e0] sm:$0xff]
      %v270 = vld [vmem:[%s169 + $0x2e8] sm:$0xff]
      %v271 = vld [vmem:[%s169 + $0x2f0] sm:$0xff]
      %v272 = vld [vmem:[%s169 + $0x2f8] sm:$0xff]
      %v273 = vld [vmem:[%s1] sm:$0xf]
      %v274 = vld [vmem:[%s1 + $0x4] sm:$0xf]
      %v275 = vld [vmem:[%s1 + $0x8] sm:$0xf]
      %v276 = vld [vmem:[%s1 + $0xc] sm:$0xf]
      %v277 = vld [vmem:[%s1 + $0x10] sm:$0xf]
      %v278 = vld [vmem:[%s1 + $0x14] sm:$0xf]
      %v279 = vld [vmem:[%s1 + $0x18] sm:$0xf]
      %v280 = vld [vmem:[%s1 + $0x1c] sm:$0xf]
      %v281 = vld [vmem:[%s1 + $0x20] sm:$0xf]
      %v282 = vld [vmem:[%s1 + $0x24] sm:$0xf]
      %v283 = vld [vmem:[%s1 + $0x28] sm:$0xf]
      %v284 = vld [vmem:[%s1 + $0x2c] sm:$0xf]
      %v285 = vld [vmem:[%s1 + $0x30] sm:$0xf]
      %v286 = vld [vmem:[%s1 + $0x34] sm:$0xf]
      %v287 = vld [vmem:[%s1 + $0x38] sm:$0xf]
      %v288 = vld [vmem:[%s1 + $0x3c] sm:$0xf]
      %v289 = vld [vmem:[%s1 + $0x40] sm:$0xf]
      %v290 = vld [vmem:[%s1 + $0x44] sm:$0xf]
      %v291 = vld [vmem:[%s1 + $0x48] sm:$0xf]
      %v292 = vld [vmem:[%s1 + $0x4c] sm:$0xf]
      %v293 = vld [vmem:[%s1 + $0x50] sm:$0xf]
      %v294 = vld [vmem:[%s1 + $0x54] sm:$0xf]
      %v295 = vld [vmem:[%s1 + $0x58] sm:$0xf]
      %v296 = vld [vmem:[%s1 + $0x5c] sm:$0xf]
      %v297 = vld [vmem:[%s1 + $0x60] sm:$0xf]
      %v298 = vld [vmem:[%s1 + $0x64] sm:$0xf]
      %v299 = vld [vmem:[%s1 + $0x68] sm:$0xf]
      %v300 = vld [vmem:[%s1 + $0x6c] sm:$0xf]
      %v301 = vld [vmem:[%s1 + $0x70] sm:$0xf]
      %v302 = vld [vmem:[%s1 + $0x74] sm:$0xf]
      %v303 = vld [vmem:[%s1 + $0x78] sm:$0xf]
      %v304 = vld [vmem:[%s1 + $0x7c] sm:$0xf]
      %v305 = vld [vmem:[%s1 + $0x80] sm:$0xf]
      %v306 = vld [vmem:[%s1 + $0x84] sm:$0xf]
      %v307 = vld [vmem:[%s1 + $0x88] sm:$0xf]
      %v308 = vld [vmem:[%s1 + $0x8c] sm:$0xf]
      %v309 = vld [vmem:[%s1 + $0x90] sm:$0xf]
      %v310 = vld [vmem:[%s1 + $0x94] sm:$0xf]
      %v311 = vld [vmem:[%s1 + $0x98] sm:$0xf]
      %v312 = vld [vmem:[%s1 + $0x9c] sm:$0xf]
      %v313 = vld [vmem:[%s1 + $0xa0] sm:$0xf]
      %v314 = vld [vmem:[%s1 + $0xa4] sm:$0xf]
      %v315 = vld [vmem:[%s1 + $0xa8] sm:$0xf]
      %v316 = vld [vmem:[%s1 + $0xac] sm:$0xf]
      %v317 = vld [vmem:[%s1 + $0xb0] sm:$0xf]
      %v318 = vld [vmem:[%s1 + $0xb4] sm:$0xf]
      %v319 = vld [vmem:[%s1 + $0xb8] sm:$0xf]
      %v320 = vld [vmem:[%s1 + $0xbc] sm:$0xf]
      %v321 = vld [vmem:[%s1 + $0xc0] sm:$0xf]
      %v322 = vld [vmem:[%s1 + $0xc4] sm:$0xf]
      %v323 = vld [vmem:[%s1 + $0xc8] sm:$0xf]
      %v324 = vld [vmem:[%s1 + $0xcc] sm:$0xf]
      %v325 = vld [vmem:[%s1 + $0xd0] sm:$0xf]
      %v326 = vld [vmem:[%s1 + $0xd4] sm:$0xf]
      %v327 = vld [vmem:[%s1 + $0xd8] sm:$0xf]
      %v328 = vld [vmem:[%s1 + $0xdc] sm:$0xf]
      %v329 = vld [vmem:[%s1 + $0xe0] sm:$0xf]
      %v330 = vld [vmem:[%s1 + $0xe4] sm:$0xf]
      %v331 = vld [vmem:[%s1 + $0xe8] sm:$0xf]
      %v332 = vld [vmem:[%s1 + $0xec] sm:$0xf]
      %v333 = vld [vmem:[%s1 + $0xf0] sm:$0xf]
      %v334 = vld [vmem:[%s1 + $0xf4] sm:$0xf]
      %v335 = vld [vmem:[%s1 + $0xf8] sm:$0xf]
      %v336 = vld [vmem:[%s1 + $0xfc] sm:$0xf]
      %v337 = vld [vmem:[%s1 + $0x100] sm:$0xf]
      %v338 = vld [vmem:[%s1 + $0x104] sm:$0xf]
      %v339 = vld [vmem:[%s1 + $0x108] sm:$0xf]
      %v340 = vld [vmem:[%s1 + $0x10c] sm:$0xf]
      %v341 = vld [vmem:[%s1 + $0x110] sm:$0xf]
      %v342 = vld [vmem:[%s1 + $0x114] sm:$0xf]
      %v343 = vld [vmem:[%s1 + $0x118] sm:$0xf]
      %v344 = vld [vmem:[%s1 + $0x11c] sm:$0xf]
      %v345 = vld [vmem:[%s1 + $0x120] sm:$0xf]
      %v346 = vld [vmem:[%s1 + $0x124] sm:$0xf]
      %v347 = vld [vmem:[%s1 + $0x128] sm:$0xf]
      %v348 = vld [vmem:[%s1 + $0x12c] sm:$0xf]
      %v349 = vld [vmem:[%s1 + $0x130] sm:$0xf]
      %v350 = vld [vmem:[%s1 + $0x134] sm:$0xf]
      %v351 = vld [vmem:[%s1 + $0x138] sm:$0xf]
      %v352 = vld [vmem:[%s1 + $0x13c] sm:$0xf]
      %v353 = vld [vmem:[%s1 + $0x140] sm:$0xf]
      %v354 = vld [vmem:[%s1 + $0x144] sm:$0xf]
      %v355 = vld [vmem:[%s1 + $0x148] sm:$0xf]
      %v356 = vld [vmem:[%s1 + $0x14c] sm:$0xf]
      %v357 = vld [vmem:[%s1 + $0x150] sm:$0xf]
      %v358 = vld [vmem:[%s1 + $0x154] sm:$0xf]
      %v359 = vld [vmem:[%s1 + $0x158] sm:$0xf]
      %v360 = vld [vmem:[%s1 + $0x15c] sm:$0xf]
      %v361 = vld [vmem:[%s1 + $0x160] sm:$0xf]
      %v362 = vld [vmem:[%s1 + $0x164] sm:$0xf]
      %v363 = vld [vmem:[%s1 + $0x168] sm:$0xf]
      %v364 = vld [vmem:[%s1 + $0x16c] sm:$0xf]
      %v365 = vld [vmem:[%s1 + $0x170] sm:$0xf]
      %v366 = vld [vmem:[%s1 + $0x174] sm:$0xf]
      %v367 = vld [vmem:[%s1 + $0x178] sm:$0xf]
      %v368 = vld [vmem:[%s1 + $0x17c] sm:$0xf]
      %v369 = vld [vmem:[%s2] sm:$0x1]
      %v371 = vperm.slane %v369, 0
      %v469 = vunpack.c.l.b16 %v177
      %v470 = vunpack.c.h.b16 %v177
      %v471 = vunpack.c.l.b16 %v178
      %v472 = vunpack.c.h.b16 %v178
      %v473 = vunpack.c.l.b16 %v179
      %v474 = vunpack.c.h.b16 %v179
      %v475 = vunpack.c.l.b16 %v180
      %v476 = vunpack.c.h.b16 %v180
      %v477 = vunpack.c.l.b16 %v181
      %v478 = vunpack.c.h.b16 %v181
      %v479 = vunpack.c.l.b16 %v182
      %v480 = vunpack.c.h.b16 %v182
      %v481 = vunpack.c.l.b16 %v183
      %v482 = vunpack.c.h.b16 %v183
      %v483 = vunpack.c.l.b16 %v184
      %v484 = vunpack.c.h.b16 %v184
      %v485 = vunpack.c.l.b16 %v185
      %v486 = vunpack.c.h.b16 %v185
      %v487 = vunpack.c.l.b16 %v186
      %v488 = vunpack.c.h.b16 %v186
      %v489 = vunpack.c.l.b16 %v187
      %v490 = vunpack.c.h.b16 %v187
      %v491 = vunpack.c.l.b16 %v188
      %v492 = vunpack.c.h.b16 %v188
      %v493 = vunpack.c.l.b16 %v189
      %v494 = vunpack.c.h.b16 %v189
      %v495 = vunpack.c.l.b16 %v190
      %v496 = vunpack.c.h.b16 %v190
      %v497 = vunpack.c.l.b16 %v191
      %v498 = vunpack.c.h.b16 %v191
      %v499 = vunpack.c.l.b16 %v192
      %v500 = vunpack.c.h.b16 %v192
      %v501 = vunpack.c.l.b16 %v193
      %v502 = vunpack.c.h.b16 %v193
      %v503 = vunpack.c.l.b16 %v194
      %v504 = vunpack.c.h.b16 %v194
      %v505 = vunpack.c.l.b16 %v195
      %v506 = vunpack.c.h.b16 %v195
      %v507 = vunpack.c.l.b16 %v196
      %v508 = vunpack.c.h.b16 %v196
      %v509 = vunpack.c.l.b16 %v197
      %v510 = vunpack.c.h.b16 %v197
      %v511 = vunpack.c.l.b16 %v198
      %v512 = vunpack.c.h.b16 %v198
      %v513 = vunpack.c.l.b16 %v199
      %v514 = vunpack.c.h.b16 %v199
      %v515 = vunpack.c.l.b16 %v200
      %v516 = vunpack.c.h.b16 %v200
      %v517 = vunpack.c.l.b16 %v201
      %v518 = vunpack.c.h.b16 %v201
      %v519 = vunpack.c.l.b16 %v202
      %v520 = vunpack.c.h.b16 %v202
      %v521 = vunpack.c.l.b16 %v203
      %v522 = vunpack.c.h.b16 %v203
      %v523 = vunpack.c.l.b16 %v204
      %v524 = vunpack.c.h.b16 %v204
      %v525 = vunpack.c.l.b16 %v205
      %v526 = vunpack.c.h.b16 %v205
      %v527 = vunpack.c.l.b16 %v206
      %v528 = vunpack.c.h.b16 %v206
      %v529 = vunpack.c.l.b16 %v207
      %v530 = vunpack.c.h.b16 %v207
      %v531 = vunpack.c.l.b16 %v208
      %v532 = vunpack.c.h.b16 %v208
      %v533 = vunpack.c.l.b16 %v209
      %v534 = vunpack.c.h.b16 %v209
      %v535 = vunpack.c.l.b16 %v210
      %v536 = vunpack.c.h.b16 %v210
      %v537 = vunpack.c.l.b16 %v211
      %v538 = vunpack.c.h.b16 %v211
      %v539 = vunpack.c.l.b16 %v212
      %v540 = vunpack.c.h.b16 %v212
      %v541 = vunpack.c.l.b16 %v213
      %v542 = vunpack.c.h.b16 %v213
      %v543 = vunpack.c.l.b16 %v214
      %v544 = vunpack.c.h.b16 %v214
      %v545 = vunpack.c.l.b16 %v215
      %v546 = vunpack.c.h.b16 %v215
      %v547 = vunpack.c.l.b16 %v216
      %v548 = vunpack.c.h.b16 %v216
      %v549 = vunpack.c.l.b16 %v217
      %v550 = vunpack.c.h.b16 %v217
      %v551 = vunpack.c.l.b16 %v218
      %v552 = vunpack.c.h.b16 %v218
      %v553 = vunpack.c.l.b16 %v219
      %v554 = vunpack.c.h.b16 %v219
      %v555 = vunpack.c.l.b16 %v220
      %v556 = vunpack.c.h.b16 %v220
      %v557 = vunpack.c.l.b16 %v221
      %v558 = vunpack.c.h.b16 %v221
      %v559 = vunpack.c.l.b16 %v222
      %v560 = vunpack.c.h.b16 %v222
      %v561 = vunpack.c.l.b16 %v223
      %v562 = vunpack.c.h.b16 %v223
      %v563 = vunpack.c.l.b16 %v224
      %v564 = vunpack.c.h.b16 %v224
      %v565 = vunpack.c.l.b16 %v225
      %v566 = vunpack.c.h.b16 %v225
      %v567 = vunpack.c.l.b16 %v226
      %v568 = vunpack.c.h.b16 %v226
      %v569 = vunpack.c.l.b16 %v227
      %v570 = vunpack.c.h.b16 %v227
      %v571 = vunpack.c.l.b16 %v228
      %v572 = vunpack.c.h.b16 %v228
      %v573 = vunpack.c.l.b16 %v229
      %v574 = vunpack.c.h.b16 %v229
      %v575 = vunpack.c.l.b16 %v230
      %v576 = vunpack.c.h.b16 %v230
      %v577 = vunpack.c.l.b16 %v231
      %v578 = vunpack.c.h.b16 %v231
      %v579 = vunpack.c.l.b16 %v232
      %v580 = vunpack.c.h.b16 %v232
      %v581 = vunpack.c.l.b16 %v233
      %v582 = vunpack.c.h.b16 %v233
      %v583 = vunpack.c.l.b16 %v234
      %v584 = vunpack.c.h.b16 %v234
      %v585 = vunpack.c.l.b16 %v235
      %v586 = vunpack.c.h.b16 %v235
      %v587 = vunpack.c.l.b16 %v236
      %v588 = vunpack.c.h.b16 %v236
      %v589 = vunpack.c.l.b16 %v237
      %v590 = vunpack.c.h.b16 %v237
      %v591 = vunpack.c.l.b16 %v238
      %v592 = vunpack.c.h.b16 %v238
      %v593 = vunpack.c.l.b16 %v239
      %v594 = vunpack.c.h.b16 %v239
      %v595 = vunpack.c.l.b16 %v240
      %v596 = vunpack.c.h.b16 %v240
      %v597 = vunpack.c.l.b16 %v241
      %v598 = vunpack.c.h.b16 %v241
      %v599 = vunpack.c.l.b16 %v242
      %v600 = vunpack.c.h.b16 %v242
      %v601 = vunpack.c.l.b16 %v243
      %v602 = vunpack.c.h.b16 %v243
      %v603 = vunpack.c.l.b16 %v244
      %v604 = vunpack.c.h.b16 %v244
      %v605 = vunpack.c.l.b16 %v245
      %v606 = vunpack.c.h.b16 %v245
      %v607 = vunpack.c.l.b16 %v246
      %v608 = vunpack.c.h.b16 %v246
      %v609 = vunpack.c.l.b16 %v247
      %v610 = vunpack.c.h.b16 %v247
      %v611 = vunpack.c.l.b16 %v248
      %v612 = vunpack.c.h.b16 %v248
      %v613 = vunpack.c.l.b16 %v249
      %v614 = vunpack.c.h.b16 %v249
      %v615 = vunpack.c.l.b16 %v250
      %v616 = vunpack.c.h.b16 %v250
      %v617 = vunpack.c.l.b16 %v251
      %v618 = vunpack.c.h.b16 %v251
      %v619 = vunpack.c.l.b16 %v252
      %v620 = vunpack.c.h.b16 %v252
      %v621 = vunpack.c.l.b16 %v253
      %v622 = vunpack.c.h.b16 %v253
      %v623 = vunpack.c.l.b16 %v254
      %v624 = vunpack.c.h.b16 %v254
      %v625 = vunpack.c.l.b16 %v255
      %v626 = vunpack.c.h.b16 %v255
      %v627 = vunpack.c.l.b16 %v256
      %v628 = vunpack.c.h.b16 %v256
      %v629 = vunpack.c.l.b16 %v257
      %v630 = vunpack.c.h.b16 %v257
      %v631 = vunpack.c.l.b16 %v258
      %v632 = vunpack.c.h.b16 %v258
      %v633 = vunpack.c.l.b16 %v259
      %v634 = vunpack.c.h.b16 %v259
      %v635 = vunpack.c.l.b16 %v260
      %v636 = vunpack.c.h.b16 %v260
      %v637 = vunpack.c.l.b16 %v261
      %v638 = vunpack.c.h.b16 %v261
      %v639 = vunpack.c.l.b16 %v262
      %v640 = vunpack.c.h.b16 %v262
      %v641 = vunpack.c.l.b16 %v263
      %v642 = vunpack.c.h.b16 %v263
      %v643 = vunpack.c.l.b16 %v264
      %v644 = vunpack.c.h.b16 %v264
      %v645 = vunpack.c.l.b16 %v265
      %v646 = vunpack.c.h.b16 %v265
      %v647 = vunpack.c.l.b16 %v266
      %v648 = vunpack.c.h.b16 %v266
      %v649 = vunpack.c.l.b16 %v267
      %v650 = vunpack.c.h.b16 %v267
      %v651 = vunpack.c.l.b16 %v268
      %v652 = vunpack.c.h.b16 %v268
      %v653 = vunpack.c.l.b16 %v269
      %v654 = vunpack.c.h.b16 %v269
      %v655 = vunpack.c.l.b16 %v270
      %v656 = vunpack.c.h.b16 %v270
      %v657 = vunpack.c.l.b16 %v271
      %v658 = vunpack.c.h.b16 %v271
      %v659 = vunpack.c.l.b16 %v272
      %v660 = vunpack.c.h.b16 %v272
      %v661 = vpack.c.b16 %v475, %v469
      %v662 = vpack.c.b16 %v476, %v470
      %v663 = vpack.c.b16 %v477, %v471
      %v664 = vpack.c.b16 %v478, %v472
      %v665 = vpack.c.b16 %v479, %v473
      %v666 = vpack.c.b16 %v480, %v474
      %v667 = vpack.c.b16 %v487, %v481
      %v668 = vpack.c.b16 %v488, %v482
      %v669 = vpack.c.b16 %v489, %v483
      %v670 = vpack.c.b16 %v490, %v484
      %v671 = vpack.c.b16 %v491, %v485
      %v672 = vpack.c.b16 %v492, %v486
      %v673 = vpack.c.b16 %v499, %v493
      %v674 = vpack.c.b16 %v500, %v494
      %v675 = vpack.c.b16 %v501, %v495
      %v676 = vpack.c.b16 %v502, %v496
      %v677 = vpack.c.b16 %v503, %v497
      %v678 = vpack.c.b16 %v504, %v498
      %v679 = vpack.c.b16 %v511, %v505
      %v680 = vpack.c.b16 %v512, %v506
      %v681 = vpack.c.b16 %v513, %v507
      %v682 = vpack.c.b16 %v514, %v508
      %v683 = vpack.c.b16 %v515, %v509
      %v684 = vpack.c.b16 %v516, %v510
      %v685 = vpack.c.b16 %v523, %v517
      %v686 = vpack.c.b16 %v524, %v518
      %v687 = vpack.c.b16 %v525, %v519
      %v688 = vpack.c.b16 %v526, %v520
      %v689 = vpack.c.b16 %v527, %v521
      %v690 = vpack.c.b16 %v528, %v522
      %v691 = vpack.c.b16 %v535, %v529
      %v692 = vpack.c.b16 %v536, %v530
      %v693 = vpack.c.b16 %v537, %v531
      %v694 = vpack.c.b16 %v538, %v532
      %v695 = vpack.c.b16 %v539, %v533
      %v696 = vpack.c.b16 %v540, %v534
      %v697 = vpack.c.b16 %v547, %v541
      %v698 = vpack.c.b16 %v548, %v542
      %v699 = vpack.c.b16 %v549, %v543
      %v700 = vpack.c.b16 %v550, %v544
      %v701 = vpack.c.b16 %v551, %v545
      %v702 = vpack.c.b16 %v552, %v546
      %v703 = vpack.c.b16 %v559, %v553
      %v704 = vpack.c.b16 %v560, %v554
      %v705 = vpack.c.b16 %v561, %v555
      %v706 = vpack.c.b16 %v562, %v556
      %v707 = vpack.c.b16 %v563, %v557
      %v708 = vpack.c.b16 %v564, %v558
      %v709 = vpack.c.b16 %v571, %v565
      %v710 = vpack.c.b16 %v572, %v566
      %v711 = vpack.c.b16 %v573, %v567
      %v712 = vpack.c.b16 %v574, %v568
      %v713 = vpack.c.b16 %v575, %v569
      %v714 = vpack.c.b16 %v576, %v570
      %v715 = vpack.c.b16 %v583, %v577
      %v716 = vpack.c.b16 %v584, %v578
      %v717 = vpack.c.b16 %v585, %v579
      %v718 = vpack.c.b16 %v586, %v580
      %v719 = vpack.c.b16 %v587, %v581
      %v720 = vpack.c.b16 %v588, %v582
      %v721 = vpack.c.b16 %v595, %v589
      %v722 = vpack.c.b16 %v596, %v590
      %v723 = vpack.c.b16 %v597, %v591
      %v724 = vpack.c.b16 %v598, %v592
      %v725 = vpack.c.b16 %v599, %v593
      %v726 = vpack.c.b16 %v600, %v594
      %v727 = vpack.c.b16 %v607, %v601
      %v728 = vpack.c.b16 %v608, %v602
      %v729 = vpack.c.b16 %v609, %v603
      %v730 = vpack.c.b16 %v610, %v604
      %v731 = vpack.c.b16 %v611, %v605
      %v732 = vpack.c.b16 %v612, %v606
      %v733 = vpack.c.b16 %v619, %v613
      %v734 = vpack.c.b16 %v620, %v614
      %v735 = vpack.c.b16 %v621, %v615
      %v736 = vpack.c.b16 %v622, %v616
      %v737 = vpack.c.b16 %v623, %v617
      %v738 = vpack.c.b16 %v624, %v618
      %v739 = vpack.c.b16 %v631, %v625
      %v740 = vpack.c.b16 %v632, %v626
      %v741 = vpack.c.b16 %v633, %v627
      %v742 = vpack.c.b16 %v634, %v628
      %v743 = vpack.c.b16 %v635, %v629
      %v744 = vpack.c.b16 %v636, %v630
      %v745 = vpack.c.b16 %v643, %v637
      %v746 = vpack.c.b16 %v644, %v638
      %v747 = vpack.c.b16 %v645, %v639
      %v748 = vpack.c.b16 %v646, %v640
      %v749 = vpack.c.b16 %v647, %v641
      %v750 = vpack.c.b16 %v648, %v642
      %v751 = vpack.c.b16 %v655, %v649
      %v752 = vpack.c.b16 %v656, %v650
      %v753 = vpack.c.b16 %v657, %v651
      %v754 = vpack.c.b16 %v658, %v652
      %v755 = vpack.c.b16 %v659, %v653
      %v756 = vpack.c.b16 %v660, %v654
      %v949 = vunpack.c.l.b16 %v273
      %v950 = vunpack.c.l.b16 %v274
      %v951 = vunpack.c.l.b16 %v275
      %v952 = vunpack.c.l.b16 %v276
      %v953 = vunpack.c.l.b16 %v277
      %v954 = vunpack.c.l.b16 %v278
      %v955 = vunpack.c.l.b16 %v279
      %v956 = vunpack.c.l.b16 %v280
      %v957 = vunpack.c.l.b16 %v281
      %v958 = vunpack.c.l.b16 %v282
      %v959 = vunpack.c.l.b16 %v283
      %v960 = vunpack.c.l.b16 %v284
      %v961 = vunpack.c.l.b16 %v285
      %v962 = vunpack.c.l.b16 %v286
      %v963 = vunpack.c.l.b16 %v287
      %v964 = vunpack.c.l.b16 %v288
      %v965 = vunpack.c.l.b16 %v289
      %v966 = vunpack.c.l.b16 %v290
      %v967 = vunpack.c.l.b16 %v291
      %v968 = vunpack.c.l.b16 %v292
      %v969 = vunpack.c.l.b16 %v293
      %v970 = vunpack.c.l.b16 %v294
      %v971 = vunpack.c.l.b16 %v295
      %v972 = vunpack.c.l.b16 %v296
      %v973 = vunpack.c.l.b16 %v297
      %v974 = vunpack.c.l.b16 %v298
      %v975 = vunpack.c.l.b16 %v299
      %v976 = vunpack.c.l.b16 %v300
      %v977 = vunpack.c.l.b16 %v301
      %v978 = vunpack.c.l.b16 %v302
      %v979 = vunpack.c.l.b16 %v303
      %v980 = vunpack.c.l.b16 %v304
      %v981 = vunpack.c.l.b16 %v305
      %v982 = vunpack.c.l.b16 %v306
      %v983 = vunpack.c.l.b16 %v307
      %v984 = vunpack.c.l.b16 %v308
      %v985 = vunpack.c.l.b16 %v309
      %v986 = vunpack.c.l.b16 %v310
      %v987 = vunpack.c.l.b16 %v311
      %v988 = vunpack.c.l.b16 %v312
      %v989 = vunpack.c.l.b16 %v313
      %v990 = vunpack.c.l.b16 %v314
      %v991 = vunpack.c.l.b16 %v315
      %v992 = vunpack.c.l.b16 %v316
      %v993 = vunpack.c.l.b16 %v317
      %v994 = vunpack.c.l.b16 %v318
      %v995 = vunpack.c.l.b16 %v319
      %v996 = vunpack.c.l.b16 %v320
      %v997 = vunpack.c.l.b16 %v321
      %v998 = vunpack.c.l.b16 %v322
      %v999 = vunpack.c.l.b16 %v323
      %v1000 = vunpack.c.l.b16 %v324
      %v1001 = vunpack.c.l.b16 %v325
      %v1002 = vunpack.c.l.b16 %v326
      %v1003 = vunpack.c.l.b16 %v327
      %v1004 = vunpack.c.l.b16 %v328
      %v1005 = vunpack.c.l.b16 %v329
      %v1006 = vunpack.c.l.b16 %v330
      %v1007 = vunpack.c.l.b16 %v331
      %v1008 = vunpack.c.l.b16 %v332
      %v1009 = vunpack.c.l.b16 %v333
      %v1010 = vunpack.c.l.b16 %v334
      %v1011 = vunpack.c.l.b16 %v335
      %v1012 = vunpack.c.l.b16 %v336
      %v1013 = vunpack.c.l.b16 %v337
      %v1014 = vunpack.c.l.b16 %v338
      %v1015 = vunpack.c.l.b16 %v339
      %v1016 = vunpack.c.l.b16 %v340
      %v1017 = vunpack.c.l.b16 %v341
      %v1018 = vunpack.c.l.b16 %v342
      %v1019 = vunpack.c.l.b16 %v343
      %v1020 = vunpack.c.l.b16 %v344
      %v1021 = vunpack.c.l.b16 %v345
      %v1022 = vunpack.c.l.b16 %v346
      %v1023 = vunpack.c.l.b16 %v347
      %v1024 = vunpack.c.l.b16 %v348
      %v1025 = vunpack.c.l.b16 %v349
      %v1026 = vunpack.c.l.b16 %v350
      %v1027 = vunpack.c.l.b16 %v351
      %v1028 = vunpack.c.l.b16 %v352
      %v1029 = vunpack.c.l.b16 %v353
      %v1030 = vunpack.c.l.b16 %v354
      %v1031 = vunpack.c.l.b16 %v355
      %v1032 = vunpack.c.l.b16 %v356
      %v1033 = vunpack.c.l.b16 %v357
      %v1034 = vunpack.c.l.b16 %v358
      %v1035 = vunpack.c.l.b16 %v359
      %v1036 = vunpack.c.l.b16 %v360
      %v1037 = vunpack.c.l.b16 %v361
      %v1038 = vunpack.c.l.b16 %v362
      %v1039 = vunpack.c.l.b16 %v363
      %v1040 = vunpack.c.l.b16 %v364
      %v1041 = vunpack.c.l.b16 %v365
      %v1042 = vunpack.c.l.b16 %v366
      %v1043 = vunpack.c.l.b16 %v367
      %v1044 = vunpack.c.l.b16 %v368
      %v1045 = vpack.c.b16 %v950, %v949
      %v1046 = vpack.c.b16 %v952, %v951
      %v1047 = vpack.c.b16 %v954, %v953
      %v1048 = vpack.c.b16 %v956, %v955
      %v1049 = vpack.c.b16 %v958, %v957
      %v1050 = vpack.c.b16 %v960, %v959
      %v1051 = vpack.c.b16 %v962, %v961
      %v1052 = vpack.c.b16 %v964, %v963
      %v1053 = vpack.c.b16 %v966, %v965
      %v1054 = vpack.c.b16 %v968, %v967
      %v1055 = vpack.c.b16 %v970, %v969
      %v1056 = vpack.c.b16 %v972, %v971
      %v1057 = vpack.c.b16 %v974, %v973
      %v1058 = vpack.c.b16 %v976, %v975
      %v1059 = vpack.c.b16 %v978, %v977
      %v1060 = vpack.c.b16 %v980, %v979
      %v1061 = vpack.c.b16 %v982, %v981
      %v1062 = vpack.c.b16 %v984, %v983
      %v1063 = vpack.c.b16 %v986, %v985
      %v1064 = vpack.c.b16 %v988, %v987
      %v1065 = vpack.c.b16 %v990, %v989
      %v1066 = vpack.c.b16 %v992, %v991
      %v1067 = vpack.c.b16 %v994, %v993
      %v1068 = vpack.c.b16 %v996, %v995
      %v1069 = vpack.c.b16 %v998, %v997
      %v1070 = vpack.c.b16 %v1000, %v999
      %v1071 = vpack.c.b16 %v1002, %v1001
      %v1072 = vpack.c.b16 %v1004, %v1003
      %v1073 = vpack.c.b16 %v1006, %v1005
      %v1074 = vpack.c.b16 %v1008, %v1007
      %v1075 = vpack.c.b16 %v1010, %v1009
      %v1076 = vpack.c.b16 %v1012, %v1011
      %v1077 = vpack.c.b16 %v1014, %v1013
      %v1078 = vpack.c.b16 %v1016, %v1015
      %v1079 = vpack.c.b16 %v1018, %v1017
      %v1080 = vpack.c.b16 %v1020, %v1019
      %v1081 = vpack.c.b16 %v1022, %v1021
      %v1082 = vpack.c.b16 %v1024, %v1023
      %v1083 = vpack.c.b16 %v1026, %v1025
      %v1084 = vpack.c.b16 %v1028, %v1027
      %v1085 = vpack.c.b16 %v1030, %v1029
      %v1086 = vpack.c.b16 %v1032, %v1031
      %v1087 = vpack.c.b16 %v1034, %v1033
      %v1088 = vpack.c.b16 %v1036, %v1035
      %v1089 = vpack.c.b16 %v1038, %v1037
      %v1090 = vpack.c.b16 %v1040, %v1039
      %v1091 = vpack.c.b16 %v1042, %v1041
      %v1092 = vpack.c.b16 %v1044, %v1043
      %1141 = vmatpush.bf16.msra.mxu0 %v1052
      %1142 = vmatpush.bf16.msra.mxu0 %v1051
      %1143 = vmatpush.bf16.msra.mxu0 %v1050
      %1144 = vmatpush.bf16.msra.mxu0 %v1049
      %1145 = vmatpush.bf16.msra.mxu0 %v1048
      %1146 = vmatpush.bf16.msra.mxu0 %v1047
      %1147 = vmatpush.bf16.msra.mxu0 %v1046
      %1148 = vmatpush.bf16.msra.mxu0 %v1045
      %1149 = vmatmul.bf16.gmra.mxu0 %v661
      %v1150 = vpop.f32.mrf.mxu0
      %v1151 = vadd.f32 %v371, %v1150
      %v1152 = vpop.f32.mrf.mxu0
      %v1153 = vadd.f32 %v371, %v1152
      %1154 = vmatmul.bf16.gmra.mxu0 %v667
      %v1155 = vpop.f32.mrf.mxu0
      %v1156 = vadd.f32 %v371, %v1155
      %v1157 = vpop.f32.mrf.mxu0
      %v1158 = vadd.f32 %v371, %v1157
      %1159 = vmatmul.bf16.gmra.mxu0 %v673
      %v1160 = vpop.f32.mrf.mxu0
      %v1161 = vadd.f32 %v371, %v1160
      %v1162 = vpop.f32.mrf.mxu0
      %v1163 = vadd.f32 %v371, %v1162
      %1164 = vmatmul.bf16.gmra.mxu0 %v679
      %v1165 = vpop.f32.mrf.mxu0
      %v1166 = vadd.f32 %v371, %v1165
      %v1167 = vpop.f32.mrf.mxu0
      %v1168 = vadd.f32 %v371, %v1167
      %1169 = vmatmul.bf16.gmra.mxu0 %v685
      %v1170 = vpop.f32.mrf.mxu0
      %v1171 = vadd.f32 %v371, %v1170
      %v1172 = vpop.f32.mrf.mxu0
      %v1173 = vadd.f32 %v371, %v1172
      %1174 = vmatmul.bf16.gmra.mxu0 %v691
      %v1175 = vpop.f32.mrf.mxu0
      %v1176 = vadd.f32 %v371, %v1175
      %v1177 = vpop.f32.mrf.mxu0
      %v1178 = vadd.f32 %v371, %v1177
      %1179 = vmatmul.bf16.gmra.mxu0 %v697
      %v1180 = vpop.f32.mrf.mxu0
      %v1181 = vadd.f32 %v371, %v1180
      %v1182 = vpop.f32.mrf.mxu0
      %v1183 = vadd.f32 %v371, %v1182
      %1184 = vmatmul.bf16.gmra.mxu0 %v703
      %v1185 = vpop.f32.mrf.mxu0
      %v1186 = vadd.f32 %v371, %v1185
      %v1187 = vpop.f32.mrf.mxu0
      %v1188 = vadd.f32 %v371, %v1187
      %1189 = vmatmul.bf16.gmra.mxu0 %v709
      %v1190 = vpop.f32.mrf.mxu0
      %v1191 = vadd.f32 %v371, %v1190
      %v1192 = vpop.f32.mrf.mxu0
      %v1193 = vadd.f32 %v371, %v1192
      %1194 = vmatmul.bf16.gmra.mxu0 %v715
      %v1195 = vpop.f32.mrf.mxu0
      %v1196 = vadd.f32 %v371, %v1195
      %v1197 = vpop.f32.mrf.mxu0
      %v1198 = vadd.f32 %v371, %v1197
      %1199 = vmatmul.bf16.gmra.mxu0 %v721
      %v1200 = vpop.f32.mrf.mxu0
      %v1201 = vadd.f32 %v371, %v1200
      %v1202 = vpop.f32.mrf.mxu0
      %v1203 = vadd.f32 %v371, %v1202
      %1204 = vmatmul.bf16.gmra.mxu0 %v727
      %v1205 = vpop.f32.mrf.mxu0
      %v1206 = vadd.f32 %v371, %v1205
      %v1207 = vpop.f32.mrf.mxu0
      %v1208 = vadd.f32 %v371, %v1207
      %1209 = vmatmul.bf16.gmra.mxu0 %v733
      %v1210 = vpop.f32.mrf.mxu0
      %v1211 = vadd.f32 %v371, %v1210
      %v1212 = vpop.f32.mrf.mxu0
      %v1213 = vadd.f32 %v371, %v1212
      %1214 = vmatmul.bf16.gmra.mxu0 %v739
      %v1215 = vpop.f32.mrf.mxu0
      %v1216 = vadd.f32 %v371, %v1215
      %v1217 = vpop.f32.mrf.mxu0
      %v1218 = vadd.f32 %v371, %v1217
      %1219 = vmatmul.bf16.gmra.mxu0 %v745
      %v1220 = vpop.f32.mrf.mxu0
      %v1221 = vadd.f32 %v371, %v1220
      %v1222 = vpop.f32.mrf.mxu0
      %v1223 = vadd.f32 %v371, %v1222
      %1224 = vmatmul.bf16.gmra.mxu0 %v751
      %v1225 = vpop.f32.mrf.mxu0
      %v1226 = vadd.f32 %v371, %v1225
      %v1227 = vpop.f32.mrf.mxu0
      %v1228 = vadd.f32 %v371, %v1227
      %1229 = vdwg.mxu0
      %1230 = vmatpush.bf16.msra.mxu0 %v1060
      %1231 = vmatpush.bf16.msra.mxu0 %v1059
      %1232 = vmatpush.bf16.msra.mxu0 %v1058
      %1233 = vmatpush.bf16.msra.mxu0 %v1057
      %1234 = vmatpush.bf16.msra.mxu0 %v1056
      %1235 = vmatpush.bf16.msra.mxu0 %v1055
      %1236 = vmatpush.bf16.msra.mxu0 %v1054
      %1237 = vmatpush.bf16.msra.mxu0 %v1053
      %1238 = vmatmul.bf16.gmra.mxu0 %v662
      %v1239 = vpop.f32.mrf.mxu0
      %v1240 = vadd.f32 %v1151, %v1239
      %v1241 = vpop.f32.mrf.mxu0
      %v1242 = vadd.f32 %v1153, %v1241
      %1243 = vmatmul.bf16.gmra.mxu0 %v668
      %v1244 = vpop.f32.mrf.mxu0
      %v1245 = vadd.f32 %v1156, %v1244
      %v1246 = vpop.f32.mrf.mxu0
      %v1247 = vadd.f32 %v1158, %v1246
      %1248 = vmatmul.bf16.gmra.mxu0 %v674
      %v1249 = vpop.f32.mrf.mxu0
      %v1250 = vadd.f32 %v1161, %v1249
      %v1251 = vpop.f32.mrf.mxu0
      %v1252 = vadd.f32 %v1163, %v1251
      %1253 = vmatmul.bf16.gmra.mxu0 %v680
      %v1254 = vpop.f32.mrf.mxu0
      %v1255 = vadd.f32 %v1166, %v1254
      %v1256 = vpop.f32.mrf.mxu0
      %v1257 = vadd.f32 %v1168, %v1256
      %1258 = vmatmul.bf16.gmra.mxu0 %v686
      %v1259 = vpop.f32.mrf.mxu0
      %v1260 = vadd.f32 %v1171, %v1259
      %v1261 = vpop.f32.mrf.mxu0
      %v1262 = vadd.f32 %v1173, %v1261
      %1263 = vmatmul.bf16.gmra.mxu0 %v692
      %v1264 = vpop.f32.mrf.mxu0
      %v1265 = vadd.f32 %v1176, %v1264
      %v1266 = vpop.f32.mrf.mxu0
      %v1267 = vadd.f32 %v1178, %v1266
      %1268 = vmatmul.bf16.gmra.mxu0 %v698
      %v1269 = vpop.f32.mrf.mxu0
      %v1270 = vadd.f32 %v1181, %v1269
      %v1271 = vpop.f32.mrf.mxu0
      %v1272 = vadd.f32 %v1183, %v1271
      %1273 = vmatmul.bf16.gmra.mxu0 %v704
      %v1274 = vpop.f32.mrf.mxu0
      %v1275 = vadd.f32 %v1186, %v1274
      %v1276 = vpop.f32.mrf.mxu0
      %v1277 = vadd.f32 %v1188, %v1276
      %1278 = vmatmul.bf16.gmra.mxu0 %v710
      %v1279 = vpop.f32.mrf.mxu0
      %v1280 = vadd.f32 %v1191, %v1279
      %v1281 = vpop.f32.mrf.mxu0
      %v1282 = vadd.f32 %v1193, %v1281
      %1283 = vmatmul.bf16.gmra.mxu0 %v716
      %v1284 = vpop.f32.mrf.mxu0
      %v1285 = vadd.f32 %v1196, %v1284
      %v1286 = vpop.f32.mrf.mxu0
      %v1287 = vadd.f32 %v1198, %v1286
      %1288 = vmatmul.bf16.gmra.mxu0 %v722
      %v1289 = vpop.f32.mrf.mxu0
      %v1290 = vadd.f32 %v1201, %v1289
      %v1291 = vpop.f32.mrf.mxu0
      %v1292 = vadd.f32 %v1203, %v1291
      %1293 = vmatmul.bf16.gmra.mxu0 %v728
      %v1294 = vpop.f32.mrf.mxu0
      %v1295 = vadd.f32 %v1206, %v1294
      %v1296 = vpop.f32.mrf.mxu0
      %v1297 = vadd.f32 %v1208, %v1296
      %1298 = vmatmul.bf16.gmra.mxu0 %v734
      %v1299 = vpop.f32.mrf.mxu0
      %v1300 = vadd.f32 %v1211, %v1299
      %v1301 = vpop.f32.mrf.mxu0
      %v1302 = vadd.f32 %v1213, %v1301
      %1303 = vmatmul.bf16.gmra.mxu0 %v740
      %v1304 = vpop.f32.mrf.mxu0
      %v1305 = vadd.f32 %v1216, %v1304
      %v1306 = vpop.f32.mrf.mxu0
      %v1307 = vadd.f32 %v1218, %v1306
      %1308 = vmatmul.bf16.gmra.mxu0 %v746
      %v1309 = vpop.f32.mrf.mxu0
      %v1310 = vadd.f32 %v1221, %v1309
      %v1311 = vpop.f32.mrf.mxu0
      %v1312 = vadd.f32 %v1223, %v1311
      %1313 = vmatmul.bf16.gmra.mxu0 %v752
      %v1314 = vpop.f32.mrf.mxu0
      %v1315 = vadd.f32 %v1226, %v1314
      %v1316 = vpop.f32.mrf.mxu0
      %v1317 = vadd.f32 %v1228, %v1316
      %1318 = vdwg.mxu0
      %1319 = vmatpush.bf16.msra.mxu0 %v1068
      %1320 = vmatpush.bf16.msra.mxu0 %v1067
      %1321 = vmatpush.bf16.msra.mxu0 %v1066
      %1322 = vmatpush.bf16.msra.mxu0 %v1065
      %1323 = vmatpush.bf16.msra.mxu0 %v1064
      %1324 = vmatpush.bf16.msra.mxu0 %v1063
      %1325 = vmatpush.bf16.msra.mxu0 %v1062
      %1326 = vmatpush.bf16.msra.mxu0 %v1061
      %1327 = vmatmul.bf16.gmra.mxu0 %v663
      %v1328 = vpop.f32.mrf.mxu0
      %v1329 = vadd.f32 %v1240, %v1328
      %v1330 = vpop.f32.mrf.mxu0
      %v1331 = vadd.f32 %v1242, %v1330
      %1332 = vmatmul.bf16.gmra.mxu0 %v669
      %v1333 = vpop.f32.mrf.mxu0
      %v1334 = vadd.f32 %v1245, %v1333
      %v1335 = vpop.f32.mrf.mxu0
      %v1336 = vadd.f32 %v1247, %v1335
      %1337 = vmatmul.bf16.gmra.mxu0 %v675
      %v1338 = vpop.f32.mrf.mxu0
      %v1339 = vadd.f32 %v1250, %v1338
      %v1340 = vpop.f32.mrf.mxu0
      %v1341 = vadd.f32 %v1252, %v1340
      %1342 = vmatmul.bf16.gmra.mxu0 %v681
      %v1343 = vpop.f32.mrf.mxu0
      %v1344 = vadd.f32 %v1255, %v1343
      %v1345 = vpop.f32.mrf.mxu0
      %v1346 = vadd.f32 %v1257, %v1345
      %1347 = vmatmul.bf16.gmra.mxu0 %v687
      %v1348 = vpop.f32.mrf.mxu0
      %v1349 = vadd.f32 %v1260, %v1348
      %v1350 = vpop.f32.mrf.mxu0
      %v1351 = vadd.f32 %v1262, %v1350
      %1352 = vmatmul.bf16.gmra.mxu0 %v693
      %v1353 = vpop.f32.mrf.mxu0
      %v1354 = vadd.f32 %v1265, %v1353
      %v1355 = vpop.f32.mrf.mxu0
      %v1356 = vadd.f32 %v1267, %v1355
      %1357 = vmatmul.bf16.gmra.mxu0 %v699
      %v1358 = vpop.f32.mrf.mxu0
      %v1359 = vadd.f32 %v1270, %v1358
      %v1360 = vpop.f32.mrf.mxu0
      %v1361 = vadd.f32 %v1272, %v1360
      %1362 = vmatmul.bf16.gmra.mxu0 %v705
      %v1363 = vpop.f32.mrf.mxu0
      %v1364 = vadd.f32 %v1275, %v1363
      %v1365 = vpop.f32.mrf.mxu0
      %v1366 = vadd.f32 %v1277, %v1365
      %1367 = vmatmul.bf16.gmra.mxu0 %v711
      %v1368 = vpop.f32.mrf.mxu0
      %v1369 = vadd.f32 %v1280, %v1368
      %v1370 = vpop.f32.mrf.mxu0
      %v1371 = vadd.f32 %v1282, %v1370
      %1372 = vmatmul.bf16.gmra.mxu0 %v717
      %v1373 = vpop.f32.mrf.mxu0
      %v1374 = vadd.f32 %v1285, %v1373
      %v1375 = vpop.f32.mrf.mxu0
      %v1376 = vadd.f32 %v1287, %v1375
      %1377 = vmatmul.bf16.gmra.mxu0 %v723
      %v1378 = vpop.f32.mrf.mxu0
      %v1379 = vadd.f32 %v1290, %v1378
      %v1380 = vpop.f32.mrf.mxu0
      %v1381 = vadd.f32 %v1292, %v1380
      %1382 = vmatmul.bf16.gmra.mxu0 %v729
      %v1383 = vpop.f32.mrf.mxu0
      %v1384 = vadd.f32 %v1295, %v1383
      %v1385 = vpop.f32.mrf.mxu0
      %v1386 = vadd.f32 %v1297, %v1385
      %1387 = vmatmul.bf16.gmra.mxu0 %v735
      %v1388 = vpop.f32.mrf.mxu0
      %v1389 = vadd.f32 %v1300, %v1388
      %v1390 = vpop.f32.mrf.mxu0
      %v1391 = vadd.f32 %v1302, %v1390
      %1392 = vmatmul.bf16.gmra.mxu0 %v741
      %v1393 = vpop.f32.mrf.mxu0
      %v1394 = vadd.f32 %v1305, %v1393
      %v1395 = vpop.f32.mrf.mxu0
      %v1396 = vadd.f32 %v1307, %v1395
      %1397 = vmatmul.bf16.gmra.mxu0 %v747
      %v1398 = vpop.f32.mrf.mxu0
      %v1399 = vadd.f32 %v1310, %v1398
      %v1400 = vpop.f32.mrf.mxu0
      %v1401 = vadd.f32 %v1312, %v1400
      %1402 = vmatmul.bf16.gmra.mxu0 %v753
      %v1403 = vpop.f32.mrf.mxu0
      %v1404 = vadd.f32 %v1315, %v1403
      %v1405 = vpop.f32.mrf.mxu0
      %v1406 = vadd.f32 %v1317, %v1405
      %1407 = vdwg.mxu0
      %1408 = vmatpush.bf16.msra.mxu0 %v1076
      %1409 = vmatpush.bf16.msra.mxu0 %v1075
      %1410 = vmatpush.bf16.msra.mxu0 %v1074
      %1411 = vmatpush.bf16.msra.mxu0 %v1073
      %1412 = vmatpush.bf16.msra.mxu0 %v1072
      %1413 = vmatpush.bf16.msra.mxu0 %v1071
      %1414 = vmatpush.bf16.msra.mxu0 %v1070
      %1415 = vmatpush.bf16.msra.mxu0 %v1069
      %1416 = vmatmul.bf16.gmra.mxu0 %v664
      %v1417 = vpop.f32.mrf.mxu0
      %v1418 = vadd.f32 %v1329, %v1417
      %v1419 = vpop.f32.mrf.mxu0
      %v1420 = vadd.f32 %v1331, %v1419
      %1421 = vmatmul.bf16.gmra.mxu0 %v670
      %v1422 = vpop.f32.mrf.mxu0
      %v1423 = vadd.f32 %v1334, %v1422
      %v1424 = vpop.f32.mrf.mxu0
      %v1425 = vadd.f32 %v1336, %v1424
      %1426 = vmatmul.bf16.gmra.mxu0 %v676
      %v1427 = vpop.f32.mrf.mxu0
      %v1428 = vadd.f32 %v1339, %v1427
      %v1429 = vpop.f32.mrf.mxu0
      %v1430 = vadd.f32 %v1341, %v1429
      %1431 = vmatmul.bf16.gmra.mxu0 %v682
      %v1432 = vpop.f32.mrf.mxu0
      %v1433 = vadd.f32 %v1344, %v1432
      %v1434 = vpop.f32.mrf.mxu0
      %v1435 = vadd.f32 %v1346, %v1434
      %1436 = vmatmul.bf16.gmra.mxu0 %v688
      %v1437 = vpop.f32.mrf.mxu0
      %v1438 = vadd.f32 %v1349, %v1437
      %v1439 = vpop.f32.mrf.mxu0
      %v1440 = vadd.f32 %v1351, %v1439
      %1441 = vmatmul.bf16.gmra.mxu0 %v694
      %v1442 = vpop.f32.mrf.mxu0
      %v1443 = vadd.f32 %v1354, %v1442
      %v1444 = vpop.f32.mrf.mxu0
      %v1445 = vadd.f32 %v1356, %v1444
      %1446 = vmatmul.bf16.gmra.mxu0 %v700
      %v1447 = vpop.f32.mrf.mxu0
      %v1448 = vadd.f32 %v1359, %v1447
      %v1449 = vpop.f32.mrf.mxu0
      %v1450 = vadd.f32 %v1361, %v1449
      %1451 = vmatmul.bf16.gmra.mxu0 %v706
      %v1452 = vpop.f32.mrf.mxu0
      %v1453 = vadd.f32 %v1364, %v1452
      %v1454 = vpop.f32.mrf.mxu0
      %v1455 = vadd.f32 %v1366, %v1454
      %1456 = vmatmul.bf16.gmra.mxu0 %v712
      %v1457 = vpop.f32.mrf.mxu0
      %v1458 = vadd.f32 %v1369, %v1457
      %v1459 = vpop.f32.mrf.mxu0
      %v1460 = vadd.f32 %v1371, %v1459
      %1461 = vmatmul.bf16.gmra.mxu0 %v718
      %v1462 = vpop.f32.mrf.mxu0
      %v1463 = vadd.f32 %v1374, %v1462
      %v1464 = vpop.f32.mrf.mxu0
      %v1465 = vadd.f32 %v1376, %v1464
      %1466 = vmatmul.bf16.gmra.mxu0 %v724
      %v1467 = vpop.f32.mrf.mxu0
      %v1468 = vadd.f32 %v1379, %v1467
      %v1469 = vpop.f32.mrf.mxu0
      %v1470 = vadd.f32 %v1381, %v1469
      %1471 = vmatmul.bf16.gmra.mxu0 %v730
      %v1472 = vpop.f32.mrf.mxu0
      %v1473 = vadd.f32 %v1384, %v1472
      %v1474 = vpop.f32.mrf.mxu0
      %v1475 = vadd.f32 %v1386, %v1474
      %1476 = vmatmul.bf16.gmra.mxu0 %v736
      %v1477 = vpop.f32.mrf.mxu0
      %v1478 = vadd.f32 %v1389, %v1477
      %v1479 = vpop.f32.mrf.mxu0
      %v1480 = vadd.f32 %v1391, %v1479
      %1481 = vmatmul.bf16.gmra.mxu0 %v742
      %v1482 = vpop.f32.mrf.mxu0
      %v1483 = vadd.f32 %v1394, %v1482
      %v1484 = vpop.f32.mrf.mxu0
      %v1485 = vadd.f32 %v1396, %v1484
      %1486 = vmatmul.bf16.gmra.mxu0 %v748
      %v1487 = vpop.f32.mrf.mxu0
      %v1488 = vadd.f32 %v1399, %v1487
      %v1489 = vpop.f32.mrf.mxu0
      %v1490 = vadd.f32 %v1401, %v1489
      %1491 = vmatmul.bf16.gmra.mxu0 %v754
      %v1492 = vpop.f32.mrf.mxu0
      %v1493 = vadd.f32 %v1404, %v1492
      %v1494 = vpop.f32.mrf.mxu0
      %v1495 = vadd.f32 %v1406, %v1494
      %1496 = vdwg.mxu0
      %1497 = vmatpush.bf16.msra.mxu0 %v1084
      %1498 = vmatpush.bf16.msra.mxu0 %v1083
      %1499 = vmatpush.bf16.msra.mxu0 %v1082
      %1500 = vmatpush.bf16.msra.mxu0 %v1081
      %1501 = vmatpush.bf16.msra.mxu0 %v1080
      %1502 = vmatpush.bf16.msra.mxu0 %v1079
      %1503 = vmatpush.bf16.msra.mxu0 %v1078
      %1504 = vmatpush.bf16.msra.mxu0 %v1077
      %1505 = vmatmul.bf16.gmra.mxu0 %v665
      %v1506 = vpop.f32.mrf.mxu0
      %v1507 = vadd.f32 %v1418, %v1506
      %v1508 = vpop.f32.mrf.mxu0
      %v1509 = vadd.f32 %v1420, %v1508
      %1510 = vmatmul.bf16.gmra.mxu0 %v671
      %v1511 = vpop.f32.mrf.mxu0
      %v1512 = vadd.f32 %v1423, %v1511
      %v1513 = vpop.f32.mrf.mxu0
      %v1514 = vadd.f32 %v1425, %v1513
      %1515 = vmatmul.bf16.gmra.mxu0 %v677
      %v1516 = vpop.f32.mrf.mxu0
      %v1517 = vadd.f32 %v1428, %v1516
      %v1518 = vpop.f32.mrf.mxu0
      %v1519 = vadd.f32 %v1430, %v1518
      %1520 = vmatmul.bf16.gmra.mxu0 %v683
      %v1521 = vpop.f32.mrf.mxu0
      %v1522 = vadd.f32 %v1433, %v1521
      %v1523 = vpop.f32.mrf.mxu0
      %v1524 = vadd.f32 %v1435, %v1523
      %1525 = vmatmul.bf16.gmra.mxu0 %v689
      %v1526 = vpop.f32.mrf.mxu0
      %v1527 = vadd.f32 %v1438, %v1526
      %v1528 = vpop.f32.mrf.mxu0
      %v1529 = vadd.f32 %v1440, %v1528
      %1530 = vmatmul.bf16.gmra.mxu0 %v695
      %v1531 = vpop.f32.mrf.mxu0
      %v1532 = vadd.f32 %v1443, %v1531
      %v1533 = vpop.f32.mrf.mxu0
      %v1534 = vadd.f32 %v1445, %v1533
      %1535 = vmatmul.bf16.gmra.mxu0 %v701
      %v1536 = vpop.f32.mrf.mxu0
      %v1537 = vadd.f32 %v1448, %v1536
      %v1538 = vpop.f32.mrf.mxu0
      %v1539 = vadd.f32 %v1450, %v1538
      %1540 = vmatmul.bf16.gmra.mxu0 %v707
      %v1541 = vpop.f32.mrf.mxu0
      %v1542 = vadd.f32 %v1453, %v1541
      %v1543 = vpop.f32.mrf.mxu0
      %v1544 = vadd.f32 %v1455, %v1543
      %1545 = vmatmul.bf16.gmra.mxu0 %v713
      %v1546 = vpop.f32.mrf.mxu0
      %v1547 = vadd.f32 %v1458, %v1546
      %v1548 = vpop.f32.mrf.mxu0
      %v1549 = vadd.f32 %v1460, %v1548
      %1550 = vmatmul.bf16.gmra.mxu0 %v719
      %v1551 = vpop.f32.mrf.mxu0
      %v1552 = vadd.f32 %v1463, %v1551
      %v1553 = vpop.f32.mrf.mxu0
      %v1554 = vadd.f32 %v1465, %v1553
      %1555 = vmatmul.bf16.gmra.mxu0 %v725
      %v1556 = vpop.f32.mrf.mxu0
      %v1557 = vadd.f32 %v1468, %v1556
      %v1558 = vpop.f32.mrf.mxu0
      %v1559 = vadd.f32 %v1470, %v1558
      %1560 = vmatmul.bf16.gmra.mxu0 %v731
      %v1561 = vpop.f32.mrf.mxu0
      %v1562 = vadd.f32 %v1473, %v1561
      %v1563 = vpop.f32.mrf.mxu0
      %v1564 = vadd.f32 %v1475, %v1563
      %1565 = vmatmul.bf16.gmra.mxu0 %v737
      %v1566 = vpop.f32.mrf.mxu0
      %v1567 = vadd.f32 %v1478, %v1566
      %v1568 = vpop.f32.mrf.mxu0
      %v1569 = vadd.f32 %v1480, %v1568
      %1570 = vmatmul.bf16.gmra.mxu0 %v743
      %v1571 = vpop.f32.mrf.mxu0
      %v1572 = vadd.f32 %v1483, %v1571
      %v1573 = vpop.f32.mrf.mxu0
      %v1574 = vadd.f32 %v1485, %v1573
      %1575 = vmatmul.bf16.gmra.mxu0 %v749
      %v1576 = vpop.f32.mrf.mxu0
      %v1577 = vadd.f32 %v1488, %v1576
      %v1578 = vpop.f32.mrf.mxu0
      %v1579 = vadd.f32 %v1490, %v1578
      %1580 = vmatmul.bf16.gmra.mxu0 %v755
      %v1581 = vpop.f32.mrf.mxu0
      %v1582 = vadd.f32 %v1493, %v1581
      %v1583 = vpop.f32.mrf.mxu0
      %v1584 = vadd.f32 %v1495, %v1583
      %1585 = vdwg.mxu0
      %1586 = vmatpush.bf16.msra.mxu0 %v1092
      %1587 = vmatpush.bf16.msra.mxu0 %v1091
      %1588 = vmatpush.bf16.msra.mxu0 %v1090
      %1589 = vmatpush.bf16.msra.mxu0 %v1089
      %1590 = vmatpush.bf16.msra.mxu0 %v1088
      %1591 = vmatpush.bf16.msra.mxu0 %v1087
      %1592 = vmatpush.bf16.msra.mxu0 %v1086
      %1593 = vmatpush.bf16.msra.mxu0 %v1085
      %1594 = vmatmul.bf16.gmra.mxu0 %v666
      %v1595 = vpop.f32.mrf.mxu0
      %v1596 = vadd.f32 %v1507, %v1595
      %v1597 = vpop.f32.mrf.mxu0
      %v1598 = vadd.f32 %v1509, %v1597
      %1599 = vmatmul.bf16.gmra.mxu0 %v672
      %v1600 = vpop.f32.mrf.mxu0
      %v1601 = vadd.f32 %v1512, %v1600
      %v1602 = vpop.f32.mrf.mxu0
      %v1603 = vadd.f32 %v1514, %v1602
      %1604 = vmatmul.bf16.gmra.mxu0 %v678
      %v1605 = vpop.f32.mrf.mxu0
      %v1606 = vadd.f32 %v1517, %v1605
      %v1607 = vpop.f32.mrf.mxu0
      %v1608 = vadd.f32 %v1519, %v1607
      %1609 = vmatmul.bf16.gmra.mxu0 %v684
      %v1610 = vpop.f32.mrf.mxu0
      %v1611 = vadd.f32 %v1522, %v1610
      %v1612 = vpop.f32.mrf.mxu0
      %v1613 = vadd.f32 %v1524, %v1612
      %1614 = vmatmul.bf16.gmra.mxu0 %v690
      %v1615 = vpop.f32.mrf.mxu0
      %v1616 = vadd.f32 %v1527, %v1615
      %v1617 = vpop.f32.mrf.mxu0
      %v1618 = vadd.f32 %v1529, %v1617
      %1619 = vmatmul.bf16.gmra.mxu0 %v696
      %v1620 = vpop.f32.mrf.mxu0
      %v1621 = vadd.f32 %v1532, %v1620
      %v1622 = vpop.f32.mrf.mxu0
      %v1623 = vadd.f32 %v1534, %v1622
      %1624 = vmatmul.bf16.gmra.mxu0 %v702
      %v1625 = vpop.f32.mrf.mxu0
      %v1626 = vadd.f32 %v1537, %v1625
      %v1627 = vpop.f32.mrf.mxu0
      %v1628 = vadd.f32 %v1539, %v1627
      %1629 = vmatmul.bf16.gmra.mxu0 %v708
      %v1630 = vpop.f32.mrf.mxu0
      %v1631 = vadd.f32 %v1542, %v1630
      %v1632 = vpop.f32.mrf.mxu0
      %v1633 = vadd.f32 %v1544, %v1632
      %1634 = vmatmul.bf16.gmra.mxu0 %v714
      %v1635 = vpop.f32.mrf.mxu0
      %v1636 = vadd.f32 %v1547, %v1635
      %v1637 = vpop.f32.mrf.mxu0
      %v1638 = vadd.f32 %v1549, %v1637
      %1639 = vmatmul.bf16.gmra.mxu0 %v720
      %v1640 = vpop.f32.mrf.mxu0
      %v1641 = vadd.f32 %v1552, %v1640
      %v1642 = vpop.f32.mrf.mxu0
      %v1643 = vadd.f32 %v1554, %v1642
      %1644 = vmatmul.bf16.gmra.mxu0 %v726
      %v1645 = vpop.f32.mrf.mxu0
      %v1646 = vadd.f32 %v1557, %v1645
      %v1647 = vpop.f32.mrf.mxu0
      %v1648 = vadd.f32 %v1559, %v1647
      %1649 = vmatmul.bf16.gmra.mxu0 %v732
      %v1650 = vpop.f32.mrf.mxu0
      %v1651 = vadd.f32 %v1562, %v1650
      %v1652 = vpop.f32.mrf.mxu0
      %v1653 = vadd.f32 %v1564, %v1652
      %1654 = vmatmul.bf16.gmra.mxu0 %v738
      %v1655 = vpop.f32.mrf.mxu0
      %v1656 = vadd.f32 %v1567, %v1655
      %v1657 = vpop.f32.mrf.mxu0
      %v1658 = vadd.f32 %v1569, %v1657
      %1659 = vmatmul.bf16.gmra.mxu0 %v744
      %v1660 = vpop.f32.mrf.mxu0
      %v1661 = vadd.f32 %v1572, %v1660
      %v1662 = vpop.f32.mrf.mxu0
      %v1663 = vadd.f32 %v1574, %v1662
      %1664 = vmatmul.bf16.gmra.mxu0 %v750
      %v1665 = vpop.f32.mrf.mxu0
      %v1666 = vadd.f32 %v1577, %v1665
      %v1667 = vpop.f32.mrf.mxu0
      %v1668 = vadd.f32 %v1579, %v1667
      %1669 = vmatmul.bf16.gmra.mxu0 %v756
      %v1670 = vpop.f32.mrf.mxu0
      %v1671 = vadd.f32 %v1582, %v1670
      %v1672 = vpop.f32.mrf.mxu0
      %v1673 = vadd.f32 %v1584, %v1672
      %1674 = vdwg.mxu0
      %v1675 = vmul.f32 %v1596, 0.2
      %v1676 = vmul.f32 %v1598, 0.2
      %v1677 = vmul.f32 %v1601, 0.2
      %v1678 = vmul.f32 %v1603, 0.2
      %v1679 = vmul.f32 %v1606, 0.2
      %v1680 = vmul.f32 %v1608, 0.2
      %v1681 = vmul.f32 %v1611, 0.2
      %v1682 = vmul.f32 %v1613, 0.2
      %v1683 = vmul.f32 %v1616, 0.2
      %v1684 = vmul.f32 %v1618, 0.2
      %v1685 = vmul.f32 %v1621, 0.2
      %v1686 = vmul.f32 %v1623, 0.2
      %v1687 = vmul.f32 %v1626, 0.2
      %v1688 = vmul.f32 %v1628, 0.2
      %v1689 = vmul.f32 %v1631, 0.2
      %v1690 = vmul.f32 %v1633, 0.2
      %v1691 = vmul.f32 %v1636, 0.2
      %v1692 = vmul.f32 %v1638, 0.2
      %v1693 = vmul.f32 %v1641, 0.2
      %v1694 = vmul.f32 %v1643, 0.2
      %v1695 = vmul.f32 %v1646, 0.2
      %v1696 = vmul.f32 %v1648, 0.2
      %v1697 = vmul.f32 %v1651, 0.2
      %v1698 = vmul.f32 %v1653, 0.2
      %v1699 = vmul.f32 %v1656, 0.2
      %v1700 = vmul.f32 %v1658, 0.2
      %v1701 = vmul.f32 %v1661, 0.2
      %v1702 = vmul.f32 %v1663, 0.2
      %v1703 = vmul.f32 %v1666, 0.2
      %v1704 = vmul.f32 %v1668, 0.2
      %v1705 = vmul.f32 %v1671, 0.2
      %v1706 = vmul.f32 %v1673, 0.2
      %v1707 = vmax.f32 %v1596, %v1675
      %v1708 = vmax.f32 %v1598, %v1676
      %v1709 = vmax.f32 %v1601, %v1677
      %v1710 = vmax.f32 %v1603, %v1678
      %v1711 = vmax.f32 %v1606, %v1679
      %v1712 = vmax.f32 %v1608, %v1680
      %v1713 = vmax.f32 %v1611, %v1681
      %v1714 = vmax.f32 %v1613, %v1682
      %v1715 = vmax.f32 %v1616, %v1683
      %v1716 = vmax.f32 %v1618, %v1684
      %v1717 = vmax.f32 %v1621, %v1685
      %v1718 = vmax.f32 %v1623, %v1686
      %v1719 = vmax.f32 %v1626, %v1687
      %v1720 = vmax.f32 %v1628, %v1688
      %v1721 = vmax.f32 %v1631, %v1689
      %v1722 = vmax.f32 %v1633, %v1690
      %v1723 = vmax.f32 %v1636, %v1691
      %v1724 = vmax.f32 %v1638, %v1692
      %v1725 = vmax.f32 %v1641, %v1693
      %v1726 = vmax.f32 %v1643, %v1694
      %v1727 = vmax.f32 %v1646, %v1695
      %v1728 = vmax.f32 %v1648, %v1696
      %v1729 = vmax.f32 %v1651, %v1697
      %v1730 = vmax.f32 %v1653, %v1698
      %v1731 = vmax.f32 %v1656, %v1699
      %v1732 = vmax.f32 %v1658, %v1700
      %v1733 = vmax.f32 %v1661, %v1701
      %v1734 = vmax.f32 %v1663, %v1702
      %v1735 = vmax.f32 %v1666, %v1703
      %v1736 = vmax.f32 %v1668, %v1704
      %v1737 = vmax.f32 %v1671, %v1705
      %v1738 = vmax.f32 %v1673, %v1706
      %v1739 = vpack.c.bf16 %v1707, %v1707
      %v1740 = vpack.c.bf16 %v1708, %v1708
      %v1741 = vpack.c.bf16 %v1709, %v1709
      %v1742 = vpack.c.bf16 %v1710, %v1710
      %v1743 = vpack.c.bf16 %v1711, %v1711
      %v1744 = vpack.c.bf16 %v1712, %v1712
      %v1745 = vpack.c.bf16 %v1713, %v1713
      %v1746 = vpack.c.bf16 %v1714, %v1714
      %v1747 = vpack.c.bf16 %v1715, %v1715
      %v1748 = vpack.c.bf16 %v1716, %v1716
      %v1749 = vpack.c.bf16 %v1717, %v1717
      %v1750 = vpack.c.bf16 %v1718, %v1718
      %v1751 = vpack.c.bf16 %v1719, %v1719
      %v1752 = vpack.c.bf16 %v1720, %v1720
      %v1753 = vpack.c.bf16 %v1721, %v1721
      %v1754 = vpack.c.bf16 %v1722, %v1722
      %v1755 = vpack.c.bf16 %v1723, %v1723
      %v1756 = vpack.c.bf16 %v1724, %v1724
      %v1757 = vpack.c.bf16 %v1725, %v1725
      %v1758 = vpack.c.bf16 %v1726, %v1726
      %v1759 = vpack.c.bf16 %v1727, %v1727
      %v1760 = vpack.c.bf16 %v1728, %v1728
      %v1761 = vpack.c.bf16 %v1729, %v1729
      %v1762 = vpack.c.bf16 %v1730, %v1730
      %v1763 = vpack.c.bf16 %v1731, %v1731
      %v1764 = vpack.c.bf16 %v1732, %v1732
      %v1765 = vpack.c.bf16 %v1733, %v1733
      %v1766 = vpack.c.bf16 %v1734, %v1734
      %v1767 = vpack.c.bf16 %v1735, %v1735
      %v1768 = vpack.c.bf16 %v1736, %v1736
      %v1769 = vpack.c.bf16 %v1737, %v1737
      %v1770 = vpack.c.bf16 %v1738, %v1738
      %1771 = vst [vmem:[%s175] sm:$0xf] %v1739
      %1772 = vst [vmem:[%s175 + $0x4] sm:$0xf] %v1740
      %1773 = vst [vmem:[%s175 + $0x8] sm:$0xf] %v1741
      %1774 = vst [vmem:[%s175 + $0xc] sm:$0xf] %v1742
      %1775 = vst [vmem:[%s175 + $0x10] sm:$0xf] %v1743
      %1776 = vst [vmem:[%s175 + $0x14] sm:$0xf] %v1744
      %1777 = vst [vmem:[%s175 + $0x18] sm:$0xf] %v1745
      %1778 = vst [vmem:[%s175 + $0x1c] sm:$0xf] %v1746
      %1779 = vst [vmem:[%s175 + $0x20] sm:$0xf] %v1747
      %1780 = vst [vmem:[%s175 + $0x24] sm:$0xf] %v1748
      %1781 = vst [vmem:[%s175 + $0x28] sm:$0xf] %v1749
      %1782 = vst [vmem:[%s175 + $0x2c] sm:$0xf] %v1750
      %1783 = vst [vmem:[%s175 + $0x30] sm:$0xf] %v1751
      %1784 = vst [vmem:[%s175 + $0x34] sm:$0xf] %v1752
      %1785 = vst [vmem:[%s175 + $0x38] sm:$0xf] %v1753
      %1786 = vst [vmem:[%s175 + $0x3c] sm:$0xf] %v1754
      %1787 = vst [vmem:[%s175 + $0x40] sm:$0xf] %v1755
      %1788 = vst [vmem:[%s175 + $0x44] sm:$0xf] %v1756
      %1789 = vst [vmem:[%s175 + $0x48] sm:$0xf] %v1757
      %1790 = vst [vmem:[%s175 + $0x4c] sm:$0xf] %v1758
      %1791 = vst [vmem:[%s175 + $0x50] sm:$0xf] %v1759
      %1792 = vst [vmem:[%s175 + $0x54] sm:$0xf] %v1760
      %1793 = vst [vmem:[%s175 + $0x58] sm:$0xf] %v1761
      %1794 = vst [vmem:[%s175 + $0x5c] sm:$0xf] %v1762
      %1795 = vst [vmem:[%s175 + $0x60] sm:$0xf] %v1763
      %1796 = vst [vmem:[%s175 + $0x64] sm:$0xf] %v1764
      %1797 = vst [vmem:[%s175 + $0x68] sm:$0xf] %v1765
      %1798 = vst [vmem:[%s175 + $0x6c] sm:$0xf] %v1766
      %1799 = vst [vmem:[%s175 + $0x70] sm:$0xf] %v1767
      %1800 = vst [vmem:[%s175 + $0x74] sm:$0xf] %v1768
      %1801 = vst [vmem:[%s175 + $0x78] sm:$0xf] %v1769
      %1802 = vst [vmem:[%s175 + $0x7c] sm:$0xf] %v1770
      %s1803 = smul.u32 32, %s14
      %p1804 = scmp.lt.s32.totalorder %s1803, 63
      %s1805 = scalar_select %p1804, %s1803, 63
      %s1806 = smul.addr %s1805, 4
      %s1807 = scalar_lea.vmem %s3, %s1806
      // Predicated region
      $region33: #{_lambda_.4} parent=31 // pred_check
        %p1808 = pneg %p100
      $region34: #{_lambda_.4} parent=31 // pred_check_branch
        %1810 = sbr.rel (%p1808) target = $region36
      $region35: #{_lambda_.4} parent=31 // pred_region
        %s1811 = smul.u32 32, %s14
      $region36: #{_lambda_.4} parent=31 // pred_fallthru
        _
    $region32: #{_lambda_.4} parent=5 // pred_fallthru
      _
    %p1812 = scmp.le.s32.totalorder 2, %s9
    // Predicated region
    $region37: #{_lambda_.4} parent=5 // pred_check
      %p1813 = pneg %p1812
    $region38: #{_lambda_.4} parent=5 // pred_check_branch
      %1815 = sbr.rel (%p1813) target = $region40
    $region39: #{_lambda_.4} parent=5 // pred_region
      %s1816 = ssub.s32 %s9, 2
      // Predicated region
      $region41: #{_lambda_.4} parent=39 // pred_check
        %p1817 = pneg %p106
      $region42: #{_lambda_.4} parent=39 // pred_check_branch
        %1819 = sbr.rel (%p1817) target = $region44
      $region43: #{_lambda_.4} parent=39 // pred_region
        %s1820 = smul.u32 32, %s15
        %p1821 = scmp.lt.s32.totalorder %s1820, 63
        %s1822 = scalar_select %p1821, %s1820, 63
        %s1823 = smul.addr %s1822, 4
        %s1824 = scalar_lea.vmem %s3, %s1823
      $region44: #{_lambda_.4} parent=39 // pred_fallthru
        _
    $region40: #{_lambda_.4} parent=5 // pred_fallthru
      _
  $region6: #{_lambda_.4} parent=0 // loop_footer
    %s13 = sadd.s32 1, %s9
  $region7: #{_lambda_.4} parent=0 // loop_footer_branch
    %8 = sbr.rel target = $region3
  $region8: #{_lambda_.4} parent=0 // loop_exit
    _

// kernel: _lambda_.5
$region0: #{_lambda_.5}
  #allocation0 [shape = 'u32[]', space=smem, size = 0x4, offset = 0x4, fixed_abs, tag = 'smem constant byte address 0x4 - core index']
  #allocation1 [shape = 'u32[72,128]{1,0:T(1,128)}', space=vmem, size = 0x9000, scoped, tag = 'internal scratch']
  %s0 = inlined_call_operand.vmem [shape: bf16[256,1024], index: 0, kind: input, shape index: {}]
  %s1 = inlined_call_operand.vmem [shape: bf16[1024,128], index: 1, kind: input, shape index: {}]
  %s2 = inlined_call_operand.vmem [shape: f32[1,128], index: 2, kind: input, shape index: {}]
  %s3 = inlined_call_operand.vmem [shape: bf16[256,128], index: 3, kind: output, shape index: {}]
  %s4 = sld [smem:[#allocation0]]
  $region45: #{_lambda_.5} parent=0
    _
  %s6 = ssub.s32 1, %s4
  %s7 = scalar_select 0, %s6, %s4
  loop: start=0, step=1, limit=4
  $region2: #{_lambda_.5} parent=0 // loop_pre_header
    _
  $region3: #{_lambda_.5} parent=0 // loop_header
    %s9 = sphi 0, %s13
    %p10 = scmp.ge.s32.totalorder %s9, 4
    %s19 = sphi 0, %s21
    %s22 = sphi 0, %s19
    %s23 = sphi 0, %s22
    %s39 = sphi 0, %s23
    %s43 = sphi 0, %s43
    %s45 = sphi 0, %s43
    %s46 = sphi 0, %s45
    %s60 = sphi 0, %s46
    %s64 = sphi 0, %s64
    %s66 = sphi 0, %s64
    %s67 = sphi 0, %s66
    %s81 = sphi 0, %s67
    %s87 = sphi 0, %s89
    %s90 = sphi 0, %s87
    %s91 = sphi 0, %s90
    %s107 = sphi 0, %s91
  $region4: #{_lambda_.5} parent=0 // loop_header_branch
    %12 = sbr.rel (%p10) target = $region8
  $region5: #{_lambda_.5} parent=0 // loop_body
    %s14 = ssub.s32 %s9, 1
    %s15 = ssub.s32 %s9, 2
    %s16 = sadd.s32 %s9, 1
    %s17 = ssub.s32 %s9, %s16
    %p18 = scmp.eq.s32.totalorder %s17, 0
    %s20 = sadd.s32 %s19, 1
    %s21 = scalar_select %p18, %s19, %s20
    %p24 = pneg %p18
    %p25 = scmp.eq.s32.totalorder %s9, 1
    %p26 = por %p24, %p25
    %p27 = scmp.ne.s32.totalorder %s19, %s22
    %p28 = scmp.eq.s32.totalorder %s9, 0
    %p29 = por %p27, %p28
    %p30 = scmp.ne.s32.totalorder %s19, %s22
    %p31 = scmp.eq.s32.totalorder %s14, 1
    %p32 = por %p30, %p31
    %p33 = scmp.ne.s32.totalorder %s22, %s23
    %p34 = scmp.eq.s32.totalorder %s14, 0
    %p35 = por %p33, %p34
    %p36 = scmp.ne.s32.totalorder %s22, %s23
    %p37 = scmp.eq.s32.totalorder %s15, 1
    %p38 = por %p36, %p37
    %p40 = scmp.ne.s32.totalorder %s23, %s39
    %p41 = scmp.eq.s32.totalorder %s15, 0
    %p42 = por %p40, %p41
    %s44 = sadd.s32 %s43, 1
    %p47 = scmp.eq.s32.totalorder %s9, 1
    %p48 = scmp.ne.s32.totalorder %s43, %s45
    %p49 = scmp.eq.s32.totalorder %s9, 0
    %p50 = por %p48, %p49
    %p51 = scmp.ne.s32.totalorder %s43, %s45
    %p52 = scmp.eq.s32.totalorder %s14, 1
    %p53 = por %p51, %p52
    %p54 = scmp.ne.s32.totalorder %s45, %s46
    %p55 = scmp.eq.s32.totalorder %s14, 0
    %p56 = por %p54, %p55
    %p57 = scmp.ne.s32.totalorder %s45, %s46
    %p58 = scmp.eq.s32.totalorder %s15, 1
    %p59 = por %p57, %p58
    %p61 = scmp.ne.s32.totalorder %s46, %s60
    %p62 = scmp.eq.s32.totalorder %s15, 0
    %p63 = por %p61, %p62
    %s65 = sadd.s32 %s64, 1
    %p68 = scmp.eq.s32.totalorder %s9, 1
    %p69 = scmp.ne.s32.totalorder %s64, %s66
    %p70 = scmp.eq.s32.totalorder %s9, 0
    %p71 = por %p69, %p70
    %p72 = scmp.ne.s32.totalorder %s64, %s66
    %p73 = scmp.eq.s32.totalorder %s14, 1
    %p74 = por %p72, %p73
    %p75 = scmp.ne.s32.totalorder %s66, %s67
    %p76 = scmp.eq.s32.totalorder %s14, 0
    %p77 = por %p75, %p76
    %p78 = scmp.ne.s32.totalorder %s66, %s67
    %p79 = scmp.eq.s32.totalorder %s15, 1
    %p80 = por %p78, %p79
    %p82 = scmp.ne.s32.totalorder %s67, %s81
    %p83 = scmp.eq.s32.totalorder %s15, 0
    %p84 = por %p82, %p83
    %s85 = ssub.s32 %s9, %s16
    %p86 = scmp.eq.s32.totalorder %s85, 0
    %s88 = sadd.s32 %s87, 1
    %s89 = scalar_select %p86, %s87, %s88
    %p92 = pneg %p86
    %p93 = scmp.eq.s32.totalorder %s9, 1
    %p94 = por %p92, %p93
    %p95 = scmp.ne.s32.totalorder %s87, %s90
    %p96 = scmp.eq.s32.totalorder %s9, 0
    %p97 = por %p95, %p96
    %p98 = scmp.ne.s32.totalorder %s87, %s90
    %p99 = scmp.eq.s32.totalorder %s14, 1
    %p100 = por %p98, %p99
    %p101 = scmp.ne.s32.totalorder %s90, %s91
    %p102 = scmp.eq.s32.totalorder %s14, 0
    %p103 = por %p101, %p102
    %p104 = scmp.ne.s32.totalorder %s90, %s91
    %p105 = scmp.eq.s32.totalorder %s15, 1
    %p106 = por %p104, %p105
    %p108 = scmp.ne.s32.totalorder %s91, %s107
    %p109 = scmp.eq.s32.totalorder %s15, 0
    %p110 = por %p108, %p109
    %p111 = scmp.le.s32.totalorder 1, %s9
    %p112 = scmp.lt.s32.totalorder %s9, 3
    %p113 = pnand %p111, %p112
    %p114 = pneg %p113
    // Predicated region
    $region9: #{_lambda_.5} parent=5 // pred_check
      _
    $region10: #{_lambda_.5} parent=5 // pred_check_branch
      %116 = sbr.rel (%p113) target = $region12
    $region11: #{_lambda_.5} parent=5 // pred_region
      %s117 = ssub.s32 %s9, 1
      // Predicated region
      $region13: #{_lambda_.5} parent=11 // pred_check
        %p118 = pneg %p56
      $region14: #{_lambda_.5} parent=11 // pred_check_branch
        %120 = sbr.rel (%p118) target = $region16
      $region15: #{_lambda_.5} parent=11 // pred_region
        _
      $region16: #{_lambda_.5} parent=11 // pred_fallthru
        _
      // Predicated region
      $region17: #{_lambda_.5} parent=11 // pred_check
        %p121 = pneg %p77
      $region18: #{_lambda_.5} parent=11 // pred_check_branch
        %123 = sbr.rel (%p121) target = $region20
      $region19: #{_lambda_.5} parent=11 // pred_region
        _
      $region20: #{_lambda_.5} parent=11 // pred_fallthru
        _
    $region12: #{_lambda_.5} parent=5 // pred_fallthru
      _
    %p124 = scmp.lt.s32.totalorder %s9, 2
    // Predicated region
    $region21: #{_lambda_.5} parent=5 // pred_check
      %p125 = pneg %p124
    $region22: #{_lambda_.5} parent=5 // pred_check_branch
      %127 = sbr.rel (%p125) target = $region24
    $region23: #{_lambda_.5} parent=5 // pred_region
      // Predicated region
      $region25: #{_lambda_.5} parent=23 // pred_check
        %p128 = pneg %p29
      $region26: #{_lambda_.5} parent=23 // pred_check_branch
        %130 = sbr.rel (%p128) target = $region28
      $region27: #{_lambda_.5} parent=23 // pred_region
        %s131 = smul.u32 16, %s9
        %p132 = scmp.lt.s32.totalorder %s131, 31
        %s133 = scalar_select %p132, %s131, 31
        %s134 = smul.addr %s133, 8
        %s135 = smul.addr %s134, 4
        %s136 = scalar_lea.vmem %s0, %s135
        %s137 = smul.u32 16, %s9
      $region28: #{_lambda_.5} parent=23 // pred_fallthru
        _
    $region24: #{_lambda_.5} parent=5 // pred_fallthru
      _
    %p138 = scmp.le.s32.totalorder 1, %s9
    %p139 = scmp.lt.s32.totalorder %s9, 3
    %p140 = pnand %p138, %p139
    %p141 = pneg %p140
    // Predicated region
    $region29: #{_lambda_.5} parent=5 // pred_check
      _
    $region30: #{_lambda_.5} parent=5 // pred_check_branch
      %143 = sbr.rel (%p140) target = $region32
    $region31: #{_lambda_.5} parent=5 // pred_region
      %s144 = ssub.s32 %s9, 1
      %s145 = smul.u32 16, %s14
      %p146 = scmp.lt.s32.totalorder %s145, 31
      %s147 = scalar_select %p146, %s145, 31
      %s148 = smul.addr %s147, 8
      %s149 = smul.addr %s148, 4
      %s150 = scalar_lea.vmem %s0, %s149
      %p151 = pneg %p35
      %p152 = pneg %p32
      %p153 = pneg %p56
      %p154 = pneg %p53
      %p155 = pneg %p77
      %p156 = pneg %p74
      %p157 = pneg %p103
      %p158 = pneg %p100
      %s159 = smul.u32 16, %s14
      %p160 = scmp.lt.s32.totalorder %s159, 31
      %s161 = scalar_select %p160, %s159, 31
      %s162 = smul.addr %s161, 4
      %s163 = scalar_lea.vmem %s3, %s162
      %s164 = smul.u32 16, %s14
      %p165 = scmp.lt.s32.totalorder %s164, 31
      %s166 = scalar_select %p165, %s164, 31
      %s167 = smul.addr %s166, 8
      %s168 = smul.addr %s167, 4
      %s169 = scalar_lea.vmem %s0, %s168
      %s170 = smul.u32 16, %s14
      %s171 = smul.u32 16, %s14
      %p172 = scmp.lt.s32.totalorder %s171, 31
      %s173 = scalar_select %p172, %s171, 31
      %s174 = smul.addr %s173, 4
      %s175 = scalar_lea.vmem %s3, %s174
      %s176 = smul.u32 16, %s14
      %v177 = vld [vmem:[%s169] sm:$0xff]
      %v178 = vld [vmem:[%s169 + $0x8] sm:$0xff]
      %v179 = vld [vmem:[%s169 + $0x10] sm:$0xff]
      %v180 = vld [vmem:[%s169 + $0x18] sm:$0xff]
      %v181 = vld [vmem:[%s169 + $0x20] sm:$0xff]
      %v182 = vld [vmem:[%s169 + $0x28] sm:$0xff]
      %v183 = vld [vmem:[%s169 + $0x30] sm:$0xff]
      %v184 = vld [vmem:[%s169 + $0x38] sm:$0xff]
      %v185 = vld [vmem:[%s169 + $0x40] sm:$0xff]
      %v186 = vld [vmem:[%s169 + $0x48] sm:$0xff]
      %v187 = vld [vmem:[%s169 + $0x50] sm:$0xff]
      %v188 = vld [vmem:[%s169 + $0x58] sm:$0xff]
      %v189 = vld [vmem:[%s169 + $0x60] sm:$0xff]
      %v190 = vld [vmem:[%s169 + $0x68] sm:$0xff]
      %v191 = vld [vmem:[%s169 + $0x70] sm:$0xff]
      %v192 = vld [vmem:[%s169 + $0x78] sm:$0xff]
      %v193 = vld [vmem:[%s169 + $0x80] sm:$0xff]
      %v194 = vld [vmem:[%s169 + $0x88] sm:$0xff]
      %v195 = vld [vmem:[%s169 + $0x90] sm:$0xff]
      %v196 = vld [vmem:[%s169 + $0x98] sm:$0xff]
      %v197 = vld [vmem:[%s169 + $0xa0] sm:$0xff]
      %v198 = vld [vmem:[%s169 + $0xa8] sm:$0xff]
      %v199 = vld [vmem:[%s169 + $0xb0] sm:$0xff]
      %v200 = vld [vmem:[%s169 + $0xb8] sm:$0xff]
      %v201 = vld [vmem:[%s169 + $0xc0] sm:$0xff]
      %v202 = vld [vmem:[%s169 + $0xc8] sm:$0xff]
      %v203 = vld [vmem:[%s169 + $0xd0] sm:$0xff]
      %v204 = vld [vmem:[%s169 + $0xd8] sm:$0xff]
      %v205 = vld [vmem:[%s169 + $0xe0] sm:$0xff]
      %v206 = vld [vmem:[%s169 + $0xe8] sm:$0xff]
      %v207 = vld [vmem:[%s169 + $0xf0] sm:$0xff]
      %v208 = vld [vmem:[%s169 + $0xf8] sm:$0xff]
      %v209 = vld [vmem:[%s169 + $0x100] sm:$0xff]
      %v210 = vld [vmem:[%s169 + $0x108] sm:$0xff]
      %v211 = vld [vmem:[%s169 + $0x110] sm:$0xff]
      %v212 = vld [vmem:[%s169 + $0x118] sm:$0xff]
      %v213 = vld [vmem:[%s169 + $0x120] sm:$0xff]
      %v214 = vld [vmem:[%s169 + $0x128] sm:$0xff]
      %v215 = vld [vmem:[%s169 + $0x130] sm:$0xff]
      %v216 = vld [vmem:[%s169 + $0x138] sm:$0xff]
      %v217 = vld [vmem:[%s169 + $0x140] sm:$0xff]
      %v218 = vld [vmem:[%s169 + $0x148] sm:$0xff]
      %v219 = vld [vmem:[%s169 + $0x150] sm:$0xff]
      %v220 = vld [vmem:[%s169 + $0x158] sm:$0xff]
      %v221 = vld [vmem:[%s169 + $0x160] sm:$0xff]
      %v222 = vld [vmem:[%s169 + $0x168] sm:$0xff]
      %v223 = vld [vmem:[%s169 + $0x170] sm:$0xff]
      %v224 = vld [vmem:[%s169 + $0x178] sm:$0xff]
      %v225 = vld [vmem:[%s169 + $0x180] sm:$0xff]
      %v226 = vld [vmem:[%s169 + $0x188] sm:$0xff]
      %v227 = vld [vmem:[%s169 + $0x190] sm:$0xff]
      %v228 = vld [vmem:[%s169 + $0x198] sm:$0xff]
      %v229 = vld [vmem:[%s169 + $0x1a0] sm:$0xff]
      %v230 = vld [vmem:[%s169 + $0x1a8] sm:$0xff]
      %v231 = vld [vmem:[%s169 + $0x1b0] sm:$0xff]
      %v232 = vld [vmem:[%s169 + $0x1b8] sm:$0xff]
      %v233 = vld [vmem:[%s169 + $0x1c0] sm:$0xff]
      %v234 = vld [vmem:[%s169 + $0x1c8] sm:$0xff]
      %v235 = vld [vmem:[%s169 + $0x1d0] sm:$0xff]
      %v236 = vld [vmem:[%s169 + $0x1d8] sm:$0xff]
      %v237 = vld [vmem:[%s169 + $0x1e0] sm:$0xff]
      %v238 = vld [vmem:[%s169 + $0x1e8] sm:$0xff]
      %v239 = vld [vmem:[%s169 + $0x1f0] sm:$0xff]
      %v240 = vld [vmem:[%s169 + $0x1f8] sm:$0xff]
      %v241 = vld [vmem:[%s1] sm:$0xf]
      %v242 = vld [vmem:[%s1 + $0x4] sm:$0xf]
      %v243 = vld [vmem:[%s1 + $0x8] sm:$0xf]
      %v244 = vld [vmem:[%s1 + $0xc] sm:$0xf]
      %v245 = vld [vmem:[%s1 + $0x10] sm:$0xf]
      %v246 = vld [vmem:[%s1 + $0x14] sm:$0xf]
      %v247 = vld [vmem:[%s1 + $0x18] sm:$0xf]
      %v248 = vld [vmem:[%s1 + $0x1c] sm:$0xf]
      %v249 = vld [vmem:[%s1 + $0x20] sm:$0xf]
      %v250 = vld [vmem:[%s1 + $0x24] sm:$0xf]
      %v251 = vld [vmem:[%s1 + $0x28] sm:$0xf]
      %v252 = vld [vmem:[%s1 + $0x2c] sm:$0xf]
      %v253 = vld [vmem:[%s1 + $0x30] sm:$0xf]
      %v254 = vld [vmem:[%s1 + $0x34] sm:$0xf]
      %v255 = vld [vmem:[%s1 + $0x38] sm:$0xf]
      %v256 = vld [vmem:[%s1 + $0x3c] sm:$0xf]
      %v257 = vld [vmem:[%s1 + $0x40] sm:$0xf]
      %v258 = vld [vmem:[%s1 + $0x44] sm:$0xf]
      %v259 = vld [vmem:[%s1 + $0x48] sm:$0xf]
      %v260 = vld [vmem:[%s1 + $0x4c] sm:$0xf]
      %v261 = vld [vmem:[%s1 + $0x50] sm:$0xf]
      %v262 = vld [vmem:[%s1 + $0x54] sm:$0xf]
      %v263 = vld [vmem:[%s1 + $0x58] sm:$0xf]
      %v264 = vld [vmem:[%s1 + $0x5c] sm:$0xf]
      %v265 = vld [vmem:[%s1 + $0x60] sm:$0xf]
      %v266 = vld [vmem:[%s1 + $0x64] sm:$0xf]
      %v267 = vld [vmem:[%s1 + $0x68] sm:$0xf]
      %v268 = vld [vmem:[%s1 + $0x6c] sm:$0xf]
      %v269 = vld [vmem:[%s1 + $0x70] sm:$0xf]
      %v270 = vld [vmem:[%s1 + $0x74] sm:$0xf]
      %v271 = vld [vmem:[%s1 + $0x78] sm:$0xf]
      %v272 = vld [vmem:[%s1 + $0x7c] sm:$0xf]
      %v273 = vld [vmem:[%s1 + $0x80] sm:$0xf]
      %v274 = vld [vmem:[%s1 + $0x84] sm:$0xf]
      %v275 = vld [vmem:[%s1 + $0x88] sm:$0xf]
      %v276 = vld [vmem:[%s1 + $0x8c] sm:$0xf]
      %v277 = vld [vmem:[%s1 + $0x90] sm:$0xf]
      %v278 = vld [vmem:[%s1 + $0x94] sm:$0xf]
      %v279 = vld [vmem:[%s1 + $0x98] sm:$0xf]
      %v280 = vld [vmem:[%s1 + $0x9c] sm:$0xf]
      %v281 = vld [vmem:[%s1 + $0xa0] sm:$0xf]
      %v282 = vld [vmem:[%s1 + $0xa4] sm:$0xf]
      %v283 = vld [vmem:[%s1 + $0xa8] sm:$0xf]
      %v284 = vld [vmem:[%s1 + $0xac] sm:$0xf]
      %v285 = vld [vmem:[%s1 + $0xb0] sm:$0xf]
      %v286 = vld [vmem:[%s1 + $0xb4] sm:$0xf]
      %v287 = vld [vmem:[%s1 + $0xb8] sm:$0xf]
      %v288 = vld [vmem:[%s1 + $0xbc] sm:$0xf]
      %v289 = vld [vmem:[%s1 + $0xc0] sm:$0xf]
      %v290 = vld [vmem:[%s1 + $0xc4] sm:$0xf]
      %v291 = vld [vmem:[%s1 + $0xc8] sm:$0xf]
      %v292 = vld [vmem:[%s1 + $0xcc] sm:$0xf]
      %v293 = vld [vmem:[%s1 + $0xd0] sm:$0xf]
      %v294 = vld [vmem:[%s1 + $0xd4] sm:$0xf]
      %v295 = vld [vmem:[%s1 + $0xd8] sm:$0xf]
      %v296 = vld [vmem:[%s1 + $0xdc] sm:$0xf]
      %v297 = vld [vmem:[%s1 + $0xe0] sm:$0xf]
      %v298 = vld [vmem:[%s1 + $0xe4] sm:$0xf]
      %v299 = vld [vmem:[%s1 + $0xe8] sm:$0xf]
      %v300 = vld [vmem:[%s1 + $0xec] sm:$0xf]
      %v301 = vld [vmem:[%s1 + $0xf0] sm:$0xf]
      %v302 = vld [vmem:[%s1 + $0xf4] sm:$0xf]
      %v303 = vld [vmem:[%s1 + $0xf8] sm:$0xf]
      %v304 = vld [vmem:[%s1 + $0xfc] sm:$0xf]
      %v305 = vld [vmem:[%s1 + $0x100] sm:$0xf]
      %v306 = vld [vmem:[%s1 + $0x104] sm:$0xf]
      %v307 = vld [vmem:[%s1 + $0x108] sm:$0xf]
      %v308 = vld [vmem:[%s1 + $0x10c] sm:$0xf]
      %v309 = vld [vmem:[%s1 + $0x110] sm:$0xf]
      %v310 = vld [vmem:[%s1 + $0x114] sm:$0xf]
      %v311 = vld [vmem:[%s1 + $0x118] sm:$0xf]
      %v312 = vld [vmem:[%s1 + $0x11c] sm:$0xf]
      %v313 = vld [vmem:[%s1 + $0x120] sm:$0xf]
      %v314 = vld [vmem:[%s1 + $0x124] sm:$0xf]
      %v315 = vld [vmem:[%s1 + $0x128] sm:$0xf]
      %v316 = vld [vmem:[%s1 + $0x12c] sm:$0xf]
      %v317 = vld [vmem:[%s1 + $0x130] sm:$0xf]
      %v318 = vld [vmem:[%s1 + $0x134] sm:$0xf]
      %v319 = vld [vmem:[%s1 + $0x138] sm:$0xf]
      %v320 = vld [vmem:[%s1 + $0x13c] sm:$0xf]
      %v321 = vld [vmem:[%s1 + $0x140] sm:$0xf]
      %v322 = vld [vmem:[%s1 + $0x144] sm:$0xf]
      %v323 = vld [vmem:[%s1 + $0x148] sm:$0xf]
      %v324 = vld [vmem:[%s1 + $0x14c] sm:$0xf]
      %v325 = vld [vmem:[%s1 + $0x150] sm:$0xf]
      %v326 = vld [vmem:[%s1 + $0x154] sm:$0xf]
      %v327 = vld [vmem:[%s1 + $0x158] sm:$0xf]
      %v328 = vld [vmem:[%s1 + $0x15c] sm:$0xf]
      %v329 = vld [vmem:[%s1 + $0x160] sm:$0xf]
      %v330 = vld [vmem:[%s1 + $0x164] sm:$0xf]
      %v331 = vld [vmem:[%s1 + $0x168] sm:$0xf]
      %v332 = vld [vmem:[%s1 + $0x16c] sm:$0xf]
      %v333 = vld [vmem:[%s1 + $0x170] sm:$0xf]
      %v334 = vld [vmem:[%s1 + $0x174] sm:$0xf]
      %v335 = vld [vmem:[%s1 + $0x178] sm:$0xf]
      %v336 = vld [vmem:[%s1 + $0x17c] sm:$0xf]
      %v337 = vld [vmem:[%s1 + $0x180] sm:$0xf]
      %v338 = vld [vmem:[%s1 + $0x184] sm:$0xf]
      %v339 = vld [vmem:[%s1 + $0x188] sm:$0xf]
      %v340 = vld [vmem:[%s1 + $0x18c] sm:$0xf]
      %v341 = vld [vmem:[%s1 + $0x190] sm:$0xf]
      %v342 = vld [vmem:[%s1 + $0x194] sm:$0xf]
      %v343 = vld [vmem:[%s1 + $0x198] sm:$0xf]
      %v344 = vld [vmem:[%s1 + $0x19c] sm:$0xf]
      %v345 = vld [vmem:[%s1 + $0x1a0] sm:$0xf]
      %v346 = vld [vmem:[%s1 + $0x1a4] sm:$0xf]
      %v347 = vld [vmem:[%s1 + $0x1a8] sm:$0xf]
      %v348 = vld [vmem:[%s1 + $0x1ac] sm:$0xf]
      %v349 = vld [vmem:[%s1 + $0x1b0] sm:$0xf]
      %v350 = vld [vmem:[%s1 + $0x1b4] sm:$0xf]
      %v351 = vld [vmem:[%s1 + $0x1b8] sm:$0xf]
      %v352 = vld [vmem:[%s1 + $0x1bc] sm:$0xf]
      %v353 = vld [vmem:[%s1 + $0x1c0] sm:$0xf]
      %v354 = vld [vmem:[%s1 + $0x1c4] sm:$0xf]
      %v355 = vld [vmem:[%s1 + $0x1c8] sm:$0xf]
      %v356 = vld [vmem:[%s1 + $0x1cc] sm:$0xf]
      %v357 = vld [vmem:[%s1 + $0x1d0] sm:$0xf]
      %v358 = vld [vmem:[%s1 + $0x1d4] sm:$0xf]
      %v359 = vld [vmem:[%s1 + $0x1d8] sm:$0xf]
      %v360 = vld [vmem:[%s1 + $0x1dc] sm:$0xf]
      %v361 = vld [vmem:[%s1 + $0x1e0] sm:$0xf]
      %v362 = vld [vmem:[%s1 + $0x1e4] sm:$0xf]
      %v363 = vld [vmem:[%s1 + $0x1e8] sm:$0xf]
      %v364 = vld [vmem:[%s1 + $0x1ec] sm:$0xf]
      %v365 = vld [vmem:[%s1 + $0x1f0] sm:$0xf]
      %v366 = vld [vmem:[%s1 + $0x1f4] sm:$0xf]
      %v367 = vld [vmem:[%s1 + $0x1f8] sm:$0xf]
      %v368 = vld [vmem:[%s1 + $0x1fc] sm:$0xf]
      %v369 = vld [vmem:[%s2] sm:$0x1]
      %v371 = vperm.slane %v369, 0
      %v437 = vunpack.c.l.b16 %v177
      %v438 = vunpack.c.h.b16 %v177
      %v439 = vunpack.c.l.b16 %v178
      %v440 = vunpack.c.h.b16 %v178
      %v441 = vunpack.c.l.b16 %v179
      %v442 = vunpack.c.h.b16 %v179
      %v443 = vunpack.c.l.b16 %v180
      %v444 = vunpack.c.h.b16 %v180
      %v445 = vunpack.c.l.b16 %v181
      %v446 = vunpack.c.h.b16 %v181
      %v447 = vunpack.c.l.b16 %v182
      %v448 = vunpack.c.h.b16 %v182
      %v449 = vunpack.c.l.b16 %v183
      %v450 = vunpack.c.h.b16 %v183
      %v451 = vunpack.c.l.b16 %v184
      %v452 = vunpack.c.h.b16 %v184
      %v453 = vunpack.c.l.b16 %v185
      %v454 = vunpack.c.h.b16 %v185
      %v455 = vunpack.c.l.b16 %v186
      %v456 = vunpack.c.h.b16 %v186
      %v457 = vunpack.c.l.b16 %v187
      %v458 = vunpack.c.h.b16 %v187
      %v459 = vunpack.c.l.b16 %v188
      %v460 = vunpack.c.h.b16 %v188
      %v461 = vunpack.c.l.b16 %v189
      %v462 = vunpack.c.h.b16 %v189
      %v463 = vunpack.c.l.b16 %v190
      %v464 = vunpack.c.h.b16 %v190
      %v465 = vunpack.c.l.b16 %v191
      %v466 = vunpack.c.h.b16 %v191
      %v467 = vunpack.c.l.b16 %v192
      %v468 = vunpack.c.h.b16 %v192
      %v469 = vunpack.c.l.b16 %v193
      %v470 = vunpack.c.h.b16 %v193
      %v471 = vunpack.c.l.b16 %v194
      %v472 = vunpack.c.h.b16 %v194
      %v473 = vunpack.c.l.b16 %v195
      %v474 = vunpack.c.h.b16 %v195
      %v475 = vunpack.c.l.b16 %v196
      %v476 = vunpack.c.h.b16 %v196
      %v477 = vunpack.c.l.b16 %v197
      %v478 = vunpack.c.h.b16 %v197
      %v479 = vunpack.c.l.b16 %v198
      %v480 = vunpack.c.h.b16 %v198
      %v481 = vunpack.c.l.b16 %v199
      %v482 = vunpack.c.h.b16 %v199
      %v483 = vunpack.c.l.b16 %v200
      %v484 = vunpack.c.h.b16 %v200
      %v485 = vunpack.c.l.b16 %v201
      %v486 = vunpack.c.h.b16 %v201
      %v487 = vunpack.c.l.b16 %v202
      %v488 = vunpack.c.h.b16 %v202
      %v489 = vunpack.c.l.b16 %v203
      %v490 = vunpack.c.h.b16 %v203
      %v491 = vunpack.c.l.b16 %v204
      %v492 = vunpack.c.h.b16 %v204
      %v493 = vunpack.c.l.b16 %v205
      %v494 = vunpack.c.h.b16 %v205
      %v495 = vunpack.c.l.b16 %v206
      %v496 = vunpack.c.h.b16 %v206
      %v497 = vunpack.c.l.b16 %v207
      %v498 = vunpack.c.h.b16 %v207
      %v499 = vunpack.c.l.b16 %v208
      %v500 = vunpack.c.h.b16 %v208
      %v501 = vunpack.c.l.b16 %v209
      %v502 = vunpack.c.h.b16 %v209
      %v503 = vunpack.c.l.b16 %v210
      %v504 = vunpack.c.h.b16 %v210
      %v505 = vunpack.c.l.b16 %v211
      %v506 = vunpack.c.h.b16 %v211
      %v507 = vunpack.c.l.b16 %v212
      %v508 = vunpack.c.h.b16 %v212
      %v509 = vunpack.c.l.b16 %v213
      %v510 = vunpack.c.h.b16 %v213
      %v511 = vunpack.c.l.b16 %v214
      %v512 = vunpack.c.h.b16 %v214
      %v513 = vunpack.c.l.b16 %v215
      %v514 = vunpack.c.h.b16 %v215
      %v515 = vunpack.c.l.b16 %v216
      %v516 = vunpack.c.h.b16 %v216
      %v517 = vunpack.c.l.b16 %v217
      %v518 = vunpack.c.h.b16 %v217
      %v519 = vunpack.c.l.b16 %v218
      %v520 = vunpack.c.h.b16 %v218
      %v521 = vunpack.c.l.b16 %v219
      %v522 = vunpack.c.h.b16 %v219
      %v523 = vunpack.c.l.b16 %v220
      %v524 = vunpack.c.h.b16 %v220
      %v525 = vunpack.c.l.b16 %v221
      %v526 = vunpack.c.h.b16 %v221
      %v527 = vunpack.c.l.b16 %v222
      %v528 = vunpack.c.h.b16 %v222
      %v529 = vunpack.c.l.b16 %v223
      %v530 = vunpack.c.h.b16 %v223
      %v531 = vunpack.c.l.b16 %v224
      %v532 = vunpack.c.h.b16 %v224
      %v533 = vunpack.c.l.b16 %v225
      %v534 = vunpack.c.h.b16 %v225
      %v535 = vunpack.c.l.b16 %v226
      %v536 = vunpack.c.h.b16 %v226
      %v537 = vunpack.c.l.b16 %v227
      %v538 = vunpack.c.h.b16 %v227
      %v539 = vunpack.c.l.b16 %v228
      %v540 = vunpack.c.h.b16 %v228
      %v541 = vunpack.c.l.b16 %v229
      %v542 = vunpack.c.h.b16 %v229
      %v543 = vunpack.c.l.b16 %v230
      %v544 = vunpack.c.h.b16 %v230
      %v545 = vunpack.c.l.b16 %v231
      %v546 = vunpack.c.h.b16 %v231
      %v547 = vunpack.c.l.b16 %v232
      %v548 = vunpack.c.h.b16 %v232
      %v549 = vunpack.c.l.b16 %v233
      %v550 = vunpack.c.h.b16 %v233
      %v551 = vunpack.c.l.b16 %v234
      %v552 = vunpack.c.h.b16 %v234
      %v553 = vunpack.c.l.b16 %v235
      %v554 = vunpack.c.h.b16 %v235
      %v555 = vunpack.c.l.b16 %v236
      %v556 = vunpack.c.h.b16 %v236
      %v557 = vunpack.c.l.b16 %v237
      %v558 = vunpack.c.h.b16 %v237
      %v559 = vunpack.c.l.b16 %v238
      %v560 = vunpack.c.h.b16 %v238
      %v561 = vunpack.c.l.b16 %v239
      %v562 = vunpack.c.h.b16 %v239
      %v563 = vunpack.c.l.b16 %v240
      %v564 = vunpack.c.h.b16 %v240
      %v565 = vpack.c.b16 %v445, %v437
      %v566 = vpack.c.b16 %v446, %v438
      %v567 = vpack.c.b16 %v447, %v439
      %v568 = vpack.c.b16 %v448, %v440
      %v569 = vpack.c.b16 %v449, %v441
      %v570 = vpack.c.b16 %v450, %v442
      %v571 = vpack.c.b16 %v451, %v443
      %v572 = vpack.c.b16 %v452, %v444
      %v573 = vpack.c.b16 %v461, %v453
      %v574 = vpack.c.b16 %v462, %v454
      %v575 = vpack.c.b16 %v463, %v455
      %v576 = vpack.c.b16 %v464, %v456
      %v577 = vpack.c.b16 %v465, %v457
      %v578 = vpack.c.b16 %v466, %v458
      %v579 = vpack.c.b16 %v467, %v459
      %v580 = vpack.c.b16 %v468, %v460
      %v581 = vpack.c.b16 %v477, %v469
      %v582 = vpack.c.b16 %v478, %v470
      %v583 = vpack.c.b16 %v479, %v471
      %v584 = vpack.c.b16 %v480, %v472
      %v585 = vpack.c.b16 %v481, %v473
      %v586 = vpack.c.b16 %v482, %v474
      %v587 = vpack.c.b16 %v483, %v475
      %v588 = vpack.c.b16 %v484, %v476
      %v589 = vpack.c.b16 %v493, %v485
      %v590 = vpack.c.b16 %v494, %v486
      %v591 = vpack.c.b16 %v495, %v487
      %v592 = vpack.c.b16 %v496, %v488
      %v593 = vpack.c.b16 %v497, %v489
      %v594 = vpack.c.b16 %v498, %v490
      %v595 = vpack.c.b16 %v499, %v491
      %v596 = vpack.c.b16 %v500, %v492
      %v597 = vpack.c.b16 %v509, %v501
      %v598 = vpack.c.b16 %v510, %v502
      %v599 = vpack.c.b16 %v511, %v503
      %v600 = vpack.c.b16 %v512, %v504
      %v601 = vpack.c.b16 %v513, %v505
      %v602 = vpack.c.b16 %v514, %v506
      %v603 = vpack.c.b16 %v515, %v507
      %v604 = vpack.c.b16 %v516, %v508
      %v605 = vpack.c.b16 %v525, %v517
      %v606 = vpack.c.b16 %v526, %v518
      %v607 = vpack.c.b16 %v527, %v519
      %v608 = vpack.c.b16 %v528, %v520
      %v609 = vpack.c.b16 %v529, %v521
      %v610 = vpack.c.b16 %v530, %v522
      %v611 = vpack.c.b16 %v531, %v523
      %v612 = vpack.c.b16 %v532, %v524
      %v613 = vpack.c.b16 %v541, %v533
      %v614 = vpack.c.b16 %v542, %v534
      %v615 = vpack.c.b16 %v543, %v535
      %v616 = vpack.c.b16 %v544, %v536
      %v617 = vpack.c.b16 %v545, %v537
      %v618 = vpack.c.b16 %v546, %v538
      %v619 = vpack.c.b16 %v547, %v539
      %v620 = vpack.c.b16 %v548, %v540
      %v621 = vpack.c.b16 %v557, %v549
      %v622 = vpack.c.b16 %v558, %v550
      %v623 = vpack.c.b16 %v559, %v551
      %v624 = vpack.c.b16 %v560, %v552
      %v625 = vpack.c.b16 %v561, %v553
      %v626 = vpack.c.b16 %v562, %v554
      %v627 = vpack.c.b16 %v563, %v555
      %v628 = vpack.c.b16 %v564, %v556
      %v821 = vunpack.c.l.b16 %v241
      %v822 = vunpack.c.l.b16 %v242
      %v823 = vunpack.c.l.b16 %v243
      %v824 = vunpack.c.l.b16 %v244
      %v825 = vunpack.c.l.b16 %v245
      %v826 = vunpack.c.l.b16 %v246
      %v827 = vunpack.c.l.b16 %v247
      %v828 = vunpack.c.l.b16 %v248
      %v829 = vunpack.c.l.b16 %v249
      %v830 = vunpack.c.l.b16 %v250
      %v831 = vunpack.c.l.b16 %v251
      %v832 = vunpack.c.l.b16 %v252
      %v833 = vunpack.c.l.b16 %v253
      %v834 = vunpack.c.l.b16 %v254
      %v835 = vunpack.c.l.b16 %v255
      %v836 = vunpack.c.l.b16 %v256
      %v837 = vunpack.c.l.b16 %v257
      %v838 = vunpack.c.l.b16 %v258
      %v839 = vunpack.c.l.b16 %v259
      %v840 = vunpack.c.l.b16 %v260
      %v841 = vunpack.c.l.b16 %v261
      %v842 = vunpack.c.l.b16 %v262
      %v843 = vunpack.c.l.b16 %v263
      %v844 = vunpack.c.l.b16 %v264
      %v845 = vunpack.c.l.b16 %v265
      %v846 = vunpack.c.l.b16 %v266
      %v847 = vunpack.c.l.b16 %v267
      %v848 = vunpack.c.l.b16 %v268
      %v849 = vunpack.c.l.b16 %v269
      %v850 = vunpack.c.l.b16 %v270
      %v851 = vunpack.c.l.b16 %v271
      %v852 = vunpack.c.l.b16 %v272
      %v853 = vunpack.c.l.b16 %v273
      %v854 = vunpack.c.l.b16 %v274
      %v855 = vunpack.c.l.b16 %v275
      %v856 = vunpack.c.l.b16 %v276
      %v857 = vunpack.c.l.b16 %v277
      %v858 = vunpack.c.l.b16 %v278
      %v859 = vunpack.c.l.b16 %v279
      %v860 = vunpack.c.l.b16 %v280
      %v861 = vunpack.c.l.b16 %v281
      %v862 = vunpack.c.l.b16 %v282
      %v863 = vunpack.c.l.b16 %v283
      %v864 = vunpack.c.l.b16 %v284
      %v865 = vunpack.c.l.b16 %v285
      %v866 = vunpack.c.l.b16 %v286
      %v867 = vunpack.c.l.b16 %v287
      %v868 = vunpack.c.l.b16 %v288
      %v869 = vunpack.c.l.b16 %v289
      %v870 = vunpack.c.l.b16 %v290
      %v871 = vunpack.c.l.b16 %v291
      %v872 = vunpack.c.l.b16 %v292
      %v873 = vunpack.c.l.b16 %v293
      %v874 = vunpack.c.l.b16 %v294
      %v875 = vunpack.c.l.b16 %v295
      %v876 = vunpack.c.l.b16 %v296
      %v877 = vunpack.c.l.b16 %v297
      %v878 = vunpack.c.l.b16 %v298
      %v879 = vunpack.c.l.b16 %v299
      %v880 = vunpack.c.l.b16 %v300
      %v881 = vunpack.c.l.b16 %v301
      %v882 = vunpack.c.l.b16 %v302
      %v883 = vunpack.c.l.b16 %v303
      %v884 = vunpack.c.l.b16 %v304
      %v885 = vunpack.c.l.b16 %v305
      %v886 = vunpack.c.l.b16 %v306
      %v887 = vunpack.c.l.b16 %v307
      %v888 = vunpack.c.l.b16 %v308
      %v889 = vunpack.c.l.b16 %v309
      %v890 = vunpack.c.l.b16 %v310
      %v891 = vunpack.c.l.b16 %v311
      %v892 = vunpack.c.l.b16 %v312
      %v893 = vunpack.c.l.b16 %v313
      %v894 = vunpack.c.l.b16 %v314
      %v895 = vunpack.c.l.b16 %v315
      %v896 = vunpack.c.l.b16 %v316
      %v897 = vunpack.c.l.b16 %v317
      %v898 = vunpack.c.l.b16 %v318
      %v899 = vunpack.c.l.b16 %v319
      %v900 = vunpack.c.l.b16 %v320
      %v901 = vunpack.c.l.b16 %v321
      %v902 = vunpack.c.l.b16 %v322
      %v903 = vunpack.c.l.b16 %v323
      %v904 = vunpack.c.l.b16 %v324
      %v905 = vunpack.c.l.b16 %v325
      %v906 = vunpack.c.l.b16 %v326
      %v907 = vunpack.c.l.b16 %v327
      %v908 = vunpack.c.l.b16 %v328
      %v909 = vunpack.c.l.b16 %v329
      %v910 = vunpack.c.l.b16 %v330
      %v911 = vunpack.c.l.b16 %v331
      %v912 = vunpack.c.l.b16 %v332
      %v913 = vunpack.c.l.b16 %v333
      %v914 = vunpack.c.l.b16 %v334
      %v915 = vunpack.c.l.b16 %v335
      %v916 = vunpack.c.l.b16 %v336
      %v917 = vunpack.c.l.b16 %v337
      %v918 = vunpack.c.l.b16 %v338
      %v919 = vunpack.c.l.b16 %v339
      %v920 = vunpack.c.l.b16 %v340
      %v921 = vunpack.c.l.b16 %v341
      %v922 = vunpack.c.l.b16 %v342
      %v923 = vunpack.c.l.b16 %v343
      %v924 = vunpack.c.l.b16 %v344
      %v925 = vunpack.c.l.b16 %v345
      %v926 = vunpack.c.l.b16 %v346
      %v927 = vunpack.c.l.b16 %v347
      %v928 = vunpack.c.l.b16 %v348
      %v929 = vunpack.c.l.b16 %v349
      %v930 = vunpack.c.l.b16 %v350
      %v931 = vunpack.c.l.b16 %v351
      %v932 = vunpack.c.l.b16 %v352
      %v933 = vunpack.c.l.b16 %v353
      %v934 = vunpack.c.l.b16 %v354
      %v935 = vunpack.c.l.b16 %v355
      %v936 = vunpack.c.l.b16 %v356
      %v937 = vunpack.c.l.b16 %v357
      %v938 = vunpack.c.l.b16 %v358
      %v939 = vunpack.c.l.b16 %v359
      %v940 = vunpack.c.l.b16 %v360
      %v941 = vunpack.c.l.b16 %v361
      %v942 = vunpack.c.l.b16 %v362
      %v943 = vunpack.c.l.b16 %v363
      %v944 = vunpack.c.l.b16 %v364
      %v945 = vunpack.c.l.b16 %v365
      %v946 = vunpack.c.l.b16 %v366
      %v947 = vunpack.c.l.b16 %v367
      %v948 = vunpack.c.l.b16 %v368
      %v949 = vpack.c.b16 %v822, %v821
      %v950 = vpack.c.b16 %v824, %v823
      %v951 = vpack.c.b16 %v826, %v825
      %v952 = vpack.c.b16 %v828, %v827
      %v953 = vpack.c.b16 %v830, %v829
      %v954 = vpack.c.b16 %v832, %v831
      %v955 = vpack.c.b16 %v834, %v833
      %v956 = vpack.c.b16 %v836, %v835
      %v957 = vpack.c.b16 %v838, %v837
      %v958 = vpack.c.b16 %v840, %v839
      %v959 = vpack.c.b16 %v842, %v841
      %v960 = vpack.c.b16 %v844, %v843
      %v961 = vpack.c.b16 %v846, %v845
      %v962 = vpack.c.b16 %v848, %v847
      %v963 = vpack.c.b16 %v850, %v849
      %v964 = vpack.c.b16 %v852, %v851
      %v965 = vpack.c.b16 %v854, %v853
      %v966 = vpack.c.b16 %v856, %v855
      %v967 = vpack.c.b16 %v858, %v857
      %v968 = vpack.c.b16 %v860, %v859
      %v969 = vpack.c.b16 %v862, %v861
      %v970 = vpack.c.b16 %v864, %v863
      %v971 = vpack.c.b16 %v866, %v865
      %v972 = vpack.c.b16 %v868, %v867
      %v973 = vpack.c.b16 %v870, %v869
      %v974 = vpack.c.b16 %v872, %v871
      %v975 = vpack.c.b16 %v874, %v873
      %v976 = vpack.c.b16 %v876, %v875
      %v977 = vpack.c.b16 %v878, %v877
      %v978 = vpack.c.b16 %v880, %v879
      %v979 = vpack.c.b16 %v882, %v881
      %v980 = vpack.c.b16 %v884, %v883
      %v981 = vpack.c.b16 %v886, %v885
      %v982 = vpack.c.b16 %v888, %v887
      %v983 = vpack.c.b16 %v890, %v889
      %v984 = vpack.c.b16 %v892, %v891
      %v985 = vpack.c.b16 %v894, %v893
      %v986 = vpack.c.b16 %v896, %v895
      %v987 = vpack.c.b16 %v898, %v897
      %v988 = vpack.c.b16 %v900, %v899
      %v989 = vpack.c.b16 %v902, %v901
      %v990 = vpack.c.b16 %v904, %v903
      %v991 = vpack.c.b16 %v906, %v905
      %v992 = vpack.c.b16 %v908, %v907
      %v993 = vpack.c.b16 %v910, %v909
      %v994 = vpack.c.b16 %v912, %v911
      %v995 = vpack.c.b16 %v914, %v913
      %v996 = vpack.c.b16 %v916, %v915
      %v997 = vpack.c.b16 %v918, %v917
      %v998 = vpack.c.b16 %v920, %v919
      %v999 = vpack.c.b16 %v922, %v921
      %v1000 = vpack.c.b16 %v924, %v923
      %v1001 = vpack.c.b16 %v926, %v925
      %v1002 = vpack.c.b16 %v928, %v927
      %v1003 = vpack.c.b16 %v930, %v929
      %v1004 = vpack.c.b16 %v932, %v931
      %v1005 = vpack.c.b16 %v934, %v933
      %v1006 = vpack.c.b16 %v936, %v935
      %v1007 = vpack.c.b16 %v938, %v937
      %v1008 = vpack.c.b16 %v940, %v939
      %v1009 = vpack.c.b16 %v942, %v941
      %v1010 = vpack.c.b16 %v944, %v943
      %v1011 = vpack.c.b16 %v946, %v945
      %v1012 = vpack.c.b16 %v948, %v947
      %1077 = vmatpush.bf16.msra.mxu0 %v956
      %1078 = vmatpush.bf16.msra.mxu0 %v955
      %1079 = vmatpush.bf16.msra.mxu0 %v954
      %1080 = vmatpush.bf16.msra.mxu0 %v953
      %1081 = vmatpush.bf16.msra.mxu0 %v952
      %1082 = vmatpush.bf16.msra.mxu0 %v951
      %1083 = vmatpush.bf16.msra.mxu0 %v950
      %1084 = vmatpush.bf16.msra.mxu0 %v949
      %1085 = vmatmul.bf16.gmra.mxu0 %v565
      %v1086 = vpop.f32.mrf.mxu0
      %v1087 = vadd.f32 %v371, %v1086
      %v1088 = vpop.f32.mrf.mxu0
      %v1089 = vadd.f32 %v371, %v1088
      %1090 = vmatmul.bf16.gmra.mxu0 %v573
      %v1091 = vpop.f32.mrf.mxu0
      %v1092 = vadd.f32 %v371, %v1091
      %v1093 = vpop.f32.mrf.mxu0
      %v1094 = vadd.f32 %v371, %v1093
      %1095 = vmatmul.bf16.gmra.mxu0 %v581
      %v1096 = vpop.f32.mrf.mxu0
      %v1097 = vadd.f32 %v371, %v1096
      %v1098 = vpop.f32.mrf.mxu0
      %v1099 = vadd.f32 %v371, %v1098
      %1100 = vmatmul.bf16.gmra.mxu0 %v589
      %v1101 = vpop.f32.mrf.mxu0
      %v1102 = vadd.f32 %v371, %v1101
      %v1103 = vpop.f32.mrf.mxu0
      %v1104 = vadd.f32 %v371, %v1103
      %1105 = vmatmul.bf16.gmra.mxu0 %v597
      %v1106 = vpop.f32.mrf.mxu0
      %v1107 = vadd.f32 %v371, %v1106
      %v1108 = vpop.f32.mrf.mxu0
      %v1109 = vadd.f32 %v371, %v1108
      %1110 = vmatmul.bf16.gmra.mxu0 %v605
      %v1111 = vpop.f32.mrf.mxu0
      %v1112 = vadd.f32 %v371, %v1111
      %v1113 = vpop.f32.mrf.mxu0
      %v1114 = vadd.f32 %v371, %v1113
      %1115 = vmatmul.bf16.gmra.mxu0 %v613
      %v1116 = vpop.f32.mrf.mxu0
      %v1117 = vadd.f32 %v371, %v1116
      %v1118 = vpop.f32.mrf.mxu0
      %v1119 = vadd.f32 %v371, %v1118
      %1120 = vmatmul.bf16.gmra.mxu0 %v621
      %v1121 = vpop.f32.mrf.mxu0
      %v1122 = vadd.f32 %v371, %v1121
      %v1123 = vpop.f32.mrf.mxu0
      %v1124 = vadd.f32 %v371, %v1123
      %1125 = vdwg.mxu0
      %1126 = vmatpush.bf16.msra.mxu0 %v964
      %1127 = vmatpush.bf16.msra.mxu0 %v963
      %1128 = vmatpush.bf16.msra.mxu0 %v962
      %1129 = vmatpush.bf16.msra.mxu0 %v961
      %1130 = vmatpush.bf16.msra.mxu0 %v960
      %1131 = vmatpush.bf16.msra.mxu0 %v959
      %1132 = vmatpush.bf16.msra.mxu0 %v958
      %1133 = vmatpush.bf16.msra.mxu0 %v957
      %1134 = vmatmul.bf16.gmra.mxu0 %v566
      %v1135 = vpop.f32.mrf.mxu0
      %v1136 = vadd.f32 %v1087, %v1135
      %v1137 = vpop.f32.mrf.mxu0
      %v1138 = vadd.f32 %v1089, %v1137
      %1139 = vmatmul.bf16.gmra.mxu0 %v574
      %v1140 = vpop.f32.mrf.mxu0
      %v1141 = vadd.f32 %v1092, %v1140
      %v1142 = vpop.f32.mrf.mxu0
      %v1143 = vadd.f32 %v1094, %v1142
      %1144 = vmatmul.bf16.gmra.mxu0 %v582
      %v1145 = vpop.f32.mrf.mxu0
      %v1146 = vadd.f32 %v1097, %v1145
      %v1147 = vpop.f32.mrf.mxu0
      %v1148 = vadd.f32 %v1099, %v1147
      %1149 = vmatmul.bf16.gmra.mxu0 %v590
      %v1150 = vpop.f32.mrf.mxu0
      %v1151 = vadd.f32 %v1102, %v1150
      %v1152 = vpop.f32.mrf.mxu0
      %v1153 = vadd.f32 %v1104, %v1152
      %1154 = vmatmul.bf16.gmra.mxu0 %v598
      %v1155 = vpop.f32.mrf.mxu0
      %v1156 = vadd.f32 %v1107, %v1155
      %v1157 = vpop.f32.mrf.mxu0
      %v1158 = vadd.f32 %v1109, %v1157
      %1159 = vmatmul.bf16.gmra.mxu0 %v606
      %v1160 = vpop.f32.mrf.mxu0
      %v1161 = vadd.f32 %v1112, %v1160
      %v1162 = vpop.f32.mrf.mxu0
      %v1163 = vadd.f32 %v1114, %v1162
      %1164 = vmatmul.bf16.gmra.mxu0 %v614
      %v1165 = vpop.f32.mrf.mxu0
      %v1166 = vadd.f32 %v1117, %v1165
      %v1167 = vpop.f32.mrf.mxu0
      %v1168 = vadd.f32 %v1119, %v1167
      %1169 = vmatmul.bf16.gmra.mxu0 %v622
      %v1170 = vpop.f32.mrf.mxu0
      %v1171 = vadd.f32 %v1122, %v1170
      %v1172 = vpop.f32.mrf.mxu0
      %v1173 = vadd.f32 %v1124, %v1172
      %1174 = vdwg.mxu0
      %1175 = vmatpush.bf16.msra.mxu0 %v972
      %1176 = vmatpush.bf16.msra.mxu0 %v971
      %1177 = vmatpush.bf16.msra.mxu0 %v970
      %1178 = vmatpush.bf16.msra.mxu0 %v969
      %1179 = vmatpush.bf16.msra.mxu0 %v968
      %1180 = vmatpush.bf16.msra.mxu0 %v967
      %1181 = vmatpush.bf16.msra.mxu0 %v966
      %1182 = vmatpush.bf16.msra.mxu0 %v965
      %1183 = vmatmul.bf16.gmra.mxu0 %v567
      %v1184 = vpop.f32.mrf.mxu0
      %v1185 = vadd.f32 %v1136, %v1184
      %v1186 = vpop.f32.mrf.mxu0
      %v1187 = vadd.f32 %v1138, %v1186
      %1188 = vmatmul.bf16.gmra.mxu0 %v575
      %v1189 = vpop.f32.mrf.mxu0
      %v1190 = vadd.f32 %v1141, %v1189
      %v1191 = vpop.f32.mrf.mxu0
      %v1192 = vadd.f32 %v1143, %v1191
      %1193 = vmatmul.bf16.gmra.mxu0 %v583
      %v1194 = vpop.f32.mrf.mxu0
      %v1195 = vadd.f32 %v1146, %v1194
      %v1196 = vpop.f32.mrf.mxu0
      %v1197 = vadd.f32 %v1148, %v1196
      %1198 = vmatmul.bf16.gmra.mxu0 %v591
      %v1199 = vpop.f32.mrf.mxu0
      %v1200 = vadd.f32 %v1151, %v1199
      %v1201 = vpop.f32.mrf.mxu0
      %v1202 = vadd.f32 %v1153, %v1201
      %1203 = vmatmul.bf16.gmra.mxu0 %v599
      %v1204 = vpop.f32.mrf.mxu0
      %v1205 = vadd.f32 %v1156, %v1204
      %v1206 = vpop.f32.mrf.mxu0
      %v1207 = vadd.f32 %v1158, %v1206
      %1208 = vmatmul.bf16.gmra.mxu0 %v607
      %v1209 = vpop.f32.mrf.mxu0
      %v1210 = vadd.f32 %v1161, %v1209
      %v1211 = vpop.f32.mrf.mxu0
      %v1212 = vadd.f32 %v1163, %v1211
      %1213 = vmatmul.bf16.gmra.mxu0 %v615
      %v1214 = vpop.f32.mrf.mxu0
      %v1215 = vadd.f32 %v1166, %v1214
      %v1216 = vpop.f32.mrf.mxu0
      %v1217 = vadd.f32 %v1168, %v1216
      %1218 = vmatmul.bf16.gmra.mxu0 %v623
      %v1219 = vpop.f32.mrf.mxu0
      %v1220 = vadd.f32 %v1171, %v1219
      %v1221 = vpop.f32.mrf.mxu0
      %v1222 = vadd.f32 %v1173, %v1221
      %1223 = vdwg.mxu0
      %1224 = vmatpush.bf16.msra.mxu0 %v980
      %1225 = vmatpush.bf16.msra.mxu0 %v979
      %1226 = vmatpush.bf16.msra.mxu0 %v978
      %1227 = vmatpush.bf16.msra.mxu0 %v977
      %1228 = vmatpush.bf16.msra.mxu0 %v976
      %1229 = vmatpush.bf16.msra.mxu0 %v975
      %1230 = vmatpush.bf16.msra.mxu0 %v974
      %1231 = vmatpush.bf16.msra.mxu0 %v973
      %1232 = vmatmul.bf16.gmra.mxu0 %v568
      %v1233 = vpop.f32.mrf.mxu0
      %v1234 = vadd.f32 %v1185, %v1233
      %v1235 = vpop.f32.mrf.mxu0
      %v1236 = vadd.f32 %v1187, %v1235
      %1237 = vmatmul.bf16.gmra.mxu0 %v576
      %v1238 = vpop.f32.mrf.mxu0
      %v1239 = vadd.f32 %v1190, %v1238
      %v1240 = vpop.f32.mrf.mxu0
      %v1241 = vadd.f32 %v1192, %v1240
      %1242 = vmatmul.bf16.gmra.mxu0 %v584
      %v1243 = vpop.f32.mrf.mxu0
      %v1244 = vadd.f32 %v1195, %v1243
      %v1245 = vpop.f32.mrf.mxu0
      %v1246 = vadd.f32 %v1197, %v1245
      %1247 = vmatmul.bf16.gmra.mxu0 %v592
      %v1248 = vpop.f32.mrf.mxu0
      %v1249 = vadd.f32 %v1200, %v1248
      %v1250 = vpop.f32.mrf.mxu0
      %v1251 = vadd.f32 %v1202, %v1250
      %1252 = vmatmul.bf16.gmra.mxu0 %v600
      %v1253 = vpop.f32.mrf.mxu0
      %v1254 = vadd.f32 %v1205, %v1253
      %v1255 = vpop.f32.mrf.mxu0
      %v1256 = vadd.f32 %v1207, %v1255
      %1257 = vmatmul.bf16.gmra.mxu0 %v608
      %v1258 = vpop.f32.mrf.mxu0
      %v1259 = vadd.f32 %v1210, %v1258
      %v1260 = vpop.f32.mrf.mxu0
      %v1261 = vadd.f32 %v1212, %v1260
      %1262 = vmatmul.bf16.gmra.mxu0 %v616
      %v1263 = vpop.f32.mrf.mxu0
      %v1264 = vadd.f32 %v1215, %v1263
      %v1265 = vpop.f32.mrf.mxu0
      %v1266 = vadd.f32 %v1217, %v1265
      %1267 = vmatmul.bf16.gmra.mxu0 %v624
      %v1268 = vpop.f32.mrf.mxu0
      %v1269 = vadd.f32 %v1220, %v1268
      %v1270 = vpop.f32.mrf.mxu0
      %v1271 = vadd.f32 %v1222, %v1270
      %1272 = vdwg.mxu0
      %1273 = vmatpush.bf16.msra.mxu0 %v988
      %1274 = vmatpush.bf16.msra.mxu0 %v987
      %1275 = vmatpush.bf16.msra.mxu0 %v986
      %1276 = vmatpush.bf16.msra.mxu0 %v985
      %1277 = vmatpush.bf16.msra.mxu0 %v984
      %1278 = vmatpush.bf16.msra.mxu0 %v983
      %1279 = vmatpush.bf16.msra.mxu0 %v982
      %1280 = vmatpush.bf16.msra.mxu0 %v981
      %1281 = vmatmul.bf16.gmra.mxu0 %v569
      %v1282 = vpop.f32.mrf.mxu0
      %v1283 = vadd.f32 %v1234, %v1282
      %v1284 = vpop.f32.mrf.mxu0
      %v1285 = vadd.f32 %v1236, %v1284
      %1286 = vmatmul.bf16.gmra.mxu0 %v577
      %v1287 = vpop.f32.mrf.mxu0
      %v1288 = vadd.f32 %v1239, %v1287
      %v1289 = vpop.f32.mrf.mxu0
      %v1290 = vadd.f32 %v1241, %v1289
      %1291 = vmatmul.bf16.gmra.mxu0 %v585
      %v1292 = vpop.f32.mrf.mxu0
      %v1293 = vadd.f32 %v1244, %v1292
      %v1294 = vpop.f32.mrf.mxu0
      %v1295 = vadd.f32 %v1246, %v1294
      %1296 = vmatmul.bf16.gmra.mxu0 %v593
      %v1297 = vpop.f32.mrf.mxu0
      %v1298 = vadd.f32 %v1249, %v1297
      %v1299 = vpop.f32.mrf.mxu0
      %v1300 = vadd.f32 %v1251, %v1299
      %1301 = vmatmul.bf16.gmra.mxu0 %v601
      %v1302 = vpop.f32.mrf.mxu0
      %v1303 = vadd.f32 %v1254, %v1302
      %v1304 = vpop.f32.mrf.mxu0
      %v1305 = vadd.f32 %v1256, %v1304
      %1306 = vmatmul.bf16.gmra.mxu0 %v609
      %v1307 = vpop.f32.mrf.mxu0
      %v1308 = vadd.f32 %v1259, %v1307
      %v1309 = vpop.f32.mrf.mxu0
      %v1310 = vadd.f32 %v1261, %v1309
      %1311 = vmatmul.bf16.gmra.mxu0 %v617
      %v1312 = vpop.f32.mrf.mxu0
      %v1313 = vadd.f32 %v1264, %v1312
      %v1314 = vpop.f32.mrf.mxu0
      %v1315 = vadd.f32 %v1266, %v1314
      %1316 = vmatmul.bf16.gmra.mxu0 %v625
      %v1317 = vpop.f32.mrf.mxu0
      %v1318 = vadd.f32 %v1269, %v1317
      %v1319 = vpop.f32.mrf.mxu0
      %v1320 = vadd.f32 %v1271, %v1319
      %1321 = vdwg.mxu0
      %1322 = vmatpush.bf16.msra.mxu0 %v996
      %1323 = vmatpush.bf16.msra.mxu0 %v995
      %1324 = vmatpush.bf16.msra.mxu0 %v994
      %1325 = vmatpush.bf16.msra.mxu0 %v993
      %1326 = vmatpush.bf16.msra.mxu0 %v992
      %1327 = vmatpush.bf16.msra.mxu0 %v991
      %1328 = vmatpush.bf16.msra.mxu0 %v990
      %1329 = vmatpush.bf16.msra.mxu0 %v989
      %1330 = vmatmul.bf16.gmra.mxu0 %v570
      %v1331 = vpop.f32.mrf.mxu0
      %v1332 = vadd.f32 %v1283, %v1331
      %v1333 = vpop.f32.mrf.mxu0
      %v1334 = vadd.f32 %v1285, %v1333
      %1335 = vmatmul.bf16.gmra.mxu0 %v578
      %v1336 = vpop.f32.mrf.mxu0
      %v1337 = vadd.f32 %v1288, %v1336
      %v1338 = vpop.f32.mrf.mxu0
      %v1339 = vadd.f32 %v1290, %v1338
      %1340 = vmatmul.bf16.gmra.mxu0 %v586
      %v1341 = vpop.f32.mrf.mxu0
      %v1342 = vadd.f32 %v1293, %v1341
      %v1343 = vpop.f32.mrf.mxu0
      %v1344 = vadd.f32 %v1295, %v1343
      %1345 = vmatmul.bf16.gmra.mxu0 %v594
      %v1346 = vpop.f32.mrf.mxu0
      %v1347 = vadd.f32 %v1298, %v1346
      %v1348 = vpop.f32.mrf.mxu0
      %v1349 = vadd.f32 %v1300, %v1348
      %1350 = vmatmul.bf16.gmra.mxu0 %v602
      %v1351 = vpop.f32.mrf.mxu0
      %v1352 = vadd.f32 %v1303, %v1351
      %v1353 = vpop.f32.mrf.mxu0
      %v1354 = vadd.f32 %v1305, %v1353
      %1355 = vmatmul.bf16.gmra.mxu0 %v610
      %v1356 = vpop.f32.mrf.mxu0
      %v1357 = vadd.f32 %v1308, %v1356
      %v1358 = vpop.f32.mrf.mxu0
      %v1359 = vadd.f32 %v1310, %v1358
      %1360 = vmatmul.bf16.gmra.mxu0 %v618
      %v1361 = vpop.f32.mrf.mxu0
      %v1362 = vadd.f32 %v1313, %v1361
      %v1363 = vpop.f32.mrf.mxu0
      %v1364 = vadd.f32 %v1315, %v1363
      %1365 = vmatmul.bf16.gmra.mxu0 %v626
      %v1366 = vpop.f32.mrf.mxu0
      %v1367 = vadd.f32 %v1318, %v1366
      %v1368 = vpop.f32.mrf.mxu0
      %v1369 = vadd.f32 %v1320, %v1368
      %1370 = vdwg.mxu0
      %1371 = vmatpush.bf16.msra.mxu0 %v1004
      %1372 = vmatpush.bf16.msra.mxu0 %v1003
      %1373 = vmatpush.bf16.msra.mxu0 %v1002
      %1374 = vmatpush.bf16.msra.mxu0 %v1001
      %1375 = vmatpush.bf16.msra.mxu0 %v1000
      %1376 = vmatpush.bf16.msra.mxu0 %v999
      %1377 = vmatpush.bf16.msra.mxu0 %v998
      %1378 = vmatpush.bf16.msra.mxu0 %v997
      %1379 = vmatmul.bf16.gmra.mxu0 %v571
      %v1380 = vpop.f32.mrf.mxu0
      %v1381 = vadd.f32 %v1332, %v1380
      %v1382 = vpop.f32.mrf.mxu0
      %v1383 = vadd.f32 %v1334, %v1382
      %1384 = vmatmul.bf16.gmra.mxu0 %v579
      %v1385 = vpop.f32.mrf.mxu0
      %v1386 = vadd.f32 %v1337, %v1385
      %v1387 = vpop.f32.mrf.mxu0
      %v1388 = vadd.f32 %v1339, %v1387
      %1389 = vmatmul.bf16.gmra.mxu0 %v587
      %v1390 = vpop.f32.mrf.mxu0
      %v1391 = vadd.f32 %v1342, %v1390
      %v1392 = vpop.f32.mrf.mxu0
      %v1393 = vadd.f32 %v1344, %v1392
      %1394 = vmatmul.bf16.gmra.mxu0 %v595
      %v1395 = vpop.f32.mrf.mxu0
      %v1396 = vadd.f32 %v1347, %v1395
      %v1397 = vpop.f32.mrf.mxu0
      %v1398 = vadd.f32 %v1349, %v1397
      %1399 = vmatmul.bf16.gmra.mxu0 %v603
      %v1400 = vpop.f32.mrf.mxu0
      %v1401 = vadd.f32 %v1352, %v1400
      %v1402 = vpop.f32.mrf.mxu0
      %v1403 = vadd.f32 %v1354, %v1402
      %1404 = vmatmul.bf16.gmra.mxu0 %v611
      %v1405 = vpop.f32.mrf.mxu0
      %v1406 = vadd.f32 %v1357, %v1405
      %v1407 = vpop.f32.mrf.mxu0
      %v1408 = vadd.f32 %v1359, %v1407
      %1409 = vmatmul.bf16.gmra.mxu0 %v619
      %v1410 = vpop.f32.mrf.mxu0
      %v1411 = vadd.f32 %v1362, %v1410
      %v1412 = vpop.f32.mrf.mxu0
      %v1413 = vadd.f32 %v1364, %v1412
      %1414 = vmatmul.bf16.gmra.mxu0 %v627
      %v1415 = vpop.f32.mrf.mxu0
      %v1416 = vadd.f32 %v1367, %v1415
      %v1417 = vpop.f32.mrf.mxu0
      %v1418 = vadd.f32 %v1369, %v1417
      %1419 = vdwg.mxu0
      %1420 = vmatpush.bf16.msra.mxu0 %v1012
      %1421 = vmatpush.bf16.msra.mxu0 %v1011
      %1422 = vmatpush.bf16.msra.mxu0 %v1010
      %1423 = vmatpush.bf16.msra.mxu0 %v1009
      %1424 = vmatpush.bf16.msra.mxu0 %v1008
      %1425 = vmatpush.bf16.msra.mxu0 %v1007
      %1426 = vmatpush.bf16.msra.mxu0 %v1006
      %1427 = vmatpush.bf16.msra.mxu0 %v1005
      %1428 = vmatmul.bf16.gmra.mxu0 %v572
      %v1429 = vpop.f32.mrf.mxu0
      %v1430 = vadd.f32 %v1381, %v1429
      %v1431 = vpop.f32.mrf.mxu0
      %v1432 = vadd.f32 %v1383, %v1431
      %1433 = vmatmul.bf16.gmra.mxu0 %v580
      %v1434 = vpop.f32.mrf.mxu0
      %v1435 = vadd.f32 %v1386, %v1434
      %v1436 = vpop.f32.mrf.mxu0
      %v1437 = vadd.f32 %v1388, %v1436
      %1438 = vmatmul.bf16.gmra.mxu0 %v588
      %v1439 = vpop.f32.mrf.mxu0
      %v1440 = vadd.f32 %v1391, %v1439
      %v1441 = vpop.f32.mrf.mxu0
      %v1442 = vadd.f32 %v1393, %v1441
      %1443 = vmatmul.bf16.gmra.mxu0 %v596
      %v1444 = vpop.f32.mrf.mxu0
      %v1445 = vadd.f32 %v1396, %v1444
      %v1446 = vpop.f32.mrf.mxu0
      %v1447 = vadd.f32 %v1398, %v1446
      %1448 = vmatmul.bf16.gmra.mxu0 %v604
      %v1449 = vpop.f32.mrf.mxu0
      %v1450 = vadd.f32 %v1401, %v1449
      %v1451 = vpop.f32.mrf.mxu0
      %v1452 = vadd.f32 %v1403, %v1451
      %1453 = vmatmul.bf16.gmra.mxu0 %v612
      %v1454 = vpop.f32.mrf.mxu0
      %v1455 = vadd.f32 %v1406, %v1454
      %v1456 = vpop.f32.mrf.mxu0
      %v1457 = vadd.f32 %v1408, %v1456
      %1458 = vmatmul.bf16.gmra.mxu0 %v620
      %v1459 = vpop.f32.mrf.mxu0
      %v1460 = vadd.f32 %v1411, %v1459
      %v1461 = vpop.f32.mrf.mxu0
      %v1462 = vadd.f32 %v1413, %v1461
      %1463 = vmatmul.bf16.gmra.mxu0 %v628
      %v1464 = vpop.f32.mrf.mxu0
      %v1465 = vadd.f32 %v1416, %v1464
      %v1466 = vpop.f32.mrf.mxu0
      %v1467 = vadd.f32 %v1418, %v1466
      %1468 = vdwg.mxu0
      %v1469 = vmul.f32 %v1430, 0.2
      %v1470 = vmul.f32 %v1432, 0.2
      %v1471 = vmul.f32 %v1435, 0.2
      %v1472 = vmul.f32 %v1437, 0.2
      %v1473 = vmul.f32 %v1440, 0.2
      %v1474 = vmul.f32 %v1442, 0.2
      %v1475 = vmul.f32 %v1445, 0.2
      %v1476 = vmul.f32 %v1447, 0.2
      %v1477 = vmul.f32 %v1450, 0.2
      %v1478 = vmul.f32 %v1452, 0.2
      %v1479 = vmul.f32 %v1455, 0.2
      %v1480 = vmul.f32 %v1457, 0.2
      %v1481 = vmul.f32 %v1460, 0.2
      %v1482 = vmul.f32 %v1462, 0.2
      %v1483 = vmul.f32 %v1465, 0.2
      %v1484 = vmul.f32 %v1467, 0.2
      %v1485 = vmax.f32 %v1430, %v1469
      %v1486 = vmax.f32 %v1432, %v1470
      %v1487 = vmax.f32 %v1435, %v1471
      %v1488 = vmax.f32 %v1437, %v1472
      %v1489 = vmax.f32 %v1440, %v1473
      %v1490 = vmax.f32 %v1442, %v1474
      %v1491 = vmax.f32 %v1445, %v1475
      %v1492 = vmax.f32 %v1447, %v1476
      %v1493 = vmax.f32 %v1450, %v1477
      %v1494 = vmax.f32 %v1452, %v1478
      %v1495 = vmax.f32 %v1455, %v1479
      %v1496 = vmax.f32 %v1457, %v1480
      %v1497 = vmax.f32 %v1460, %v1481
      %v1498 = vmax.f32 %v1462, %v1482
      %v1499 = vmax.f32 %v1465, %v1483
      %v1500 = vmax.f32 %v1467, %v1484
      %v1501 = vpack.c.bf16 %v1485, %v1485
      %v1502 = vpack.c.bf16 %v1486, %v1486
      %v1503 = vpack.c.bf16 %v1487, %v1487
      %v1504 = vpack.c.bf16 %v1488, %v1488
      %v1505 = vpack.c.bf16 %v1489, %v1489
      %v1506 = vpack.c.bf16 %v1490, %v1490
      %v1507 = vpack.c.bf16 %v1491, %v1491
      %v1508 = vpack.c.bf16 %v1492, %v1492
      %v1509 = vpack.c.bf16 %v1493, %v1493
      %v1510 = vpack.c.bf16 %v1494, %v1494
      %v1511 = vpack.c.bf16 %v1495, %v1495
      %v1512 = vpack.c.bf16 %v1496, %v1496
      %v1513 = vpack.c.bf16 %v1497, %v1497
      %v1514 = vpack.c.bf16 %v1498, %v1498
      %v1515 = vpack.c.bf16 %v1499, %v1499
      %v1516 = vpack.c.bf16 %v1500, %v1500
      %1517 = vst [vmem:[%s175] sm:$0xf] %v1501
      %1518 = vst [vmem:[%s175 + $0x4] sm:$0xf] %v1502
      %1519 = vst [vmem:[%s175 + $0x8] sm:$0xf] %v1503
      %1520 = vst [vmem:[%s175 + $0xc] sm:$0xf] %v1504
      %1521 = vst [vmem:[%s175 + $0x10] sm:$0xf] %v1505
      %1522 = vst [vmem:[%s175 + $0x14] sm:$0xf] %v1506
      %1523 = vst [vmem:[%s175 + $0x18] sm:$0xf] %v1507
      %1524 = vst [vmem:[%s175 + $0x1c] sm:$0xf] %v1508
      %1525 = vst [vmem:[%s175 + $0x20] sm:$0xf] %v1509
      %1526 = vst [vmem:[%s175 + $0x24] sm:$0xf] %v1510
      %1527 = vst [vmem:[%s175 + $0x28] sm:$0xf] %v1511
      %1528 = vst [vmem:[%s175 + $0x2c] sm:$0xf] %v1512
      %1529 = vst [vmem:[%s175 + $0x30] sm:$0xf] %v1513
      %1530 = vst [vmem:[%s175 + $0x34] sm:$0xf] %v1514
      %1531 = vst [vmem:[%s175 + $0x38] sm:$0xf] %v1515
      %1532 = vst [vmem:[%s175 + $0x3c] sm:$0xf] %v1516
      %s1533 = smul.u32 16, %s14
      %p1534 = scmp.lt.s32.totalorder %s1533, 31
      %s1535 = scalar_select %p1534, %s1533, 31
      %s1536 = smul.addr %s1535, 4
      %s1537 = scalar_lea.vmem %s3, %s1536
      // Predicated region
      $region33: #{_lambda_.5} parent=31 // pred_check
        %p1538 = pneg %p100
      $region34: #{_lambda_.5} parent=31 // pred_check_branch
        %1540 = sbr.rel (%p1538) target = $region36
      $region35: #{_lambda_.5} parent=31 // pred_region
        %s1541 = smul.u32 16, %s14
      $region36: #{_lambda_.5} parent=31 // pred_fallthru
        _
    $region32: #{_lambda_.5} parent=5 // pred_fallthru
      _
    %p1542 = scmp.le.s32.totalorder 2, %s9
    // Predicated region
    $region37: #{_lambda_.5} parent=5 // pred_check
      %p1543 = pneg %p1542
    $region38: #{_lambda_.5} parent=5 // pred_check_branch
      %1545 = sbr.rel (%p1543) target = $region40
    $region39: #{_lambda_.5} parent=5 // pred_region
      %s1546 = ssub.s32 %s9, 2
      // Predicated region
      $region41: #{_lambda_.5} parent=39 // pred_check
        %p1547 = pneg %p106
      $region42: #{_lambda_.5} parent=39 // pred_check_branch
        %1549 = sbr.rel (%p1547) target = $region44
      $region43: #{_lambda_.5} parent=39 // pred_region
        %s1550 = smul.u32 16, %s15
        %p1551 = scmp.lt.s32.totalorder %s1550, 31
        %s1552 = scalar_select %p1551, %s1550, 31
        %s1553 = smul.addr %s1552, 4
        %s1554 = scalar_lea.vmem %s3, %s1553
      $region44: #{_lambda_.5} parent=39 // pred_fallthru
        _
    $region40: #{_lambda_.5} parent=5 // pred_fallthru
      _
  $region6: #{_lambda_.5} parent=0 // loop_footer
    %s13 = sadd.s32 1, %s9
  $region7: #{_lambda_.5} parent=0 // loop_footer_branch
    %8 = sbr.rel target = $region3
  $region8: #{_lambda_.5} parent=0 // loop_exit
    _

// kernel: _lambda_.6
$region0: #{_lambda_.6}
  #allocation0 [shape = 'u32[]', space=smem, size = 0x4, offset = 0x4, fixed_abs, tag = 'smem constant byte address 0x4 - core index']
  #allocation1 [shape = 'u32[72,128]{1,0:T(1,128)}', space=vmem, size = 0x9000, scoped, tag = 'internal scratch']
  %s0 = inlined_call_operand.vmem [shape: bf16[128,1024], index: 0, kind: input, shape index: {}]
  %s1 = inlined_call_operand.vmem [shape: bf16[1024,128], index: 1, kind: input, shape index: {}]
  %s2 = inlined_call_operand.vmem [shape: f32[1,128], index: 2, kind: input, shape index: {}]
  %s3 = inlined_call_operand.vmem [shape: bf16[128,128], index: 3, kind: output, shape index: {}]
  %s4 = sld [smem:[#allocation0]]
  $region45: #{_lambda_.6} parent=0
    _
  %s6 = ssub.s32 1, %s4
  %s7 = scalar_select 0, %s6, %s4
  loop: start=0, step=1, limit=4
  $region2: #{_lambda_.6} parent=0 // loop_pre_header
    _
  $region3: #{_lambda_.6} parent=0 // loop_header
    %s9 = sphi 0, %s13
    %p10 = scmp.ge.s32.totalorder %s9, 4
    %s19 = sphi 0, %s21
    %s22 = sphi 0, %s19
    %s23 = sphi 0, %s22
    %s39 = sphi 0, %s23
    %s43 = sphi 0, %s43
    %s45 = sphi 0, %s43
    %s46 = sphi 0, %s45
    %s60 = sphi 0, %s46
    %s64 = sphi 0, %s64
    %s66 = sphi 0, %s64
    %s67 = sphi 0, %s66
    %s81 = sphi 0, %s67
    %s87 = sphi 0, %s89
    %s90 = sphi 0, %s87
    %s91 = sphi 0, %s90
    %s107 = sphi 0, %s91
  $region4: #{_lambda_.6} parent=0 // loop_header_branch
    %12 = sbr.rel (%p10) target = $region8
  $region5: #{_lambda_.6} parent=0 // loop_body
    %s14 = ssub.s32 %s9, 1
    %s15 = ssub.s32 %s9, 2
    %s16 = sadd.s32 %s9, 1
    %s17 = ssub.s32 %s9, %s16
    %p18 = scmp.eq.s32.totalorder %s17, 0
    %s20 = sadd.s32 %s19, 1
    %s21 = scalar_select %p18, %s19, %s20
    %p24 = pneg %p18
    %p25 = scmp.eq.s32.totalorder %s9, 1
    %p26 = por %p24, %p25
    %p27 = scmp.ne.s32.totalorder %s19, %s22
    %p28 = scmp.eq.s32.totalorder %s9, 0
    %p29 = por %p27, %p28
    %p30 = scmp.ne.s32.totalorder %s19, %s22
    %p31 = scmp.eq.s32.totalorder %s14, 1
    %p32 = por %p30, %p31
    %p33 = scmp.ne.s32.totalorder %s22, %s23
    %p34 = scmp.eq.s32.totalorder %s14, 0
    %p35 = por %p33, %p34
    %p36 = scmp.ne.s32.totalorder %s22, %s23
    %p37 = scmp.eq.s32.totalorder %s15, 1
    %p38 = por %p36, %p37
    %p40 = scmp.ne.s32.totalorder %s23, %s39
    %p41 = scmp.eq.s32.totalorder %s15, 0
    %p42 = por %p40, %p41
    %s44 = sadd.s32 %s43, 1
    %p47 = scmp.eq.s32.totalorder %s9, 1
    %p48 = scmp.ne.s32.totalorder %s43, %s45
    %p49 = scmp.eq.s32.totalorder %s9, 0
    %p50 = por %p48, %p49
    %p51 = scmp.ne.s32.totalorder %s43, %s45
    %p52 = scmp.eq.s32.totalorder %s14, 1
    %p53 = por %p51, %p52
    %p54 = scmp.ne.s32.totalorder %s45, %s46
    %p55 = scmp.eq.s32.totalorder %s14, 0
    %p56 = por %p54, %p55
    %p57 = scmp.ne.s32.totalorder %s45, %s46
    %p58 = scmp.eq.s32.totalorder %s15, 1
    %p59 = por %p57, %p58
    %p61 = scmp.ne.s32.totalorder %s46, %s60
    %p62 = scmp.eq.s32.totalorder %s15, 0
    %p63 = por %p61, %p62
    %s65 = sadd.s32 %s64, 1
    %p68 = scmp.eq.s32.totalorder %s9, 1
    %p69 = scmp.ne.s32.totalorder %s64, %s66
    %p70 = scmp.eq.s32.totalorder %s9, 0
    %p71 = por %p69, %p70
    %p72 = scmp.ne.s32.totalorder %s64, %s66
    %p73 = scmp.eq.s32.totalorder %s14, 1
    %p74 = por %p72, %p73
    %p75 = scmp.ne.s32.totalorder %s66, %s67
    %p76 = scmp.eq.s32.totalorder %s14, 0
    %p77 = por %p75, %p76
    %p78 = scmp.ne.s32.totalorder %s66, %s67
    %p79 = scmp.eq.s32.totalorder %s15, 1
    %p80 = por %p78, %p79
    %p82 = scmp.ne.s32.totalorder %s67, %s81
    %p83 = scmp.eq.s32.totalorder %s15, 0
    %p84 = por %p82, %p83
    %s85 = ssub.s32 %s9, %s16
    %p86 = scmp.eq.s32.totalorder %s85, 0
    %s88 = sadd.s32 %s87, 1
    %s89 = scalar_select %p86, %s87, %s88
    %p92 = pneg %p86
    %p93 = scmp.eq.s32.totalorder %s9, 1
    %p94 = por %p92, %p93
    %p95 = scmp.ne.s32.totalorder %s87, %s90
    %p96 = scmp.eq.s32.totalorder %s9, 0
    %p97 = por %p95, %p96
    %p98 = scmp.ne.s32.totalorder %s87, %s90
    %p99 = scmp.eq.s32.totalorder %s14, 1
    %p100 = por %p98, %p99
    %p101 = scmp.ne.s32.totalorder %s90, %s91
    %p102 = scmp.eq.s32.totalorder %s14, 0
    %p103 = por %p101, %p102
    %p104 = scmp.ne.s32.totalorder %s90, %s91
    %p105 = scmp.eq.s32.totalorder %s15, 1
    %p106 = por %p104, %p105
    %p108 = scmp.ne.s32.totalorder %s91, %s107
    %p109 = scmp.eq.s32.totalorder %s15, 0
    %p110 = por %p108, %p109
    %p111 = scmp.le.s32.totalorder 1, %s9
    %p112 = scmp.lt.s32.totalorder %s9, 3
    %p113 = pnand %p111, %p112
    %p114 = pneg %p113
    // Predicated region
    $region9: #{_lambda_.6} parent=5 // pred_check
      _
    $region10: #{_lambda_.6} parent=5 // pred_check_branch
      %116 = sbr.rel (%p113) target = $region12
    $region11: #{_lambda_.6} parent=5 // pred_region
      %s117 = ssub.s32 %s9, 1
      // Predicated region
      $region13: #{_lambda_.6} parent=11 // pred_check
        %p118 = pneg %p56
      $region14: #{_lambda_.6} parent=11 // pred_check_branch
        %120 = sbr.rel (%p118) target = $region16
      $region15: #{_lambda_.6} parent=11 // pred_region
        _
      $region16: #{_lambda_.6} parent=11 // pred_fallthru
        _
      // Predicated region
      $region17: #{_lambda_.6} parent=11 // pred_check
        %p121 = pneg %p77
      $region18: #{_lambda_.6} parent=11 // pred_check_branch
        %123 = sbr.rel (%p121) target = $region20
      $region19: #{_lambda_.6} parent=11 // pred_region
        _
      $region20: #{_lambda_.6} parent=11 // pred_fallthru
        _
    $region12: #{_lambda_.6} parent=5 // pred_fallthru
      _
    %p124 = scmp.lt.s32.totalorder %s9, 2
    // Predicated region
    $region21: #{_lambda_.6} parent=5 // pred_check
      %p125 = pneg %p124
    $region22: #{_lambda_.6} parent=5 // pred_check_branch
      %127 = sbr.rel (%p125) target = $region24
    $region23: #{_lambda_.6} parent=5 // pred_region
      // Predicated region
      $region25: #{_lambda_.6} parent=23 // pred_check
        %p128 = pneg %p29
      $region26: #{_lambda_.6} parent=23 // pred_check_branch
        %130 = sbr.rel (%p128) target = $region28
      $region27: #{_lambda_.6} parent=23 // pred_region
        %s131 = smul.u32 8, %s9
        %p132 = scmp.lt.s32.totalorder %s131, 15
        %s133 = scalar_select %p132, %s131, 15
        %s134 = smul.addr %s133, 8
        %s135 = smul.addr %s134, 4
        %s136 = scalar_lea.vmem %s0, %s135
        %s137 = smul.u32 8, %s9
      $region28: #{_lambda_.6} parent=23 // pred_fallthru
        _
    $region24: #{_lambda_.6} parent=5 // pred_fallthru
      _
    %p138 = scmp.le.s32.totalorder 1, %s9
    %p139 = scmp.lt.s32.totalorder %s9, 3
    %p140 = pnand %p138, %p139
    %p141 = pneg %p140
    // Predicated region
    $region29: #{_lambda_.6} parent=5 // pred_check
      _
    $region30: #{_lambda_.6} parent=5 // pred_check_branch
      %143 = sbr.rel (%p140) target = $region32
    $region31: #{_lambda_.6} parent=5 // pred_region
      %s144 = ssub.s32 %s9, 1
      %s145 = smul.u32 8, %s14
      %p146 = scmp.lt.s32.totalorder %s145, 15
      %s147 = scalar_select %p146, %s145, 15
      %s148 = smul.addr %s147, 8
      %s149 = smul.addr %s148, 4
      %s150 = scalar_lea.vmem %s0, %s149
      %p151 = pneg %p35
      %p152 = pneg %p32
      %p153 = pneg %p56
      %p154 = pneg %p53
      %p155 = pneg %p77
      %p156 = pneg %p74
      %p157 = pneg %p103
      %p158 = pneg %p100
      %s159 = smul.u32 8, %s14
      %p160 = scmp.lt.s32.totalorder %s159, 15
      %s161 = scalar_select %p160, %s159, 15
      %s162 = smul.addr %s161, 4
      %s163 = scalar_lea.vmem %s3, %s162
      %s164 = smul.u32 8, %s14
      %p165 = scmp.lt.s32.totalorder %s164, 15
      %s166 = scalar_select %p165, %s164, 15
      %s167 = smul.addr %s166, 8
      %s168 = smul.addr %s167, 4
      %s169 = scalar_lea.vmem %s0, %s168
      %s170 = smul.u32 8, %s14
      %s171 = smul.u32 8, %s14
      %p172 = scmp.lt.s32.totalorder %s171, 15
      %s173 = scalar_select %p172, %s171, 15
      %s174 = smul.addr %s173, 4
      %s175 = scalar_lea.vmem %s3, %s174
      %s176 = smul.u32 8, %s14
      %v177 = vld [vmem:[%s169] sm:$0xff]
      %v178 = vld [vmem:[%s169 + $0x8] sm:$0xff]
      %v179 = vld [vmem:[%s169 + $0x10] sm:$0xff]
      %v180 = vld [vmem:[%s169 + $0x18] sm:$0xff]
      %v181 = vld [vmem:[%s169 + $0x20] sm:$0xff]
      %v182 = vld [vmem:[%s169 + $0x28] sm:$0xff]
      %v183 = vld [vmem:[%s169 + $0x30] sm:$0xff]
      %v184 = vld [vmem:[%s169 + $0x38] sm:$0xff]
      %v185 = vld [vmem:[%s169 + $0x40] sm:$0xff]
      %v186 = vld [vmem:[%s169 + $0x48] sm:$0xff]
      %v187 = vld [vmem:[%s169 + $0x50] sm:$0xff]
      %v188 = vld [vmem:[%s169 + $0x58] sm:$0xff]
      %v189 = vld [vmem:[%s169 + $0x60] sm:$0xff]
      %v190 = vld [vmem:[%s169 + $0x68] sm:$0xff]
      %v191 = vld [vmem:[%s169 + $0x70] sm:$0xff]
      %v192 = vld [vmem:[%s169 + $0x78] sm:$0xff]
      %v193 = vld [vmem:[%s169 + $0x80] sm:$0xff]
      %v194 = vld [vmem:[%s169 + $0x88] sm:$0xff]
      %v195 = vld [vmem:[%s169 + $0x90] sm:$0xff]
      %v196 = vld [vmem:[%s169 + $0x98] sm:$0xff]
      %v197 = vld [vmem:[%s169 + $0xa0] sm:$0xff]
      %v198 = vld [vmem:[%s169 + $0xa8] sm:$0xff]
      %v199 = vld [vmem:[%s169 + $0xb0] sm:$0xff]
      %v200 = vld [vmem:[%s169 + $0xb8] sm:$0xff]
      %v201 = vld [vmem:[%s169 + $0xc0] sm:$0xff]
      %v202 = vld [vmem:[%s169 + $0xc8] sm:$0xff]
      %v203 = vld [vmem:[%s169 + $0xd0] sm:$0xff]
      %v204 = vld [vmem:[%s169 + $0xd8] sm:$0xff]
      %v205 = vld [vmem:[%s169 + $0xe0] sm:$0xff]
      %v206 = vld [vmem:[%s169 + $0xe8] sm:$0xff]
      %v207 = vld [vmem:[%s169 + $0xf0] sm:$0xff]
      %v208 = vld [vmem:[%s169 + $0xf8] sm:$0xff]
      %v209 = vld [vmem:[%s1] sm:$0xf]
      %v210 = vld [vmem:[%s1 + $0x4] sm:$0xf]
      %v211 = vld [vmem:[%s1 + $0x8] sm:$0xf]
      %v212 = vld [vmem:[%s1 + $0xc] sm:$0xf]
      %v213 = vld [vmem:[%s1 + $0x10] sm:$0xf]
      %v214 = vld [vmem:[%s1 + $0x14] sm:$0xf]
      %v215 = vld [vmem:[%s1 + $0x18] sm:$0xf]
      %v216 = vld [vmem:[%s1 + $0x1c] sm:$0xf]
      %v217 = vld [vmem:[%s1 + $0x20] sm:$0xf]
      %v218 = vld [vmem:[%s1 + $0x24] sm:$0xf]
      %v219 = vld [vmem:[%s1 + $0x28] sm:$0xf]
      %v220 = vld [vmem:[%s1 + $0x2c] sm:$0xf]
      %v221 = vld [vmem:[%s1 + $0x30] sm:$0xf]
      %v222 = vld [vmem:[%s1 + $0x34] sm:$0xf]
      %v223 = vld [vmem:[%s1 + $0x38] sm:$0xf]
      %v224 = vld [vmem:[%s1 + $0x3c] sm:$0xf]
      %v225 = vld [vmem:[%s1 + $0x40] sm:$0xf]
      %v226 = vld [vmem:[%s1 + $0x44] sm:$0xf]
      %v227 = vld [vmem:[%s1 + $0x48] sm:$0xf]
      %v228 = vld [vmem:[%s1 + $0x4c] sm:$0xf]
      %v229 = vld [vmem:[%s1 + $0x50] sm:$0xf]
      %v230 = vld [vmem:[%s1 + $0x54] sm:$0xf]
      %v231 = vld [vmem:[%s1 + $0x58] sm:$0xf]
      %v232 = vld [vmem:[%s1 + $0x5c] sm:$0xf]
      %v233 = vld [vmem:[%s1 + $0x60] sm:$0xf]
      %v234 = vld [vmem:[%s1 + $0x64] sm:$0xf]
      %v235 = vld [vmem:[%s1 + $0x68] sm:$0xf]
      %v236 = vld [vmem:[%s1 + $0x6c] sm:$0xf]
      %v237 = vld [vmem:[%s1 + $0x70] sm:$0xf]
      %v238 = vld [vmem:[%s1 + $0x74] sm:$0xf]
      %v239 = vld [vmem:[%s1 + $0x78] sm:$0xf]
      %v240 = vld [vmem:[%s1 + $0x7c] sm:$0xf]
      %v241 = vld [vmem:[%s1 + $0x80] sm:$0xf]
      %v242 = vld [vmem:[%s1 + $0x84] sm:$0xf]
      %v243 = vld [vmem:[%s1 + $0x88] sm:$0xf]
      %v244 = vld [vmem:[%s1 + $0x8c] sm:$0xf]
      %v245 = vld [vmem:[%s1 + $0x90] sm:$0xf]
      %v246 = vld [vmem:[%s1 + $0x94] sm:$0xf]
      %v247 = vld [vmem:[%s1 + $0x98] sm:$0xf]
      %v248 = vld [vmem:[%s1 + $0x9c] sm:$0xf]
      %v249 = vld [vmem:[%s1 + $0xa0] sm:$0xf]
      %v250 = vld [vmem:[%s1 + $0xa4] sm:$0xf]
      %v251 = vld [vmem:[%s1 + $0xa8] sm:$0xf]
      %v252 = vld [vmem:[%s1 + $0xac] sm:$0xf]
      %v253 = vld [vmem:[%s1 + $0xb0] sm:$0xf]
      %v254 = vld [vmem:[%s1 + $0xb4] sm:$0xf]
      %v255 = vld [vmem:[%s1 + $0xb8] sm:$0xf]
      %v256 = vld [vmem:[%s1 + $0xbc] sm:$0xf]
      %v257 = vld [vmem:[%s1 + $0xc0] sm:$0xf]
      %v258 = vld [vmem:[%s1 + $0xc4] sm:$0xf]
      %v259 = vld [vmem:[%s1 + $0xc8] sm:$0xf]
      %v260 = vld [vmem:[%s1 + $0xcc] sm:$0xf]
      %v261 = vld [vmem:[%s1 + $0xd0] sm:$0xf]
      %v262 = vld [vmem:[%s1 + $0xd4] sm:$0xf]
      %v263 = vld [vmem:[%s1 + $0xd8] sm:$0xf]
      %v264 = vld [vmem:[%s1 + $0xdc] sm:$0xf]
      %v265 = vld [vmem:[%s1 + $0xe0] sm:$0xf]
      %v266 = vld [vmem:[%s1 + $0xe4] sm:$0xf]
      %v267 = vld [vmem:[%s1 + $0xe8] sm:$0xf]
      %v268 = vld [vmem:[%s1 + $0xec] sm:$0xf]
      %v269 = vld [vmem:[%s1 + $0xf0] sm:$0xf]
      %v270 = vld [vmem:[%s1 + $0xf4] sm:$0xf]
      %v271 = vld [vmem:[%s1 + $0xf8] sm:$0xf]
      %v272 = vld [vmem:[%s1 + $0xfc] sm:$0xf]
      %v273 = vld [vmem:[%s1 + $0x100] sm:$0xf]
      %v274 = vld [vmem:[%s1 + $0x104] sm:$0xf]
      %v275 = vld [vmem:[%s1 + $0x108] sm:$0xf]
      %v276 = vld [vmem:[%s1 + $0x10c] sm:$0xf]
      %v277 = vld [vmem:[%s1 + $0x110] sm:$0xf]
      %v278 = vld [vmem:[%s1 + $0x114] sm:$0xf]
      %v279 = vld [vmem:[%s1 + $0x118] sm:$0xf]
      %v280 = vld [vmem:[%s1 + $0x11c] sm:$0xf]
      %v281 = vld [vmem:[%s1 + $0x120] sm:$0xf]
      %v282 = vld [vmem:[%s1 + $0x124] sm:$0xf]
      %v283 = vld [vmem:[%s1 + $0x128] sm:$0xf]
      %v284 = vld [vmem:[%s1 + $0x12c] sm:$0xf]
      %v285 = vld [vmem:[%s1 + $0x130] sm:$0xf]
      %v286 = vld [vmem:[%s1 + $0x134] sm:$0xf]
      %v287 = vld [vmem:[%s1 + $0x138] sm:$0xf]
      %v288 = vld [vmem:[%s1 + $0x13c] sm:$0xf]
      %v289 = vld [vmem:[%s1 + $0x140] sm:$0xf]
      %v290 = vld [vmem:[%s1 + $0x144] sm:$0xf]
      %v291 = vld [vmem:[%s1 + $0x148] sm:$0xf]
      %v292 = vld [vmem:[%s1 + $0x14c] sm:$0xf]
      %v293 = vld [vmem:[%s1 + $0x150] sm:$0xf]
      %v294 = vld [vmem:[%s1 + $0x154] sm:$0xf]
      %v295 = vld [vmem:[%s1 + $0x158] sm:$0xf]
      %v296 = vld [vmem:[%s1 + $0x15c] sm:$0xf]
      %v297 = vld [vmem:[%s1 + $0x160] sm:$0xf]
      %v298 = vld [vmem:[%s1 + $0x164] sm:$0xf]
      %v299 = vld [vmem:[%s1 + $0x168] sm:$0xf]
      %v300 = vld [vmem:[%s1 + $0x16c] sm:$0xf]
      %v301 = vld [vmem:[%s1 + $0x170] sm:$0xf]
      %v302 = vld [vmem:[%s1 + $0x174] sm:$0xf]
      %v303 = vld [vmem:[%s1 + $0x178] sm:$0xf]
      %v304 = vld [vmem:[%s1 + $0x17c] sm:$0xf]
      %v305 = vld [vmem:[%s1 + $0x180] sm:$0xf]
      %v306 = vld [vmem:[%s1 + $0x184] sm:$0xf]
      %v307 = vld [vmem:[%s1 + $0x188] sm:$0xf]
      %v308 = vld [vmem:[%s1 + $0x18c] sm:$0xf]
      %v309 = vld [vmem:[%s1 + $0x190] sm:$0xf]
      %v310 = vld [vmem:[%s1 + $0x194] sm:$0xf]
      %v311 = vld [vmem:[%s1 + $0x198] sm:$0xf]
      %v312 = vld [vmem:[%s1 + $0x19c] sm:$0xf]
      %v313 = vld [vmem:[%s1 + $0x1a0] sm:$0xf]
      %v314 = vld [vmem:[%s1 + $0x1a4] sm:$0xf]
      %v315 = vld [vmem:[%s1 + $0x1a8] sm:$0xf]
      %v316 = vld [vmem:[%s1 + $0x1ac] sm:$0xf]
      %v317 = vld [vmem:[%s1 + $0x1b0] sm:$0xf]
      %v318 = vld [vmem:[%s1 + $0x1b4] sm:$0xf]
      %v319 = vld [vmem:[%s1 + $0x1b8] sm:$0xf]
      %v320 = vld [vmem:[%s1 + $0x1bc] sm:$0xf]
      %v321 = vld [vmem:[%s1 + $0x1c0] sm:$0xf]
      %v322 = vld [vmem:[%s1 + $0x1c4] sm:$0xf]
      %v323 = vld [vmem:[%s1 + $0x1c8] sm:$0xf]
      %v324 = vld [vmem:[%s1 + $0x1cc] sm:$0xf]
      %v325 = vld [vmem:[%s1 + $0x1d0] sm:$0xf]
      %v326 = vld [vmem:[%s1 + $0x1d4] sm:$0xf]
      %v327 = vld [vmem:[%s1 + $0x1d8] sm:$0xf]
      %v328 = vld [vmem:[%s1 + $0x1dc] sm:$0xf]
      %v329 = vld [vmem:[%s1 + $0x1e0] sm:$0xf]
      %v330 = vld [vmem:[%s1 + $0x1e4] sm:$0xf]
      %v331 = vld [vmem:[%s1 + $0x1e8] sm:$0xf]
      %v332 = vld [vmem:[%s1 + $0x1ec] sm:$0xf]
      %v333 = vld [vmem:[%s1 + $0x1f0] sm:$0xf]
      %v334 = vld [vmem:[%s1 + $0x1f4] sm:$0xf]
      %v335 = vld [vmem:[%s1 + $0x1f8] sm:$0xf]
      %v336 = vld [vmem:[%s1 + $0x1fc] sm:$0xf]
      %v337 = vld [vmem:[%s2] sm:$0x1]
      %v339 = vperm.slane %v337, 0
      %v373 = vunpack.c.l.b16 %v177
      %v374 = vunpack.c.h.b16 %v177
      %v375 = vunpack.c.l.b16 %v178
      %v376 = vunpack.c.h.b16 %v178
      %v377 = vunpack.c.l.b16 %v179
      %v378 = vunpack.c.h.b16 %v179
      %v379 = vunpack.c.l.b16 %v180
      %v380 = vunpack.c.h.b16 %v180
      %v381 = vunpack.c.l.b16 %v181
      %v382 = vunpack.c.h.b16 %v181
      %v383 = vunpack.c.l.b16 %v182
      %v384 = vunpack.c.h.b16 %v182
      %v385 = vunpack.c.l.b16 %v183
      %v386 = vunpack.c.h.b16 %v183
      %v387 = vunpack.c.l.b16 %v184
      %v388 = vunpack.c.h.b16 %v184
      %v389 = vunpack.c.l.b16 %v185
      %v390 = vunpack.c.h.b16 %v185
      %v391 = vunpack.c.l.b16 %v186
      %v392 = vunpack.c.h.b16 %v186
      %v393 = vunpack.c.l.b16 %v187
      %v394 = vunpack.c.h.b16 %v187
      %v395 = vunpack.c.l.b16 %v188
      %v396 = vunpack.c.h.b16 %v188
      %v397 = vunpack.c.l.b16 %v189
      %v398 = vunpack.c.h.b16 %v189
      %v399 = vunpack.c.l.b16 %v190
      %v400 = vunpack.c.h.b16 %v190
      %v401 = vunpack.c.l.b16 %v191
      %v402 = vunpack.c.h.b16 %v191
      %v403 = vunpack.c.l.b16 %v192
      %v404 = vunpack.c.h.b16 %v192
      %v405 = vunpack.c.l.b16 %v193
      %v406 = vunpack.c.h.b16 %v193
      %v407 = vunpack.c.l.b16 %v194
      %v408 = vunpack.c.h.b16 %v194
      %v409 = vunpack.c.l.b16 %v195
      %v410 = vunpack.c.h.b16 %v195
      %v411 = vunpack.c.l.b16 %v196
      %v412 = vunpack.c.h.b16 %v196
      %v413 = vunpack.c.l.b16 %v197
      %v414 = vunpack.c.h.b16 %v197
      %v415 = vunpack.c.l.b16 %v198
      %v416 = vunpack.c.h.b16 %v198
      %v417 = vunpack.c.l.b16 %v199
      %v418 = vunpack.c.h.b16 %v199
      %v419 = vunpack.c.l.b16 %v200
      %v420 = vunpack.c.h.b16 %v200
      %v421 = vunpack.c.l.b16 %v201
      %v422 = vunpack.c.h.b16 %v201
      %v423 = vunpack.c.l.b16 %v202
      %v424 = vunpack.c.h.b16 %v202
      %v425 = vunpack.c.l.b16 %v203
      %v426 = vunpack.c.h.b16 %v203
      %v427 = vunpack.c.l.b16 %v204
      %v428 = vunpack.c.h.b16 %v204
      %v429 = vunpack.c.l.b16 %v205
      %v430 = vunpack.c.h.b16 %v205
      %v431 = vunpack.c.l.b16 %v206
      %v432 = vunpack.c.h.b16 %v206
      %v433 = vunpack.c.l.b16 %v207
      %v434 = vunpack.c.h.b16 %v207
      %v435 = vunpack.c.l.b16 %v208
      %v436 = vunpack.c.h.b16 %v208
      %v437 = vpack.c.b16 %v381, %v373
      %v438 = vpack.c.b16 %v382, %v374
      %v439 = vpack.c.b16 %v383, %v375
      %v440 = vpack.c.b16 %v384, %v376
      %v441 = vpack.c.b16 %v385, %v377
      %v442 = vpack.c.b16 %v386, %v378
      %v443 = vpack.c.b16 %v387, %v379
      %v444 = vpack.c.b16 %v388, %v380
      %v445 = vpack.c.b16 %v397, %v389
      %v446 = vpack.c.b16 %v398, %v390
      %v447 = vpack.c.b16 %v399, %v391
      %v448 = vpack.c.b16 %v400, %v392
      %v449 = vpack.c.b16 %v401, %v393
      %v450 = vpack.c.b16 %v402, %v394
      %v451 = vpack.c.b16 %v403, %v395
      %v452 = vpack.c.b16 %v404, %v396
      %v453 = vpack.c.b16 %v413, %v405
      %v454 = vpack.c.b16 %v414, %v406
      %v455 = vpack.c.b16 %v415, %v407
      %v456 = vpack.c.b16 %v416, %v408
      %v457 = vpack.c.b16 %v417, %v409
      %v458 = vpack.c.b16 %v418, %v410
      %v459 = vpack.c.b16 %v419, %v411
      %v460 = vpack.c.b16 %v420, %v412
      %v461 = vpack.c.b16 %v429, %v421
      %v462 = vpack.c.b16 %v430, %v422
      %v463 = vpack.c.b16 %v431, %v423
      %v464 = vpack.c.b16 %v432, %v424
      %v465 = vpack.c.b16 %v433, %v425
      %v466 = vpack.c.b16 %v434, %v426
      %v467 = vpack.c.b16 %v435, %v427
      %v468 = vpack.c.b16 %v436, %v428
      %v629 = vunpack.c.l.b16 %v209
      %v630 = vunpack.c.l.b16 %v210
      %v631 = vunpack.c.l.b16 %v211
      %v632 = vunpack.c.l.b16 %v212
      %v633 = vunpack.c.l.b16 %v213
      %v634 = vunpack.c.l.b16 %v214
      %v635 = vunpack.c.l.b16 %v215
      %v636 = vunpack.c.l.b16 %v216
      %v637 = vunpack.c.l.b16 %v217
      %v638 = vunpack.c.l.b16 %v218
      %v639 = vunpack.c.l.b16 %v219
      %v640 = vunpack.c.l.b16 %v220
      %v641 = vunpack.c.l.b16 %v221
      %v642 = vunpack.c.l.b16 %v222
      %v643 = vunpack.c.l.b16 %v223
      %v644 = vunpack.c.l.b16 %v224
      %v645 = vunpack.c.l.b16 %v225
      %v646 = vunpack.c.l.b16 %v226
      %v647 = vunpack.c.l.b16 %v227
      %v648 = vunpack.c.l.b16 %v228
      %v649 = vunpack.c.l.b16 %v229
      %v650 = vunpack.c.l.b16 %v230
      %v651 = vunpack.c.l.b16 %v231
      %v652 = vunpack.c.l.b16 %v232
      %v653 = vunpack.c.l.b16 %v233
      %v654 = vunpack.c.l.b16 %v234
      %v655 = vunpack.c.l.b16 %v235
      %v656 = vunpack.c.l.b16 %v236
      %v657 = vunpack.c.l.b16 %v237
      %v658 = vunpack.c.l.b16 %v238
      %v659 = vunpack.c.l.b16 %v239
      %v660 = vunpack.c.l.b16 %v240
      %v661 = vunpack.c.l.b16 %v241
      %v662 = vunpack.c.l.b16 %v242
      %v663 = vunpack.c.l.b16 %v243
      %v664 = vunpack.c.l.b16 %v244
      %v665 = vunpack.c.l.b16 %v245
      %v666 = vunpack.c.l.b16 %v246
      %v667 = vunpack.c.l.b16 %v247
      %v668 = vunpack.c.l.b16 %v248
      %v669 = vunpack.c.l.b16 %v249
      %v670 = vunpack.c.l.b16 %v250
      %v671 = vunpack.c.l.b16 %v251
      %v672 = vunpack.c.l.b16 %v252
      %v673 = vunpack.c.l.b16 %v253
      %v674 = vunpack.c.l.b16 %v254
      %v675 = vunpack.c.l.b16 %v255
      %v676 = vunpack.c.l.b16 %v256
      %v677 = vunpack.c.l.b16 %v257
      %v678 = vunpack.c.l.b16 %v258
      %v679 = vunpack.c.l.b16 %v259
      %v680 = vunpack.c.l.b16 %v260
      %v681 = vunpack.c.l.b16 %v261
      %v682 = vunpack.c.l.b16 %v262
      %v683 = vunpack.c.l.b16 %v263
      %v684 = vunpack.c.l.b16 %v264
      %v685 = vunpack.c.l.b16 %v265
      %v686 = vunpack.c.l.b16 %v266
      %v687 = vunpack.c.l.b16 %v267
      %v688 = vunpack.c.l.b16 %v268
      %v689 = vunpack.c.l.b16 %v269
      %v690 = vunpack.c.l.b16 %v270
      %v691 = vunpack.c.l.b16 %v271
      %v692 = vunpack.c.l.b16 %v272
      %v693 = vunpack.c.l.b16 %v273
      %v694 = vunpack.c.l.b16 %v274
      %v695 = vunpack.c.l.b16 %v275
      %v696 = vunpack.c.l.b16 %v276
      %v697 = vunpack.c.l.b16 %v277
      %v698 = vunpack.c.l.b16 %v278
      %v699 = vunpack.c.l.b16 %v279
      %v700 = vunpack.c.l.b16 %v280
      %v701 = vunpack.c.l.b16 %v281
      %v702 = vunpack.c.l.b16 %v282
      %v703 = vunpack.c.l.b16 %v283
      %v704 = vunpack.c.l.b16 %v284
      %v705 = vunpack.c.l.b16 %v285
      %v706 = vunpack.c.l.b16 %v286
      %v707 = vunpack.c.l.b16 %v287
      %v708 = vunpack.c.l.b16 %v288
      %v709 = vunpack.c.l.b16 %v289
      %v710 = vunpack.c.l.b16 %v290
      %v711 = vunpack.c.l.b16 %v291
      %v712 = vunpack.c.l.b16 %v292
      %v713 = vunpack.c.l.b16 %v293
      %v714 = vunpack.c.l.b16 %v294
      %v715 = vunpack.c.l.b16 %v295
      %v716 = vunpack.c.l.b16 %v296
      %v717 = vunpack.c.l.b16 %v297
      %v718 = vunpack.c.l.b16 %v298
      %v719 = vunpack.c.l.b16 %v299
      %v720 = vunpack.c.l.b16 %v300
      %v721 = vunpack.c.l.b16 %v301
      %v722 = vunpack.c.l.b16 %v302
      %v723 = vunpack.c.l.b16 %v303
      %v724 = vunpack.c.l.b16 %v304
      %v725 = vunpack.c.l.b16 %v305
      %v726 = vunpack.c.l.b16 %v306
      %v727 = vunpack.c.l.b16 %v307
      %v728 = vunpack.c.l.b16 %v308
      %v729 = vunpack.c.l.b16 %v309
      %v730 = vunpack.c.l.b16 %v310
      %v731 = vunpack.c.l.b16 %v311
      %v732 = vunpack.c.l.b16 %v312
      %v733 = vunpack.c.l.b16 %v313
      %v734 = vunpack.c.l.b16 %v314
      %v735 = vunpack.c.l.b16 %v315
      %v736 = vunpack.c.l.b16 %v316
      %v737 = vunpack.c.l.b16 %v317
      %v738 = vunpack.c.l.b16 %v318
      %v739 = vunpack.c.l.b16 %v319
      %v740 = vunpack.c.l.b16 %v320
      %v741 = vunpack.c.l.b16 %v321
      %v742 = vunpack.c.l.b16 %v322
      %v743 = vunpack.c.l.b16 %v323
      %v744 = vunpack.c.l.b16 %v324
      %v745 = vunpack.c.l.b16 %v325
      %v746 = vunpack.c.l.b16 %v326
      %v747 = vunpack.c.l.b16 %v327
      %v748 = vunpack.c.l.b16 %v328
      %v749 = vunpack.c.l.b16 %v329
      %v750 = vunpack.c.l.b16 %v330
      %v751 = vunpack.c.l.b16 %v331
      %v752 = vunpack.c.l.b16 %v332
      %v753 = vunpack.c.l.b16 %v333
      %v754 = vunpack.c.l.b16 %v334
      %v755 = vunpack.c.l.b16 %v335
      %v756 = vunpack.c.l.b16 %v336
      %v757 = vpack.c.b16 %v630, %v629
      %v758 = vpack.c.b16 %v632, %v631
      %v759 = vpack.c.b16 %v634, %v633
      %v760 = vpack.c.b16 %v636, %v635
      %v761 = vpack.c.b16 %v638, %v637
      %v762 = vpack.c.b16 %v640, %v639
      %v763 = vpack.c.b16 %v642, %v641
      %v764 = vpack.c.b16 %v644, %v643
      %v765 = vpack.c.b16 %v646, %v645
      %v766 = vpack.c.b16 %v648, %v647
      %v767 = vpack.c.b16 %v650, %v649
      %v768 = vpack.c.b16 %v652, %v651
      %v769 = vpack.c.b16 %v654, %v653
      %v770 = vpack.c.b16 %v656, %v655
      %v771 = vpack.c.b16 %v658, %v657
      %v772 = vpack.c.b16 %v660, %v659
      %v773 = vpack.c.b16 %v662, %v661
      %v774 = vpack.c.b16 %v664, %v663
      %v775 = vpack.c.b16 %v666, %v665
      %v776 = vpack.c.b16 %v668, %v667
      %v777 = vpack.c.b16 %v670, %v669
      %v778 = vpack.c.b16 %v672, %v671
      %v779 = vpack.c.b16 %v674, %v673
      %v780 = vpack.c.b16 %v676, %v675
      %v781 = vpack.c.b16 %v678, %v677
      %v782 = vpack.c.b16 %v680, %v679
      %v783 = vpack.c.b16 %v682, %v681
      %v784 = vpack.c.b16 %v684, %v683
      %v785 = vpack.c.b16 %v686, %v685
      %v786 = vpack.c.b16 %v688, %v687
      %v787 = vpack.c.b16 %v690, %v689
      %v788 = vpack.c.b16 %v692, %v691
      %v789 = vpack.c.b16 %v694, %v693
      %v790 = vpack.c.b16 %v696, %v695
      %v791 = vpack.c.b16 %v698, %v697
      %v792 = vpack.c.b16 %v700, %v699
      %v793 = vpack.c.b16 %v702, %v701
      %v794 = vpack.c.b16 %v704, %v703
      %v795 = vpack.c.b16 %v706, %v705
      %v796 = vpack.c.b16 %v708, %v707
      %v797 = vpack.c.b16 %v710, %v709
      %v798 = vpack.c.b16 %v712, %v711
      %v799 = vpack.c.b16 %v714, %v713
      %v800 = vpack.c.b16 %v716, %v715
      %v801 = vpack.c.b16 %v718, %v717
      %v802 = vpack.c.b16 %v720, %v719
      %v803 = vpack.c.b16 %v722, %v721
      %v804 = vpack.c.b16 %v724, %v723
      %v805 = vpack.c.b16 %v726, %v725
      %v806 = vpack.c.b16 %v728, %v727
      %v807 = vpack.c.b16 %v730, %v729
      %v808 = vpack.c.b16 %v732, %v731
      %v809 = vpack.c.b16 %v734, %v733
      %v810 = vpack.c.b16 %v736, %v735
      %v811 = vpack.c.b16 %v738, %v737
      %v812 = vpack.c.b16 %v740, %v739
      %v813 = vpack.c.b16 %v742, %v741
      %v814 = vpack.c.b16 %v744, %v743
      %v815 = vpack.c.b16 %v746, %v745
      %v816 = vpack.c.b16 %v748, %v747
      %v817 = vpack.c.b16 %v750, %v749
      %v818 = vpack.c.b16 %v752, %v751
      %v819 = vpack.c.b16 %v754, %v753
      %v820 = vpack.c.b16 %v756, %v755
      %885 = vmatpush.bf16.msra.mxu0 %v764
      %886 = vmatpush.bf16.msra.mxu0 %v763
      %887 = vmatpush.bf16.msra.mxu0 %v762
      %888 = vmatpush.bf16.msra.mxu0 %v761
      %889 = vmatpush.bf16.msra.mxu0 %v760
      %890 = vmatpush.bf16.msra.mxu0 %v759
      %891 = vmatpush.bf16.msra.mxu0 %v758
      %892 = vmatpush.bf16.msra.mxu0 %v757
      %893 = vmatmul.bf16.gmra.mxu0 %v437
      %v894 = vpop.f32.mrf.mxu0
      %v895 = vadd.f32 %v339, %v894
      %v896 = vpop.f32.mrf.mxu0
      %v897 = vadd.f32 %v339, %v896
      %898 = vmatmul.bf16.gmra.mxu0 %v445
      %v899 = vpop.f32.mrf.mxu0
      %v900 = vadd.f32 %v339, %v899
      %v901 = vpop.f32.mrf.mxu0
      %v902 = vadd.f32 %v339, %v901
      %903 = vmatmul.bf16.gmra.mxu0 %v453
      %v904 = vpop.f32.mrf.mxu0
      %v905 = vadd.f32 %v339, %v904
      %v906 = vpop.f32.mrf.mxu0
      %v907 = vadd.f32 %v339, %v906
      %908 = vmatmul.bf16.gmra.mxu0 %v461
      %v909 = vpop.f32.mrf.mxu0
      %v910 = vadd.f32 %v339, %v909
      %v911 = vpop.f32.mrf.mxu0
      %v912 = vadd.f32 %v339, %v911
      %913 = vdwg.mxu0
      %914 = vmatpush.bf16.msra.mxu0 %v772
      %915 = vmatpush.bf16.msra.mxu0 %v771
      %916 = vmatpush.bf16.msra.mxu0 %v770
      %917 = vmatpush.bf16.msra.mxu0 %v769
      %918 = vmatpush.bf16.msra.mxu0 %v768
      %919 = vmatpush.bf16.msra.mxu0 %v767
      %920 = vmatpush.bf16.msra.mxu0 %v766
      %921 = vmatpush.bf16.msra.mxu0 %v765
      %922 = vmatmul.bf16.gmra.mxu0 %v438
      %v923 = vpop.f32.mrf.mxu0
      %v924 = vadd.f32 %v895, %v923
      %v925 = vpop.f32.mrf.mxu0
      %v926 = vadd.f32 %v897, %v925
      %927 = vmatmul.bf16.gmra.mxu0 %v446
      %v928 = vpop.f32.mrf.mxu0
      %v929 = vadd.f32 %v900, %v928
      %v930 = vpop.f32.mrf.mxu0
      %v931 = vadd.f32 %v902, %v930
      %932 = vmatmul.bf16.gmra.mxu0 %v454
      %v933 = vpop.f32.mrf.mxu0
      %v934 = vadd.f32 %v905, %v933
      %v935 = vpop.f32.mrf.mxu0
      %v936 = vadd.f32 %v907, %v935
      %937 = vmatmul.bf16.gmra.mxu0 %v462
      %v938 = vpop.f32.mrf.mxu0
      %v939 = vadd.f32 %v910, %v938
      %v940 = vpop.f32.mrf.mxu0
      %v941 = vadd.f32 %v912, %v940
      %942 = vdwg.mxu0
      %943 = vmatpush.bf16.msra.mxu0 %v780
      %944 = vmatpush.bf16.msra.mxu0 %v779
      %945 = vmatpush.bf16.msra.mxu0 %v778
      %946 = vmatpush.bf16.msra.mxu0 %v777
      %947 = vmatpush.bf16.msra.mxu0 %v776
      %948 = vmatpush.bf16.msra.mxu0 %v775
      %949 = vmatpush.bf16.msra.mxu0 %v774
      %950 = vmatpush.bf16.msra.mxu0 %v773
      %951 = vmatmul.bf16.gmra.mxu0 %v439
      %v952 = vpop.f32.mrf.mxu0
      %v953 = vadd.f32 %v924, %v952
      %v954 = vpop.f32.mrf.mxu0
      %v955 = vadd.f32 %v926, %v954
      %956 = vmatmul.bf16.gmra.mxu0 %v447
      %v957 = vpop.f32.mrf.mxu0
      %v958 = vadd.f32 %v929, %v957
      %v959 = vpop.f32.mrf.mxu0
      %v960 = vadd.f32 %v931, %v959
      %961 = vmatmul.bf16.gmra.mxu0 %v455
      %v962 = vpop.f32.mrf.mxu0
      %v963 = vadd.f32 %v934, %v962
      %v964 = vpop.f32.mrf.mxu0
      %v965 = vadd.f32 %v936, %v964
      %966 = vmatmul.bf16.gmra.mxu0 %v463
      %v967 = vpop.f32.mrf.mxu0
      %v968 = vadd.f32 %v939, %v967
      %v969 = vpop.f32.mrf.mxu0
      %v970 = vadd.f32 %v941, %v969
      %971 = vdwg.mxu0
      %972 = vmatpush.bf16.msra.mxu0 %v788
      %973 = vmatpush.bf16.msra.mxu0 %v787
      %974 = vmatpush.bf16.msra.mxu0 %v786
      %975 = vmatpush.bf16.msra.mxu0 %v785
      %976 = vmatpush.bf16.msra.mxu0 %v784
      %977 = vmatpush.bf16.msra.mxu0 %v783
      %978 = vmatpush.bf16.msra.mxu0 %v782
      %979 = vmatpush.bf16.msra.mxu0 %v781
      %980 = vmatmul.bf16.gmra.mxu0 %v440
      %v981 = vpop.f32.mrf.mxu0
      %v982 = vadd.f32 %v953, %v981
      %v983 = vpop.f32.mrf.mxu0
      %v984 = vadd.f32 %v955, %v983
      %985 = vmatmul.bf16.gmra.mxu0 %v448
      %v986 = vpop.f32.mrf.mxu0
      %v987 = vadd.f32 %v958, %v986
      %v988 = vpop.f32.mrf.mxu0
      %v989 = vadd.f32 %v960, %v988
      %990 = vmatmul.bf16.gmra.mxu0 %v456
      %v991 = vpop.f32.mrf.mxu0
      %v992 = vadd.f32 %v963, %v991
      %v993 = vpop.f32.mrf.mxu0
      %v994 = vadd.f32 %v965, %v993
      %995 = vmatmul.bf16.gmra.mxu0 %v464
      %v996 = vpop.f32.mrf.mxu0
      %v997 = vadd.f32 %v968, %v996
      %v998 = vpop.f32.mrf.mxu0
      %v999 = vadd.f32 %v970, %v998
      %1000 = vdwg.mxu0
      %1001 = vmatpush.bf16.msra.mxu0 %v796
      %1002 = vmatpush.bf16.msra.mxu0 %v795
      %1003 = vmatpush.bf16.msra.mxu0 %v794
      %1004 = vmatpush.bf16.msra.mxu0 %v793
      %1005 = vmatpush.bf16.msra.mxu0 %v792
      %1006 = vmatpush.bf16.msra.mxu0 %v791
      %1007 = vmatpush.bf16.msra.mxu0 %v790
      %1008 = vmatpush.bf16.msra.mxu0 %v789
      %1009 = vmatmul.bf16.gmra.mxu0 %v441
      %v1010 = vpop.f32.mrf.mxu0
      %v1011 = vadd.f32 %v982, %v1010
      %v1012 = vpop.f32.mrf.mxu0
      %v1013 = vadd.f32 %v984, %v1012
      %1014 = vmatmul.bf16.gmra.mxu0 %v449
      %v1015 = vpop.f32.mrf.mxu0
      %v1016 = vadd.f32 %v987, %v1015
      %v1017 = vpop.f32.mrf.mxu0
      %v1018 = vadd.f32 %v989, %v1017
      %1019 = vmatmul.bf16.gmra.mxu0 %v457
      %v1020 = vpop.f32.mrf.mxu0
      %v1021 = vadd.f32 %v992, %v1020
      %v1022 = vpop.f32.mrf.mxu0
      %v1023 = vadd.f32 %v994, %v1022
      %1024 = vmatmul.bf16.gmra.mxu0 %v465
      %v1025 = vpop.f32.mrf.mxu0
      %v1026 = vadd.f32 %v997, %v1025
      %v1027 = vpop.f32.mrf.mxu0
      %v1028 = vadd.f32 %v999, %v1027
      %1029 = vdwg.mxu0
      %1030 = vmatpush.bf16.msra.mxu0 %v804
      %1031 = vmatpush.bf16.msra.mxu0 %v803
      %1032 = vmatpush.bf16.msra.mxu0 %v802
      %1033 = vmatpush.bf16.msra.mxu0 %v801
      %1034 = vmatpush.bf16.msra.mxu0 %v800
      %1035 = vmatpush.bf16.msra.mxu0 %v799
      %1036 = vmatpush.bf16.msra.mxu0 %v798
      %1037 = vmatpush.bf16.msra.mxu0 %v797
      %1038 = vmatmul.bf16.gmra.mxu0 %v442
      %v1039 = vpop.f32.mrf.mxu0
      %v1040 = vadd.f32 %v1011, %v1039
      %v1041 = vpop.f32.mrf.mxu0
      %v1042 = vadd.f32 %v1013, %v1041
      %1043 = vmatmul.bf16.gmra.mxu0 %v450
      %v1044 = vpop.f32.mrf.mxu0
      %v1045 = vadd.f32 %v1016, %v1044
      %v1046 = vpop.f32.mrf.mxu0
      %v1047 = vadd.f32 %v1018, %v1046
      %1048 = vmatmul.bf16.gmra.mxu0 %v458
      %v1049 = vpop.f32.mrf.mxu0
      %v1050 = vadd.f32 %v1021, %v1049
      %v1051 = vpop.f32.mrf.mxu0
      %v1052 = vadd.f32 %v1023, %v1051
      %1053 = vmatmul.bf16.gmra.mxu0 %v466
      %v1054 = vpop.f32.mrf.mxu0
      %v1055 = vadd.f32 %v1026, %v1054
      %v1056 = vpop.f32.mrf.mxu0
      %v1057 = vadd.f32 %v1028, %v1056
      %1058 = vdwg.mxu0
      %1059 = vmatpush.bf16.msra.mxu0 %v812
      %1060 = vmatpush.bf16.msra.mxu0 %v811
      %1061 = vmatpush.bf16.msra.mxu0 %v810
      %1062 = vmatpush.bf16.msra.mxu0 %v809
      %1063 = vmatpush.bf16.msra.mxu0 %v808
      %1064 = vmatpush.bf16.msra.mxu0 %v807
      %1065 = vmatpush.bf16.msra.mxu0 %v806
      %1066 = vmatpush.bf16.msra.mxu0 %v805
      %1067 = vmatmul.bf16.gmra.mxu0 %v443
      %v1068 = vpop.f32.mrf.mxu0
      %v1069 = vadd.f32 %v1040, %v1068
      %v1070 = vpop.f32.mrf.mxu0
      %v1071 = vadd.f32 %v1042, %v1070
      %1072 = vmatmul.bf16.gmra.mxu0 %v451
      %v1073 = vpop.f32.mrf.mxu0
      %v1074 = vadd.f32 %v1045, %v1073
      %v1075 = vpop.f32.mrf.mxu0
      %v1076 = vadd.f32 %v1047, %v1075
      %1077 = vmatmul.bf16.gmra.mxu0 %v459
      %v1078 = vpop.f32.mrf.mxu0
      %v1079 = vadd.f32 %v1050, %v1078
      %v1080 = vpop.f32.mrf.mxu0
      %v1081 = vadd.f32 %v1052, %v1080
      %1082 = vmatmul.bf16.gmra.mxu0 %v467
      %v1083 = vpop.f32.mrf.mxu0
      %v1084 = vadd.f32 %v1055, %v1083
      %v1085 = vpop.f32.mrf.mxu0
      %v1086 = vadd.f32 %v1057, %v1085
      %1087 = vdwg.mxu0
      %1088 = vmatpush.bf16.msra.mxu0 %v820
      %1089 = vmatpush.bf16.msra.mxu0 %v819
      %1090 = vmatpush.bf16.msra.mxu0 %v818
      %1091 = vmatpush.bf16.msra.mxu0 %v817
      %1092 = vmatpush.bf16.msra.mxu0 %v816
      %1093 = vmatpush.bf16.msra.mxu0 %v815
      %1094 = vmatpush.bf16.msra.mxu0 %v814
      %1095 = vmatpush.bf16.msra.mxu0 %v813
      %1096 = vmatmul.bf16.gmra.mxu0 %v444
      %v1097 = vpop.f32.mrf.mxu0
      %v1098 = vadd.f32 %v1069, %v1097
      %v1099 = vpop.f32.mrf.mxu0
      %v1100 = vadd.f32 %v1071, %v1099
      %1101 = vmatmul.bf16.gmra.mxu0 %v452
      %v1102 = vpop.f32.mrf.mxu0
      %v1103 = vadd.f32 %v1074, %v1102
      %v1104 = vpop.f32.mrf.mxu0
      %v1105 = vadd.f32 %v1076, %v1104
      %1106 = vmatmul.bf16.gmra.mxu0 %v460
      %v1107 = vpop.f32.mrf.mxu0
      %v1108 = vadd.f32 %v1079, %v1107
      %v1109 = vpop.f32.mrf.mxu0
      %v1110 = vadd.f32 %v1081, %v1109
      %1111 = vmatmul.bf16.gmra.mxu0 %v468
      %v1112 = vpop.f32.mrf.mxu0
      %v1113 = vadd.f32 %v1084, %v1112
      %v1114 = vpop.f32.mrf.mxu0
      %v1115 = vadd.f32 %v1086, %v1114
      %1116 = vdwg.mxu0
      %v1117 = vmul.f32 %v1098, 0.2
      %v1118 = vmul.f32 %v1100, 0.2
      %v1119 = vmul.f32 %v1103, 0.2
      %v1120 = vmul.f32 %v1105, 0.2
      %v1121 = vmul.f32 %v1108, 0.2
      %v1122 = vmul.f32 %v1110, 0.2
      %v1123 = vmul.f32 %v1113, 0.2
      %v1124 = vmul.f32 %v1115, 0.2
      %v1125 = vmax.f32 %v1098, %v1117
      %v1126 = vmax.f32 %v1100, %v1118
      %v1127 = vmax.f32 %v1103, %v1119
      %v1128 = vmax.f32 %v1105, %v1120
      %v1129 = vmax.f32 %v1108, %v1121
      %v1130 = vmax.f32 %v1110, %v1122
      %v1131 = vmax.f32 %v1113, %v1123
      %v1132 = vmax.f32 %v1115, %v1124
      %v1133 = vpack.c.bf16 %v1125, %v1125
      %v1134 = vpack.c.bf16 %v1126, %v1126
      %v1135 = vpack.c.bf16 %v1127, %v1127
      %v1136 = vpack.c.bf16 %v1128, %v1128
      %v1137 = vpack.c.bf16 %v1129, %v1129
      %v1138 = vpack.c.bf16 %v1130, %v1130
      %v1139 = vpack.c.bf16 %v1131, %v1131
      %v1140 = vpack.c.bf16 %v1132, %v1132
      %1141 = vst [vmem:[%s175] sm:$0xf] %v1133
      %1142 = vst [vmem:[%s175 + $0x4] sm:$0xf] %v1134
      %1143 = vst [vmem:[%s175 + $0x8] sm:$0xf] %v1135
      %1144 = vst [vmem:[%s175 + $0xc] sm:$0xf] %v1136
      %1145 = vst [vmem:[%s175 + $0x10] sm:$0xf] %v1137
      %1146 = vst [vmem:[%s175 + $0x14] sm:$0xf] %v1138
      %1147 = vst [vmem:[%s175 + $0x18] sm:$0xf] %v1139
      %1148 = vst [vmem:[%s175 + $0x1c] sm:$0xf] %v1140
      %s1149 = smul.u32 8, %s14
      %p1150 = scmp.lt.s32.totalorder %s1149, 15
      %s1151 = scalar_select %p1150, %s1149, 15
      %s1152 = smul.addr %s1151, 4
      %s1153 = scalar_lea.vmem %s3, %s1152
      // Predicated region
      $region33: #{_lambda_.6} parent=31 // pred_check
        %p1154 = pneg %p100
      $region34: #{_lambda_.6} parent=31 // pred_check_branch
        %1156 = sbr.rel (%p1154) target = $region36
      $region35: #{_lambda_.6} parent=31 // pred_region
        %s1157 = smul.u32 8, %s14
      $region36: #{_lambda_.6} parent=31 // pred_fallthru
        _
    $region32: #{_lambda_.6} parent=5 // pred_fallthru
      _
    %p1158 = scmp.le.s32.totalorder 2, %s9
    // Predicated region
    $region37: #{_lambda_.6} parent=5 // pred_check
      %p1159 = pneg %p1158
    $region38: #{_lambda_.6} parent=5 // pred_check_branch
      %1161 = sbr.rel (%p1159) target = $region40
    $region39: #{_lambda_.6} parent=5 // pred_region
      %s1162 = ssub.s32 %s9, 2
      // Predicated region
      $region41: #{_lambda_.6} parent=39 // pred_check
        %p1163 = pneg %p106
      $region42: #{_lambda_.6} parent=39 // pred_check_branch
        %1165 = sbr.rel (%p1163) target = $region44
      $region43: #{_lambda_.6} parent=39 // pred_region
        %s1166 = smul.u32 8, %s15
        %p1167 = scmp.lt.s32.totalorder %s1166, 15
        %s1168 = scalar_select %p1167, %s1166, 15
        %s1169 = smul.addr %s1168, 4
        %s1170 = scalar_lea.vmem %s3, %s1169
      $region44: #{_lambda_.6} parent=39 // pred_fallthru
        _
    $region40: #{_lambda_.6} parent=5 // pred_fallthru
      _
  $region6: #{_lambda_.6} parent=0 // loop_footer
    %s13 = sadd.s32 1, %s9
  $region7: #{_lambda_.6} parent=0 // loop_footer_branch
    %8 = sbr.rel target = $region3
  $region8: #{_lambda_.6} parent=0 // loop_exit
    _

// kernel: _lambda_.7
$region0: #{_lambda_.7}
  #allocation0 [shape = 'u32[]', space=smem, size = 0x4, offset = 0x4, fixed_abs, tag = 'smem constant byte address 0x4 - core index']
  #allocation1 [shape = 'u32[72,128]{1,0:T(1,128)}', space=vmem, size = 0x9000, scoped, tag = 'internal scratch']
  %s0 = inlined_call_operand.vmem [shape: bf16[128,512], index: 0, kind: input, shape index: {}]
  %s1 = inlined_call_operand.vmem [shape: bf16[512,64], index: 1, kind: input, shape index: {}]
  %s2 = inlined_call_operand.vmem [shape: f32[1,64], index: 2, kind: input, shape index: {}]
  %s3 = inlined_call_operand.vmem [shape: bf16[16,32,128], index: 3, kind: input, shape index: {}]
  %s4 = inlined_call_operand.vmem [shape: bf16[16,64,128], index: 4, kind: input, shape index: {}]
  %s5 = inlined_call_operand.vmem [shape: f32[1,128], index: 5, kind: input, shape index: {}]
  %s6 = inlined_call_operand.vmem [shape: bf16[9,32,32], index: 6, kind: input, shape index: {}]
  %s7 = inlined_call_operand.vmem [shape: bf16[9,128,64], index: 7, kind: input, shape index: {}]
  %s8 = inlined_call_operand.vmem [shape: f32[1,64], index: 8, kind: input, shape index: {}]
  %s9 = inlined_call_operand.hbm [shape: f32[32,64], index: 9, kind: output, shape index: {}]
  %s10 = sld [smem:[#allocation0]]
  $region46: #{_lambda_.7} parent=0
    _
  %s12 = ssub.s32 1, %s10
  %s13 = scalar_select 0, %s12, %s10
  $region1: #{_lambda_.7} parent=0
    #allocation2 [shape = 'u8[16384]{0}', space=vmem, size = 0x4000, scoped, tag = 'output window, operand 0, single buffered']
    #allocation3 [shape = 's32[1]{0}', space=sflag, size = 0x4, scoped, tag = 'scoped memory for _lambda_.7']
    %14 = vsyncpa [#allocation3], 0
    // Predicated region
    $region2: #{_lambda_.7} parent=1 // pred_check
      _
    $region3: #{_lambda_.7} parent=1 // pred_check_branch
      %16 = sbr.rel (0) target = $region5
    $region4: #{_lambda_.7} parent=1 // pred_region
      _
    $region5: #{_lambda_.7} parent=1 // pred_fallthru
      _
    // Predicated region
    $region6: #{_lambda_.7} parent=1 // pred_check
      _
    $region7: #{_lambda_.7} parent=1 // pred_check_branch
      %18 = sbr.rel (0) target = $region9
    $region8: #{_lambda_.7} parent=1 // pred_region
      _
    $region9: #{_lambda_.7} parent=1 // pred_fallthru
      _
    // Predicated region
    $region10: #{_lambda_.7} parent=1 // pred_check
      _
    $region11: #{_lambda_.7} parent=1 // pred_check_branch
      %20 = sbr.rel (0) target = $region13
    $region12: #{_lambda_.7} parent=1 // pred_region
      _
    $region13: #{_lambda_.7} parent=1 // pred_fallthru
      _
    // Predicated region
    $region14: #{_lambda_.7} parent=1 // pred_check
      _
    $region15: #{_lambda_.7} parent=1 // pred_check_branch
      %22 = sbr.rel (0) target = $region17
    $region16: #{_lambda_.7} parent=1 // pred_region
      _
    $region17: #{_lambda_.7} parent=1 // pred_fallthru
      _
    // Predicated region
    $region18: #{_lambda_.7} parent=1 // pred_check
      _
    $region19: #{_lambda_.7} parent=1 // pred_check_branch
      %24 = sbr.rel (0) target = $region21
    $region20: #{_lambda_.7} parent=1 // pred_region
      _
    $region21: #{_lambda_.7} parent=1 // pred_fallthru
      _
    // Predicated region
    $region22: #{_lambda_.7} parent=1 // pred_check
      _
    $region23: #{_lambda_.7} parent=1 // pred_check_branch
      %26 = sbr.rel (0) target = $region25
    $region24: #{_lambda_.7} parent=1 // pred_region
      _
    $region25: #{_lambda_.7} parent=1 // pred_fallthru
      _
    // Predicated region
    $region26: #{_lambda_.7} parent=1 // pred_check
      _
    $region27: #{_lambda_.7} parent=1 // pred_check_branch
      %28 = sbr.rel (0) target = $region29
    $region28: #{_lambda_.7} parent=1 // pred_region
      _
    $region29: #{_lambda_.7} parent=1 // pred_fallthru
      _
    // Predicated region
    $region30: #{_lambda_.7} parent=1 // pred_check
      _
    $region31: #{_lambda_.7} parent=1 // pred_check_branch
      %30 = sbr.rel (0) target = $region33
    $region32: #{_lambda_.7} parent=1 // pred_region
      _
    $region33: #{_lambda_.7} parent=1 // pred_fallthru
      _
    // Predicated region
    $region34: #{_lambda_.7} parent=1 // pred_check
      _
    $region35: #{_lambda_.7} parent=1 // pred_check_branch
      %32 = sbr.rel (0) target = $region37
    $region36: #{_lambda_.7} parent=1 // pred_region
      _
    $region37: #{_lambda_.7} parent=1 // pred_fallthru
      _
    %v34 = vld [vmem:[%s0] sm:$0xff]
    %v35 = vld [vmem:[%s0 + $0x8] sm:$0xff]
    %v36 = vld [vmem:[%s0 + $0x10] sm:$0xff]
    %v37 = vld [vmem:[%s0 + $0x18] sm:$0xff]
    %v38 = vld [vmem:[%s0 + $0x20] sm:$0xff]
    %v39 = vld [vmem:[%s0 + $0x28] sm:$0xff]
    %v40 = vld [vmem:[%s0 + $0x30] sm:$0xff]
    %v41 = vld [vmem:[%s0 + $0x38] sm:$0xff]
    %v42 = vld [vmem:[%s0 + $0x40] sm:$0xff]
    %v43 = vld [vmem:[%s0 + $0x48] sm:$0xff]
    %v44 = vld [vmem:[%s0 + $0x50] sm:$0xff]
    %v45 = vld [vmem:[%s0 + $0x58] sm:$0xff]
    %v46 = vld [vmem:[%s0 + $0x60] sm:$0xff]
    %v47 = vld [vmem:[%s0 + $0x68] sm:$0xff]
    %v48 = vld [vmem:[%s0 + $0x70] sm:$0xff]
    %v49 = vld [vmem:[%s0 + $0x78] sm:$0xff]
    %v50 = vld [vmem:[%s0 + $0x80] sm:$0xff]
    %v51 = vld [vmem:[%s0 + $0x88] sm:$0xff]
    %v52 = vld [vmem:[%s0 + $0x90] sm:$0xff]
    %v53 = vld [vmem:[%s0 + $0x98] sm:$0xff]
    %v54 = vld [vmem:[%s0 + $0xa0] sm:$0xff]
    %v55 = vld [vmem:[%s0 + $0xa8] sm:$0xff]
    %v56 = vld [vmem:[%s0 + $0xb0] sm:$0xff]
    %v57 = vld [vmem:[%s0 + $0xb8] sm:$0xff]
    %v58 = vld [vmem:[%s0 + $0xc0] sm:$0xff]
    %v59 = vld [vmem:[%s0 + $0xc8] sm:$0xff]
    %v60 = vld [vmem:[%s0 + $0xd0] sm:$0xff]
    %v61 = vld [vmem:[%s0 + $0xd8] sm:$0xff]
    %v62 = vld [vmem:[%s0 + $0xe0] sm:$0xff]
    %v63 = vld [vmem:[%s0 + $0xe8] sm:$0xff]
    %v64 = vld [vmem:[%s0 + $0xf0] sm:$0xff]
    %v65 = vld [vmem:[%s0 + $0xf8] sm:$0xff]
    %v66 = vld [vmem:[%s1] sm:$0xf]
    %v67 = vld [vmem:[%s1 + $0x4] sm:$0xf]
    %v68 = vld [vmem:[%s1 + $0x8] sm:$0xf]
    %v69 = vld [vmem:[%s1 + $0xc] sm:$0xf]
    %v70 = vld [vmem:[%s1 + $0x10] sm:$0xf]
    %v71 = vld [vmem:[%s1 + $0x14] sm:$0xf]
    %v72 = vld [vmem:[%s1 + $0x18] sm:$0xf]
    %v73 = vld [vmem:[%s1 + $0x1c] sm:$0xf]
    %v74 = vld [vmem:[%s1 + $0x20] sm:$0xf]
    %v75 = vld [vmem:[%s1 + $0x24] sm:$0xf]
    %v76 = vld [vmem:[%s1 + $0x28] sm:$0xf]
    %v77 = vld [vmem:[%s1 + $0x2c] sm:$0xf]
    %v78 = vld [vmem:[%s1 + $0x30] sm:$0xf]
    %v79 = vld [vmem:[%s1 + $0x34] sm:$0xf]
    %v80 = vld [vmem:[%s1 + $0x38] sm:$0xf]
    %v81 = vld [vmem:[%s1 + $0x3c] sm:$0xf]
    %v82 = vld [vmem:[%s1 + $0x40] sm:$0xf]
    %v83 = vld [vmem:[%s1 + $0x44] sm:$0xf]
    %v84 = vld [vmem:[%s1 + $0x48] sm:$0xf]
    %v85 = vld [vmem:[%s1 + $0x4c] sm:$0xf]
    %v86 = vld [vmem:[%s1 + $0x50] sm:$0xf]
    %v87 = vld [vmem:[%s1 + $0x54] sm:$0xf]
    %v88 = vld [vmem:[%s1 + $0x58] sm:$0xf]
    %v89 = vld [vmem:[%s1 + $0x5c] sm:$0xf]
    %v90 = vld [vmem:[%s1 + $0x60] sm:$0xf]
    %v91 = vld [vmem:[%s1 + $0x64] sm:$0xf]
    %v92 = vld [vmem:[%s1 + $0x68] sm:$0xf]
    %v93 = vld [vmem:[%s1 + $0x6c] sm:$0xf]
    %v94 = vld [vmem:[%s1 + $0x70] sm:$0xf]
    %v95 = vld [vmem:[%s1 + $0x74] sm:$0xf]
    %v96 = vld [vmem:[%s1 + $0x78] sm:$0xf]
    %v97 = vld [vmem:[%s1 + $0x7c] sm:$0xf]
    %v98 = vld [vmem:[%s1 + $0x80] sm:$0xf]
    %v99 = vld [vmem:[%s1 + $0x84] sm:$0xf]
    %v100 = vld [vmem:[%s1 + $0x88] sm:$0xf]
    %v101 = vld [vmem:[%s1 + $0x8c] sm:$0xf]
    %v102 = vld [vmem:[%s1 + $0x90] sm:$0xf]
    %v103 = vld [vmem:[%s1 + $0x94] sm:$0xf]
    %v104 = vld [vmem:[%s1 + $0x98] sm:$0xf]
    %v105 = vld [vmem:[%s1 + $0x9c] sm:$0xf]
    %v106 = vld [vmem:[%s1 + $0xa0] sm:$0xf]
    %v107 = vld [vmem:[%s1 + $0xa4] sm:$0xf]
    %v108 = vld [vmem:[%s1 + $0xa8] sm:$0xf]
    %v109 = vld [vmem:[%s1 + $0xac] sm:$0xf]
    %v110 = vld [vmem:[%s1 + $0xb0] sm:$0xf]
    %v111 = vld [vmem:[%s1 + $0xb4] sm:$0xf]
    %v112 = vld [vmem:[%s1 + $0xb8] sm:$0xf]
    %v113 = vld [vmem:[%s1 + $0xbc] sm:$0xf]
    %v114 = vld [vmem:[%s1 + $0xc0] sm:$0xf]
    %v115 = vld [vmem:[%s1 + $0xc4] sm:$0xf]
    %v116 = vld [vmem:[%s1 + $0xc8] sm:$0xf]
    %v117 = vld [vmem:[%s1 + $0xcc] sm:$0xf]
    %v118 = vld [vmem:[%s1 + $0xd0] sm:$0xf]
    %v119 = vld [vmem:[%s1 + $0xd4] sm:$0xf]
    %v120 = vld [vmem:[%s1 + $0xd8] sm:$0xf]
    %v121 = vld [vmem:[%s1 + $0xdc] sm:$0xf]
    %v122 = vld [vmem:[%s1 + $0xe0] sm:$0xf]
    %v123 = vld [vmem:[%s1 + $0xe4] sm:$0xf]
    %v124 = vld [vmem:[%s1 + $0xe8] sm:$0xf]
    %v125 = vld [vmem:[%s1 + $0xec] sm:$0xf]
    %v126 = vld [vmem:[%s1 + $0xf0] sm:$0xf]
    %v127 = vld [vmem:[%s1 + $0xf4] sm:$0xf]
    %v128 = vld [vmem:[%s1 + $0xf8] sm:$0xf]
    %v129 = vld [vmem:[%s1 + $0xfc] sm:$0xf]
    %v130 = vld [vmem:[%s2] sm:$0x1]
    %v132 = vperm.slane %v130, 0
    %v166 = vunpack.c.l.b16 %v34
    %v167 = vunpack.c.h.b16 %v34
    %v168 = vunpack.c.l.b16 %v35
    %v169 = vunpack.c.h.b16 %v35
    %v170 = vunpack.c.l.b16 %v36
    %v171 = vunpack.c.h.b16 %v36
    %v172 = vunpack.c.l.b16 %v37
    %v173 = vunpack.c.h.b16 %v37
    %v174 = vunpack.c.l.b16 %v38
    %v175 = vunpack.c.h.b16 %v38
    %v176 = vunpack.c.l.b16 %v39
    %v177 = vunpack.c.h.b16 %v39
    %v178 = vunpack.c.l.b16 %v40
    %v179 = vunpack.c.h.b16 %v40
    %v180 = vunpack.c.l.b16 %v41
    %v181 = vunpack.c.h.b16 %v41
    %v182 = vunpack.c.l.b16 %v42
    %v183 = vunpack.c.h.b16 %v42
    %v184 = vunpack.c.l.b16 %v43
    %v185 = vunpack.c.h.b16 %v43
    %v186 = vunpack.c.l.b16 %v44
    %v187 = vunpack.c.h.b16 %v44
    %v188 = vunpack.c.l.b16 %v45
    %v189 = vunpack.c.h.b16 %v45
    %v190 = vunpack.c.l.b16 %v46
    %v191 = vunpack.c.h.b16 %v46
    %v192 = vunpack.c.l.b16 %v47
    %v193 = vunpack.c.h.b16 %v47
    %v194 = vunpack.c.l.b16 %v48
    %v195 = vunpack.c.h.b16 %v48
    %v196 = vunpack.c.l.b16 %v49
    %v197 = vunpack.c.h.b16 %v49
    %v198 = vunpack.c.l.b16 %v50
    %v199 = vunpack.c.h.b16 %v50
    %v200 = vunpack.c.l.b16 %v51
    %v201 = vunpack.c.h.b16 %v51
    %v202 = vunpack.c.l.b16 %v52
    %v203 = vunpack.c.h.b16 %v52
    %v204 = vunpack.c.l.b16 %v53
    %v205 = vunpack.c.h.b16 %v53
    %v206 = vunpack.c.l.b16 %v54
    %v207 = vunpack.c.h.b16 %v54
    %v208 = vunpack.c.l.b16 %v55
    %v209 = vunpack.c.h.b16 %v55
    %v210 = vunpack.c.l.b16 %v56
    %v211 = vunpack.c.h.b16 %v56
    %v212 = vunpack.c.l.b16 %v57
    %v213 = vunpack.c.h.b16 %v57
    %v214 = vunpack.c.l.b16 %v58
    %v215 = vunpack.c.h.b16 %v58
    %v216 = vunpack.c.l.b16 %v59
    %v217 = vunpack.c.h.b16 %v59
    %v218 = vunpack.c.l.b16 %v60
    %v219 = vunpack.c.h.b16 %v60
    %v220 = vunpack.c.l.b16 %v61
    %v221 = vunpack.c.h.b16 %v61
    %v222 = vunpack.c.l.b16 %v62
    %v223 = vunpack.c.h.b16 %v62
    %v224 = vunpack.c.l.b16 %v63
    %v225 = vunpack.c.h.b16 %v63
    %v226 = vunpack.c.l.b16 %v64
    %v227 = vunpack.c.h.b16 %v64
    %v228 = vunpack.c.l.b16 %v65
    %v229 = vunpack.c.h.b16 %v65
    %v230 = vpack.c.b16 %v170, %v166
    %v231 = vpack.c.b16 %v171, %v167
    %v232 = vpack.c.b16 %v172, %v168
    %v233 = vpack.c.b16 %v173, %v169
    %v234 = vpack.c.b16 %v178, %v174
    %v235 = vpack.c.b16 %v179, %v175
    %v236 = vpack.c.b16 %v180, %v176
    %v237 = vpack.c.b16 %v181, %v177
    %v238 = vpack.c.b16 %v186, %v182
    %v239 = vpack.c.b16 %v187, %v183
    %v240 = vpack.c.b16 %v188, %v184
    %v241 = vpack.c.b16 %v189, %v185
    %v242 = vpack.c.b16 %v194, %v190
    %v243 = vpack.c.b16 %v195, %v191
    %v244 = vpack.c.b16 %v196, %v192
    %v245 = vpack.c.b16 %v197, %v193
    %v246 = vpack.c.b16 %v202, %v198
    %v247 = vpack.c.b16 %v203, %v199
    %v248 = vpack.c.b16 %v204, %v200
    %v249 = vpack.c.b16 %v205, %v201
    %v250 = vpack.c.b16 %v210, %v206
    %v251 = vpack.c.b16 %v211, %v207
    %v252 = vpack.c.b16 %v212, %v208
    %v253 = vpack.c.b16 %v213, %v209
    %v254 = vpack.c.b16 %v218, %v214
    %v255 = vpack.c.b16 %v219, %v215
    %v256 = vpack.c.b16 %v220, %v216
    %v257 = vpack.c.b16 %v221, %v217
    %v258 = vpack.c.b16 %v226, %v222
    %v259 = vpack.c.b16 %v227, %v223
    %v260 = vpack.c.b16 %v228, %v224
    %v261 = vpack.c.b16 %v229, %v225
    %v358 = vunpack.c.l.b16 %v66
    %v359 = vunpack.c.l.b16 %v67
    %v360 = vunpack.c.l.b16 %v68
    %v361 = vunpack.c.l.b16 %v69
    %v362 = vunpack.c.l.b16 %v70
    %v363 = vunpack.c.l.b16 %v71
    %v364 = vunpack.c.l.b16 %v72
    %v365 = vunpack.c.l.b16 %v73
    %v366 = vunpack.c.l.b16 %v74
    %v367 = vunpack.c.l.b16 %v75
    %v368 = vunpack.c.l.b16 %v76
    %v369 = vunpack.c.l.b16 %v77
    %v370 = vunpack.c.l.b16 %v78
    %v371 = vunpack.c.l.b16 %v79
    %v372 = vunpack.c.l.b16 %v80
    %v373 = vunpack.c.l.b16 %v81
    %v374 = vunpack.c.l.b16 %v82
    %v375 = vunpack.c.l.b16 %v83
    %v376 = vunpack.c.l.b16 %v84
    %v377 = vunpack.c.l.b16 %v85
    %v378 = vunpack.c.l.b16 %v86
    %v379 = vunpack.c.l.b16 %v87
    %v380 = vunpack.c.l.b16 %v88
    %v381 = vunpack.c.l.b16 %v89
    %v382 = vunpack.c.l.b16 %v90
    %v383 = vunpack.c.l.b16 %v91
    %v384 = vunpack.c.l.b16 %v92
    %v385 = vunpack.c.l.b16 %v93
    %v386 = vunpack.c.l.b16 %v94
    %v387 = vunpack.c.l.b16 %v95
    %v388 = vunpack.c.l.b16 %v96
    %v389 = vunpack.c.l.b16 %v97
    %v390 = vunpack.c.l.b16 %v98
    %v391 = vunpack.c.l.b16 %v99
    %v392 = vunpack.c.l.b16 %v100
    %v393 = vunpack.c.l.b16 %v101
    %v394 = vunpack.c.l.b16 %v102
    %v395 = vunpack.c.l.b16 %v103
    %v396 = vunpack.c.l.b16 %v104
    %v397 = vunpack.c.l.b16 %v105
    %v398 = vunpack.c.l.b16 %v106
    %v399 = vunpack.c.l.b16 %v107
    %v400 = vunpack.c.l.b16 %v108
    %v401 = vunpack.c.l.b16 %v109
    %v402 = vunpack.c.l.b16 %v110
    %v403 = vunpack.c.l.b16 %v111
    %v404 = vunpack.c.l.b16 %v112
    %v405 = vunpack.c.l.b16 %v113
    %v406 = vunpack.c.l.b16 %v114
    %v407 = vunpack.c.l.b16 %v115
    %v408 = vunpack.c.l.b16 %v116
    %v409 = vunpack.c.l.b16 %v117
    %v410 = vunpack.c.l.b16 %v118
    %v411 = vunpack.c.l.b16 %v119
    %v412 = vunpack.c.l.b16 %v120
    %v413 = vunpack.c.l.b16 %v121
    %v414 = vunpack.c.l.b16 %v122
    %v415 = vunpack.c.l.b16 %v123
    %v416 = vunpack.c.l.b16 %v124
    %v417 = vunpack.c.l.b16 %v125
    %v418 = vunpack.c.l.b16 %v126
    %v419 = vunpack.c.l.b16 %v127
    %v420 = vunpack.c.l.b16 %v128
    %v421 = vunpack.c.l.b16 %v129
    %v422 = vpack.c.b16 %v359, %v358
    %v423 = vpack.c.b16 %v361, %v360
    %v424 = vpack.c.b16 %v363, %v362
    %v425 = vpack.c.b16 %v365, %v364
    %v426 = vpack.c.b16 %v367, %v366
    %v427 = vpack.c.b16 %v369, %v368
    %v428 = vpack.c.b16 %v371, %v370
    %v429 = vpack.c.b16 %v373, %v372
    %v430 = vpack.c.b16 %v375, %v374
    %v431 = vpack.c.b16 %v377, %v376
    %v432 = vpack.c.b16 %v379, %v378
    %v433 = vpack.c.b16 %v381, %v380
    %v434 = vpack.c.b16 %v383, %v382
    %v435 = vpack.c.b16 %v385, %v384
    %v436 = vpack.c.b16 %v387, %v386
    %v437 = vpack.c.b16 %v389, %v388
    %v438 = vpack.c.b16 %v391, %v390
    %v439 = vpack.c.b16 %v393, %v392
    %v440 = vpack.c.b16 %v395, %v394
    %v441 = vpack.c.b16 %v397, %v396
    %v442 = vpack.c.b16 %v399, %v398
    %v443 = vpack.c.b16 %v401, %v400
    %v444 = vpack.c.b16 %v403, %v402
    %v445 = vpack.c.b16 %v405, %v404
    %v446 = vpack.c.b16 %v407, %v406
    %v447 = vpack.c.b16 %v409, %v408
    %v448 = vpack.c.b16 %v411, %v410
    %v449 = vpack.c.b16 %v413, %v412
    %v450 = vpack.c.b16 %v415, %v414
    %v451 = vpack.c.b16 %v417, %v416
    %v452 = vpack.c.b16 %v419, %v418
    %v453 = vpack.c.b16 %v421, %v420
    %486 = vmatpush.bf16.msra.mxu0 %v429
    %487 = vmatpush.bf16.msra.mxu0 %v428
    %488 = vmatpush.bf16.msra.mxu0 %v427
    %489 = vmatpush.bf16.msra.mxu0 %v426
    %490 = vmatpush.bf16.msra.mxu0 %v425
    %491 = vmatpush.bf16.msra.mxu0 %v424
    %492 = vmatpush.bf16.msra.mxu0 %v423
    %493 = vmatpush.bf16.msra.mxu0 %v422
    %494 = vmatmul.bf16.gmra.mxu0 %v230
    %v495 = vpop.f32.mrf.mxu0
    %v496 = vadd.f32 %v132, %v495
    %v497 = vpop.f32.mrf.mxu0
    %v498 = vadd.f32 %v132, %v497
    %499 = vmatmul.bf16.gmra.mxu0 %v234
    %v500 = vpop.f32.mrf.mxu0
    %v501 = vadd.f32 %v132, %v500
    %v502 = vpop.f32.mrf.mxu0
    %v503 = vadd.f32 %v132, %v502
    %504 = vmatmul.bf16.gmra.mxu0 %v238
    %v505 = vpop.f32.mrf.mxu0
    %v506 = vadd.f32 %v132, %v505
    %v507 = vpop.f32.mrf.mxu0
    %v508 = vadd.f32 %v132, %v507
    %509 = vmatmul.bf16.gmra.mxu0 %v242
    %v510 = vpop.f32.mrf.mxu0
    %v511 = vadd.f32 %v132, %v510
    %v512 = vpop.f32.mrf.mxu0
    %v513 = vadd.f32 %v132, %v512
    %514 = vmatmul.bf16.gmra.mxu0 %v246
    %v515 = vpop.f32.mrf.mxu0
    %v516 = vadd.f32 %v132, %v515
    %v517 = vpop.f32.mrf.mxu0
    %v518 = vadd.f32 %v132, %v517
    %519 = vmatmul.bf16.gmra.mxu0 %v250
    %v520 = vpop.f32.mrf.mxu0
    %v521 = vadd.f32 %v132, %v520
    %v522 = vpop.f32.mrf.mxu0
    %v523 = vadd.f32 %v132, %v522
    %524 = vmatmul.bf16.gmra.mxu0 %v254
    %v525 = vpop.f32.mrf.mxu0
    %v526 = vadd.f32 %v132, %v525
    %v527 = vpop.f32.mrf.mxu0
    %v528 = vadd.f32 %v132, %v527
    %529 = vmatmul.bf16.gmra.mxu0 %v258
    %v530 = vpop.f32.mrf.mxu0
    %v531 = vadd.f32 %v132, %v530
    %v532 = vpop.f32.mrf.mxu0
    %v533 = vadd.f32 %v132, %v532
    %534 = vdwg.mxu0
    %535 = vmatpush.bf16.msra.mxu0 %v437
    %536 = vmatpush.bf16.msra.mxu0 %v436
    %537 = vmatpush.bf16.msra.mxu0 %v435
    %538 = vmatpush.bf16.msra.mxu0 %v434
    %539 = vmatpush.bf16.msra.mxu0 %v433
    %540 = vmatpush.bf16.msra.mxu0 %v432
    %541 = vmatpush.bf16.msra.mxu0 %v431
    %542 = vmatpush.bf16.msra.mxu0 %v430
    %543 = vmatmul.bf16.gmra.mxu0 %v231
    %v544 = vpop.f32.mrf.mxu0
    %v545 = vadd.f32 %v496, %v544
    %v546 = vpop.f32.mrf.mxu0
    %v547 = vadd.f32 %v498, %v546
    %548 = vmatmul.bf16.gmra.mxu0 %v235
    %v549 = vpop.f32.mrf.mxu0
    %v550 = vadd.f32 %v501, %v549
    %v551 = vpop.f32.mrf.mxu0
    %v552 = vadd.f32 %v503, %v551
    %553 = vmatmul.bf16.gmra.mxu0 %v239
    %v554 = vpop.f32.mrf.mxu0
    %v555 = vadd.f32 %v506, %v554
    %v556 = vpop.f32.mrf.mxu0
    %v557 = vadd.f32 %v508, %v556
    %558 = vmatmul.bf16.gmra.mxu0 %v243
    %v559 = vpop.f32.mrf.mxu0
    %v560 = vadd.f32 %v511, %v559
    %v561 = vpop.f32.mrf.mxu0
    %v562 = vadd.f32 %v513, %v561
    %563 = vmatmul.bf16.gmra.mxu0 %v247
    %v564 = vpop.f32.mrf.mxu0
    %v565 = vadd.f32 %v516, %v564
    %v566 = vpop.f32.mrf.mxu0
    %v567 = vadd.f32 %v518, %v566
    %568 = vmatmul.bf16.gmra.mxu0 %v251
    %v569 = vpop.f32.mrf.mxu0
    %v570 = vadd.f32 %v521, %v569
    %v571 = vpop.f32.mrf.mxu0
    %v572 = vadd.f32 %v523, %v571
    %573 = vmatmul.bf16.gmra.mxu0 %v255
    %v574 = vpop.f32.mrf.mxu0
    %v575 = vadd.f32 %v526, %v574
    %v576 = vpop.f32.mrf.mxu0
    %v577 = vadd.f32 %v528, %v576
    %578 = vmatmul.bf16.gmra.mxu0 %v259
    %v579 = vpop.f32.mrf.mxu0
    %v580 = vadd.f32 %v531, %v579
    %v581 = vpop.f32.mrf.mxu0
    %v582 = vadd.f32 %v533, %v581
    %583 = vdwg.mxu0
    %584 = vmatpush.bf16.msra.mxu0 %v445
    %585 = vmatpush.bf16.msra.mxu0 %v444
    %586 = vmatpush.bf16.msra.mxu0 %v443
    %587 = vmatpush.bf16.msra.mxu0 %v442
    %588 = vmatpush.bf16.msra.mxu0 %v441
    %589 = vmatpush.bf16.msra.mxu0 %v440
    %590 = vmatpush.bf16.msra.mxu0 %v439
    %591 = vmatpush.bf16.msra.mxu0 %v438
    %592 = vmatmul.bf16.gmra.mxu0 %v232
    %v593 = vpop.f32.mrf.mxu0
    %v594 = vadd.f32 %v545, %v593
    %v595 = vpop.f32.mrf.mxu0
    %v596 = vadd.f32 %v547, %v595
    %597 = vmatmul.bf16.gmra.mxu0 %v236
    %v598 = vpop.f32.mrf.mxu0
    %v599 = vadd.f32 %v550, %v598
    %v600 = vpop.f32.mrf.mxu0
    %v601 = vadd.f32 %v552, %v600
    %602 = vmatmul.bf16.gmra.mxu0 %v240
    %v603 = vpop.f32.mrf.mxu0
    %v604 = vadd.f32 %v555, %v603
    %v605 = vpop.f32.mrf.mxu0
    %v606 = vadd.f32 %v557, %v605
    %607 = vmatmul.bf16.gmra.mxu0 %v244
    %v608 = vpop.f32.mrf.mxu0
    %v609 = vadd.f32 %v560, %v608
    %v610 = vpop.f32.mrf.mxu0
    %v611 = vadd.f32 %v562, %v610
    %612 = vmatmul.bf16.gmra.mxu0 %v248
    %v613 = vpop.f32.mrf.mxu0
    %v614 = vadd.f32 %v565, %v613
    %v615 = vpop.f32.mrf.mxu0
    %v616 = vadd.f32 %v567, %v615
    %617 = vmatmul.bf16.gmra.mxu0 %v252
    %v618 = vpop.f32.mrf.mxu0
    %v619 = vadd.f32 %v570, %v618
    %v620 = vpop.f32.mrf.mxu0
    %v621 = vadd.f32 %v572, %v620
    %622 = vmatmul.bf16.gmra.mxu0 %v256
    %v623 = vpop.f32.mrf.mxu0
    %v624 = vadd.f32 %v575, %v623
    %v625 = vpop.f32.mrf.mxu0
    %v626 = vadd.f32 %v577, %v625
    %627 = vmatmul.bf16.gmra.mxu0 %v260
    %v628 = vpop.f32.mrf.mxu0
    %v629 = vadd.f32 %v580, %v628
    %v630 = vpop.f32.mrf.mxu0
    %v631 = vadd.f32 %v582, %v630
    %632 = vdwg.mxu0
    %633 = vmatpush.bf16.msra.mxu0 %v453
    %634 = vmatpush.bf16.msra.mxu0 %v452
    %635 = vmatpush.bf16.msra.mxu0 %v451
    %636 = vmatpush.bf16.msra.mxu0 %v450
    %637 = vmatpush.bf16.msra.mxu0 %v449
    %638 = vmatpush.bf16.msra.mxu0 %v448
    %639 = vmatpush.bf16.msra.mxu0 %v447
    %640 = vmatpush.bf16.msra.mxu0 %v446
    %641 = vmatmul.bf16.gmra.mxu0 %v233
    %v642 = vpop.f32.mrf.mxu0
    %v643 = vadd.f32 %v594, %v642
    %v644 = vpop.f32.mrf.mxu0
    %v645 = vadd.f32 %v596, %v644
    %646 = vmatmul.bf16.gmra.mxu0 %v237
    %v647 = vpop.f32.mrf.mxu0
    %v648 = vadd.f32 %v599, %v647
    %v649 = vpop.f32.mrf.mxu0
    %v650 = vadd.f32 %v601, %v649
    %651 = vmatmul.bf16.gmra.mxu0 %v241
    %v652 = vpop.f32.mrf.mxu0
    %v653 = vadd.f32 %v604, %v652
    %v654 = vpop.f32.mrf.mxu0
    %v655 = vadd.f32 %v606, %v654
    %656 = vmatmul.bf16.gmra.mxu0 %v245
    %v657 = vpop.f32.mrf.mxu0
    %v658 = vadd.f32 %v609, %v657
    %v659 = vpop.f32.mrf.mxu0
    %v660 = vadd.f32 %v611, %v659
    %661 = vmatmul.bf16.gmra.mxu0 %v249
    %v662 = vpop.f32.mrf.mxu0
    %v663 = vadd.f32 %v614, %v662
    %v664 = vpop.f32.mrf.mxu0
    %v665 = vadd.f32 %v616, %v664
    %666 = vmatmul.bf16.gmra.mxu0 %v253
    %v667 = vpop.f32.mrf.mxu0
    %v668 = vadd.f32 %v619, %v667
    %v669 = vpop.f32.mrf.mxu0
    %v670 = vadd.f32 %v621, %v669
    %671 = vmatmul.bf16.gmra.mxu0 %v257
    %v672 = vpop.f32.mrf.mxu0
    %v673 = vadd.f32 %v624, %v672
    %v674 = vpop.f32.mrf.mxu0
    %v675 = vadd.f32 %v626, %v674
    %676 = vmatmul.bf16.gmra.mxu0 %v261
    %v677 = vpop.f32.mrf.mxu0
    %v678 = vadd.f32 %v629, %v677
    %v679 = vpop.f32.mrf.mxu0
    %v680 = vadd.f32 %v631, %v679
    %681 = vdwg.mxu0
    %v682 = vmul.f32 %v643, 0.2
    %v683 = vmul.f32 %v645, 0.2
    %v684 = vmul.f32 %v648, 0.2
    %v685 = vmul.f32 %v650, 0.2
    %v686 = vmul.f32 %v653, 0.2
    %v687 = vmul.f32 %v655, 0.2
    %v688 = vmul.f32 %v658, 0.2
    %v689 = vmul.f32 %v660, 0.2
    %v690 = vmul.f32 %v663, 0.2
    %v691 = vmul.f32 %v665, 0.2
    %v692 = vmul.f32 %v668, 0.2
    %v693 = vmul.f32 %v670, 0.2
    %v694 = vmul.f32 %v673, 0.2
    %v695 = vmul.f32 %v675, 0.2
    %v696 = vmul.f32 %v678, 0.2
    %v697 = vmul.f32 %v680, 0.2
    %v698 = vmax.f32 %v643, %v682
    %v699 = vmax.f32 %v645, %v683
    %v700 = vmax.f32 %v648, %v684
    %v701 = vmax.f32 %v650, %v685
    %v702 = vmax.f32 %v653, %v686
    %v703 = vmax.f32 %v655, %v687
    %v704 = vmax.f32 %v658, %v688
    %v705 = vmax.f32 %v660, %v689
    %v706 = vmax.f32 %v663, %v690
    %v707 = vmax.f32 %v665, %v691
    %v708 = vmax.f32 %v668, %v692
    %v709 = vmax.f32 %v670, %v693
    %v710 = vmax.f32 %v673, %v694
    %v711 = vmax.f32 %v675, %v695
    %v712 = vmax.f32 %v678, %v696
    %v713 = vmax.f32 %v680, %v697
    %v714 = vpack.c.bf16 %v699, %v698
    %v715 = vpack.c.bf16 %v701, %v700
    %v716 = vpack.c.bf16 %v703, %v702
    %v717 = vpack.c.bf16 %v705, %v704
    %v718 = vpack.c.bf16 %v707, %v706
    %v719 = vpack.c.bf16 %v709, %v708
    %v720 = vpack.c.bf16 %v711, %v710
    %v721 = vpack.c.bf16 %v713, %v712
    %v722 = vld [vmem:[%s3] sm:$0xf]
    %v723 = vld [vmem:[%s3 + $0x4] sm:$0xf]
    %v724 = vld [vmem:[%s3 + $0x8] sm:$0xf]
    %v725 = vld [vmem:[%s3 + $0xc] sm:$0xf]
    %v730 = vunpack.c.l.b16 %v722
    %v731 = vunpack.c.l.b16 %v723
    %v732 = vunpack.c.l.b16 %v724
    %v733 = vunpack.c.l.b16 %v725
    %v734 = vpack.c.b16 %v731, %v730
    %v735 = vpack.c.b16 %v733, %v732
    %738 = vmatpush.bf16.msra.mxu0 %v721
    %739 = vmatpush.bf16.msra.mxu0 %v720
    %740 = vmatpush.bf16.msra.mxu0 %v719
    %741 = vmatpush.bf16.msra.mxu0 %v718
    %742 = vmatpush.bf16.msra.mxu0 %v717
    %743 = vmatpush.bf16.msra.mxu0 %v716
    %744 = vmatpush.bf16.msra.mxu0 %v715
    %745 = vmatpush.bf16.msra.mxu0 %v714
    %746 = vmatmul.bf16.gmra.mxu0 %v734
    %v747 = vpop.f32.mrf.mxu0
    %v748 = vadd.f32 0.0, %v747
    %v749 = vpop.f32.mrf.mxu0
    %v750 = vadd.f32 0.0, %v749
    %751 = vmatmul.bf16.gmra.mxu0 %v735
    %v752 = vpop.f32.mrf.mxu0
    %v753 = vadd.f32 0.0, %v752
    %v754 = vpop.f32.mrf.mxu0
    %v755 = vadd.f32 0.0, %v754
    %756 = vdwg.mxu0
    %v757 = vpack.c.bf16 %v750, %v748
    %v758 = vpack.c.bf16 %v755, %v753
    %v759 = vld [vmem:[%s4] sm:$0xf]
    %v760 = vld [vmem:[%s4 + $0x4] sm:$0xf]
    %v761 = vld [vmem:[%s4 + $0x8] sm:$0xf]
    %v762 = vld [vmem:[%s4 + $0xc] sm:$0xf]
    %v763 = vld [vmem:[%s4 + $0x10] sm:$0xf]
    %v764 = vld [vmem:[%s4 + $0x14] sm:$0xf]
    %v765 = vld [vmem:[%s4 + $0x18] sm:$0xf]
    %v766 = vld [vmem:[%s4 + $0x1c] sm:$0xf]
    %s767 = scalar_lea.vmem %s3, 16
    %v768 = vld [vmem:[%s767] sm:$0xf]
    %v769 = vld [vmem:[%s767 + $0x4] sm:$0xf]
    %v770 = vld [vmem:[%s767 + $0x8] sm:$0xf]
    %v771 = vld [vmem:[%s767 + $0xc] sm:$0xf]
    %v776 = vunpack.c.l.b16 %v768
    %v777 = vunpack.c.l.b16 %v769
    %v778 = vunpack.c.l.b16 %v770
    %v779 = vunpack.c.l.b16 %v771
    %v780 = vpack.c.b16 %v777, %v776
    %v781 = vpack.c.b16 %v779, %v778
    %784 = vmatpush.bf16.msra.mxu0 %v721
    %785 = vmatpush.bf16.msra.mxu0 %v720
    %786 = vmatpush.bf16.msra.mxu0 %v719
    %787 = vmatpush.bf16.msra.mxu0 %v718
    %788 = vmatpush.bf16.msra.mxu0 %v717
    %789 = vmatpush.bf16.msra.mxu0 %v716
    %790 = vmatpush.bf16.msra.mxu0 %v715
    %791 = vmatpush.bf16.msra.mxu0 %v714
    %792 = vmatmul.bf16.gmra.mxu0 %v780
    %v793 = vpop.f32.mrf.mxu0
    %v794 = vadd.f32 0.0, %v793
    %v795 = vpop.f32.mrf.mxu0
    %v796 = vadd.f32 0.0, %v795
    %797 = vmatmul.bf16.gmra.mxu0 %v781
    %v798 = vpop.f32.mrf.mxu0
    %v799 = vadd.f32 0.0, %v798
    %v800 = vpop.f32.mrf.mxu0
    %v801 = vadd.f32 0.0, %v800
    %802 = vdwg.mxu0
    %v803 = vpack.c.bf16 %v796, %v794
    %v804 = vpack.c.bf16 %v801, %v799
    %s805 = scalar_lea.vmem %s4, 32
    %v806 = vld [vmem:[%s805] sm:$0xf]
    %v807 = vld [vmem:[%s805 + $0x4] sm:$0xf]
    %v808 = vld [vmem:[%s805 + $0x8] sm:$0xf]
    %v809 = vld [vmem:[%s805 + $0xc] sm:$0xf]
    %v810 = vld [vmem:[%s805 + $0x10] sm:$0xf]
    %v811 = vld [vmem:[%s805 + $0x14] sm:$0xf]
    %v812 = vld [vmem:[%s805 + $0x18] sm:$0xf]
    %v813 = vld [vmem:[%s805 + $0x1c] sm:$0xf]
    %v822 = vunpack.c.l.b16 %v806
    %v823 = vunpack.c.l.b16 %v807
    %v824 = vunpack.c.l.b16 %v808
    %v825 = vunpack.c.l.b16 %v809
    %v826 = vunpack.c.l.b16 %v810
    %v827 = vunpack.c.l.b16 %v811
    %v828 = vunpack.c.l.b16 %v812
    %v829 = vunpack.c.l.b16 %v813
    %v830 = vpack.c.b16 %v823, %v822
    %v831 = vpack.c.b16 %v825, %v824
    %v832 = vpack.c.b16 %v827, %v826
    %v833 = vpack.c.b16 %v829, %v828
    %vm838 = vcmask 523264
    %v840 = vsel %vm838, %v803, 0
    %v843 = vsel %vm838, %v804, 0
    %845 = vmatpush.bf16.msra.mxu0 0
    %846 = vmatpush.bf16.msra.mxu0 0
    %847 = vmatpush.bf16.msra.mxu0 0
    %848 = vmatpush.bf16.msra.mxu0 0
    %849 = vmatpush.bf16.msra.mxu0 %v833
    %850 = vmatpush.bf16.msra.mxu0 %v832
    %851 = vmatpush.bf16.msra.mxu0 %v831
    %852 = vmatpush.bf16.msra.mxu0 %v830
    %853 = vmatmul.bf16.gmra.mxu0 %v840
    %v854 = vpop.f32.mrf.mxu0
    %v855 = vadd.f32 0.0, %v854
    %v856 = vpop.f32.mrf.mxu0
    %v857 = vadd.f32 0.0, %v856
    %858 = vmatmul.bf16.gmra.mxu0 %v843
    %v859 = vpop.f32.mrf.mxu0
    %v860 = vadd.f32 0.0, %v859
    %v861 = vpop.f32.mrf.mxu0
    %v862 = vadd.f32 0.0, %v861
    %863 = vdwg.mxu0
    %v872 = vunpack.c.l.b16 %v759
    %v873 = vunpack.c.l.b16 %v760
    %v874 = vunpack.c.l.b16 %v761
    %v875 = vunpack.c.l.b16 %v762
    %v876 = vunpack.c.l.b16 %v763
    %v877 = vunpack.c.l.b16 %v764
    %v878 = vunpack.c.l.b16 %v765
    %v879 = vunpack.c.l.b16 %v766
    %v880 = vpack.c.b16 %v873, %v872
    %v881 = vpack.c.b16 %v875, %v874
    %v882 = vpack.c.b16 %v877, %v876
    %v883 = vpack.c.b16 %v879, %v878
    %v889 = vsel %vm838, %v757, 0
    %v892 = vsel %vm838, %v758, 0
    %894 = vmatpush.bf16.msra.mxu0 0
    %895 = vmatpush.bf16.msra.mxu0 0
    %896 = vmatpush.bf16.msra.mxu0 0
    %897 = vmatpush.bf16.msra.mxu0 0
    %898 = vmatpush.bf16.msra.mxu0 %v883
    %899 = vmatpush.bf16.msra.mxu0 %v882
    %900 = vmatpush.bf16.msra.mxu0 %v881
    %901 = vmatpush.bf16.msra.mxu0 %v880
    %902 = vmatmul.bf16.gmra.mxu0 %v889
    %v903 = vpop.f32.mrf.mxu0
    %v904 = vadd.f32 %v855, %v903
    %v905 = vpop.f32.mrf.mxu0
    %v906 = vadd.f32 %v857, %v905
    %907 = vmatmul.bf16.gmra.mxu0 %v892
    %v908 = vpop.f32.mrf.mxu0
    %v909 = vadd.f32 %v860, %v908
    %v910 = vpop.f32.mrf.mxu0
    %v911 = vadd.f32 %v862, %v910
    %912 = vdwg.mxu0
    %s913 = scalar_lea.vmem %s3, 32
    %v914 = vld [vmem:[%s913] sm:$0xf]
    %v915 = vld [vmem:[%s913 + $0x4] sm:$0xf]
    %v916 = vld [vmem:[%s913 + $0x8] sm:$0xf]
    %v917 = vld [vmem:[%s913 + $0xc] sm:$0xf]
    %v922 = vunpack.c.l.b16 %v914
    %v923 = vunpack.c.l.b16 %v915
    %v924 = vunpack.c.l.b16 %v916
    %v925 = vunpack.c.l.b16 %v917
    %v926 = vpack.c.b16 %v923, %v922
    %v927 = vpack.c.b16 %v925, %v924
    %930 = vmatpush.bf16.msra.mxu0 %v721
    %931 = vmatpush.bf16.msra.mxu0 %v720
    %932 = vmatpush.bf16.msra.mxu0 %v719
    %933 = vmatpush.bf16.msra.mxu0 %v718
    %934 = vmatpush.bf16.msra.mxu0 %v717
    %935 = vmatpush.bf16.msra.mxu0 %v716
    %936 = vmatpush.bf16.msra.mxu0 %v715
    %937 = vmatpush.bf16.msra.mxu0 %v714
    %938 = vmatmul.bf16.gmra.mxu0 %v926
    %v939 = vpop.f32.mrf.mxu0
    %v940 = vadd.f32 0.0, %v939
    %v941 = vpop.f32.mrf.mxu0
    %v942 = vadd.f32 0.0, %v941
    %943 = vmatmul.bf16.gmra.mxu0 %v927
    %v944 = vpop.f32.mrf.mxu0
    %v945 = vadd.f32 0.0, %v944
    %v946 = vpop.f32.mrf.mxu0
    %v947 = vadd.f32 0.0, %v946
    %948 = vdwg.mxu0
    %v949 = vpack.c.bf16 %v942, %v940
    %v950 = vpack.c.bf16 %v947, %v945
    %s951 = scalar_lea.vmem %s4, 64
    %v952 = vld [vmem:[%s951] sm:$0xf]
    %v953 = vld [vmem:[%s951 + $0x4] sm:$0xf]
    %v954 = vld [vmem:[%s951 + $0x8] sm:$0xf]
    %v955 = vld [vmem:[%s951 + $0xc] sm:$0xf]
    %v956 = vld [vmem:[%s951 + $0x10] sm:$0xf]
    %v957 = vld [vmem:[%s951 + $0x14] sm:$0xf]
    %v958 = vld [vmem:[%s951 + $0x18] sm:$0xf]
    %v959 = vld [vmem:[%s951 + $0x1c] sm:$0xf]
    %v968 = vunpack.c.l.b16 %v952
    %v969 = vunpack.c.l.b16 %v953
    %v970 = vunpack.c.l.b16 %v954
    %v971 = vunpack.c.l.b16 %v955
    %v972 = vunpack.c.l.b16 %v956
    %v973 = vunpack.c.l.b16 %v957
    %v974 = vunpack.c.l.b16 %v958
    %v975 = vunpack.c.l.b16 %v959
    %v976 = vpack.c.b16 %v969, %v968
    %v977 = vpack.c.b16 %v971, %v970
    %v978 = vpack.c.b16 %v973, %v972
    %v979 = vpack.c.b16 %v975, %v974
    %v985 = vsel %vm838, %v949, 0
    %v988 = vsel %vm838, %v950, 0
    %990 = vmatpush.bf16.msra.mxu0 0
    %991 = vmatpush.bf16.msra.mxu0 0
    %992 = vmatpush.bf16.msra.mxu0 0
    %993 = vmatpush.bf16.msra.mxu0 0
    %994 = vmatpush.bf16.msra.mxu0 %v979
    %995 = vmatpush.bf16.msra.mxu0 %v978
    %996 = vmatpush.bf16.msra.mxu0 %v977
    %997 = vmatpush.bf16.msra.mxu0 %v976
    %998 = vmatmul.bf16.gmra.mxu0 %v985
    %v999 = vpop.f32.mrf.mxu0
    %v1000 = vadd.f32 0.0, %v999
    %v1001 = vpop.f32.mrf.mxu0
    %v1002 = vadd.f32 0.0, %v1001
    %1003 = vmatmul.bf16.gmra.mxu0 %v988
    %v1004 = vpop.f32.mrf.mxu0
    %v1005 = vadd.f32 0.0, %v1004
    %v1006 = vpop.f32.mrf.mxu0
    %v1007 = vadd.f32 0.0, %v1006
    %1008 = vdwg.mxu0
    %v1009 = vadd.f32 %v904, %v1000
    %v1010 = vadd.f32 %v906, %v1002
    %v1011 = vadd.f32 %v909, %v1005
    %v1012 = vadd.f32 %v911, %v1007
    %s1013 = scalar_lea.vmem %s3, 48
    %v1014 = vld [vmem:[%s1013] sm:$0xf]
    %v1015 = vld [vmem:[%s1013 + $0x4] sm:$0xf]
    %v1016 = vld [vmem:[%s1013 + $0x8] sm:$0xf]
    %v1017 = vld [vmem:[%s1013 + $0xc] sm:$0xf]
    %v1022 = vunpack.c.l.b16 %v1014
    %v1023 = vunpack.c.l.b16 %v1015
    %v1024 = vunpack.c.l.b16 %v1016
    %v1025 = vunpack.c.l.b16 %v1017
    %v1026 = vpack.c.b16 %v1023, %v1022
    %v1027 = vpack.c.b16 %v1025, %v1024
    %1030 = vmatpush.bf16.msra.mxu0 %v721
    %1031 = vmatpush.bf16.msra.mxu0 %v720
    %1032 = vmatpush.bf16.msra.mxu0 %v719
    %1033 = vmatpush.bf16.msra.mxu0 %v718
    %1034 = vmatpush.bf16.msra.mxu0 %v717
    %1035 = vmatpush.bf16.msra.mxu0 %v716
    %1036 = vmatpush.bf16.msra.mxu0 %v715
    %1037 = vmatpush.bf16.msra.mxu0 %v714
    %1038 = vmatmul.bf16.gmra.mxu0 %v1026
    %v1039 = vpop.f32.mrf.mxu0
    %v1040 = vadd.f32 0.0, %v1039
    %v1041 = vpop.f32.mrf.mxu0
    %v1042 = vadd.f32 0.0, %v1041
    %1043 = vmatmul.bf16.gmra.mxu0 %v1027
    %v1044 = vpop.f32.mrf.mxu0
    %v1045 = vadd.f32 0.0, %v1044
    %v1046 = vpop.f32.mrf.mxu0
    %v1047 = vadd.f32 0.0, %v1046
    %1048 = vdwg.mxu0
    %v1049 = vpack.c.bf16 %v1042, %v1040
    %v1050 = vpack.c.bf16 %v1047, %v1045
    %s1051 = scalar_lea.vmem %s4, 96
    %v1052 = vld [vmem:[%s1051] sm:$0xf]
    %v1053 = vld [vmem:[%s1051 + $0x4] sm:$0xf]
    %v1054 = vld [vmem:[%s1051 + $0x8] sm:$0xf]
    %v1055 = vld [vmem:[%s1051 + $0xc] sm:$0xf]
    %v1056 = vld [vmem:[%s1051 + $0x10] sm:$0xf]
    %v1057 = vld [vmem:[%s1051 + $0x14] sm:$0xf]
    %v1058 = vld [vmem:[%s1051 + $0x18] sm:$0xf]
    %v1059 = vld [vmem:[%s1051 + $0x1c] sm:$0xf]
    %v1068 = vunpack.c.l.b16 %v1052
    %v1069 = vunpack.c.l.b16 %v1053
    %v1070 = vunpack.c.l.b16 %v1054
    %v1071 = vunpack.c.l.b16 %v1055
    %v1072 = vunpack.c.l.b16 %v1056
    %v1073 = vunpack.c.l.b16 %v1057
    %v1074 = vunpack.c.l.b16 %v1058
    %v1075 = vunpack.c.l.b16 %v1059
    %v1076 = vpack.c.b16 %v1069, %v1068
    %v1077 = vpack.c.b16 %v1071, %v1070
    %v1078 = vpack.c.b16 %v1073, %v1072
    %v1079 = vpack.c.b16 %v1075, %v1074
    %v1085 = vsel %vm838, %v1049, 0
    %v1088 = vsel %vm838, %v1050, 0
    %1090 = vmatpush.bf16.msra.mxu0 0
    %1091 = vmatpush.bf16.msra.mxu0 0
    %1092 = vmatpush.bf16.msra.mxu0 0
    %1093 = vmatpush.bf16.msra.mxu0 0
    %1094 = vmatpush.bf16.msra.mxu0 %v1079
    %1095 = vmatpush.bf16.msra.mxu0 %v1078
    %1096 = vmatpush.bf16.msra.mxu0 %v1077
    %1097 = vmatpush.bf16.msra.mxu0 %v1076
    %1098 = vmatmul.bf16.gmra.mxu0 %v1085
    %v1099 = vpop.f32.mrf.mxu0
    %v1100 = vadd.f32 0.0, %v1099
    %v1101 = vpop.f32.mrf.mxu0
    %v1102 = vadd.f32 0.0, %v1101
    %1103 = vmatmul.bf16.gmra.mxu0 %v1088
    %v1104 = vpop.f32.mrf.mxu0
    %v1105 = vadd.f32 0.0, %v1104
    %v1106 = vpop.f32.mrf.mxu0
    %v1107 = vadd.f32 0.0, %v1106
    %1108 = vdwg.mxu0
    %v1109 = vadd.f32 %v1009, %v1100
    %v1110 = vadd.f32 %v1010, %v1102
    %v1111 = vadd.f32 %v1011, %v1105
    %v1112 = vadd.f32 %v1012, %v1107
    %s1113 = scalar_lea.vmem %s3, 64
    %v1114 = vld [vmem:[%s1113] sm:$0xf]
    %v1115 = vld [vmem:[%s1113 + $0x4] sm:$0xf]
    %v1116 = vld [vmem:[%s1113 + $0x8] sm:$0xf]
    %v1117 = vld [vmem:[%s1113 + $0xc] sm:$0xf]
    %v1122 = vunpack.c.l.b16 %v1114
    %v1123 = vunpack.c.l.b16 %v1115
    %v1124 = vunpack.c.l.b16 %v1116
    %v1125 = vunpack.c.l.b16 %v1117
    %v1126 = vpack.c.b16 %v1123, %v1122
    %v1127 = vpack.c.b16 %v1125, %v1124
    %1130 = vmatpush.bf16.msra.mxu0 %v721
    %1131 = vmatpush.bf16.msra.mxu0 %v720
    %1132 = vmatpush.bf16.msra.mxu0 %v719
    %1133 = vmatpush.bf16.msra.mxu0 %v718
    %1134 = vmatpush.bf16.msra.mxu0 %v717
    %1135 = vmatpush.bf16.msra.mxu0 %v716
    %1136 = vmatpush.bf16.msra.mxu0 %v715
    %1137 = vmatpush.bf16.msra.mxu0 %v714
    %1138 = vmatmul.bf16.gmra.mxu0 %v1126
    %v1139 = vpop.f32.mrf.mxu0
    %v1140 = vadd.f32 0.0, %v1139
    %v1141 = vpop.f32.mrf.mxu0
    %v1142 = vadd.f32 0.0, %v1141
    %1143 = vmatmul.bf16.gmra.mxu0 %v1127
    %v1144 = vpop.f32.mrf.mxu0
    %v1145 = vadd.f32 0.0, %v1144
    %v1146 = vpop.f32.mrf.mxu0
    %v1147 = vadd.f32 0.0, %v1146
    %1148 = vdwg.mxu0
    %v1149 = vpack.c.bf16 %v1142, %v1140
    %v1150 = vpack.c.bf16 %v1147, %v1145
    %s1151 = scalar_lea.vmem %s4, 128
    %v1152 = vld [vmem:[%s1151] sm:$0xf]
    %v1153 = vld [vmem:[%s1151 + $0x4] sm:$0xf]
    %v1154 = vld [vmem:[%s1151 + $0x8] sm:$0xf]
    %v1155 = vld [vmem:[%s1151 + $0xc] sm:$0xf]
    %v1156 = vld [vmem:[%s1151 + $0x10] sm:$0xf]
    %v1157 = vld [vmem:[%s1151 + $0x14] sm:$0xf]
    %v1158 = vld [vmem:[%s1151 + $0x18] sm:$0xf]
    %v1159 = vld [vmem:[%s1151 + $0x1c] sm:$0xf]
    %v1168 = vunpack.c.l.b16 %v1152
    %v1169 = vunpack.c.l.b16 %v1153
    %v1170 = vunpack.c.l.b16 %v1154
    %v1171 = vunpack.c.l.b16 %v1155
    %v1172 = vunpack.c.l.b16 %v1156
    %v1173 = vunpack.c.l.b16 %v1157
    %v1174 = vunpack.c.l.b16 %v1158
    %v1175 = vunpack.c.l.b16 %v1159
    %v1176 = vpack.c.b16 %v1169, %v1168
    %v1177 = vpack.c.b16 %v1171, %v1170
    %v1178 = vpack.c.b16 %v1173, %v1172
    %v1179 = vpack.c.b16 %v1175, %v1174
    %v1185 = vsel %vm838, %v1149, 0
    %v1188 = vsel %vm838, %v1150, 0
    %1190 = vmatpush.bf16.msra.mxu0 0
    %1191 = vmatpush.bf16.msra.mxu0 0
    %1192 = vmatpush.bf16.msra.mxu0 0
    %1193 = vmatpush.bf16.msra.mxu0 0
    %1194 = vmatpush.bf16.msra.mxu0 %v1179
    %1195 = vmatpush.bf16.msra.mxu0 %v1178
    %1196 = vmatpush.bf16.msra.mxu0 %v1177
    %1197 = vmatpush.bf16.msra.mxu0 %v1176
    %1198 = vmatmul.bf16.gmra.mxu0 %v1185
    %v1199 = vpop.f32.mrf.mxu0
    %v1200 = vadd.f32 0.0, %v1199
    %v1201 = vpop.f32.mrf.mxu0
    %v1202 = vadd.f32 0.0, %v1201
    %1203 = vmatmul.bf16.gmra.mxu0 %v1188
    %v1204 = vpop.f32.mrf.mxu0
    %v1205 = vadd.f32 0.0, %v1204
    %v1206 = vpop.f32.mrf.mxu0
    %v1207 = vadd.f32 0.0, %v1206
    %1208 = vdwg.mxu0
    %v1209 = vadd.f32 %v1109, %v1200
    %v1210 = vadd.f32 %v1110, %v1202
    %v1211 = vadd.f32 %v1111, %v1205
    %v1212 = vadd.f32 %v1112, %v1207
    %s1213 = scalar_lea.vmem %s3, 80
    %v1214 = vld [vmem:[%s1213] sm:$0xf]
    %v1215 = vld [vmem:[%s1213 + $0x4] sm:$0xf]
    %v1216 = vld [vmem:[%s1213 + $0x8] sm:$0xf]
    %v1217 = vld [vmem:[%s1213 + $0xc] sm:$0xf]
    %v1222 = vunpack.c.l.b16 %v1214
    %v1223 = vunpack.c.l.b16 %v1215
    %v1224 = vunpack.c.l.b16 %v1216
    %v1225 = vunpack.c.l.b16 %v1217
    %v1226 = vpack.c.b16 %v1223, %v1222
    %v1227 = vpack.c.b16 %v1225, %v1224
    %1230 = vmatpush.bf16.msra.mxu0 %v721
    %1231 = vmatpush.bf16.msra.mxu0 %v720
    %1232 = vmatpush.bf16.msra.mxu0 %v719
    %1233 = vmatpush.bf16.msra.mxu0 %v718
    %1234 = vmatpush.bf16.msra.mxu0 %v717
    %1235 = vmatpush.bf16.msra.mxu0 %v716
    %1236 = vmatpush.bf16.msra.mxu0 %v715
    %1237 = vmatpush.bf16.msra.mxu0 %v714
    %1238 = vmatmul.bf16.gmra.mxu0 %v1226
    %v1239 = vpop.f32.mrf.mxu0
    %v1240 = vadd.f32 0.0, %v1239
    %v1241 = vpop.f32.mrf.mxu0
    %v1242 = vadd.f32 0.0, %v1241
    %1243 = vmatmul.bf16.gmra.mxu0 %v1227
    %v1244 = vpop.f32.mrf.mxu0
    %v1245 = vadd.f32 0.0, %v1244
    %v1246 = vpop.f32.mrf.mxu0
    %v1247 = vadd.f32 0.0, %v1246
    %1248 = vdwg.mxu0
    %v1249 = vpack.c.bf16 %v1242, %v1240
    %v1250 = vpack.c.bf16 %v1247, %v1245
    %s1251 = scalar_lea.vmem %s4, 160
    %v1252 = vld [vmem:[%s1251] sm:$0xf]
    %v1253 = vld [vmem:[%s1251 + $0x4] sm:$0xf]
    %v1254 = vld [vmem:[%s1251 + $0x8] sm:$0xf]
    %v1255 = vld [vmem:[%s1251 + $0xc] sm:$0xf]
    %v1256 = vld [vmem:[%s1251 + $0x10] sm:$0xf]
    %v1257 = vld [vmem:[%s1251 + $0x14] sm:$0xf]
    %v1258 = vld [vmem:[%s1251 + $0x18] sm:$0xf]
    %v1259 = vld [vmem:[%s1251 + $0x1c] sm:$0xf]
    %v1268 = vunpack.c.l.b16 %v1252
    %v1269 = vunpack.c.l.b16 %v1253
    %v1270 = vunpack.c.l.b16 %v1254
    %v1271 = vunpack.c.l.b16 %v1255
    %v1272 = vunpack.c.l.b16 %v1256
    %v1273 = vunpack.c.l.b16 %v1257
    %v1274 = vunpack.c.l.b16 %v1258
    %v1275 = vunpack.c.l.b16 %v1259
    %v1276 = vpack.c.b16 %v1269, %v1268
    %v1277 = vpack.c.b16 %v1271, %v1270
    %v1278 = vpack.c.b16 %v1273, %v1272
    %v1279 = vpack.c.b16 %v1275, %v1274
    %v1285 = vsel %vm838, %v1249, 0
    %v1288 = vsel %vm838, %v1250, 0
    %1290 = vmatpush.bf16.msra.mxu0 0
    %1291 = vmatpush.bf16.msra.mxu0 0
    %1292 = vmatpush.bf16.msra.mxu0 0
    %1293 = vmatpush.bf16.msra.mxu0 0
    %1294 = vmatpush.bf16.msra.mxu0 %v1279
    %1295 = vmatpush.bf16.msra.mxu0 %v1278
    %1296 = vmatpush.bf16.msra.mxu0 %v1277
    %1297 = vmatpush.bf16.msra.mxu0 %v1276
    %1298 = vmatmul.bf16.gmra.mxu0 %v1285
    %v1299 = vpop.f32.mrf.mxu0
    %v1300 = vadd.f32 0.0, %v1299
    %v1301 = vpop.f32.mrf.mxu0
    %v1302 = vadd.f32 0.0, %v1301
    %1303 = vmatmul.bf16.gmra.mxu0 %v1288
    %v1304 = vpop.f32.mrf.mxu0
    %v1305 = vadd.f32 0.0, %v1304
    %v1306 = vpop.f32.mrf.mxu0
    %v1307 = vadd.f32 0.0, %v1306
    %1308 = vdwg.mxu0
    %v1309 = vadd.f32 %v1209, %v1300
    %v1310 = vadd.f32 %v1210, %v1302
    %v1311 = vadd.f32 %v1211, %v1305
    %v1312 = vadd.f32 %v1212, %v1307
    %s1313 = scalar_lea.vmem %s3, 96
    %v1314 = vld [vmem:[%s1313] sm:$0xf]
    %v1315 = vld [vmem:[%s1313 + $0x4] sm:$0xf]
    %v1316 = vld [vmem:[%s1313 + $0x8] sm:$0xf]
    %v1317 = vld [vmem:[%s1313 + $0xc] sm:$0xf]
    %v1322 = vunpack.c.l.b16 %v1314
    %v1323 = vunpack.c.l.b16 %v1315
    %v1324 = vunpack.c.l.b16 %v1316
    %v1325 = vunpack.c.l.b16 %v1317
    %v1326 = vpack.c.b16 %v1323, %v1322
    %v1327 = vpack.c.b16 %v1325, %v1324
    %1330 = vmatpush.bf16.msra.mxu0 %v721
    %1331 = vmatpush.bf16.msra.mxu0 %v720
    %1332 = vmatpush.bf16.msra.mxu0 %v719
    %1333 = vmatpush.bf16.msra.mxu0 %v718
    %1334 = vmatpush.bf16.msra.mxu0 %v717
    %1335 = vmatpush.bf16.msra.mxu0 %v716
    %1336 = vmatpush.bf16.msra.mxu0 %v715
    %1337 = vmatpush.bf16.msra.mxu0 %v714
    %1338 = vmatmul.bf16.gmra.mxu0 %v1326
    %v1339 = vpop.f32.mrf.mxu0
    %v1340 = vadd.f32 0.0, %v1339
    %v1341 = vpop.f32.mrf.mxu0
    %v1342 = vadd.f32 0.0, %v1341
    %1343 = vmatmul.bf16.gmra.mxu0 %v1327
    %v1344 = vpop.f32.mrf.mxu0
    %v1345 = vadd.f32 0.0, %v1344
    %v1346 = vpop.f32.mrf.mxu0
    %v1347 = vadd.f32 0.0, %v1346
    %1348 = vdwg.mxu0
    %v1349 = vpack.c.bf16 %v1342, %v1340
    %v1350 = vpack.c.bf16 %v1347, %v1345
    %s1351 = scalar_lea.vmem %s4, 192
    %v1352 = vld [vmem:[%s1351] sm:$0xf]
    %v1353 = vld [vmem:[%s1351 + $0x4] sm:$0xf]
    %v1354 = vld [vmem:[%s1351 + $0x8] sm:$0xf]
    %v1355 = vld [vmem:[%s1351 + $0xc] sm:$0xf]
    %v1356 = vld [vmem:[%s1351 + $0x10] sm:$0xf]
    %v1357 = vld [vmem:[%s1351 + $0x14] sm:$0xf]
    %v1358 = vld [vmem:[%s1351 + $0x18] sm:$0xf]
    %v1359 = vld [vmem:[%s1351 + $0x1c] sm:$0xf]
    %v1368 = vunpack.c.l.b16 %v1352
    %v1369 = vunpack.c.l.b16 %v1353
    %v1370 = vunpack.c.l.b16 %v1354
    %v1371 = vunpack.c.l.b16 %v1355
    %v1372 = vunpack.c.l.b16 %v1356
    %v1373 = vunpack.c.l.b16 %v1357
    %v1374 = vunpack.c.l.b16 %v1358
    %v1375 = vunpack.c.l.b16 %v1359
    %v1376 = vpack.c.b16 %v1369, %v1368
    %v1377 = vpack.c.b16 %v1371, %v1370
    %v1378 = vpack.c.b16 %v1373, %v1372
    %v1379 = vpack.c.b16 %v1375, %v1374
    %v1385 = vsel %vm838, %v1349, 0
    %v1388 = vsel %vm838, %v1350, 0
    %1390 = vmatpush.bf16.msra.mxu0 0
    %1391 = vmatpush.bf16.msra.mxu0 0
    %1392 = vmatpush.bf16.msra.mxu0 0
    %1393 = vmatpush.bf16.msra.mxu0 0
    %1394 = vmatpush.bf16.msra.mxu0 %v1379
    %1395 = vmatpush.bf16.msra.mxu0 %v1378
    %1396 = vmatpush.bf16.msra.mxu0 %v1377
    %1397 = vmatpush.bf16.msra.mxu0 %v1376
    %1398 = vmatmul.bf16.gmra.mxu0 %v1385
    %v1399 = vpop.f32.mrf.mxu0
    %v1400 = vadd.f32 0.0, %v1399
    %v1401 = vpop.f32.mrf.mxu0
    %v1402 = vadd.f32 0.0, %v1401
    %1403 = vmatmul.bf16.gmra.mxu0 %v1388
    %v1404 = vpop.f32.mrf.mxu0
    %v1405 = vadd.f32 0.0, %v1404
    %v1406 = vpop.f32.mrf.mxu0
    %v1407 = vadd.f32 0.0, %v1406
    %1408 = vdwg.mxu0
    %v1409 = vadd.f32 %v1309, %v1400
    %v1410 = vadd.f32 %v1310, %v1402
    %v1411 = vadd.f32 %v1311, %v1405
    %v1412 = vadd.f32 %v1312, %v1407
    %s1413 = scalar_lea.vmem %s3, 112
    %v1414 = vld [vmem:[%s1413] sm:$0xf]
    %v1415 = vld [vmem:[%s1413 + $0x4] sm:$0xf]
    %v1416 = vld [vmem:[%s1413 + $0x8] sm:$0xf]
    %v1417 = vld [vmem:[%s1413 + $0xc] sm:$0xf]
    %v1422 = vunpack.c.l.b16 %v1414
    %v1423 = vunpack.c.l.b16 %v1415
    %v1424 = vunpack.c.l.b16 %v1416
    %v1425 = vunpack.c.l.b16 %v1417
    %v1426 = vpack.c.b16 %v1423, %v1422
    %v1427 = vpack.c.b16 %v1425, %v1424
    %1430 = vmatpush.bf16.msra.mxu0 %v721
    %1431 = vmatpush.bf16.msra.mxu0 %v720
    %1432 = vmatpush.bf16.msra.mxu0 %v719
    %1433 = vmatpush.bf16.msra.mxu0 %v718
    %1434 = vmatpush.bf16.msra.mxu0 %v717
    %1435 = vmatpush.bf16.msra.mxu0 %v716
    %1436 = vmatpush.bf16.msra.mxu0 %v715
    %1437 = vmatpush.bf16.msra.mxu0 %v714
    %1438 = vmatmul.bf16.gmra.mxu0 %v1426
    %v1439 = vpop.f32.mrf.mxu0
    %v1440 = vadd.f32 0.0, %v1439
    %v1441 = vpop.f32.mrf.mxu0
    %v1442 = vadd.f32 0.0, %v1441
    %1443 = vmatmul.bf16.gmra.mxu0 %v1427
    %v1444 = vpop.f32.mrf.mxu0
    %v1445 = vadd.f32 0.0, %v1444
    %v1446 = vpop.f32.mrf.mxu0
    %v1447 = vadd.f32 0.0, %v1446
    %1448 = vdwg.mxu0
    %v1449 = vpack.c.bf16 %v1442, %v1440
    %v1450 = vpack.c.bf16 %v1447, %v1445
    %s1451 = scalar_lea.vmem %s4, 224
    %v1452 = vld [vmem:[%s1451] sm:$0xf]
    %v1453 = vld [vmem:[%s1451 + $0x4] sm:$0xf]
    %v1454 = vld [vmem:[%s1451 + $0x8] sm:$0xf]
    %v1455 = vld [vmem:[%s1451 + $0xc] sm:$0xf]
    %v1456 = vld [vmem:[%s1451 + $0x10] sm:$0xf]
    %v1457 = vld [vmem:[%s1451 + $0x14] sm:$0xf]
    %v1458 = vld [vmem:[%s1451 + $0x18] sm:$0xf]
    %v1459 = vld [vmem:[%s1451 + $0x1c] sm:$0xf]
    %v1468 = vunpack.c.l.b16 %v1452
    %v1469 = vunpack.c.l.b16 %v1453
    %v1470 = vunpack.c.l.b16 %v1454
    %v1471 = vunpack.c.l.b16 %v1455
    %v1472 = vunpack.c.l.b16 %v1456
    %v1473 = vunpack.c.l.b16 %v1457
    %v1474 = vunpack.c.l.b16 %v1458
    %v1475 = vunpack.c.l.b16 %v1459
    %v1476 = vpack.c.b16 %v1469, %v1468
    %v1477 = vpack.c.b16 %v1471, %v1470
    %v1478 = vpack.c.b16 %v1473, %v1472
    %v1479 = vpack.c.b16 %v1475, %v1474
    %v1485 = vsel %vm838, %v1449, 0
    %v1488 = vsel %vm838, %v1450, 0
    %1490 = vmatpush.bf16.msra.mxu0 0
    %1491 = vmatpush.bf16.msra.mxu0 0
    %1492 = vmatpush.bf16.msra.mxu0 0
    %1493 = vmatpush.bf16.msra.mxu0 0
    %1494 = vmatpush.bf16.msra.mxu0 %v1479
    %1495 = vmatpush.bf16.msra.mxu0 %v1478
    %1496 = vmatpush.bf16.msra.mxu0 %v1477
    %1497 = vmatpush.bf16.msra.mxu0 %v1476
    %1498 = vmatmul.bf16.gmra.mxu0 %v1485
    %v1499 = vpop.f32.mrf.mxu0
    %v1500 = vadd.f32 0.0, %v1499
    %v1501 = vpop.f32.mrf.mxu0
    %v1502 = vadd.f32 0.0, %v1501
    %1503 = vmatmul.bf16.gmra.mxu0 %v1488
    %v1504 = vpop.f32.mrf.mxu0
    %v1505 = vadd.f32 0.0, %v1504
    %v1506 = vpop.f32.mrf.mxu0
    %v1507 = vadd.f32 0.0, %v1506
    %1508 = vdwg.mxu0
    %v1509 = vadd.f32 %v1409, %v1500
    %v1510 = vadd.f32 %v1410, %v1502
    %v1511 = vadd.f32 %v1411, %v1505
    %v1512 = vadd.f32 %v1412, %v1507
    %s1513 = scalar_lea.vmem %s3, 128
    %v1514 = vld [vmem:[%s1513] sm:$0xf]
    %v1515 = vld [vmem:[%s1513 + $0x4] sm:$0xf]
    %v1516 = vld [vmem:[%s1513 + $0x8] sm:$0xf]
    %v1517 = vld [vmem:[%s1513 + $0xc] sm:$0xf]
    %v1522 = vunpack.c.l.b16 %v1514
    %v1523 = vunpack.c.l.b16 %v1515
    %v1524 = vunpack.c.l.b16 %v1516
    %v1525 = vunpack.c.l.b16 %v1517
    %v1526 = vpack.c.b16 %v1523, %v1522
    %v1527 = vpack.c.b16 %v1525, %v1524
    %1530 = vmatpush.bf16.msra.mxu0 %v721
    %1531 = vmatpush.bf16.msra.mxu0 %v720
    %1532 = vmatpush.bf16.msra.mxu0 %v719
    %1533 = vmatpush.bf16.msra.mxu0 %v718
    %1534 = vmatpush.bf16.msra.mxu0 %v717
    %1535 = vmatpush.bf16.msra.mxu0 %v716
    %1536 = vmatpush.bf16.msra.mxu0 %v715
    %1537 = vmatpush.bf16.msra.mxu0 %v714
    %1538 = vmatmul.bf16.gmra.mxu0 %v1526
    %v1539 = vpop.f32.mrf.mxu0
    %v1540 = vadd.f32 0.0, %v1539
    %v1541 = vpop.f32.mrf.mxu0
    %v1542 = vadd.f32 0.0, %v1541
    %1543 = vmatmul.bf16.gmra.mxu0 %v1527
    %v1544 = vpop.f32.mrf.mxu0
    %v1545 = vadd.f32 0.0, %v1544
    %v1546 = vpop.f32.mrf.mxu0
    %v1547 = vadd.f32 0.0, %v1546
    %1548 = vdwg.mxu0
    %v1549 = vpack.c.bf16 %v1542, %v1540
    %v1550 = vpack.c.bf16 %v1547, %v1545
    %s1551 = scalar_lea.vmem %s4, 256
    %v1552 = vld [vmem:[%s1551] sm:$0xf]
    %v1553 = vld [vmem:[%s1551 + $0x4] sm:$0xf]
    %v1554 = vld [vmem:[%s1551 + $0x8] sm:$0xf]
    %v1555 = vld [vmem:[%s1551 + $0xc] sm:$0xf]
    %v1556 = vld [vmem:[%s1551 + $0x10] sm:$0xf]
    %v1557 = vld [vmem:[%s1551 + $0x14] sm:$0xf]
    %v1558 = vld [vmem:[%s1551 + $0x18] sm:$0xf]
    %v1559 = vld [vmem:[%s1551 + $0x1c] sm:$0xf]
    %v1568 = vunpack.c.l.b16 %v1552
    %v1569 = vunpack.c.l.b16 %v1553
    %v1570 = vunpack.c.l.b16 %v1554
    %v1571 = vunpack.c.l.b16 %v1555
    %v1572 = vunpack.c.l.b16 %v1556
    %v1573 = vunpack.c.l.b16 %v1557
    %v1574 = vunpack.c.l.b16 %v1558
    %v1575 = vunpack.c.l.b16 %v1559
    %v1576 = vpack.c.b16 %v1569, %v1568
    %v1577 = vpack.c.b16 %v1571, %v1570
    %v1578 = vpack.c.b16 %v1573, %v1572
    %v1579 = vpack.c.b16 %v1575, %v1574
    %v1585 = vsel %vm838, %v1549, 0
    %v1588 = vsel %vm838, %v1550, 0
    %1590 = vmatpush.bf16.msra.mxu0 0
    %1591 = vmatpush.bf16.msra.mxu0 0
    %1592 = vmatpush.bf16.msra.mxu0 0
    %1593 = vmatpush.bf16.msra.mxu0 0
    %1594 = vmatpush.bf16.msra.mxu0 %v1579
    %1595 = vmatpush.bf16.msra.mxu0 %v1578
    %1596 = vmatpush.bf16.msra.mxu0 %v1577
    %1597 = vmatpush.bf16.msra.mxu0 %v1576
    %1598 = vmatmul.bf16.gmra.mxu0 %v1585
    %v1599 = vpop.f32.mrf.mxu0
    %v1600 = vadd.f32 0.0, %v1599
    %v1601 = vpop.f32.mrf.mxu0
    %v1602 = vadd.f32 0.0, %v1601
    %1603 = vmatmul.bf16.gmra.mxu0 %v1588
    %v1604 = vpop.f32.mrf.mxu0
    %v1605 = vadd.f32 0.0, %v1604
    %v1606 = vpop.f32.mrf.mxu0
    %v1607 = vadd.f32 0.0, %v1606
    %1608 = vdwg.mxu0
    %v1609 = vadd.f32 %v1509, %v1600
    %v1610 = vadd.f32 %v1510, %v1602
    %v1611 = vadd.f32 %v1511, %v1605
    %v1612 = vadd.f32 %v1512, %v1607
    %s1613 = scalar_lea.vmem %s3, 144
    %v1614 = vld [vmem:[%s1613] sm:$0xf]
    %v1615 = vld [vmem:[%s1613 + $0x4] sm:$0xf]
    %v1616 = vld [vmem:[%s1613 + $0x8] sm:$0xf]
    %v1617 = vld [vmem:[%s1613 + $0xc] sm:$0xf]
    %v1622 = vunpack.c.l.b16 %v1614
    %v1623 = vunpack.c.l.b16 %v1615
    %v1624 = vunpack.c.l.b16 %v1616
    %v1625 = vunpack.c.l.b16 %v1617
    %v1626 = vpack.c.b16 %v1623, %v1622
    %v1627 = vpack.c.b16 %v1625, %v1624
    %1630 = vmatpush.bf16.msra.mxu0 %v721
    %1631 = vmatpush.bf16.msra.mxu0 %v720
    %1632 = vmatpush.bf16.msra.mxu0 %v719
    %1633 = vmatpush.bf16.msra.mxu0 %v718
    %1634 = vmatpush.bf16.msra.mxu0 %v717
    %1635 = vmatpush.bf16.msra.mxu0 %v716
    %1636 = vmatpush.bf16.msra.mxu0 %v715
    %1637 = vmatpush.bf16.msra.mxu0 %v714
    %1638 = vmatmul.bf16.gmra.mxu0 %v1626
    %v1639 = vpop.f32.mrf.mxu0
    %v1640 = vadd.f32 0.0, %v1639
    %v1641 = vpop.f32.mrf.mxu0
    %v1642 = vadd.f32 0.0, %v1641
    %1643 = vmatmul.bf16.gmra.mxu0 %v1627
    %v1644 = vpop.f32.mrf.mxu0
    %v1645 = vadd.f32 0.0, %v1644
    %v1646 = vpop.f32.mrf.mxu0
    %v1647 = vadd.f32 0.0, %v1646
    %1648 = vdwg.mxu0
    %v1649 = vpack.c.bf16 %v1642, %v1640
    %v1650 = vpack.c.bf16 %v1647, %v1645
    %s1651 = scalar_lea.vmem %s4, 288
    %v1652 = vld [vmem:[%s1651] sm:$0xf]
    %v1653 = vld [vmem:[%s1651 + $0x4] sm:$0xf]
    %v1654 = vld [vmem:[%s1651 + $0x8] sm:$0xf]
    %v1655 = vld [vmem:[%s1651 + $0xc] sm:$0xf]
    %v1656 = vld [vmem:[%s1651 + $0x10] sm:$0xf]
    %v1657 = vld [vmem:[%s1651 + $0x14] sm:$0xf]
    %v1658 = vld [vmem:[%s1651 + $0x18] sm:$0xf]
    %v1659 = vld [vmem:[%s1651 + $0x1c] sm:$0xf]
    %v1668 = vunpack.c.l.b16 %v1652
    %v1669 = vunpack.c.l.b16 %v1653
    %v1670 = vunpack.c.l.b16 %v1654
    %v1671 = vunpack.c.l.b16 %v1655
    %v1672 = vunpack.c.l.b16 %v1656
    %v1673 = vunpack.c.l.b16 %v1657
    %v1674 = vunpack.c.l.b16 %v1658
    %v1675 = vunpack.c.l.b16 %v1659
    %v1676 = vpack.c.b16 %v1669, %v1668
    %v1677 = vpack.c.b16 %v1671, %v1670
    %v1678 = vpack.c.b16 %v1673, %v1672
    %v1679 = vpack.c.b16 %v1675, %v1674
    %v1685 = vsel %vm838, %v1649, 0
    %v1688 = vsel %vm838, %v1650, 0
    %1690 = vmatpush.bf16.msra.mxu0 0
    %1691 = vmatpush.bf16.msra.mxu0 0
    %1692 = vmatpush.bf16.msra.mxu0 0
    %1693 = vmatpush.bf16.msra.mxu0 0
    %1694 = vmatpush.bf16.msra.mxu0 %v1679
    %1695 = vmatpush.bf16.msra.mxu0 %v1678
    %1696 = vmatpush.bf16.msra.mxu0 %v1677
    %1697 = vmatpush.bf16.msra.mxu0 %v1676
    %1698 = vmatmul.bf16.gmra.mxu0 %v1685
    %v1699 = vpop.f32.mrf.mxu0
    %v1700 = vadd.f32 0.0, %v1699
    %v1701 = vpop.f32.mrf.mxu0
    %v1702 = vadd.f32 0.0, %v1701
    %1703 = vmatmul.bf16.gmra.mxu0 %v1688
    %v1704 = vpop.f32.mrf.mxu0
    %v1705 = vadd.f32 0.0, %v1704
    %v1706 = vpop.f32.mrf.mxu0
    %v1707 = vadd.f32 0.0, %v1706
    %1708 = vdwg.mxu0
    %v1709 = vadd.f32 %v1609, %v1700
    %v1710 = vadd.f32 %v1610, %v1702
    %v1711 = vadd.f32 %v1611, %v1705
    %v1712 = vadd.f32 %v1612, %v1707
    %s1713 = scalar_lea.vmem %s3, 160
    %v1714 = vld [vmem:[%s1713] sm:$0xf]
    %v1715 = vld [vmem:[%s1713 + $0x4] sm:$0xf]
    %v1716 = vld [vmem:[%s1713 + $0x8] sm:$0xf]
    %v1717 = vld [vmem:[%s1713 + $0xc] sm:$0xf]
    %v1722 = vunpack.c.l.b16 %v1714
    %v1723 = vunpack.c.l.b16 %v1715
    %v1724 = vunpack.c.l.b16 %v1716
    %v1725 = vunpack.c.l.b16 %v1717
    %v1726 = vpack.c.b16 %v1723, %v1722
    %v1727 = vpack.c.b16 %v1725, %v1724
    %1730 = vmatpush.bf16.msra.mxu0 %v721
    %1731 = vmatpush.bf16.msra.mxu0 %v720
    %1732 = vmatpush.bf16.msra.mxu0 %v719
    %1733 = vmatpush.bf16.msra.mxu0 %v718
    %1734 = vmatpush.bf16.msra.mxu0 %v717
    %1735 = vmatpush.bf16.msra.mxu0 %v716
    %1736 = vmatpush.bf16.msra.mxu0 %v715
    %1737 = vmatpush.bf16.msra.mxu0 %v714
    %1738 = vmatmul.bf16.gmra.mxu0 %v1726
    %v1739 = vpop.f32.mrf.mxu0
    %v1740 = vadd.f32 0.0, %v1739
    %v1741 = vpop.f32.mrf.mxu0
    %v1742 = vadd.f32 0.0, %v1741
    %1743 = vmatmul.bf16.gmra.mxu0 %v1727
    %v1744 = vpop.f32.mrf.mxu0
    %v1745 = vadd.f32 0.0, %v1744
    %v1746 = vpop.f32.mrf.mxu0
    %v1747 = vadd.f32 0.0, %v1746
    %1748 = vdwg.mxu0
    %v1749 = vpack.c.bf16 %v1742, %v1740
    %v1750 = vpack.c.bf16 %v1747, %v1745
    %s1751 = scalar_lea.vmem %s4, 320
    %v1752 = vld [vmem:[%s1751] sm:$0xf]
    %v1753 = vld [vmem:[%s1751 + $0x4] sm:$0xf]
    %v1754 = vld [vmem:[%s1751 + $0x8] sm:$0xf]
    %v1755 = vld [vmem:[%s1751 + $0xc] sm:$0xf]
    %v1756 = vld [vmem:[%s1751 + $0x10] sm:$0xf]
    %v1757 = vld [vmem:[%s1751 + $0x14] sm:$0xf]
    %v1758 = vld [vmem:[%s1751 + $0x18] sm:$0xf]
    %v1759 = vld [vmem:[%s1751 + $0x1c] sm:$0xf]
    %v1768 = vunpack.c.l.b16 %v1752
    %v1769 = vunpack.c.l.b16 %v1753
    %v1770 = vunpack.c.l.b16 %v1754
    %v1771 = vunpack.c.l.b16 %v1755
    %v1772 = vunpack.c.l.b16 %v1756
    %v1773 = vunpack.c.l.b16 %v1757
    %v1774 = vunpack.c.l.b16 %v1758
    %v1775 = vunpack.c.l.b16 %v1759
    %v1776 = vpack.c.b16 %v1769, %v1768
    %v1777 = vpack.c.b16 %v1771, %v1770
    %v1778 = vpack.c.b16 %v1773, %v1772
    %v1779 = vpack.c.b16 %v1775, %v1774
    %v1785 = vsel %vm838, %v1749, 0
    %v1788 = vsel %vm838, %v1750, 0
    %1790 = vmatpush.bf16.msra.mxu0 0
    %1791 = vmatpush.bf16.msra.mxu0 0
    %1792 = vmatpush.bf16.msra.mxu0 0
    %1793 = vmatpush.bf16.msra.mxu0 0
    %1794 = vmatpush.bf16.msra.mxu0 %v1779
    %1795 = vmatpush.bf16.msra.mxu0 %v1778
    %1796 = vmatpush.bf16.msra.mxu0 %v1777
    %1797 = vmatpush.bf16.msra.mxu0 %v1776
    %1798 = vmatmul.bf16.gmra.mxu0 %v1785
    %v1799 = vpop.f32.mrf.mxu0
    %v1800 = vadd.f32 0.0, %v1799
    %v1801 = vpop.f32.mrf.mxu0
    %v1802 = vadd.f32 0.0, %v1801
    %1803 = vmatmul.bf16.gmra.mxu0 %v1788
    %v1804 = vpop.f32.mrf.mxu0
    %v1805 = vadd.f32 0.0, %v1804
    %v1806 = vpop.f32.mrf.mxu0
    %v1807 = vadd.f32 0.0, %v1806
    %1808 = vdwg.mxu0
    %v1809 = vadd.f32 %v1709, %v1800
    %v1810 = vadd.f32 %v1710, %v1802
    %v1811 = vadd.f32 %v1711, %v1805
    %v1812 = vadd.f32 %v1712, %v1807
    %s1813 = scalar_lea.vmem %s3, 176
    %v1814 = vld [vmem:[%s1813] sm:$0xf]
    %v1815 = vld [vmem:[%s1813 + $0x4] sm:$0xf]
    %v1816 = vld [vmem:[%s1813 + $0x8] sm:$0xf]
    %v1817 = vld [vmem:[%s1813 + $0xc] sm:$0xf]
    %v1822 = vunpack.c.l.b16 %v1814
    %v1823 = vunpack.c.l.b16 %v1815
    %v1824 = vunpack.c.l.b16 %v1816
    %v1825 = vunpack.c.l.b16 %v1817
    %v1826 = vpack.c.b16 %v1823, %v1822
    %v1827 = vpack.c.b16 %v1825, %v1824
    %1830 = vmatpush.bf16.msra.mxu0 %v721
    %1831 = vmatpush.bf16.msra.mxu0 %v720
    %1832 = vmatpush.bf16.msra.mxu0 %v719
    %1833 = vmatpush.bf16.msra.mxu0 %v718
    %1834 = vmatpush.bf16.msra.mxu0 %v717
    %1835 = vmatpush.bf16.msra.mxu0 %v716
    %1836 = vmatpush.bf16.msra.mxu0 %v715
    %1837 = vmatpush.bf16.msra.mxu0 %v714
    %1838 = vmatmul.bf16.gmra.mxu0 %v1826
    %v1839 = vpop.f32.mrf.mxu0
    %v1840 = vadd.f32 0.0, %v1839
    %v1841 = vpop.f32.mrf.mxu0
    %v1842 = vadd.f32 0.0, %v1841
    %1843 = vmatmul.bf16.gmra.mxu0 %v1827
    %v1844 = vpop.f32.mrf.mxu0
    %v1845 = vadd.f32 0.0, %v1844
    %v1846 = vpop.f32.mrf.mxu0
    %v1847 = vadd.f32 0.0, %v1846
    %1848 = vdwg.mxu0
    %v1849 = vpack.c.bf16 %v1842, %v1840
    %v1850 = vpack.c.bf16 %v1847, %v1845
    %s1851 = scalar_lea.vmem %s4, 352
    %v1852 = vld [vmem:[%s1851] sm:$0xf]
    %v1853 = vld [vmem:[%s1851 + $0x4] sm:$0xf]
    %v1854 = vld [vmem:[%s1851 + $0x8] sm:$0xf]
    %v1855 = vld [vmem:[%s1851 + $0xc] sm:$0xf]
    %v1856 = vld [vmem:[%s1851 + $0x10] sm:$0xf]
    %v1857 = vld [vmem:[%s1851 + $0x14] sm:$0xf]
    %v1858 = vld [vmem:[%s1851 + $0x18] sm:$0xf]
    %v1859 = vld [vmem:[%s1851 + $0x1c] sm:$0xf]
    %v1868 = vunpack.c.l.b16 %v1852
    %v1869 = vunpack.c.l.b16 %v1853
    %v1870 = vunpack.c.l.b16 %v1854
    %v1871 = vunpack.c.l.b16 %v1855
    %v1872 = vunpack.c.l.b16 %v1856
    %v1873 = vunpack.c.l.b16 %v1857
    %v1874 = vunpack.c.l.b16 %v1858
    %v1875 = vunpack.c.l.b16 %v1859
    %v1876 = vpack.c.b16 %v1869, %v1868
    %v1877 = vpack.c.b16 %v1871, %v1870
    %v1878 = vpack.c.b16 %v1873, %v1872
    %v1879 = vpack.c.b16 %v1875, %v1874
    %v1885 = vsel %vm838, %v1849, 0
    %v1888 = vsel %vm838, %v1850, 0
    %1890 = vmatpush.bf16.msra.mxu0 0
    %1891 = vmatpush.bf16.msra.mxu0 0
    %1892 = vmatpush.bf16.msra.mxu0 0
    %1893 = vmatpush.bf16.msra.mxu0 0
    %1894 = vmatpush.bf16.msra.mxu0 %v1879
    %1895 = vmatpush.bf16.msra.mxu0 %v1878
    %1896 = vmatpush.bf16.msra.mxu0 %v1877
    %1897 = vmatpush.bf16.msra.mxu0 %v1876
    %1898 = vmatmul.bf16.gmra.mxu0 %v1885
    %v1899 = vpop.f32.mrf.mxu0
    %v1900 = vadd.f32 0.0, %v1899
    %v1901 = vpop.f32.mrf.mxu0
    %v1902 = vadd.f32 0.0, %v1901
    %1903 = vmatmul.bf16.gmra.mxu0 %v1888
    %v1904 = vpop.f32.mrf.mxu0
    %v1905 = vadd.f32 0.0, %v1904
    %v1906 = vpop.f32.mrf.mxu0
    %v1907 = vadd.f32 0.0, %v1906
    %1908 = vdwg.mxu0
    %v1909 = vadd.f32 %v1809, %v1900
    %v1910 = vadd.f32 %v1810, %v1902
    %v1911 = vadd.f32 %v1811, %v1905
    %v1912 = vadd.f32 %v1812, %v1907
    %s1913 = scalar_lea.vmem %s3, 192
    %v1914 = vld [vmem:[%s1913] sm:$0xf]
    %v1915 = vld [vmem:[%s1913 + $0x4] sm:$0xf]
    %v1916 = vld [vmem:[%s1913 + $0x8] sm:$0xf]
    %v1917 = vld [vmem:[%s1913 + $0xc] sm:$0xf]
    %v1922 = vunpack.c.l.b16 %v1914
    %v1923 = vunpack.c.l.b16 %v1915
    %v1924 = vunpack.c.l.b16 %v1916
    %v1925 = vunpack.c.l.b16 %v1917
    %v1926 = vpack.c.b16 %v1923, %v1922
    %v1927 = vpack.c.b16 %v1925, %v1924
    %1930 = vmatpush.bf16.msra.mxu0 %v721
    %1931 = vmatpush.bf16.msra.mxu0 %v720
    %1932 = vmatpush.bf16.msra.mxu0 %v719
    %1933 = vmatpush.bf16.msra.mxu0 %v718
    %1934 = vmatpush.bf16.msra.mxu0 %v717
    %1935 = vmatpush.bf16.msra.mxu0 %v716
    %1936 = vmatpush.bf16.msra.mxu0 %v715
    %1937 = vmatpush.bf16.msra.mxu0 %v714
    %1938 = vmatmul.bf16.gmra.mxu0 %v1926
    %v1939 = vpop.f32.mrf.mxu0
    %v1940 = vadd.f32 0.0, %v1939
    %v1941 = vpop.f32.mrf.mxu0
    %v1942 = vadd.f32 0.0, %v1941
    %1943 = vmatmul.bf16.gmra.mxu0 %v1927
    %v1944 = vpop.f32.mrf.mxu0
    %v1945 = vadd.f32 0.0, %v1944
    %v1946 = vpop.f32.mrf.mxu0
    %v1947 = vadd.f32 0.0, %v1946
    %1948 = vdwg.mxu0
    %v1949 = vpack.c.bf16 %v1942, %v1940
    %v1950 = vpack.c.bf16 %v1947, %v1945
    %s1951 = scalar_lea.vmem %s4, 384
    %v1952 = vld [vmem:[%s1951] sm:$0xf]
    %v1953 = vld [vmem:[%s1951 + $0x4] sm:$0xf]
    %v1954 = vld [vmem:[%s1951 + $0x8] sm:$0xf]
    %v1955 = vld [vmem:[%s1951 + $0xc] sm:$0xf]
    %v1956 = vld [vmem:[%s1951 + $0x10] sm:$0xf]
    %v1957 = vld [vmem:[%s1951 + $0x14] sm:$0xf]
    %v1958 = vld [vmem:[%s1951 + $0x18] sm:$0xf]
    %v1959 = vld [vmem:[%s1951 + $0x1c] sm:$0xf]
    %v1968 = vunpack.c.l.b16 %v1952
    %v1969 = vunpack.c.l.b16 %v1953
    %v1970 = vunpack.c.l.b16 %v1954
    %v1971 = vunpack.c.l.b16 %v1955
    %v1972 = vunpack.c.l.b16 %v1956
    %v1973 = vunpack.c.l.b16 %v1957
    %v1974 = vunpack.c.l.b16 %v1958
    %v1975 = vunpack.c.l.b16 %v1959
    %v1976 = vpack.c.b16 %v1969, %v1968
    %v1977 = vpack.c.b16 %v1971, %v1970
    %v1978 = vpack.c.b16 %v1973, %v1972
    %v1979 = vpack.c.b16 %v1975, %v1974
    %v1985 = vsel %vm838, %v1949, 0
    %v1988 = vsel %vm838, %v1950, 0
    %1990 = vmatpush.bf16.msra.mxu0 0
    %1991 = vmatpush.bf16.msra.mxu0 0
    %1992 = vmatpush.bf16.msra.mxu0 0
    %1993 = vmatpush.bf16.msra.mxu0 0
    %1994 = vmatpush.bf16.msra.mxu0 %v1979
    %1995 = vmatpush.bf16.msra.mxu0 %v1978
    %1996 = vmatpush.bf16.msra.mxu0 %v1977
    %1997 = vmatpush.bf16.msra.mxu0 %v1976
    %1998 = vmatmul.bf16.gmra.mxu0 %v1985
    %v1999 = vpop.f32.mrf.mxu0
    %v2000 = vadd.f32 0.0, %v1999
    %v2001 = vpop.f32.mrf.mxu0
    %v2002 = vadd.f32 0.0, %v2001
    %2003 = vmatmul.bf16.gmra.mxu0 %v1988
    %v2004 = vpop.f32.mrf.mxu0
    %v2005 = vadd.f32 0.0, %v2004
    %v2006 = vpop.f32.mrf.mxu0
    %v2007 = vadd.f32 0.0, %v2006
    %2008 = vdwg.mxu0
    %v2009 = vadd.f32 %v1909, %v2000
    %v2010 = vadd.f32 %v1910, %v2002
    %v2011 = vadd.f32 %v1911, %v2005
    %v2012 = vadd.f32 %v1912, %v2007
    %s2013 = scalar_lea.vmem %s3, 208
    %v2014 = vld [vmem:[%s2013] sm:$0xf]
    %v2015 = vld [vmem:[%s2013 + $0x4] sm:$0xf]
    %v2016 = vld [vmem:[%s2013 + $0x8] sm:$0xf]
    %v2017 = vld [vmem:[%s2013 + $0xc] sm:$0xf]
    %v2022 = vunpack.c.l.b16 %v2014
    %v2023 = vunpack.c.l.b16 %v2015
    %v2024 = vunpack.c.l.b16 %v2016
    %v2025 = vunpack.c.l.b16 %v2017
    %v2026 = vpack.c.b16 %v2023, %v2022
    %v2027 = vpack.c.b16 %v2025, %v2024
    %2030 = vmatpush.bf16.msra.mxu0 %v721
    %2031 = vmatpush.bf16.msra.mxu0 %v720
    %2032 = vmatpush.bf16.msra.mxu0 %v719
    %2033 = vmatpush.bf16.msra.mxu0 %v718
    %2034 = vmatpush.bf16.msra.mxu0 %v717
    %2035 = vmatpush.bf16.msra.mxu0 %v716
    %2036 = vmatpush.bf16.msra.mxu0 %v715
    %2037 = vmatpush.bf16.msra.mxu0 %v714
    %2038 = vmatmul.bf16.gmra.mxu0 %v2026
    %v2039 = vpop.f32.mrf.mxu0
    %v2040 = vadd.f32 0.0, %v2039
    %v2041 = vpop.f32.mrf.mxu0
    %v2042 = vadd.f32 0.0, %v2041
    %2043 = vmatmul.bf16.gmra.mxu0 %v2027
    %v2044 = vpop.f32.mrf.mxu0
    %v2045 = vadd.f32 0.0, %v2044
    %v2046 = vpop.f32.mrf.mxu0
    %v2047 = vadd.f32 0.0, %v2046
    %2048 = vdwg.mxu0
    %v2049 = vpack.c.bf16 %v2042, %v2040
    %v2050 = vpack.c.bf16 %v2047, %v2045
    %s2051 = scalar_lea.vmem %s4, 416
    %v2052 = vld [vmem:[%s2051] sm:$0xf]
    %v2053 = vld [vmem:[%s2051 + $0x4] sm:$0xf]
    %v2054 = vld [vmem:[%s2051 + $0x8] sm:$0xf]
    %v2055 = vld [vmem:[%s2051 + $0xc] sm:$0xf]
    %v2056 = vld [vmem:[%s2051 + $0x10] sm:$0xf]
    %v2057 = vld [vmem:[%s2051 + $0x14] sm:$0xf]
    %v2058 = vld [vmem:[%s2051 + $0x18] sm:$0xf]
    %v2059 = vld [vmem:[%s2051 + $0x1c] sm:$0xf]
    %v2068 = vunpack.c.l.b16 %v2052
    %v2069 = vunpack.c.l.b16 %v2053
    %v2070 = vunpack.c.l.b16 %v2054
    %v2071 = vunpack.c.l.b16 %v2055
    %v2072 = vunpack.c.l.b16 %v2056
    %v2073 = vunpack.c.l.b16 %v2057
    %v2074 = vunpack.c.l.b16 %v2058
    %v2075 = vunpack.c.l.b16 %v2059
    %v2076 = vpack.c.b16 %v2069, %v2068
    %v2077 = vpack.c.b16 %v2071, %v2070
    %v2078 = vpack.c.b16 %v2073, %v2072
    %v2079 = vpack.c.b16 %v2075, %v2074
    %v2085 = vsel %vm838, %v2049, 0
    %v2088 = vsel %vm838, %v2050, 0
    %2090 = vmatpush.bf16.msra.mxu0 0
    %2091 = vmatpush.bf16.msra.mxu0 0
    %2092 = vmatpush.bf16.msra.mxu0 0
    %2093 = vmatpush.bf16.msra.mxu0 0
    %2094 = vmatpush.bf16.msra.mxu0 %v2079
    %2095 = vmatpush.bf16.msra.mxu0 %v2078
    %2096 = vmatpush.bf16.msra.mxu0 %v2077
    %2097 = vmatpush.bf16.msra.mxu0 %v2076
    %2098 = vmatmul.bf16.gmra.mxu0 %v2085
    %v2099 = vpop.f32.mrf.mxu0
    %v2100 = vadd.f32 0.0, %v2099
    %v2101 = vpop.f32.mrf.mxu0
    %v2102 = vadd.f32 0.0, %v2101
    %2103 = vmatmul.bf16.gmra.mxu0 %v2088
    %v2104 = vpop.f32.mrf.mxu0
    %v2105 = vadd.f32 0.0, %v2104
    %v2106 = vpop.f32.mrf.mxu0
    %v2107 = vadd.f32 0.0, %v2106
    %2108 = vdwg.mxu0
    %v2109 = vadd.f32 %v2009, %v2100
    %v2110 = vadd.f32 %v2010, %v2102
    %v2111 = vadd.f32 %v2011, %v2105
    %v2112 = vadd.f32 %v2012, %v2107
    %s2113 = scalar_lea.vmem %s3, 224
    %v2114 = vld [vmem:[%s2113] sm:$0xf]
    %v2115 = vld [vmem:[%s2113 + $0x4] sm:$0xf]
    %v2116 = vld [vmem:[%s2113 + $0x8] sm:$0xf]
    %v2117 = vld [vmem:[%s2113 + $0xc] sm:$0xf]
    %v2122 = vunpack.c.l.b16 %v2114
    %v2123 = vunpack.c.l.b16 %v2115
    %v2124 = vunpack.c.l.b16 %v2116
    %v2125 = vunpack.c.l.b16 %v2117
    %v2126 = vpack.c.b16 %v2123, %v2122
    %v2127 = vpack.c.b16 %v2125, %v2124
    %2130 = vmatpush.bf16.msra.mxu0 %v721
    %2131 = vmatpush.bf16.msra.mxu0 %v720
    %2132 = vmatpush.bf16.msra.mxu0 %v719
    %2133 = vmatpush.bf16.msra.mxu0 %v718
    %2134 = vmatpush.bf16.msra.mxu0 %v717
    %2135 = vmatpush.bf16.msra.mxu0 %v716
    %2136 = vmatpush.bf16.msra.mxu0 %v715
    %2137 = vmatpush.bf16.msra.mxu0 %v714
    %2138 = vmatmul.bf16.gmra.mxu0 %v2126
    %v2139 = vpop.f32.mrf.mxu0
    %v2140 = vadd.f32 0.0, %v2139
    %v2141 = vpop.f32.mrf.mxu0
    %v2142 = vadd.f32 0.0, %v2141
    %2143 = vmatmul.bf16.gmra.mxu0 %v2127
    %v2144 = vpop.f32.mrf.mxu0
    %v2145 = vadd.f32 0.0, %v2144
    %v2146 = vpop.f32.mrf.mxu0
    %v2147 = vadd.f32 0.0, %v2146
    %2148 = vdwg.mxu0
    %v2149 = vpack.c.bf16 %v2142, %v2140
    %v2150 = vpack.c.bf16 %v2147, %v2145
    %s2151 = scalar_lea.vmem %s4, 448
    %v2152 = vld [vmem:[%s2151] sm:$0xf]
    %v2153 = vld [vmem:[%s2151 + $0x4] sm:$0xf]
    %v2154 = vld [vmem:[%s2151 + $0x8] sm:$0xf]
    %v2155 = vld [vmem:[%s2151 + $0xc] sm:$0xf]
    %v2156 = vld [vmem:[%s2151 + $0x10] sm:$0xf]
    %v2157 = vld [vmem:[%s2151 + $0x14] sm:$0xf]
    %v2158 = vld [vmem:[%s2151 + $0x18] sm:$0xf]
    %v2159 = vld [vmem:[%s2151 + $0x1c] sm:$0xf]
    %v2168 = vunpack.c.l.b16 %v2152
    %v2169 = vunpack.c.l.b16 %v2153
    %v2170 = vunpack.c.l.b16 %v2154
    %v2171 = vunpack.c.l.b16 %v2155
    %v2172 = vunpack.c.l.b16 %v2156
    %v2173 = vunpack.c.l.b16 %v2157
    %v2174 = vunpack.c.l.b16 %v2158
    %v2175 = vunpack.c.l.b16 %v2159
    %v2176 = vpack.c.b16 %v2169, %v2168
    %v2177 = vpack.c.b16 %v2171, %v2170
    %v2178 = vpack.c.b16 %v2173, %v2172
    %v2179 = vpack.c.b16 %v2175, %v2174
    %v2185 = vsel %vm838, %v2149, 0
    %v2188 = vsel %vm838, %v2150, 0
    %2190 = vmatpush.bf16.msra.mxu0 0
    %2191 = vmatpush.bf16.msra.mxu0 0
    %2192 = vmatpush.bf16.msra.mxu0 0
    %2193 = vmatpush.bf16.msra.mxu0 0
    %2194 = vmatpush.bf16.msra.mxu0 %v2179
    %2195 = vmatpush.bf16.msra.mxu0 %v2178
    %2196 = vmatpush.bf16.msra.mxu0 %v2177
    %2197 = vmatpush.bf16.msra.mxu0 %v2176
    %2198 = vmatmul.bf16.gmra.mxu0 %v2185
    %v2199 = vpop.f32.mrf.mxu0
    %v2200 = vadd.f32 0.0, %v2199
    %v2201 = vpop.f32.mrf.mxu0
    %v2202 = vadd.f32 0.0, %v2201
    %2203 = vmatmul.bf16.gmra.mxu0 %v2188
    %v2204 = vpop.f32.mrf.mxu0
    %v2205 = vadd.f32 0.0, %v2204
    %v2206 = vpop.f32.mrf.mxu0
    %v2207 = vadd.f32 0.0, %v2206
    %2208 = vdwg.mxu0
    %v2209 = vadd.f32 %v2109, %v2200
    %v2210 = vadd.f32 %v2110, %v2202
    %v2211 = vadd.f32 %v2111, %v2205
    %v2212 = vadd.f32 %v2112, %v2207
    %s2213 = scalar_lea.vmem %s3, 240
    %v2214 = vld [vmem:[%s2213] sm:$0xf]
    %v2215 = vld [vmem:[%s2213 + $0x4] sm:$0xf]
    %v2216 = vld [vmem:[%s2213 + $0x8] sm:$0xf]
    %v2217 = vld [vmem:[%s2213 + $0xc] sm:$0xf]
    %v2222 = vunpack.c.l.b16 %v2214
    %v2223 = vunpack.c.l.b16 %v2215
    %v2224 = vunpack.c.l.b16 %v2216
    %v2225 = vunpack.c.l.b16 %v2217
    %v2226 = vpack.c.b16 %v2223, %v2222
    %v2227 = vpack.c.b16 %v2225, %v2224
    %2230 = vmatpush.bf16.msra.mxu0 %v721
    %2231 = vmatpush.bf16.msra.mxu0 %v720
    %2232 = vmatpush.bf16.msra.mxu0 %v719
    %2233 = vmatpush.bf16.msra.mxu0 %v718
    %2234 = vmatpush.bf16.msra.mxu0 %v717
    %2235 = vmatpush.bf16.msra.mxu0 %v716
    %2236 = vmatpush.bf16.msra.mxu0 %v715
    %2237 = vmatpush.bf16.msra.mxu0 %v714
    %2238 = vmatmul.bf16.gmra.mxu0 %v2226
    %v2239 = vpop.f32.mrf.mxu0
    %v2240 = vadd.f32 0.0, %v2239
    %v2241 = vpop.f32.mrf.mxu0
    %v2242 = vadd.f32 0.0, %v2241
    %2243 = vmatmul.bf16.gmra.mxu0 %v2227
    %v2244 = vpop.f32.mrf.mxu0
    %v2245 = vadd.f32 0.0, %v2244
    %v2246 = vpop.f32.mrf.mxu0
    %v2247 = vadd.f32 0.0, %v2246
    %2248 = vdwg.mxu0
    %v2249 = vpack.c.bf16 %v2242, %v2240
    %v2250 = vpack.c.bf16 %v2247, %v2245
    %s2251 = scalar_lea.vmem %s4, 480
    %v2252 = vld [vmem:[%s2251] sm:$0xf]
    %v2253 = vld [vmem:[%s2251 + $0x4] sm:$0xf]
    %v2254 = vld [vmem:[%s2251 + $0x8] sm:$0xf]
    %v2255 = vld [vmem:[%s2251 + $0xc] sm:$0xf]
    %v2256 = vld [vmem:[%s2251 + $0x10] sm:$0xf]
    %v2257 = vld [vmem:[%s2251 + $0x14] sm:$0xf]
    %v2258 = vld [vmem:[%s2251 + $0x18] sm:$0xf]
    %v2259 = vld [vmem:[%s2251 + $0x1c] sm:$0xf]
    %v2268 = vunpack.c.l.b16 %v2252
    %v2269 = vunpack.c.l.b16 %v2253
    %v2270 = vunpack.c.l.b16 %v2254
    %v2271 = vunpack.c.l.b16 %v2255
    %v2272 = vunpack.c.l.b16 %v2256
    %v2273 = vunpack.c.l.b16 %v2257
    %v2274 = vunpack.c.l.b16 %v2258
    %v2275 = vunpack.c.l.b16 %v2259
    %v2276 = vpack.c.b16 %v2269, %v2268
    %v2277 = vpack.c.b16 %v2271, %v2270
    %v2278 = vpack.c.b16 %v2273, %v2272
    %v2279 = vpack.c.b16 %v2275, %v2274
    %v2285 = vsel %vm838, %v2249, 0
    %v2288 = vsel %vm838, %v2250, 0
    %2290 = vmatpush.bf16.msra.mxu0 0
    %2291 = vmatpush.bf16.msra.mxu0 0
    %2292 = vmatpush.bf16.msra.mxu0 0
    %2293 = vmatpush.bf16.msra.mxu0 0
    %2294 = vmatpush.bf16.msra.mxu0 %v2279
    %2295 = vmatpush.bf16.msra.mxu0 %v2278
    %2296 = vmatpush.bf16.msra.mxu0 %v2277
    %2297 = vmatpush.bf16.msra.mxu0 %v2276
    %2298 = vmatmul.bf16.gmra.mxu0 %v2285
    %v2299 = vpop.f32.mrf.mxu0
    %v2300 = vadd.f32 0.0, %v2299
    %v2301 = vpop.f32.mrf.mxu0
    %v2302 = vadd.f32 0.0, %v2301
    %2303 = vmatmul.bf16.gmra.mxu0 %v2288
    %v2304 = vpop.f32.mrf.mxu0
    %v2305 = vadd.f32 0.0, %v2304
    %v2306 = vpop.f32.mrf.mxu0
    %v2307 = vadd.f32 0.0, %v2306
    %2308 = vdwg.mxu0
    %v2309 = vadd.f32 %v2209, %v2300
    %v2310 = vadd.f32 %v2210, %v2302
    %v2311 = vadd.f32 %v2211, %v2305
    %v2312 = vadd.f32 %v2212, %v2307
    %v2313 = vld [vmem:[%s5] sm:$0x1]
    %v2315 = vperm.slane %v2313, 0
    %v2317 = vadd.f32 %v2309, %v2315
    %v2318 = vadd.f32 %v2310, %v2315
    %v2319 = vadd.f32 %v2311, %v2315
    %v2320 = vadd.f32 %v2312, %v2315
    %v2321 = vmul.f32 %v2317, 0.2
    %v2322 = vmul.f32 %v2318, 0.2
    %v2323 = vmul.f32 %v2319, 0.2
    %v2324 = vmul.f32 %v2320, 0.2
    %v2325 = vmax.f32 %v2317, %v2321
    %v2326 = vmax.f32 %v2318, %v2322
    %v2327 = vmax.f32 %v2319, %v2323
    %v2328 = vmax.f32 %v2320, %v2324
    %v2329 = vpack.c.bf16 %v2326, %v2325
    %v2330 = vpack.c.bf16 %v2328, %v2327
    %v2331 = vld [vmem:[%s6] sm:$0xf]
    %v2332 = vld [vmem:[%s6 + $0x4] sm:$0xf]
    %v2333 = vld [vmem:[%s6 + $0x8] sm:$0xf]
    %v2334 = vld [vmem:[%s6 + $0xc] sm:$0xf]
    %v2339 = vunpack.c.l.b16 %v2331
    %v2340 = vunpack.c.l.b16 %v2332
    %v2341 = vunpack.c.l.b16 %v2333
    %v2342 = vunpack.c.l.b16 %v2334
    %v2343 = vpack.c.b16 %v2340, %v2339
    %v2344 = vpack.c.b16 %v2342, %v2341
    %vm2345 = vcmask 261120
    %v2347 = vsel %vm2345, %v2343, 0
    %v2350 = vsel %vm2345, %v2344, 0
    %2352 = vmatpush.bf16.msra.mxu0 0
    %2353 = vmatpush.bf16.msra.mxu0 0
    %2354 = vmatpush.bf16.msra.mxu0 0
    %2355 = vmatpush.bf16.msra.mxu0 0
    %2356 = vmatpush.bf16.msra.mxu0 0
    %2357 = vmatpush.bf16.msra.mxu0 0
    %2358 = vmatpush.bf16.msra.mxu0 %v2330
    %2359 = vmatpush.bf16.msra.mxu0 %v2329
    %2360 = vmatmul.bf16.gmra.mxu0 %v2347
    %v2361 = vpop.f32.mrf.mxu0
    %v2362 = vadd.f32 0.0, %v2361
    %v2363 = vpop.f32.mrf.mxu0
    %v2364 = vadd.f32 0.0, %v2363
    %2365 = vmatmul.bf16.gmra.mxu0 %v2350
    %v2366 = vpop.f32.mrf.mxu0
    %v2367 = vadd.f32 0.0, %v2366
    %v2368 = vpop.f32.mrf.mxu0
    %v2369 = vadd.f32 0.0, %v2368
    %2370 = vdwg.mxu0
    %v2371 = vpack.c.bf16 %v2364, %v2362
    %v2372 = vpack.c.bf16 %v2369, %v2367
    %v2373 = vld [vmem:[%s7] sm:$0xf]
    %v2374 = vld [vmem:[%s7 + $0x4] sm:$0xf]
    %v2375 = vld [vmem:[%s7 + $0x8] sm:$0xf]
    %v2376 = vld [vmem:[%s7 + $0xc] sm:$0xf]
    %v2377 = vld [vmem:[%s7 + $0x10] sm:$0xf]
    %v2378 = vld [vmem:[%s7 + $0x14] sm:$0xf]
    %v2379 = vld [vmem:[%s7 + $0x18] sm:$0xf]
    %v2380 = vld [vmem:[%s7 + $0x1c] sm:$0xf]
    %v2381 = vld [vmem:[%s7 + $0x20] sm:$0xf]
    %v2382 = vld [vmem:[%s7 + $0x24] sm:$0xf]
    %v2383 = vld [vmem:[%s7 + $0x28] sm:$0xf]
    %v2384 = vld [vmem:[%s7 + $0x2c] sm:$0xf]
    %v2385 = vld [vmem:[%s7 + $0x30] sm:$0xf]
    %v2386 = vld [vmem:[%s7 + $0x34] sm:$0xf]
    %v2387 = vld [vmem:[%s7 + $0x38] sm:$0xf]
    %v2388 = vld [vmem:[%s7 + $0x3c] sm:$0xf]
    %s2389 = scalar_lea.vmem %s6, 16
    %v2390 = vld [vmem:[%s2389] sm:$0xf]
    %v2391 = vld [vmem:[%s2389 + $0x4] sm:$0xf]
    %v2392 = vld [vmem:[%s2389 + $0x8] sm:$0xf]
    %v2393 = vld [vmem:[%s2389 + $0xc] sm:$0xf]
    %v2398 = vunpack.c.l.b16 %v2390
    %v2399 = vunpack.c.l.b16 %v2391
    %v2400 = vunpack.c.l.b16 %v2392
    %v2401 = vunpack.c.l.b16 %v2393
    %v2402 = vpack.c.b16 %v2399, %v2398
    %v2403 = vpack.c.b16 %v2401, %v2400
    %v2405 = vsel %vm2345, %v2402, 0
    %v2408 = vsel %vm2345, %v2403, 0
    %2410 = vmatpush.bf16.msra.mxu0 0
    %2411 = vmatpush.bf16.msra.mxu0 0
    %2412 = vmatpush.bf16.msra.mxu0 0
    %2413 = vmatpush.bf16.msra.mxu0 0
    %2414 = vmatpush.bf16.msra.mxu0 0
    %2415 = vmatpush.bf16.msra.mxu0 0
    %2416 = vmatpush.bf16.msra.mxu0 %v2330
    %2417 = vmatpush.bf16.msra.mxu0 %v2329
    %2418 = vmatmul.bf16.gmra.mxu0 %v2405
    %v2419 = vpop.f32.mrf.mxu0
    %v2420 = vadd.f32 0.0, %v2419
    %v2421 = vpop.f32.mrf.mxu0
    %v2422 = vadd.f32 0.0, %v2421
    %2423 = vmatmul.bf16.gmra.mxu0 %v2408
    %v2424 = vpop.f32.mrf.mxu0
    %v2425 = vadd.f32 0.0, %v2424
    %v2426 = vpop.f32.mrf.mxu0
    %v2427 = vadd.f32 0.0, %v2426
    %2428 = vdwg.mxu0
    %v2429 = vpack.c.bf16 %v2422, %v2420
    %v2430 = vpack.c.bf16 %v2427, %v2425
    %s2431 = scalar_lea.vmem %s7, 64
    %v2432 = vld [vmem:[%s2431] sm:$0xf]
    %v2433 = vld [vmem:[%s2431 + $0x4] sm:$0xf]
    %v2434 = vld [vmem:[%s2431 + $0x8] sm:$0xf]
    %v2435 = vld [vmem:[%s2431 + $0xc] sm:$0xf]
    %v2436 = vld [vmem:[%s2431 + $0x10] sm:$0xf]
    %v2437 = vld [vmem:[%s2431 + $0x14] sm:$0xf]
    %v2438 = vld [vmem:[%s2431 + $0x18] sm:$0xf]
    %v2439 = vld [vmem:[%s2431 + $0x1c] sm:$0xf]
    %v2440 = vld [vmem:[%s2431 + $0x20] sm:$0xf]
    %v2441 = vld [vmem:[%s2431 + $0x24] sm:$0xf]
    %v2442 = vld [vmem:[%s2431 + $0x28] sm:$0xf]
    %v2443 = vld [vmem:[%s2431 + $0x2c] sm:$0xf]
    %v2444 = vld [vmem:[%s2431 + $0x30] sm:$0xf]
    %v2445 = vld [vmem:[%s2431 + $0x34] sm:$0xf]
    %v2446 = vld [vmem:[%s2431 + $0x38] sm:$0xf]
    %v2447 = vld [vmem:[%s2431 + $0x3c] sm:$0xf]
    %v2464 = vunpack.c.l.b16 %v2432
    %v2465 = vunpack.c.l.b16 %v2433
    %v2466 = vunpack.c.l.b16 %v2434
    %v2467 = vunpack.c.l.b16 %v2435
    %v2468 = vunpack.c.l.b16 %v2436
    %v2469 = vunpack.c.l.b16 %v2437
    %v2470 = vunpack.c.l.b16 %v2438
    %v2471 = vunpack.c.l.b16 %v2439
    %v2472 = vunpack.c.l.b16 %v2440
    %v2473 = vunpack.c.l.b16 %v2441
    %v2474 = vunpack.c.l.b16 %v2442
    %v2475 = vunpack.c.l.b16 %v2443
    %v2476 = vunpack.c.l.b16 %v2444
    %v2477 = vunpack.c.l.b16 %v2445
    %v2478 = vunpack.c.l.b16 %v2446
    %v2479 = vunpack.c.l.b16 %v2447
    %v2480 = vpack.c.b16 %v2465, %v2464
    %v2481 = vpack.c.b16 %v2467, %v2466
    %v2482 = vpack.c.b16 %v2469, %v2468
    %v2483 = vpack.c.b16 %v2471, %v2470
    %v2484 = vpack.c.b16 %v2473, %v2472
    %v2485 = vpack.c.b16 %v2475, %v2474
    %v2486 = vpack.c.b16 %v2477, %v2476
    %v2487 = vpack.c.b16 %v2479, %v2478
    %2496 = vmatpush.bf16.msra.mxu0 %v2487
    %2497 = vmatpush.bf16.msra.mxu0 %v2486
    %2498 = vmatpush.bf16.msra.mxu0 %v2485
    %2499 = vmatpush.bf16.msra.mxu0 %v2484
    %2500 = vmatpush.bf16.msra.mxu0 %v2483
    %2501 = vmatpush.bf16.msra.mxu0 %v2482
    %2502 = vmatpush.bf16.msra.mxu0 %v2481
    %2503 = vmatpush.bf16.msra.mxu0 %v2480
    %2504 = vmatmul.bf16.gmra.mxu0 %v2429
    %v2505 = vpop.f32.mrf.mxu0
    %v2506 = vadd.f32 0.0, %v2505
    %v2507 = vpop.f32.mrf.mxu0
    %v2508 = vadd.f32 0.0, %v2507
    %2509 = vmatmul.bf16.gmra.mxu0 %v2430
    %v2510 = vpop.f32.mrf.mxu0
    %v2511 = vadd.f32 0.0, %v2510
    %v2512 = vpop.f32.mrf.mxu0
    %v2513 = vadd.f32 0.0, %v2512
    %2514 = vdwg.mxu0
    %v2531 = vunpack.c.l.b16 %v2373
    %v2532 = vunpack.c.l.b16 %v2374
    %v2533 = vunpack.c.l.b16 %v2375
    %v2534 = vunpack.c.l.b16 %v2376
    %v2535 = vunpack.c.l.b16 %v2377
    %v2536 = vunpack.c.l.b16 %v2378
    %v2537 = vunpack.c.l.b16 %v2379
    %v2538 = vunpack.c.l.b16 %v2380
    %v2539 = vunpack.c.l.b16 %v2381
    %v2540 = vunpack.c.l.b16 %v2382
    %v2541 = vunpack.c.l.b16 %v2383
    %v2542 = vunpack.c.l.b16 %v2384
    %v2543 = vunpack.c.l.b16 %v2385
    %v2544 = vunpack.c.l.b16 %v2386
    %v2545 = vunpack.c.l.b16 %v2387
    %v2546 = vunpack.c.l.b16 %v2388
    %v2547 = vpack.c.b16 %v2532, %v2531
    %v2548 = vpack.c.b16 %v2534, %v2533
    %v2549 = vpack.c.b16 %v2536, %v2535
    %v2550 = vpack.c.b16 %v2538, %v2537
    %v2551 = vpack.c.b16 %v2540, %v2539
    %v2552 = vpack.c.b16 %v2542, %v2541
    %v2553 = vpack.c.b16 %v2544, %v2543
    %v2554 = vpack.c.b16 %v2546, %v2545
    %2563 = vmatpush.bf16.msra.mxu0 %v2554
    %2564 = vmatpush.bf16.msra.mxu0 %v2553
    %2565 = vmatpush.bf16.msra.mxu0 %v2552
    %2566 = vmatpush.bf16.msra.mxu0 %v2551
    %2567 = vmatpush.bf16.msra.mxu0 %v2550
    %2568 = vmatpush.bf16.msra.mxu0 %v2549
    %2569 = vmatpush.bf16.msra.mxu0 %v2548
    %2570 = vmatpush.bf16.msra.mxu0 %v2547
    %2571 = vmatmul.bf16.gmra.mxu0 %v2371
    %v2572 = vpop.f32.mrf.mxu0
    %v2573 = vadd.f32 %v2506, %v2572
    %v2574 = vpop.f32.mrf.mxu0
    %v2575 = vadd.f32 %v2508, %v2574
    %2576 = vmatmul.bf16.gmra.mxu0 %v2372
    %v2577 = vpop.f32.mrf.mxu0
    %v2578 = vadd.f32 %v2511, %v2577
    %v2579 = vpop.f32.mrf.mxu0
    %v2580 = vadd.f32 %v2513, %v2579
    %2581 = vdwg.mxu0
    %s2582 = scalar_lea.vmem %s6, 32
    %v2583 = vld [vmem:[%s2582] sm:$0xf]
    %v2584 = vld [vmem:[%s2582 + $0x4] sm:$0xf]
    %v2585 = vld [vmem:[%s2582 + $0x8] sm:$0xf]
    %v2586 = vld [vmem:[%s2582 + $0xc] sm:$0xf]
    %v2591 = vunpack.c.l.b16 %v2583
    %v2592 = vunpack.c.l.b16 %v2584
    %v2593 = vunpack.c.l.b16 %v2585
    %v2594 = vunpack.c.l.b16 %v2586
    %v2595 = vpack.c.b16 %v2592, %v2591
    %v2596 = vpack.c.b16 %v2594, %v2593
    %v2598 = vsel %vm2345, %v2595, 0
    %v2601 = vsel %vm2345, %v2596, 0
    %2603 = vmatpush.bf16.msra.mxu0 0
    %2604 = vmatpush.bf16.msra.mxu0 0
    %2605 = vmatpush.bf16.msra.mxu0 0
    %2606 = vmatpush.bf16.msra.mxu0 0
    %2607 = vmatpush.bf16.msra.mxu0 0
    %2608 = vmatpush.bf16.msra.mxu0 0
    %2609 = vmatpush.bf16.msra.mxu0 %v2330
    %2610 = vmatpush.bf16.msra.mxu0 %v2329
    %2611 = vmatmul.bf16.gmra.mxu0 %v2598
    %v2612 = vpop.f32.mrf.mxu0
    %v2613 = vadd.f32 0.0, %v2612
    %v2614 = vpop.f32.mrf.mxu0
    %v2615 = vadd.f32 0.0, %v2614
    %2616 = vmatmul.bf16.gmra.mxu0 %v2601
    %v2617 = vpop.f32.mrf.mxu0
    %v2618 = vadd.f32 0.0, %v2617
    %v2619 = vpop.f32.mrf.mxu0
    %v2620 = vadd.f32 0.0, %v2619
    %2621 = vdwg.mxu0
    %v2622 = vpack.c.bf16 %v2615, %v2613
    %v2623 = vpack.c.bf16 %v2620, %v2618
    %s2624 = scalar_lea.vmem %s7, 128
    %v2625 = vld [vmem:[%s2624] sm:$0xf]
    %v2626 = vld [vmem:[%s2624 + $0x4] sm:$0xf]
    %v2627 = vld [vmem:[%s2624 + $0x8] sm:$0xf]
    %v2628 = vld [vmem:[%s2624 + $0xc] sm:$0xf]
    %v2629 = vld [vmem:[%s2624 + $0x10] sm:$0xf]
    %v2630 = vld [vmem:[%s2624 + $0x14] sm:$0xf]
    %v2631 = vld [vmem:[%s2624 + $0x18] sm:$0xf]
    %v2632 = vld [vmem:[%s2624 + $0x1c] sm:$0xf]
    %v2633 = vld [vmem:[%s2624 + $0x20] sm:$0xf]
    %v2634 = vld [vmem:[%s2624 + $0x24] sm:$0xf]
    %v2635 = vld [vmem:[%s2624 + $0x28] sm:$0xf]
    %v2636 = vld [vmem:[%s2624 + $0x2c] sm:$0xf]
    %v2637 = vld [vmem:[%s2624 + $0x30] sm:$0xf]
    %v2638 = vld [vmem:[%s2624 + $0x34] sm:$0xf]
    %v2639 = vld [vmem:[%s2624 + $0x38] sm:$0xf]
    %v2640 = vld [vmem:[%s2624 + $0x3c] sm:$0xf]
    %v2657 = vunpack.c.l.b16 %v2625
    %v2658 = vunpack.c.l.b16 %v2626
    %v2659 = vunpack.c.l.b16 %v2627
    %v2660 = vunpack.c.l.b16 %v2628
    %v2661 = vunpack.c.l.b16 %v2629
    %v2662 = vunpack.c.l.b16 %v2630
    %v2663 = vunpack.c.l.b16 %v2631
    %v2664 = vunpack.c.l.b16 %v2632
    %v2665 = vunpack.c.l.b16 %v2633
    %v2666 = vunpack.c.l.b16 %v2634
    %v2667 = vunpack.c.l.b16 %v2635
    %v2668 = vunpack.c.l.b16 %v2636
    %v2669 = vunpack.c.l.b16 %v2637
    %v2670 = vunpack.c.l.b16 %v2638
    %v2671 = vunpack.c.l.b16 %v2639
    %v2672 = vunpack.c.l.b16 %v2640
    %v2673 = vpack.c.b16 %v2658, %v2657
    %v2674 = vpack.c.b16 %v2660, %v2659
    %v2675 = vpack.c.b16 %v2662, %v2661
    %v2676 = vpack.c.b16 %v2664, %v2663
    %v2677 = vpack.c.b16 %v2666, %v2665
    %v2678 = vpack.c.b16 %v2668, %v2667
    %v2679 = vpack.c.b16 %v2670, %v2669
    %v2680 = vpack.c.b16 %v2672, %v2671
    %2689 = vmatpush.bf16.msra.mxu0 %v2680
    %2690 = vmatpush.bf16.msra.mxu0 %v2679
    %2691 = vmatpush.bf16.msra.mxu0 %v2678
    %2692 = vmatpush.bf16.msra.mxu0 %v2677
    %2693 = vmatpush.bf16.msra.mxu0 %v2676
    %2694 = vmatpush.bf16.msra.mxu0 %v2675
    %2695 = vmatpush.bf16.msra.mxu0 %v2674
    %2696 = vmatpush.bf16.msra.mxu0 %v2673
    %2697 = vmatmul.bf16.gmra.mxu0 %v2622
    %v2698 = vpop.f32.mrf.mxu0
    %v2699 = vadd.f32 0.0, %v2698
    %v2700 = vpop.f32.mrf.mxu0
    %v2701 = vadd.f32 0.0, %v2700
    %2702 = vmatmul.bf16.gmra.mxu0 %v2623
    %v2703 = vpop.f32.mrf.mxu0
    %v2704 = vadd.f32 0.0, %v2703
    %v2705 = vpop.f32.mrf.mxu0
    %v2706 = vadd.f32 0.0, %v2705
    %2707 = vdwg.mxu0
    %v2708 = vadd.f32 %v2573, %v2699
    %v2709 = vadd.f32 %v2575, %v2701
    %v2710 = vadd.f32 %v2578, %v2704
    %v2711 = vadd.f32 %v2580, %v2706
    %s2712 = scalar_lea.vmem %s6, 48
    %v2713 = vld [vmem:[%s2712] sm:$0xf]
    %v2714 = vld [vmem:[%s2712 + $0x4] sm:$0xf]
    %v2715 = vld [vmem:[%s2712 + $0x8] sm:$0xf]
    %v2716 = vld [vmem:[%s2712 + $0xc] sm:$0xf]
    %v2721 = vunpack.c.l.b16 %v2713
    %v2722 = vunpack.c.l.b16 %v2714
    %v2723 = vunpack.c.l.b16 %v2715
    %v2724 = vunpack.c.l.b16 %v2716
    %v2725 = vpack.c.b16 %v2722, %v2721
    %v2726 = vpack.c.b16 %v2724, %v2723
    %v2728 = vsel %vm2345, %v2725, 0
    %v2731 = vsel %vm2345, %v2726, 0
    %2733 = vmatpush.bf16.msra.mxu0 0
    %2734 = vmatpush.bf16.msra.mxu0 0
    %2735 = vmatpush.bf16.msra.mxu0 0
    %2736 = vmatpush.bf16.msra.mxu0 0
    %2737 = vmatpush.bf16.msra.mxu0 0
    %2738 = vmatpush.bf16.msra.mxu0 0
    %2739 = vmatpush.bf16.msra.mxu0 %v2330
    %2740 = vmatpush.bf16.msra.mxu0 %v2329
    %2741 = vmatmul.bf16.gmra.mxu0 %v2728
    %v2742 = vpop.f32.mrf.mxu0
    %v2743 = vadd.f32 0.0, %v2742
    %v2744 = vpop.f32.mrf.mxu0
    %v2745 = vadd.f32 0.0, %v2744
    %2746 = vmatmul.bf16.gmra.mxu0 %v2731
    %v2747 = vpop.f32.mrf.mxu0
    %v2748 = vadd.f32 0.0, %v2747
    %v2749 = vpop.f32.mrf.mxu0
    %v2750 = vadd.f32 0.0, %v2749
    %2751 = vdwg.mxu0
    %v2752 = vpack.c.bf16 %v2745, %v2743
    %v2753 = vpack.c.bf16 %v2750, %v2748
    %s2754 = scalar_lea.vmem %s7, 192
    %v2755 = vld [vmem:[%s2754] sm:$0xf]
    %v2756 = vld [vmem:[%s2754 + $0x4] sm:$0xf]
    %v2757 = vld [vmem:[%s2754 + $0x8] sm:$0xf]
    %v2758 = vld [vmem:[%s2754 + $0xc] sm:$0xf]
    %v2759 = vld [vmem:[%s2754 + $0x10] sm:$0xf]
    %v2760 = vld [vmem:[%s2754 + $0x14] sm:$0xf]
    %v2761 = vld [vmem:[%s2754 + $0x18] sm:$0xf]
    %v2762 = vld [vmem:[%s2754 + $0x1c] sm:$0xf]
    %v2763 = vld [vmem:[%s2754 + $0x20] sm:$0xf]
    %v2764 = vld [vmem:[%s2754 + $0x24] sm:$0xf]
    %v2765 = vld [vmem:[%s2754 + $0x28] sm:$0xf]
    %v2766 = vld [vmem:[%s2754 + $0x2c] sm:$0xf]
    %v2767 = vld [vmem:[%s2754 + $0x30] sm:$0xf]
    %v2768 = vld [vmem:[%s2754 + $0x34] sm:$0xf]
    %v2769 = vld [vmem:[%s2754 + $0x38] sm:$0xf]
    %v2770 = vld [vmem:[%s2754 + $0x3c] sm:$0xf]
    %v2787 = vunpack.c.l.b16 %v2755
    %v2788 = vunpack.c.l.b16 %v2756
    %v2789 = vunpack.c.l.b16 %v2757
    %v2790 = vunpack.c.l.b16 %v2758
    %v2791 = vunpack.c.l.b16 %v2759
    %v2792 = vunpack.c.l.b16 %v2760
    %v2793 = vunpack.c.l.b16 %v2761
    %v2794 = vunpack.c.l.b16 %v2762
    %v2795 = vunpack.c.l.b16 %v2763
    %v2796 = vunpack.c.l.b16 %v2764
    %v2797 = vunpack.c.l.b16 %v2765
    %v2798 = vunpack.c.l.b16 %v2766
    %v2799 = vunpack.c.l.b16 %v2767
    %v2800 = vunpack.c.l.b16 %v2768
    %v2801 = vunpack.c.l.b16 %v2769
    %v2802 = vunpack.c.l.b16 %v2770
    %v2803 = vpack.c.b16 %v2788, %v2787
    %v2804 = vpack.c.b16 %v2790, %v2789
    %v2805 = vpack.c.b16 %v2792, %v2791
    %v2806 = vpack.c.b16 %v2794, %v2793
    %v2807 = vpack.c.b16 %v2796, %v2795
    %v2808 = vpack.c.b16 %v2798, %v2797
    %v2809 = vpack.c.b16 %v2800, %v2799
    %v2810 = vpack.c.b16 %v2802, %v2801
    %2819 = vmatpush.bf16.msra.mxu0 %v2810
    %2820 = vmatpush.bf16.msra.mxu0 %v2809
    %2821 = vmatpush.bf16.msra.mxu0 %v2808
    %2822 = vmatpush.bf16.msra.mxu0 %v2807
    %2823 = vmatpush.bf16.msra.mxu0 %v2806
    %2824 = vmatpush.bf16.msra.mxu0 %v2805
    %2825 = vmatpush.bf16.msra.mxu0 %v2804
    %2826 = vmatpush.bf16.msra.mxu0 %v2803
    %2827 = vmatmul.bf16.gmra.mxu0 %v2752
    %v2828 = vpop.f32.mrf.mxu0
    %v2829 = vadd.f32 0.0, %v2828
    %v2830 = vpop.f32.mrf.mxu0
    %v2831 = vadd.f32 0.0, %v2830
    %2832 = vmatmul.bf16.gmra.mxu0 %v2753
    %v2833 = vpop.f32.mrf.mxu0
    %v2834 = vadd.f32 0.0, %v2833
    %v2835 = vpop.f32.mrf.mxu0
    %v2836 = vadd.f32 0.0, %v2835
    %2837 = vdwg.mxu0
    %v2838 = vadd.f32 %v2708, %v2829
    %v2839 = vadd.f32 %v2709, %v2831
    %v2840 = vadd.f32 %v2710, %v2834
    %v2841 = vadd.f32 %v2711, %v2836
    %s2842 = scalar_lea.vmem %s6, 64
    %v2843 = vld [vmem:[%s2842] sm:$0xf]
    %v2844 = vld [vmem:[%s2842 + $0x4] sm:$0xf]
    %v2845 = vld [vmem:[%s2842 + $0x8] sm:$0xf]
    %v2846 = vld [vmem:[%s2842 + $0xc] sm:$0xf]
    %v2851 = vunpack.c.l.b16 %v2843
    %v2852 = vunpack.c.l.b16 %v2844
    %v2853 = vunpack.c.l.b16 %v2845
    %v2854 = vunpack.c.l.b16 %v2846
    %v2855 = vpack.c.b16 %v2852, %v2851
    %v2856 = vpack.c.b16 %v2854, %v2853
    %v2858 = vsel %vm2345, %v2855, 0
    %v2861 = vsel %vm2345, %v2856, 0
    %2863 = vmatpush.bf16.msra.mxu0 0
    %2864 = vmatpush.bf16.msra.mxu0 0
    %2865 = vmatpush.bf16.msra.mxu0 0
    %2866 = vmatpush.bf16.msra.mxu0 0
    %2867 = vmatpush.bf16.msra.mxu0 0
    %2868 = vmatpush.bf16.msra.mxu0 0
    %2869 = vmatpush.bf16.msra.mxu0 %v2330
    %2870 = vmatpush.bf16.msra.mxu0 %v2329
    %2871 = vmatmul.bf16.gmra.mxu0 %v2858
    %v2872 = vpop.f32.mrf.mxu0
    %v2873 = vadd.f32 0.0, %v2872
    %v2874 = vpop.f32.mrf.mxu0
    %v2875 = vadd.f32 0.0, %v2874
    %2876 = vmatmul.bf16.gmra.mxu0 %v2861
    %v2877 = vpop.f32.mrf.mxu0
    %v2878 = vadd.f32 0.0, %v2877
    %v2879 = vpop.f32.mrf.mxu0
    %v2880 = vadd.f32 0.0, %v2879
    %2881 = vdwg.mxu0
    %v2882 = vpack.c.bf16 %v2875, %v2873
    %v2883 = vpack.c.bf16 %v2880, %v2878
    %s2884 = scalar_lea.vmem %s7, 256
    %v2885 = vld [vmem:[%s2884] sm:$0xf]
    %v2886 = vld [vmem:[%s2884 + $0x4] sm:$0xf]
    %v2887 = vld [vmem:[%s2884 + $0x8] sm:$0xf]
    %v2888 = vld [vmem:[%s2884 + $0xc] sm:$0xf]
    %v2889 = vld [vmem:[%s2884 + $0x10] sm:$0xf]
    %v2890 = vld [vmem:[%s2884 + $0x14] sm:$0xf]
    %v2891 = vld [vmem:[%s2884 + $0x18] sm:$0xf]
    %v2892 = vld [vmem:[%s2884 + $0x1c] sm:$0xf]
    %v2893 = vld [vmem:[%s2884 + $0x20] sm:$0xf]
    %v2894 = vld [vmem:[%s2884 + $0x24] sm:$0xf]
    %v2895 = vld [vmem:[%s2884 + $0x28] sm:$0xf]
    %v2896 = vld [vmem:[%s2884 + $0x2c] sm:$0xf]
    %v2897 = vld [vmem:[%s2884 + $0x30] sm:$0xf]
    %v2898 = vld [vmem:[%s2884 + $0x34] sm:$0xf]
    %v2899 = vld [vmem:[%s2884 + $0x38] sm:$0xf]
    %v2900 = vld [vmem:[%s2884 + $0x3c] sm:$0xf]
    %v2917 = vunpack.c.l.b16 %v2885
    %v2918 = vunpack.c.l.b16 %v2886
    %v2919 = vunpack.c.l.b16 %v2887
    %v2920 = vunpack.c.l.b16 %v2888
    %v2921 = vunpack.c.l.b16 %v2889
    %v2922 = vunpack.c.l.b16 %v2890
    %v2923 = vunpack.c.l.b16 %v2891
    %v2924 = vunpack.c.l.b16 %v2892
    %v2925 = vunpack.c.l.b16 %v2893
    %v2926 = vunpack.c.l.b16 %v2894
    %v2927 = vunpack.c.l.b16 %v2895
    %v2928 = vunpack.c.l.b16 %v2896
    %v2929 = vunpack.c.l.b16 %v2897
    %v2930 = vunpack.c.l.b16 %v2898
    %v2931 = vunpack.c.l.b16 %v2899
    %v2932 = vunpack.c.l.b16 %v2900
    %v2933 = vpack.c.b16 %v2918, %v2917
    %v2934 = vpack.c.b16 %v2920, %v2919
    %v2935 = vpack.c.b16 %v2922, %v2921
    %v2936 = vpack.c.b16 %v2924, %v2923
    %v2937 = vpack.c.b16 %v2926, %v2925
    %v2938 = vpack.c.b16 %v2928, %v2927
    %v2939 = vpack.c.b16 %v2930, %v2929
    %v2940 = vpack.c.b16 %v2932, %v2931
    %2949 = vmatpush.bf16.msra.mxu0 %v2940
    %2950 = vmatpush.bf16.msra.mxu0 %v2939
    %2951 = vmatpush.bf16.msra.mxu0 %v2938
    %2952 = vmatpush.bf16.msra.mxu0 %v2937
    %2953 = vmatpush.bf16.msra.mxu0 %v2936
    %2954 = vmatpush.bf16.msra.mxu0 %v2935
    %2955 = vmatpush.bf16.msra.mxu0 %v2934
    %2956 = vmatpush.bf16.msra.mxu0 %v2933
    %2957 = vmatmul.bf16.gmra.mxu0 %v2882
    %v2958 = vpop.f32.mrf.mxu0
    %v2959 = vadd.f32 0.0, %v2958
    %v2960 = vpop.f32.mrf.mxu0
    %v2961 = vadd.f32 0.0, %v2960
    %2962 = vmatmul.bf16.gmra.mxu0 %v2883
    %v2963 = vpop.f32.mrf.mxu0
    %v2964 = vadd.f32 0.0, %v2963
    %v2965 = vpop.f32.mrf.mxu0
    %v2966 = vadd.f32 0.0, %v2965
    %2967 = vdwg.mxu0
    %v2968 = vadd.f32 %v2838, %v2959
    %v2969 = vadd.f32 %v2839, %v2961
    %v2970 = vadd.f32 %v2840, %v2964
    %v2971 = vadd.f32 %v2841, %v2966
    %s2972 = scalar_lea.vmem %s6, 80
    %v2973 = vld [vmem:[%s2972] sm:$0xf]
    %v2974 = vld [vmem:[%s2972 + $0x4] sm:$0xf]
    %v2975 = vld [vmem:[%s2972 + $0x8] sm:$0xf]
    %v2976 = vld [vmem:[%s2972 + $0xc] sm:$0xf]
    %v2981 = vunpack.c.l.b16 %v2973
    %v2982 = vunpack.c.l.b16 %v2974
    %v2983 = vunpack.c.l.b16 %v2975
    %v2984 = vunpack.c.l.b16 %v2976
    %v2985 = vpack.c.b16 %v2982, %v2981
    %v2986 = vpack.c.b16 %v2984, %v2983
    %v2988 = vsel %vm2345, %v2985, 0
    %v2991 = vsel %vm2345, %v2986, 0
    %2993 = vmatpush.bf16.msra.mxu0 0
    %2994 = vmatpush.bf16.msra.mxu0 0
    %2995 = vmatpush.bf16.msra.mxu0 0
    %2996 = vmatpush.bf16.msra.mxu0 0
    %2997 = vmatpush.bf16.msra.mxu0 0
    %2998 = vmatpush.bf16.msra.mxu0 0
    %2999 = vmatpush.bf16.msra.mxu0 %v2330
    %3000 = vmatpush.bf16.msra.mxu0 %v2329
    %3001 = vmatmul.bf16.gmra.mxu0 %v2988
    %v3002 = vpop.f32.mrf.mxu0
    %v3003 = vadd.f32 0.0, %v3002
    %v3004 = vpop.f32.mrf.mxu0
    %v3005 = vadd.f32 0.0, %v3004
    %3006 = vmatmul.bf16.gmra.mxu0 %v2991
    %v3007 = vpop.f32.mrf.mxu0
    %v3008 = vadd.f32 0.0, %v3007
    %v3009 = vpop.f32.mrf.mxu0
    %v3010 = vadd.f32 0.0, %v3009
    %3011 = vdwg.mxu0
    %v3012 = vpack.c.bf16 %v3005, %v3003
    %v3013 = vpack.c.bf16 %v3010, %v3008
    %s3014 = scalar_lea.vmem %s7, 320
    %v3015 = vld [vmem:[%s3014] sm:$0xf]
    %v3016 = vld [vmem:[%s3014 + $0x4] sm:$0xf]
    %v3017 = vld [vmem:[%s3014 + $0x8] sm:$0xf]
    %v3018 = vld [vmem:[%s3014 + $0xc] sm:$0xf]
    %v3019 = vld [vmem:[%s3014 + $0x10] sm:$0xf]
    %v3020 = vld [vmem:[%s3014 + $0x14] sm:$0xf]
    %v3021 = vld [vmem:[%s3014 + $0x18] sm:$0xf]
    %v3022 = vld [vmem:[%s3014 + $0x1c] sm:$0xf]
    %v3023 = vld [vmem:[%s3014 + $0x20] sm:$0xf]
    %v3024 = vld [vmem:[%s3014 + $0x24] sm:$0xf]
    %v3025 = vld [vmem:[%s3014 + $0x28] sm:$0xf]
    %v3026 = vld [vmem:[%s3014 + $0x2c] sm:$0xf]
    %v3027 = vld [vmem:[%s3014 + $0x30] sm:$0xf]
    %v3028 = vld [vmem:[%s3014 + $0x34] sm:$0xf]
    %v3029 = vld [vmem:[%s3014 + $0x38] sm:$0xf]
    %v3030 = vld [vmem:[%s3014 + $0x3c] sm:$0xf]
    %v3047 = vunpack.c.l.b16 %v3015
    %v3048 = vunpack.c.l.b16 %v3016
    %v3049 = vunpack.c.l.b16 %v3017
    %v3050 = vunpack.c.l.b16 %v3018
    %v3051 = vunpack.c.l.b16 %v3019
    %v3052 = vunpack.c.l.b16 %v3020
    %v3053 = vunpack.c.l.b16 %v3021
    %v3054 = vunpack.c.l.b16 %v3022
    %v3055 = vunpack.c.l.b16 %v3023
    %v3056 = vunpack.c.l.b16 %v3024
    %v3057 = vunpack.c.l.b16 %v3025
    %v3058 = vunpack.c.l.b16 %v3026
    %v3059 = vunpack.c.l.b16 %v3027
    %v3060 = vunpack.c.l.b16 %v3028
    %v3061 = vunpack.c.l.b16 %v3029
    %v3062 = vunpack.c.l.b16 %v3030
    %v3063 = vpack.c.b16 %v3048, %v3047
    %v3064 = vpack.c.b16 %v3050, %v3049
    %v3065 = vpack.c.b16 %v3052, %v3051
    %v3066 = vpack.c.b16 %v3054, %v3053
    %v3067 = vpack.c.b16 %v3056, %v3055
    %v3068 = vpack.c.b16 %v3058, %v3057
    %v3069 = vpack.c.b16 %v3060, %v3059
    %v3070 = vpack.c.b16 %v3062, %v3061
    %3079 = vmatpush.bf16.msra.mxu0 %v3070
    %3080 = vmatpush.bf16.msra.mxu0 %v3069
    %3081 = vmatpush.bf16.msra.mxu0 %v3068
    %3082 = vmatpush.bf16.msra.mxu0 %v3067
    %3083 = vmatpush.bf16.msra.mxu0 %v3066
    %3084 = vmatpush.bf16.msra.mxu0 %v3065
    %3085 = vmatpush.bf16.msra.mxu0 %v3064
    %3086 = vmatpush.bf16.msra.mxu0 %v3063
    %3087 = vmatmul.bf16.gmra.mxu0 %v3012
    %v3088 = vpop.f32.mrf.mxu0
    %v3089 = vadd.f32 0.0, %v3088
    %v3090 = vpop.f32.mrf.mxu0
    %v3091 = vadd.f32 0.0, %v3090
    %3092 = vmatmul.bf16.gmra.mxu0 %v3013
    %v3093 = vpop.f32.mrf.mxu0
    %v3094 = vadd.f32 0.0, %v3093
    %v3095 = vpop.f32.mrf.mxu0
    %v3096 = vadd.f32 0.0, %v3095
    %3097 = vdwg.mxu0
    %v3098 = vadd.f32 %v2968, %v3089
    %v3099 = vadd.f32 %v2969, %v3091
    %v3100 = vadd.f32 %v2970, %v3094
    %v3101 = vadd.f32 %v2971, %v3096
    %s3102 = scalar_lea.vmem %s6, 96
    %v3103 = vld [vmem:[%s3102] sm:$0xf]
    %v3104 = vld [vmem:[%s3102 + $0x4] sm:$0xf]
    %v3105 = vld [vmem:[%s3102 + $0x8] sm:$0xf]
    %v3106 = vld [vmem:[%s3102 + $0xc] sm:$0xf]
    %v3111 = vunpack.c.l.b16 %v3103
    %v3112 = vunpack.c.l.b16 %v3104
    %v3113 = vunpack.c.l.b16 %v3105
    %v3114 = vunpack.c.l.b16 %v3106
    %v3115 = vpack.c.b16 %v3112, %v3111
    %v3116 = vpack.c.b16 %v3114, %v3113
    %v3118 = vsel %vm2345, %v3115, 0
    %v3121 = vsel %vm2345, %v3116, 0
    %3123 = vmatpush.bf16.msra.mxu0 0
    %3124 = vmatpush.bf16.msra.mxu0 0
    %3125 = vmatpush.bf16.msra.mxu0 0
    %3126 = vmatpush.bf16.msra.mxu0 0
    %3127 = vmatpush.bf16.msra.mxu0 0
    %3128 = vmatpush.bf16.msra.mxu0 0
    %3129 = vmatpush.bf16.msra.mxu0 %v2330
    %3130 = vmatpush.bf16.msra.mxu0 %v2329
    %3131 = vmatmul.bf16.gmra.mxu0 %v3118
    %v3132 = vpop.f32.mrf.mxu0
    %v3133 = vadd.f32 0.0, %v3132
    %v3134 = vpop.f32.mrf.mxu0
    %v3135 = vadd.f32 0.0, %v3134
    %3136 = vmatmul.bf16.gmra.mxu0 %v3121
    %v3137 = vpop.f32.mrf.mxu0
    %v3138 = vadd.f32 0.0, %v3137
    %v3139 = vpop.f32.mrf.mxu0
    %v3140 = vadd.f32 0.0, %v3139
    %3141 = vdwg.mxu0
    %v3142 = vpack.c.bf16 %v3135, %v3133
    %v3143 = vpack.c.bf16 %v3140, %v3138
    %s3144 = scalar_lea.vmem %s7, 384
    %v3145 = vld [vmem:[%s3144] sm:$0xf]
    %v3146 = vld [vmem:[%s3144 + $0x4] sm:$0xf]
    %v3147 = vld [vmem:[%s3144 + $0x8] sm:$0xf]
    %v3148 = vld [vmem:[%s3144 + $0xc] sm:$0xf]
    %v3149 = vld [vmem:[%s3144 + $0x10] sm:$0xf]
    %v3150 = vld [vmem:[%s3144 + $0x14] sm:$0xf]
    %v3151 = vld [vmem:[%s3144 + $0x18] sm:$0xf]
    %v3152 = vld [vmem:[%s3144 + $0x1c] sm:$0xf]
    %v3153 = vld [vmem:[%s3144 + $0x20] sm:$0xf]
    %v3154 = vld [vmem:[%s3144 + $0x24] sm:$0xf]
    %v3155 = vld [vmem:[%s3144 + $0x28] sm:$0xf]
    %v3156 = vld [vmem:[%s3144 + $0x2c] sm:$0xf]
    %v3157 = vld [vmem:[%s3144 + $0x30] sm:$0xf]
    %v3158 = vld [vmem:[%s3144 + $0x34] sm:$0xf]
    %v3159 = vld [vmem:[%s3144 + $0x38] sm:$0xf]
    %v3160 = vld [vmem:[%s3144 + $0x3c] sm:$0xf]
    %v3177 = vunpack.c.l.b16 %v3145
    %v3178 = vunpack.c.l.b16 %v3146
    %v3179 = vunpack.c.l.b16 %v3147
    %v3180 = vunpack.c.l.b16 %v3148
    %v3181 = vunpack.c.l.b16 %v3149
    %v3182 = vunpack.c.l.b16 %v3150
    %v3183 = vunpack.c.l.b16 %v3151
    %v3184 = vunpack.c.l.b16 %v3152
    %v3185 = vunpack.c.l.b16 %v3153
    %v3186 = vunpack.c.l.b16 %v3154
    %v3187 = vunpack.c.l.b16 %v3155
    %v3188 = vunpack.c.l.b16 %v3156
    %v3189 = vunpack.c.l.b16 %v3157
    %v3190 = vunpack.c.l.b16 %v3158
    %v3191 = vunpack.c.l.b16 %v3159
    %v3192 = vunpack.c.l.b16 %v3160
    %v3193 = vpack.c.b16 %v3178, %v3177
    %v3194 = vpack.c.b16 %v3180, %v3179
    %v3195 = vpack.c.b16 %v3182, %v3181
    %v3196 = vpack.c.b16 %v3184, %v3183
    %v3197 = vpack.c.b16 %v3186, %v3185
    %v3198 = vpack.c.b16 %v3188, %v3187
    %v3199 = vpack.c.b16 %v3190, %v3189
    %v3200 = vpack.c.b16 %v3192, %v3191
    %3209 = vmatpush.bf16.msra.mxu0 %v3200
    %3210 = vmatpush.bf16.msra.mxu0 %v3199
    %3211 = vmatpush.bf16.msra.mxu0 %v3198
    %3212 = vmatpush.bf16.msra.mxu0 %v3197
    %3213 = vmatpush.bf16.msra.mxu0 %v3196
    %3214 = vmatpush.bf16.msra.mxu0 %v3195
    %3215 = vmatpush.bf16.msra.mxu0 %v3194
    %3216 = vmatpush.bf16.msra.mxu0 %v3193
    %3217 = vmatmul.bf16.gmra.mxu0 %v3142
    %v3218 = vpop.f32.mrf.mxu0
    %v3219 = vadd.f32 0.0, %v3218
    %v3220 = vpop.f32.mrf.mxu0
    %v3221 = vadd.f32 0.0, %v3220
    %3222 = vmatmul.bf16.gmra.mxu0 %v3143
    %v3223 = vpop.f32.mrf.mxu0
    %v3224 = vadd.f32 0.0, %v3223
    %v3225 = vpop.f32.mrf.mxu0
    %v3226 = vadd.f32 0.0, %v3225
    %3227 = vdwg.mxu0
    %v3228 = vadd.f32 %v3098, %v3219
    %v3229 = vadd.f32 %v3099, %v3221
    %v3230 = vadd.f32 %v3100, %v3224
    %v3231 = vadd.f32 %v3101, %v3226
    %s3232 = scalar_lea.vmem %s6, 112
    %v3233 = vld [vmem:[%s3232] sm:$0xf]
    %v3234 = vld [vmem:[%s3232 + $0x4] sm:$0xf]
    %v3235 = vld [vmem:[%s3232 + $0x8] sm:$0xf]
    %v3236 = vld [vmem:[%s3232 + $0xc] sm:$0xf]
    %v3241 = vunpack.c.l.b16 %v3233
    %v3242 = vunpack.c.l.b16 %v3234
    %v3243 = vunpack.c.l.b16 %v3235
    %v3244 = vunpack.c.l.b16 %v3236
    %v3245 = vpack.c.b16 %v3242, %v3241
    %v3246 = vpack.c.b16 %v3244, %v3243
    %v3248 = vsel %vm2345, %v3245, 0
    %v3251 = vsel %vm2345, %v3246, 0
    %3253 = vmatpush.bf16.msra.mxu0 0
    %3254 = vmatpush.bf16.msra.mxu0 0
    %3255 = vmatpush.bf16.msra.mxu0 0
    %3256 = vmatpush.bf16.msra.mxu0 0
    %3257 = vmatpush.bf16.msra.mxu0 0
    %3258 = vmatpush.bf16.msra.mxu0 0
    %3259 = vmatpush.bf16.msra.mxu0 %v2330
    %3260 = vmatpush.bf16.msra.mxu0 %v2329
    %3261 = vmatmul.bf16.gmra.mxu0 %v3248
    %v3262 = vpop.f32.mrf.mxu0
    %v3263 = vadd.f32 0.0, %v3262
    %v3264 = vpop.f32.mrf.mxu0
    %v3265 = vadd.f32 0.0, %v3264
    %3266 = vmatmul.bf16.gmra.mxu0 %v3251
    %v3267 = vpop.f32.mrf.mxu0
    %v3268 = vadd.f32 0.0, %v3267
    %v3269 = vpop.f32.mrf.mxu0
    %v3270 = vadd.f32 0.0, %v3269
    %3271 = vdwg.mxu0
    %v3272 = vpack.c.bf16 %v3265, %v3263
    %v3273 = vpack.c.bf16 %v3270, %v3268
    %s3274 = scalar_lea.vmem %s7, 448
    %v3275 = vld [vmem:[%s3274] sm:$0xf]
    %v3276 = vld [vmem:[%s3274 + $0x4] sm:$0xf]
    %v3277 = vld [vmem:[%s3274 + $0x8] sm:$0xf]
    %v3278 = vld [vmem:[%s3274 + $0xc] sm:$0xf]
    %v3279 = vld [vmem:[%s3274 + $0x10] sm:$0xf]
    %v3280 = vld [vmem:[%s3274 + $0x14] sm:$0xf]
    %v3281 = vld [vmem:[%s3274 + $0x18] sm:$0xf]
    %v3282 = vld [vmem:[%s3274 + $0x1c] sm:$0xf]
    %v3283 = vld [vmem:[%s3274 + $0x20] sm:$0xf]
    %v3284 = vld [vmem:[%s3274 + $0x24] sm:$0xf]
    %v3285 = vld [vmem:[%s3274 + $0x28] sm:$0xf]
    %v3286 = vld [vmem:[%s3274 + $0x2c] sm:$0xf]
    %v3287 = vld [vmem:[%s3274 + $0x30] sm:$0xf]
    %v3288 = vld [vmem:[%s3274 + $0x34] sm:$0xf]
    %v3289 = vld [vmem:[%s3274 + $0x38] sm:$0xf]
    %v3290 = vld [vmem:[%s3274 + $0x3c] sm:$0xf]
    %v3307 = vunpack.c.l.b16 %v3275
    %v3308 = vunpack.c.l.b16 %v3276
    %v3309 = vunpack.c.l.b16 %v3277
    %v3310 = vunpack.c.l.b16 %v3278
    %v3311 = vunpack.c.l.b16 %v3279
    %v3312 = vunpack.c.l.b16 %v3280
    %v3313 = vunpack.c.l.b16 %v3281
    %v3314 = vunpack.c.l.b16 %v3282
    %v3315 = vunpack.c.l.b16 %v3283
    %v3316 = vunpack.c.l.b16 %v3284
    %v3317 = vunpack.c.l.b16 %v3285
    %v3318 = vunpack.c.l.b16 %v3286
    %v3319 = vunpack.c.l.b16 %v3287
    %v3320 = vunpack.c.l.b16 %v3288
    %v3321 = vunpack.c.l.b16 %v3289
    %v3322 = vunpack.c.l.b16 %v3290
    %v3323 = vpack.c.b16 %v3308, %v3307
    %v3324 = vpack.c.b16 %v3310, %v3309
    %v3325 = vpack.c.b16 %v3312, %v3311
    %v3326 = vpack.c.b16 %v3314, %v3313
    %v3327 = vpack.c.b16 %v3316, %v3315
    %v3328 = vpack.c.b16 %v3318, %v3317
    %v3329 = vpack.c.b16 %v3320, %v3319
    %v3330 = vpack.c.b16 %v3322, %v3321
    %3339 = vmatpush.bf16.msra.mxu0 %v3330
    %3340 = vmatpush.bf16.msra.mxu0 %v3329
    %3341 = vmatpush.bf16.msra.mxu0 %v3328
    %3342 = vmatpush.bf16.msra.mxu0 %v3327
    %3343 = vmatpush.bf16.msra.mxu0 %v3326
    %3344 = vmatpush.bf16.msra.mxu0 %v3325
    %3345 = vmatpush.bf16.msra.mxu0 %v3324
    %3346 = vmatpush.bf16.msra.mxu0 %v3323
    %3347 = vmatmul.bf16.gmra.mxu0 %v3272
    %v3348 = vpop.f32.mrf.mxu0
    %v3349 = vadd.f32 0.0, %v3348
    %v3350 = vpop.f32.mrf.mxu0
    %v3351 = vadd.f32 0.0, %v3350
    %3352 = vmatmul.bf16.gmra.mxu0 %v3273
    %v3353 = vpop.f32.mrf.mxu0
    %v3354 = vadd.f32 0.0, %v3353
    %v3355 = vpop.f32.mrf.mxu0
    %v3356 = vadd.f32 0.0, %v3355
    %3357 = vdwg.mxu0
    %v3358 = vadd.f32 %v3228, %v3349
    %v3359 = vadd.f32 %v3229, %v3351
    %v3360 = vadd.f32 %v3230, %v3354
    %v3361 = vadd.f32 %v3231, %v3356
    %s3362 = scalar_lea.vmem %s6, 128
    %v3363 = vld [vmem:[%s3362] sm:$0xf]
    %v3364 = vld [vmem:[%s3362 + $0x4] sm:$0xf]
    %v3365 = vld [vmem:[%s3362 + $0x8] sm:$0xf]
    %v3366 = vld [vmem:[%s3362 + $0xc] sm:$0xf]
    %v3371 = vunpack.c.l.b16 %v3363
    %v3372 = vunpack.c.l.b16 %v3364
    %v3373 = vunpack.c.l.b16 %v3365
    %v3374 = vunpack.c.l.b16 %v3366
    %v3375 = vpack.c.b16 %v3372, %v3371
    %v3376 = vpack.c.b16 %v3374, %v3373
    %v3378 = vsel %vm2345, %v3375, 0
    %v3381 = vsel %vm2345, %v3376, 0
    %3383 = vmatpush.bf16.msra.mxu0 0
    %3384 = vmatpush.bf16.msra.mxu0 0
    %3385 = vmatpush.bf16.msra.mxu0 0
    %3386 = vmatpush.bf16.msra.mxu0 0
    %3387 = vmatpush.bf16.msra.mxu0 0
    %3388 = vmatpush.bf16.msra.mxu0 0
    %3389 = vmatpush.bf16.msra.mxu0 %v2330
    %3390 = vmatpush.bf16.msra.mxu0 %v2329
    %3391 = vmatmul.bf16.gmra.mxu0 %v3378
    %v3392 = vpop.f32.mrf.mxu0
    %v3393 = vadd.f32 0.0, %v3392
    %v3394 = vpop.f32.mrf.mxu0
    %v3395 = vadd.f32 0.0, %v3394
    %3396 = vmatmul.bf16.gmra.mxu0 %v3381
    %v3397 = vpop.f32.mrf.mxu0
    %v3398 = vadd.f32 0.0, %v3397
    %v3399 = vpop.f32.mrf.mxu0
    %v3400 = vadd.f32 0.0, %v3399
    %3401 = vdwg.mxu0
    %v3402 = vpack.c.bf16 %v3395, %v3393
    %v3403 = vpack.c.bf16 %v3400, %v3398
    %s3404 = scalar_lea.vmem %s7, 512
    %v3405 = vld [vmem:[%s3404] sm:$0xf]
    %v3406 = vld [vmem:[%s3404 + $0x4] sm:$0xf]
    %v3407 = vld [vmem:[%s3404 + $0x8] sm:$0xf]
    %v3408 = vld [vmem:[%s3404 + $0xc] sm:$0xf]
    %v3409 = vld [vmem:[%s3404 + $0x10] sm:$0xf]
    %v3410 = vld [vmem:[%s3404 + $0x14] sm:$0xf]
    %v3411 = vld [vmem:[%s3404 + $0x18] sm:$0xf]
    %v3412 = vld [vmem:[%s3404 + $0x1c] sm:$0xf]
    %v3413 = vld [vmem:[%s3404 + $0x20] sm:$0xf]
    %v3414 = vld [vmem:[%s3404 + $0x24] sm:$0xf]
    %v3415 = vld [vmem:[%s3404 + $0x28] sm:$0xf]
    %v3416 = vld [vmem:[%s3404 + $0x2c] sm:$0xf]
    %v3417 = vld [vmem:[%s3404 + $0x30] sm:$0xf]
    %v3418 = vld [vmem:[%s3404 + $0x34] sm:$0xf]
    %v3419 = vld [vmem:[%s3404 + $0x38] sm:$0xf]
    %v3420 = vld [vmem:[%s3404 + $0x3c] sm:$0xf]
    %v3437 = vunpack.c.l.b16 %v3405
    %v3438 = vunpack.c.l.b16 %v3406
    %v3439 = vunpack.c.l.b16 %v3407
    %v3440 = vunpack.c.l.b16 %v3408
    %v3441 = vunpack.c.l.b16 %v3409
    %v3442 = vunpack.c.l.b16 %v3410
    %v3443 = vunpack.c.l.b16 %v3411
    %v3444 = vunpack.c.l.b16 %v3412
    %v3445 = vunpack.c.l.b16 %v3413
    %v3446 = vunpack.c.l.b16 %v3414
    %v3447 = vunpack.c.l.b16 %v3415
    %v3448 = vunpack.c.l.b16 %v3416
    %v3449 = vunpack.c.l.b16 %v3417
    %v3450 = vunpack.c.l.b16 %v3418
    %v3451 = vunpack.c.l.b16 %v3419
    %v3452 = vunpack.c.l.b16 %v3420
    %v3453 = vpack.c.b16 %v3438, %v3437
    %v3454 = vpack.c.b16 %v3440, %v3439
    %v3455 = vpack.c.b16 %v3442, %v3441
    %v3456 = vpack.c.b16 %v3444, %v3443
    %v3457 = vpack.c.b16 %v3446, %v3445
    %v3458 = vpack.c.b16 %v3448, %v3447
    %v3459 = vpack.c.b16 %v3450, %v3449
    %v3460 = vpack.c.b16 %v3452, %v3451
    %3469 = vmatpush.bf16.msra.mxu0 %v3460
    %3470 = vmatpush.bf16.msra.mxu0 %v3459
    %3471 = vmatpush.bf16.msra.mxu0 %v3458
    %3472 = vmatpush.bf16.msra.mxu0 %v3457
    %3473 = vmatpush.bf16.msra.mxu0 %v3456
    %3474 = vmatpush.bf16.msra.mxu0 %v3455
    %3475 = vmatpush.bf16.msra.mxu0 %v3454
    %3476 = vmatpush.bf16.msra.mxu0 %v3453
    %3477 = vmatmul.bf16.gmra.mxu0 %v3402
    %v3478 = vpop.f32.mrf.mxu0
    %v3479 = vadd.f32 0.0, %v3478
    %v3480 = vpop.f32.mrf.mxu0
    %v3481 = vadd.f32 0.0, %v3480
    %3482 = vmatmul.bf16.gmra.mxu0 %v3403
    %v3483 = vpop.f32.mrf.mxu0
    %v3484 = vadd.f32 0.0, %v3483
    %v3485 = vpop.f32.mrf.mxu0
    %v3486 = vadd.f32 0.0, %v3485
    %3487 = vdwg.mxu0
    %v3488 = vadd.f32 %v3358, %v3479
    %v3489 = vadd.f32 %v3359, %v3481
    %v3490 = vadd.f32 %v3360, %v3484
    %v3491 = vadd.f32 %v3361, %v3486
    %v3492 = vld [vmem:[%s8] sm:$0x1]
    %v3494 = vperm.slane %v3492, 0
    %v3496 = vadd.f32 %v3488, %v3494
    %v3497 = vadd.f32 %v3489, %v3494
    %v3498 = vadd.f32 %v3490, %v3494
    %v3499 = vadd.f32 %v3491, %v3494
    %v3500 = vmul.f32 %v3496, 0.2
    %v3501 = vmul.f32 %v3497, 0.2
    %v3502 = vmul.f32 %v3498, 0.2
    %v3503 = vmul.f32 %v3499, 0.2
    %v3504 = vmax.f32 %v3496, %v3500
    %v3505 = vmax.f32 %v3497, %v3501
    %v3506 = vmax.f32 %v3498, %v3502
    %v3507 = vmax.f32 %v3499, %v3503
    %3508 = vst.msk [vmem:[#allocation2] sm:$0xff] %vm838, %v3504
    %3509 = vst.msk [vmem:[#allocation2 + $0x8] sm:$0xff] %vm838, %v3505
    %3510 = vst.msk [vmem:[#allocation2 + $0x10] sm:$0xff] %vm838, %v3506
    %3511 = vst.msk [vmem:[#allocation2 + $0x18] sm:$0xff] %vm838, %v3507
    // Predicated region
    $region38: #{_lambda_.7} parent=1 // pred_check
      _
    $region39: #{_lambda_.7} parent=1 // pred_check_branch
      %3513 = sbr.rel (0) target = $region41
    $region40: #{_lambda_.7} parent=1 // pred_region
      %3515 = vsyncadd [#allocation3], 0
      %s3516 = sshll.u32 [#allocation2], 4
      %s3517 = int_to_ptr.vmem [resolvable:$true] %s3516
      %s3518 = sshll.u32 %s9, 4
      %s3519 = int_to_ptr.hbm [resolvable:$true] %s3518
      %3524 = dma.vmem_to_hbm [thread:$0]  %s3517, 512, %s3519, [#allocation3], 128, 128, 8
    $region41: #{_lambda_.7} parent=1 // pred_fallthru
      _
    // Predicated region
    $region42: #{_lambda_.7} parent=1 // pred_check
      _
    $region43: #{_lambda_.7} parent=1 // pred_check_branch
      %3526 = sbr.rel (0) target = $region45
    $region44: #{_lambda_.7} parent=1 // pred_region
      %3528 = dma.done [#allocation3], 512
    $region45: #{_lambda_.7} parent=1 // pred_fallthru
      _
    %3529 = vsyncpa [#allocation3], 1

</llo_original>
